<compile_context>
chip_gen: v7x
topology: tpu7x:2x2x1
jax: 0.10.0
libtpu: 0.0.40
codegen_flags: <defaults>
</compile_context>

<pallas_src>
import functools

import jax
import jax.numpy as jnp
from jax import lax
from jax.experimental import pallas as pl
from jax.experimental.pallas import tpu as pltpu


# ----------------------------------------------------------------------------
# Tiny binary-tree structure (stand-in for the repo's BinaryTree)
# ----------------------------------------------------------------------------
class BinaryTree:
    def __init__(self, index, left=None, right=None):
        self.index = index
        self.left_child = left
        self.right_child = right


def flatten_tree(root, num_obj):
    """Pre-order flattening: visit_idx[t] = object index at step t,
    parent_step[t] = visit step of that node's parent (-1 for the root)."""
    visit, parent = [], []

    def rec(node, parent_pos):
        pos = len(visit)
        visit.append(node.index)
        parent.append(parent_pos)
        if node.left_child is not None:
            rec(node.left_child, pos)
        if node.right_child is not None:
            rec(node.right_child, pos)

    rec(root, -1)
    assert len(visit) == num_obj, "tree must cover all objects exactly once"
    return (jnp.asarray(visit, jnp.int32), jnp.asarray(parent, jnp.int32))


# ----------------------------------------------------------------------------
# Single-invocation Pallas kernel: batched prologue + in-kernel tree walk
# ----------------------------------------------------------------------------
def _decoder_kernel(vis_ref, par_ref,                    # SMEM: tree structure
                    feat_ref, embed_ref,                 # VMEM inputs
                    wpxf_ref, wpxe_ref, bpx_ref,
                    wgf_ref, wge_ref, wgh_ref, bg_ref,
                    wout_ref, bout_ref,
                    dist_ref, commit_ref,                # outputs (VMEM / SMEM)
                    h_buf, c_buf, lab_buf,               # per-step state scratch
                    featg_buf, featpx_buf, embg_buf, embpx_buf,  # lookup tables
                    *, num_classes):
    n = vis_ref.shape[0]          # number of visit steps == num_obj
    hdim = wgh_ref.shape[0]
    c_pad = wout_ref.shape[1]

    # ---- prologue: batched projections, full-tile MXU work done once --------
    feats = feat_ref[...]
    featg_buf[...] = (jnp.dot(feats, wgf_ref[...], preferred_element_type=jnp.float32)
                      + bg_ref[...])
    featpx_buf[...] = (jnp.dot(feats, wpxf_ref[...], preferred_element_type=jnp.float32)
                       + bpx_ref[...])
    emb = embed_ref[...]
    embg_buf[...] = jnp.dot(emb, wge_ref[...], preferred_element_type=jnp.float32)
    embpx_buf[...] = jnp.dot(emb, wpxe_ref[...], preferred_element_type=jnp.float32)

    # sentinel "no parent" row: zero (h, c), label row 0 == 'start' embedding
    h_buf[pl.ds(n, 1), :] = jnp.zeros((1, hdim), jnp.float32)
    c_buf[pl.ds(n, 1), :] = jnp.zeros((1, hdim), jnp.float32)
    lab_buf[n] = jnp.int32(0)

    # hoisted constants for the argmax over classes 1..num_classes-1
    col = lax.broadcasted_iota(jnp.int32, (1, c_pad), 1)
    cmask = jnp.where((col >= 1) & (col < num_classes), 0.0, -1e30).astype(jnp.float32)

    # ---- serial recurrence over tree nodes (root -> leaves, pre-order) ------
    def step(t, carry):
        vis = vis_ref[t]                       # object index of this node
        p = par_ref[t]                         # parent's visit step (-1 = root)
        pc = jnp.where(p < 0, n, p)            # sentinel row for the root

        parent_h = h_buf[pl.ds(pc, 1), :]
        parent_c = c_buf[pl.ds(pc, 1), :]
        plab = lab_buf[pc]                     # parent's embedding-table row

        gates = (featg_buf[pl.ds(vis, 1), :]
                 + embg_buf[pl.ds(plab, 1), :]
                 + jnp.dot(parent_h, wgh_ref[...], preferred_element_type=jnp.float32))
        px = featpx_buf[pl.ds(vis, 1), :] + embpx_buf[pl.ds(plab, 1), :]

        i_g = jax.nn.sigmoid(gates[:, 0 * hdim:1 * hdim])
        o_g = jax.nn.sigmoid(gates[:, 1 * hdim:2 * hdim])
        f_g = jax.nn.sigmoid(gates[:, 2 * hdim:3 * hdim])
        u_g = jnp.tanh(gates[:, 3 * hdim:4 * hdim])
        r_g = jax.nn.sigmoid(gates[:, 4 * hdim:5 * hdim])

        c_new = i_g * u_g + f_g * parent_c
        h_new = o_g * jnp.tanh(c_new)
        h_final = r_g * h_new + (1.0 - r_g) * px
        # TODO(synk): training-mode dropout mask and multinomial label sampling
        # are not implemented (eval-mode semantics only).

        dist = (jnp.dot(h_final, wout_ref[...], preferred_element_type=jnp.float32)
                + bout_ref[...])                          # (1, c_pad)
        dist_ref[pl.ds(vis, 1), :] = dist                 # scatter to object order

        # commitment = first-occurrence argmax over classes 1..C-1
        masked = dist + cmask
        mx = jnp.max(masked, axis=-1, keepdims=True)
        label = jnp.min(jnp.where(masked >= mx, col, c_pad)).astype(jnp.int32)

        commit_ref[vis] = label
        lab_buf[t] = label + 1        # embedding table is ['start'] + classes
        h_buf[pl.ds(t, 1), :] = h_final
        c_buf[pl.ds(t, 1), :] = c_new
        return carry

    lax.fori_loop(0, n, step, 0, unroll=True)


# ----------------------------------------------------------------------------
# Wrapper
# ----------------------------------------------------------------------------
def _round_up(x, m):
    return (x + m - 1) // m * m


def decoder_tree_lstm_forward(tree, features, num_obj, params):
    """Returns (out_dists [num_obj, C] f32, out_commitments [num_obj] i32)."""
    visit_idx, parent_step = flatten_tree(tree, num_obj)

    N, F = features.shape
    embed_w = params["embed_w"]                     # (C + 1, E)
    Wpx_f, Wpx_e, b_px = params["Wpx_f"], params["Wpx_e"], params["b_px"]
    Wg_f, Wg_e, Wg_h, b_g = params["Wg_f"], params["Wg_e"], params["Wg_h"], params["b_g"]
    Wout, b_out = params["Wout"], params["b_out"]

    E = embed_w.shape[1]
    R = embed_w.shape[0]                            # C + 1 embedding rows
    H = Wpx_f.shape[1]
    C = Wout.shape[1]

    C_pad = _round_up(C, 128)                       # lane-dense logits
    E_pad = _round_up(E, 128)
    R_pad = _round_up(R, 8)

    f32 = jnp.float32
    embed_p = jnp.zeros((R_pad, E_pad), f32).at[:R, :E].set(embed_w)
    Wpx_e_p = jnp.zeros((E_pad, H), f32).at[:E, :].set(Wpx_e)
    Wg_e_p = jnp.zeros((E_pad, 5 * H), f32).at[:E, :].set(Wg_e)
    Wout_p = jnp.zeros((H, C_pad), f32).at[:, :C].set(Wout)
    b_out_p = jnp.zeros((1, C_pad), f32).at[:, :C].set(b_out)

    smem = pl.BlockSpec(memory_space=pltpu.MemorySpace.SMEM)
    vmem = pl.BlockSpec(memory_space=pltpu.MemorySpace.VMEM)

    dists_p, commits = pl.pallas_call(
        functools.partial(_decoder_kernel, num_classes=C),
        out_shape=(
            jax.ShapeDtypeStruct((N, C_pad), jnp.float32),
            jax.ShapeDtypeStruct((N,), jnp.int32),
        ),
        in_specs=[smem, smem] + [vmem] * 11,
        out_specs=(vmem, smem),
        scratch_shapes=[
            pltpu.VMEM((N + 1, H), jnp.float32),        # h per visit step (+sentinel)
            pltpu.VMEM((N + 1, H), jnp.float32),        # c per visit step (+sentinel)
            pltpu.SMEM((N + 1,), jnp.int32),            # chosen embedding row per step
            pltpu.VMEM((N, 5 * H), jnp.float32),        # feats @ Wg_f + b_g
            pltpu.VMEM((N, H), jnp.float32),            # feats @ Wpx_f + b_px
            pltpu.VMEM((R_pad, 5 * H), jnp.float32),    # embed @ Wg_e
            pltpu.VMEM((R_pad, H), jnp.float32),        # embed @ Wpx_e
        ],
    )(visit_idx, parent_step, features, embed_p,
      Wpx_f, Wpx_e_p, b_px, Wg_f, Wg_e_p, Wg_h, b_g, Wout_p, b_out_p)

    # kernel already scattered rows to object-index order (== dists[order])
    return dists_p[:, :C], commits


# ----------------------------------------------------------------------------
# Deterministic synthetic parameters + example run
# ----------------------------------------------------------------------------
def make_params(key, inputs_dim, embed_dim, hidden_dim, num_classes):
    ks = jax.random.split(key, 9)
    s = 0.05
    return {
        # nn.Embedding(num_classes + 1, embed_dim)  -- synthetic stand-in for GloVe
        "embed_w": jax.random.normal(ks[0], (num_classes + 1, embed_dim), jnp.float32) * 0.1,
        # px : Linear(inputs_dim + embed_dim, hidden)   (weights stored (in, out))
        "Wpx_f": jax.random.normal(ks[1], (inputs_dim, hidden_dim), jnp.float32) * s,
        "Wpx_e": jax.random.normal(ks[2], (embed_dim, hidden_dim), jnp.float32) * s,
        "b_px": jax.random.normal(ks[3], (1, hidden_dim), jnp.float32) * s,
        # iofur gates : Linear(inputs_dim + embed_dim, 5H) + Linear(hidden, 5H)
        "Wg_f": jax.random.normal(ks[4], (inputs_dim, 5 * hidden_dim), jnp.float32) * s,
        "Wg_e": jax.random.normal(ks[5], (embed_dim, 5 * hidden_dim), jnp.float32) * s,
        "Wg_h": jax.random.normal(ks[6], (hidden_dim, 5 * hidden_dim), jnp.float32) * s,
        "b_g": jax.random.normal(ks[7], (1, 5 * hidden_dim), jnp.float32) * s,
        # out : Linear(hidden, num_classes)
        "Wout": jax.random.normal(ks[8], (hidden_dim, num_classes), jnp.float32) * s,
        "b_out": jnp.zeros((1, num_classes), jnp.float32),
    }


if __name__ == "__main__":
    NUM_OBJ = 7
    INPUTS_DIM = 128
    EMBED_DIM = 64
    HIDDEN_DIM = 128
    NUM_CLASSES = 16   # includes background class 0

    key = jax.random.PRNGKey(0)
    k_feat, k_param = jax.random.split(key)
    features = jax.random.normal(k_feat, (NUM_OBJ, INPUTS_DIM), jnp.float32)
    params = make_params(k_param, INPUTS_DIM, EMBED_DIM, HIDDEN_DIM, NUM_CLASSES)

    # Balanced binary tree over the 7 objects (object 3 at the root).
    tree = BinaryTree(
        3,
        left=BinaryTree(1, left=BinaryTree(0), right=BinaryTree(2)),
        right=BinaryTree(5, left=BinaryTree(4), right=BinaryTree(6)),
    )

    out_dists, out_commitments = decoder_tree_lstm_forward(
        tree, features, NUM_OBJ, params)
    jax.block_until_ready(out_dists)
    jax.block_until_ready(out_commitments)

    assert out_dists.shape == (NUM_OBJ, NUM_CLASSES)
    assert out_commitments.shape == (NUM_OBJ,)
    assert bool(jnp.all(jnp.isfinite(out_dists)))
    assert bool(jnp.all((out_commitments >= 1) & (out_commitments < NUM_CLASSES)))
    print("KERNEL_OK")
</pallas_src>

<mosaic_0001>
module attributes {stable_mosaic.version = 11 : i64} {
  func.func @_decoder_kernel(%arg0: memref<7xi32, #tpu.memory_space<smem>>, %arg1: memref<7xi32, #tpu.memory_space<smem>>, %arg2: memref<7x128xf32, #tpu.memory_space<vmem>>, %arg3: memref<24x128xf32, #tpu.memory_space<vmem>>, %arg4: memref<128x128xf32, #tpu.memory_space<vmem>>, %arg5: memref<128x128xf32, #tpu.memory_space<vmem>>, %arg6: memref<1x128xf32, #tpu.memory_space<vmem>>, %arg7: memref<128x640xf32, #tpu.memory_space<vmem>>, %arg8: memref<128x640xf32, #tpu.memory_space<vmem>>, %arg9: memref<128x640xf32, #tpu.memory_space<vmem>>, %arg10: memref<1x640xf32, #tpu.memory_space<vmem>>, %arg11: memref<128x128xf32, #tpu.memory_space<vmem>>, %arg12: memref<1x128xf32, #tpu.memory_space<vmem>>, %arg13: memref<7x128xf32, #tpu.memory_space<vmem>>, %arg14: memref<7xi32, #tpu.memory_space<smem>>, %arg15: memref<8x128xf32, #tpu.memory_space<vmem>>, %arg16: memref<8x128xf32, #tpu.memory_space<vmem>>, %arg17: memref<8xi32, #tpu.memory_space<smem>>, %arg18: memref<7x640xf32, #tpu.memory_space<vmem>>, %arg19: memref<7x128xf32, #tpu.memory_space<vmem>>, %arg20: memref<24x640xf32, #tpu.memory_space<vmem>>, %arg21: memref<24x128xf32, #tpu.memory_space<vmem>>) attributes {dimension_semantics = [], scalar_prefetch = 0 : i64, scratch_operands = 7 : i64, tpu.core_type = #tpu.core_type<tc>} {
    %c0 = arith.constant 0 : index
    %c0_0 = arith.constant 0 : index
    %0 = vector.load %arg2[%c0, %c0_0] : memref<7x128xf32, #tpu.memory_space<vmem>>, vector<7x128xf32>
    %c0_1 = arith.constant 0 : index
    %c0_2 = arith.constant 0 : index
    %1 = vector.load %arg7[%c0_1, %c0_2] : memref<128x640xf32, #tpu.memory_space<vmem>>, vector<128x640xf32>
    %cst = arith.constant dense<0.000000e+00> : vector<7x640xf32>
    %2 = tpu.matmul %0, %1, %cst {dimension_numbers = #tpu.dot_dimension_numbers<[1], [0], [0], [1], [0, 0, 1, 1], [], []>} : vector<7x128xf32>, vector<128x640xf32>, vector<7x640xf32> -> vector<7x640xf32>
    %c0_3 = arith.constant 0 : index
    %c0_4 = arith.constant 0 : index
    %3 = vector.load %arg10[%c0_3, %c0_4] : memref<1x640xf32, #tpu.memory_space<vmem>>, vector<1x640xf32>
    %4 = vector.broadcast %3 : vector<1x640xf32> to vector<7x640xf32>
    %5 = arith.addf %2, %4 : vector<7x640xf32>
    %c0_5 = arith.constant 0 : index
    %c0_6 = arith.constant 0 : index
    %6 = vector.load %arg18[%c0_5, %c0_6] : memref<7x640xf32, #tpu.memory_space<vmem>>, vector<7x640xf32>
    tpu.vector_store %arg18[%c0_5, %c0_6], %5 {strides = array<i32>} : memref<7x640xf32, #tpu.memory_space<vmem>>, vector<7x640xf32>,
    %c0_7 = arith.constant 0 : index
    %c0_8 = arith.constant 0 : index
    %7 = vector.load %arg4[%c0_7, %c0_8] : memref<128x128xf32, #tpu.memory_space<vmem>>, vector<128x128xf32>
    %cst_9 = arith.constant dense<0.000000e+00> : vector<7x128xf32>
    %8 = tpu.matmul %0, %7, %cst_9 {dimension_numbers = #tpu.dot_dimension_numbers<[1], [0], [0], [1], [0, 0, 1, 1], [], []>} : vector<7x128xf32>, vector<128x128xf32>, vector<7x128xf32> -> vector<7x128xf32>
    %c0_10 = arith.constant 0 : index
    %c0_11 = arith.constant 0 : index
    %9 = vector.load %arg6[%c0_10, %c0_11] : memref<1x128xf32, #tpu.memory_space<vmem>>, vector<1x128xf32>
    %10 = vector.broadcast %9 : vector<1x128xf32> to vector<7x128xf32>
    %11 = arith.addf %8, %10 : vector<7x128xf32>
    %c0_12 = arith.constant 0 : index
    %c0_13 = arith.constant 0 : index
    %12 = vector.load %arg19[%c0_12, %c0_13] : memref<7x128xf32, #tpu.memory_space<vmem>>, vector<7x128xf32>
    tpu.vector_store %arg19[%c0_12, %c0_13], %11 {strides = array<i32>} : memref<7x128xf32, #tpu.memory_space<vmem>>, vector<7x128xf32>,
    %c0_14 = arith.constant 0 : index
    %c0_15 = arith.constant 0 : index
    %13 = vector.load %arg3[%c0_14, %c0_15] : memref<24x128xf32, #tpu.memory_space<vmem>>, vector<24x128xf32>
    %c0_16 = arith.constant 0 : index
    %c0_17 = arith.constant 0 : index
    %14 = vector.load %arg8[%c0_16, %c0_17] : memref<128x640xf32, #tpu.memory_space<vmem>>, vector<128x640xf32>
    %cst_18 = arith.constant dense<0.000000e+00> : vector<24x640xf32>
    %15 = tpu.matmul %13, %14, %cst_18 {dimension_numbers = #tpu.dot_dimension_numbers<[1], [0], [0], [1], [0, 0, 1, 1], [], []>} : vector<24x128xf32>, vector<128x640xf32>, vector<24x640xf32> -> vector<24x640xf32>
    %c0_19 = arith.constant 0 : index
    %c0_20 = arith.constant 0 : index
    %16 = vector.load %arg20[%c0_19, %c0_20] : memref<24x640xf32, #tpu.memory_space<vmem>>, vector<24x640xf32>
    tpu.vector_store %arg20[%c0_19, %c0_20], %15 {strides = array<i32>} : memref<24x640xf32, #tpu.memory_space<vmem>>, vector<24x640xf32>,
    %c0_21 = arith.constant 0 : index
    %c0_22 = arith.constant 0 : index
    %17 = vector.load %arg5[%c0_21, %c0_22] : memref<128x128xf32, #tpu.memory_space<vmem>>, vector<128x128xf32>
    %cst_23 = arith.constant dense<0.000000e+00> : vector<24x128xf32>
    %18 = tpu.matmul %13, %17, %cst_23 {dimension_numbers = #tpu.dot_dimension_numbers<[1], [0], [0], [1], [0, 0, 1, 1], [], []>} : vector<24x128xf32>, vector<128x128xf32>, vector<24x128xf32> -> vector<24x128xf32>
    %c0_24 = arith.constant 0 : index
    %c0_25 = arith.constant 0 : index
    %19 = vector.load %arg21[%c0_24, %c0_25] : memref<24x128xf32, #tpu.memory_space<vmem>>, vector<24x128xf32>
    tpu.vector_store %arg21[%c0_24, %c0_25], %18 {strides = array<i32>} : memref<24x128xf32, #tpu.memory_space<vmem>>, vector<24x128xf32>,
    %cst_26 = arith.constant 0.000000e+00 : f32
    %20 = vector.broadcast %cst_26 : f32 to vector<1x128xf32>
    %c7 = arith.constant 7 : index
    %c0_27 = arith.constant 0 : index
    %21 = vector.load %arg15[%c7, %c0_27] : memref<8x128xf32, #tpu.memory_space<vmem>>, vector<1x128xf32>
    tpu.vector_store %arg15[%c7, %c0_27], %20 {strides = array<i32>} : memref<8x128xf32, #tpu.memory_space<vmem>>, vector<1x128xf32>,
    %cst_28 = arith.constant 0.000000e+00 : f32
    %22 = vector.broadcast %cst_28 : f32 to vector<1x128xf32>
    %c7_29 = arith.constant 7 : index
    %c0_30 = arith.constant 0 : index
    %23 = vector.load %arg16[%c7_29, %c0_30] : memref<8x128xf32, #tpu.memory_space<vmem>>, vector<1x128xf32>
    tpu.vector_store %arg16[%c7_29, %c0_30], %22 {strides = array<i32>} : memref<8x128xf32, #tpu.memory_space<vmem>>, vector<1x128xf32>,
    %c0_i32 = arith.constant 0 : i32
    %c7_31 = arith.constant 7 : index
    %24 = memref.load %arg17[%c7_31] : memref<8xi32, #tpu.memory_space<smem>>
    memref.store %c0_i32, %arg17[%c7_31] : memref<8xi32, #tpu.memory_space<smem>>
    %25 = tpu.iota {dimensions = array<i32: 1>} : vector<1x128xi32>
    %c1_i32 = arith.constant 1 : i32
    %26 = vector.broadcast %c1_i32 : i32 to vector<1x128xi32>
    %27 = arith.cmpi sge, %25, %26 : vector<1x128xi32>
    %c16_i32 = arith.constant 16 : i32
    %28 = vector.broadcast %c16_i32 : i32 to vector<1x128xi32>
    %29 = arith.cmpi slt, %25, %28 : vector<1x128xi32>
    %30 = arith.andi %27, %29 : vector<1x128xi1>
    %cst_32 = arith.constant 0.000000e+00 : f32
    %cst_33 = arith.constant -1.000000e+30 : f32
    %31 = vector.broadcast %cst_32 : f32 to vector<1x128xf32>
    %32 = vector.broadcast %cst_33 : f32 to vector<1x128xf32>
    %33 = arith.select %30, %31, %32 : vector<1x128xi1>, vector<1x128xf32>
    %c0_i32_34 = arith.constant 0 : i32
    %34 = arith.index_cast %c0_i32_34 : i32 to index
    %35 = memref.load %arg0[%34] : memref<7xi32, #tpu.memory_space<smem>>
    %36 = arith.index_cast %c0_i32_34 : i32 to index
    %37 = memref.load %arg1[%36] : memref<7xi32, #tpu.memory_space<smem>>
    %c0_i32_35 = arith.constant 0 : i32
    %38 = arith.cmpi slt, %37, %c0_i32_35 : i32
    %c7_i32 = arith.constant 7 : i32
    %39 = arith.select %38, %c7_i32, %37 : i32
    %40 = arith.index_cast %39 : i32 to index
    %c0_36 = arith.constant 0 : index
    %41 = vector.load %arg15[%40, %c0_36] : memref<8x128xf32, #tpu.memory_space<vmem>>, vector<1x128xf32>
    %42 = arith.index_cast %39 : i32 to index
    %c0_37 = arith.constant 0 : index
    %43 = vector.load %arg16[%42, %c0_37] : memref<8x128xf32, #tpu.memory_space<vmem>>, vector<1x128xf32>
    %44 = arith.index_cast %39 : i32 to index
    %45 = memref.load %arg17[%44] : memref<8xi32, #tpu.memory_space<smem>>
    %46 = arith.index_cast %35 : i32 to index
    %c0_38 = arith.constant 0 : index
    %47 = vector.load %arg18[%46, %c0_38] : memref<7x640xf32, #tpu.memory_space<vmem>>, vector<1x640xf32>
    %48 = arith.index_cast %45 : i32 to index
    %c0_39 = arith.constant 0 : index
    %49 = vector.load %arg20[%48, %c0_39] : memref<24x640xf32, #tpu.memory_space<vmem>>, vector<1x640xf32>
    %50 = arith.addf %47, %49 : vector<1x640xf32>
    %c0_40 = arith.constant 0 : index
    %c0_41 = arith.constant 0 : index
    %51 = vector.load %arg9[%c0_40, %c0_41] : memref<128x640xf32, #tpu.memory_space<vmem>>, vector<128x640xf32>
    %cst_42 = arith.constant dense<0.000000e+00> : vector<1x640xf32>
    %52 = tpu.matmul %41, %51, %cst_42 {dimension_numbers = #tpu.dot_dimension_numbers<[1], [0], [0], [1], [0, 0, 1, 1], [], []>} : vector<1x128xf32>, vector<128x640xf32>, vector<1x640xf32> -> vector<1x640xf32>
    %53 = arith.addf %50, %52 : vector<1x640xf32>
    %54 = arith.index_cast %35 : i32 to index
    %c0_43 = arith.constant 0 : index
    %55 = vector.load %arg19[%54, %c0_43] : memref<7x128xf32, #tpu.memory_space<vmem>>, vector<1x128xf32>
    %56 = arith.index_cast %45 : i32 to index
    %c0_44 = arith.constant 0 : index
    %57 = vector.load %arg21[%56, %c0_44] : memref<24x128xf32, #tpu.memory_space<vmem>>, vector<1x128xf32>
    %58 = arith.addf %55, %57 : vector<1x128xf32>
    %59 = vector.extract_strided_slice %53 {offsets = [0, 0], sizes = [1, 128], strides = [1, 1]} : vector<1x640xf32> to vector<1x128xf32>
    %60 = arith.negf %59 : vector<1x128xf32>
    %61 = math.exp %60 : vector<1x128xf32>
    %cst_45 = arith.constant 1.000000e+00 : f32
    %62 = vector.broadcast %cst_45 : f32 to vector<1x128xf32>
    %63 = arith.addf %62, %61 : vector<1x128xf32>
    %64 = arith.divf %62, %63 : vector<1x128xf32>
    %65 = vector.extract_strided_slice %53 {offsets = [0, 128], sizes = [1, 128], strides = [1, 1]} : vector<1x640xf32> to vector<1x128xf32>
    %66 = arith.negf %65 : vector<1x128xf32>
    %67 = math.exp %66 : vector<1x128xf32>
    %cst_46 = arith.constant 1.000000e+00 : f32
    %68 = vector.broadcast %cst_46 : f32 to vector<1x128xf32>
    %69 = arith.addf %68, %67 : vector<1x128xf32>
    %70 = arith.divf %68, %69 : vector<1x128xf32>
    %71 = vector.extract_strided_slice %53 {offsets = [0, 256], sizes = [1, 128], strides = [1, 1]} : vector<1x640xf32> to vector<1x128xf32>
    %72 = arith.negf %71 : vector<1x128xf32>
    %73 = math.exp %72 : vector<1x128xf32>
    %cst_47 = arith.constant 1.000000e+00 : f32
    %74 = vector.broadcast %cst_47 : f32 to vector<1x128xf32>
    %75 = arith.addf %74, %73 : vector<1x128xf32>
    %76 = arith.divf %74, %75 : vector<1x128xf32>
    %77 = vector.extract_strided_slice %53 {offsets = [0, 384], sizes = [1, 128], strides = [1, 1]} : vector<1x640xf32> to vector<1x128xf32>
    %78 = math.tanh %77 : vector<1x128xf32>
    %79 = vector.extract_strided_slice %53 {offsets = [0, 512], sizes = [1, 128], strides = [1, 1]} : vector<1x640xf32> to vector<1x128xf32>
    %80 = arith.negf %79 : vector<1x128xf32>
    %81 = math.exp %80 : vector<1x128xf32>
    %cst_48 = arith.constant 1.000000e+00 : f32
    %82 = vector.broadcast %cst_48 : f32 to vector<1x128xf32>
    %83 = arith.addf %82, %81 : vector<1x128xf32>
    %84 = arith.divf %82, %83 : vector<1x128xf32>
    %85 = arith.mulf %64, %78 : vector<1x128xf32>
    %86 = arith.mulf %76, %43 : vector<1x128xf32>
    %87 = arith.addf %85, %86 : vector<1x128xf32>
    %88 = math.tanh %87 : vector<1x128xf32>
    %89 = arith.mulf %70, %88 : vector<1x128xf32>
    %90 = arith.mulf %84, %89 : vector<1x128xf32>
    %cst_49 = arith.constant 1.000000e+00 : f32
    %91 = vector.broadcast %cst_49 : f32 to vector<1x128xf32>
    %92 = arith.subf %91, %84 : vector<1x128xf32>
    %93 = arith.mulf %92, %58 : vector<1x128xf32>
    %94 = arith.addf %90, %93 : vector<1x128xf32>
    %c0_50 = arith.constant 0 : index
    %c0_51 = arith.constant 0 : index
    %95 = vector.load %arg11[%c0_50, %c0_51] : memref<128x128xf32, #tpu.memory_space<vmem>>, vector<128x128xf32>
    %cst_52 = arith.constant dense<0.000000e+00> : vector<1x128xf32>
    %96 = tpu.matmul %94, %95, %cst_52 {dimension_numbers = #tpu.dot_dimension_numbers<[1], [0], [0], [1], [0, 0, 1, 1], [], []>} : vector<1x128xf32>, vector<128x128xf32>, vector<1x128xf32> -> vector<1x128xf32>
    %c0_53 = arith.constant 0 : index
    %c0_54 = arith.constant 0 : index
    %97 = vector.load %arg12[%c0_53, %c0_54] : memref<1x128xf32, #tpu.memory_space<vmem>>, vector<1x128xf32>
    %98 = arith.addf %96, %97 : vector<1x128xf32>
    %99 = arith.index_cast %35 : i32 to index
    %c0_55 = arith.constant 0 : index
    %100 = vector.load %arg13[%99, %c0_55] : memref<7x128xf32, #tpu.memory_space<vmem>>, vector<1x128xf32>
    tpu.vector_store %arg13[%99, %c0_55], %98 {strides = array<i32>} : memref<7x128xf32, #tpu.memory_space<vmem>>, vector<1x128xf32>,
    %101 = arith.addf %98, %33 : vector<1x128xf32>
    %cst_56 = arith.constant dense<0xFF800000> : vector<1xf32>
    %102 = vector.multi_reduction <maximumf>, %101, %cst_56 [1] : vector<1x128xf32> to vector<1xf32>
    %103 = vector.shape_cast %102 : vector<1xf32> to vector<1x1xf32>
    %104 = vector.broadcast %103 : vector<1x1xf32> to vector<1x128xf32>
    %105 = arith.cmpf oge, %101, %104 : vector<1x128xf32>
    %c128_i32 = arith.constant 128 : i32
    %106 = vector.broadcast %c128_i32 : i32 to vector<1x128xi32>
    %107 = arith.select %105, %25, %106 : vector<1x128xi1>, vector<1x128xi32>
    %108 = vector.shape_cast %107 : vector<1x128xi32> to vector<1x1x128xi32>
    %cst_57 = arith.constant dense<2147483647> : vector<1xi32>
    %109 = vector.multi_reduction <minsi>, %108, %cst_57 [1, 2] : vector<1x1x128xi32> to vector<1xi32>
    %110 = vector.shape_cast %109 : vector<1xi32> to vector<1x1x1xi32>
    %111 = vector.extract %110[0, 0, 0] : i32 from vector<1x1x1xi32>
    %112 = arith.index_cast %35 : i32 to index
    %113 = memref.load %arg14[%112] : memref<7xi32, #tpu.memory_space<smem>>
    memref.store %111, %arg14[%112] : memref<7xi32, #tpu.memory_space<smem>>
    %c1_i32_58 = arith.constant 1 : i32
    %114 = arith.addi %111, %c1_i32_58 : i32
    %115 = arith.index_cast %c0_i32_34 : i32 to index
    %116 = memref.load %arg17[%115] : memref<8xi32, #tpu.memory_space<smem>>
    memref.store %114, %arg17[%115] : memref<8xi32, #tpu.memory_space<smem>>
    %117 = arith.index_cast %c0_i32_34 : i32 to index
    %c0_59 = arith.constant 0 : index
    %118 = vector.load %arg15[%117, %c0_59] : memref<8x128xf32, #tpu.memory_space<vmem>>, vector<1x128xf32>
    tpu.vector_store %arg15[%117, %c0_59], %94 {strides = array<i32>} : memref<8x128xf32, #tpu.memory_space<vmem>>, vector<1x128xf32>,
    %119 = arith.index_cast %c0_i32_34 : i32 to index
    %c0_60 = arith.constant 0 : index
    %120 = vector.load %arg16[%119, %c0_60] : memref<8x128xf32, #tpu.memory_space<vmem>>, vector<1x128xf32>
    tpu.vector_store %arg16[%119, %c0_60], %87 {strides = array<i32>} : memref<8x128xf32, #tpu.memory_space<vmem>>, vector<1x128xf32>,
    %c1_i32_61 = arith.constant 1 : i32
    %121 = arith.index_cast %c1_i32_61 : i32 to index
    %122 = memref.load %arg0[%121] : memref<7xi32, #tpu.memory_space<smem>>
    %123 = arith.index_cast %c1_i32_61 : i32 to index
    %124 = memref.load %arg1[%123] : memref<7xi32, #tpu.memory_space<smem>>
    %c0_i32_62 = arith.constant 0 : i32
    %125 = arith.cmpi slt, %124, %c0_i32_62 : i32
    %c7_i32_63 = arith.constant 7 : i32
    %126 = arith.select %125, %c7_i32_63, %124 : i32
    %127 = arith.index_cast %126 : i32 to index
    %c0_64 = arith.constant 0 : index
    %128 = vector.load %arg15[%127, %c0_64] : memref<8x128xf32, #tpu.memory_space<vmem>>, vector<1x128xf32>
    %129 = arith.index_cast %126 : i32 to index
    %c0_65 = arith.constant 0 : index
    %130 = vector.load %arg16[%129, %c0_65] : memref<8x128xf32, #tpu.memory_space<vmem>>, vector<1x128xf32>
    %131 = arith.index_cast %126 : i32 to index
    %132 = memref.load %arg17[%131] : memref<8xi32, #tpu.memory_space<smem>>
    %133 = arith.index_cast %122 : i32 to index
    %c0_66 = arith.constant 0 : index
    %134 = vector.load %arg18[%133, %c0_66] : memref<7x640xf32, #tpu.memory_space<vmem>>, vector<1x640xf32>
    %135 = arith.index_cast %132 : i32 to index
    %c0_67 = arith.constant 0 : index
    %136 = vector.load %arg20[%135, %c0_67] : memref<24x640xf32, #tpu.memory_space<vmem>>, vector<1x640xf32>
    %137 = arith.addf %134, %136 : vector<1x640xf32>
    %c0_68 = arith.constant 0 : index
    %c0_69 = arith.constant 0 : index
    %138 = vector.load %arg9[%c0_68, %c0_69] : memref<128x640xf32, #tpu.memory_space<vmem>>, vector<128x640xf32>
    %cst_70 = arith.constant dense<0.000000e+00> : vector<1x640xf32>
    %139 = tpu.matmul %128, %138, %cst_70 {dimension_numbers = #tpu.dot_dimension_numbers<[1], [0], [0], [1], [0, 0, 1, 1], [], []>} : vector<1x128xf32>, vector<128x640xf32>, vector<1x640xf32> -> vector<1x640xf32>
    %140 = arith.addf %137, %139 : vector<1x640xf32>
    %141 = arith.index_cast %122 : i32 to index
    %c0_71 = arith.constant 0 : index
    %142 = vector.load %arg19[%141, %c0_71] : memref<7x128xf32, #tpu.memory_space<vmem>>, vector<1x128xf32>
    %143 = arith.index_cast %132 : i32 to index
    %c0_72 = arith.constant 0 : index
    %144 = vector.load %arg21[%143, %c0_72] : memref<24x128xf32, #tpu.memory_space<vmem>>, vector<1x128xf32>
    %145 = arith.addf %142, %144 : vector<1x128xf32>
    %146 = vector.extract_strided_slice %140 {offsets = [0, 0], sizes = [1, 128], strides = [1, 1]} : vector<1x640xf32> to vector<1x128xf32>
    %147 = arith.negf %146 : vector<1x128xf32>
    %148 = math.exp %147 : vector<1x128xf32>
    %cst_73 = arith.constant 1.000000e+00 : f32
    %149 = vector.broadcast %cst_73 : f32 to vector<1x128xf32>
    %150 = arith.addf %149, %148 : vector<1x128xf32>
    %151 = arith.divf %149, %150 : vector<1x128xf32>
    %152 = vector.extract_strided_slice %140 {offsets = [0, 128], sizes = [1, 128], strides = [1, 1]} : vector<1x640xf32> to vector<1x128xf32>
    %153 = arith.negf %152 : vector<1x128xf32>
    %154 = math.exp %153 : vector<1x128xf32>
    %cst_74 = arith.constant 1.000000e+00 : f32
    %155 = vector.broadcast %cst_74 : f32 to vector<1x128xf32>
    %156 = arith.addf %155, %154 : vector<1x128xf32>
    %157 = arith.divf %155, %156 : vector<1x128xf32>
    %158 = vector.extract_strided_slice %140 {offsets = [0, 256], sizes = [1, 128], strides = [1, 1]} : vector<1x640xf32> to vector<1x128xf32>
    %159 = arith.negf %158 : vector<1x128xf32>
    %160 = math.exp %159 : vector<1x128xf32>
    %cst_75 = arith.constant 1.000000e+00 : f32
    %161 = vector.broadcast %cst_75 : f32 to vector<1x128xf32>
    %162 = arith.addf %161, %160 : vector<1x128xf32>
    %163 = arith.divf %161, %162 : vector<1x128xf32>
    %164 = vector.extract_strided_slice %140 {offsets = [0, 384], sizes = [1, 128], strides = [1, 1]} : vector<1x640xf32> to vector<1x128xf32>
    %165 = math.tanh %164 : vector<1x128xf32>
    %166 = vector.extract_strided_slice %140 {offsets = [0, 512], sizes = [1, 128], strides = [1, 1]} : vector<1x640xf32> to vector<1x128xf32>
    %167 = arith.negf %166 : vector<1x128xf32>
    %168 = math.exp %167 : vector<1x128xf32>
    %cst_76 = arith.constant 1.000000e+00 : f32
    %169 = vector.broadcast %cst_76 : f32 to vector<1x128xf32>
    %170 = arith.addf %169, %168 : vector<1x128xf32>
    %171 = arith.divf %169, %170 : vector<1x128xf32>
    %172 = arith.mulf %151, %165 : vector<1x128xf32>
    %173 = arith.mulf %163, %130 : vector<1x128xf32>
    %174 = arith.addf %172, %173 : vector<1x128xf32>
    %175 = math.tanh %174 : vector<1x128xf32>
    %176 = arith.mulf %157, %175 : vector<1x128xf32>
    %177 = arith.mulf %171, %176 : vector<1x128xf32>
    %cst_77 = arith.constant 1.000000e+00 : f32
    %178 = vector.broadcast %cst_77 : f32 to vector<1x128xf32>
    %179 = arith.subf %178, %171 : vector<1x128xf32>
    %180 = arith.mulf %179, %145 : vector<1x128xf32>
    %181 = arith.addf %177, %180 : vector<1x128xf32>
    %c0_78 = arith.constant 0 : index
    %c0_79 = arith.constant 0 : index
    %182 = vector.load %arg11[%c0_78, %c0_79] : memref<128x128xf32, #tpu.memory_space<vmem>>, vector<128x128xf32>
    %cst_80 = arith.constant dense<0.000000e+00> : vector<1x128xf32>
    %183 = tpu.matmul %181, %182, %cst_80 {dimension_numbers = #tpu.dot_dimension_numbers<[1], [0], [0], [1], [0, 0, 1, 1], [], []>} : vector<1x128xf32>, vector<128x128xf32>, vector<1x128xf32> -> vector<1x128xf32>
    %c0_81 = arith.constant 0 : index
    %c0_82 = arith.constant 0 : index
    %184 = vector.load %arg12[%c0_81, %c0_82] : memref<1x128xf32, #tpu.memory_space<vmem>>, vector<1x128xf32>
    %185 = arith.addf %183, %184 : vector<1x128xf32>
    %186 = arith.index_cast %122 : i32 to index
    %c0_83 = arith.constant 0 : index
    %187 = vector.load %arg13[%186, %c0_83] : memref<7x128xf32, #tpu.memory_space<vmem>>, vector<1x128xf32>
    tpu.vector_store %arg13[%186, %c0_83], %185 {strides = array<i32>} : memref<7x128xf32, #tpu.memory_space<vmem>>, vector<1x128xf32>,
    %188 = arith.addf %185, %33 : vector<1x128xf32>
    %cst_84 = arith.constant dense<0xFF800000> : vector<1xf32>
    %189 = vector.multi_reduction <maximumf>, %188, %cst_84 [1] : vector<1x128xf32> to vector<1xf32>
    %190 = vector.shape_cast %189 : vector<1xf32> to vector<1x1xf32>
    %191 = vector.broadcast %190 : vector<1x1xf32> to vector<1x128xf32>
    %192 = arith.cmpf oge, %188, %191 : vector<1x128xf32>
    %c128_i32_85 = arith.constant 128 : i32
    %193 = vector.broadcast %c128_i32_85 : i32 to vector<1x128xi32>
    %194 = arith.select %192, %25, %193 : vector<1x128xi1>, vector<1x128xi32>
    %195 = vector.shape_cast %194 : vector<1x128xi32> to vector<1x1x128xi32>
    %cst_86 = arith.constant dense<2147483647> : vector<1xi32>
    %196 = vector.multi_reduction <minsi>, %195, %cst_86 [1, 2] : vector<1x1x128xi32> to vector<1xi32>
    %197 = vector.shape_cast %196 : vector<1xi32> to vector<1x1x1xi32>
    %198 = vector.extract %197[0, 0, 0] : i32 from vector<1x1x1xi32>
    %199 = arith.index_cast %122 : i32 to index
    %200 = memref.load %arg14[%199] : memref<7xi32, #tpu.memory_space<smem>>
    memref.store %198, %arg14[%199] : memref<7xi32, #tpu.memory_space<smem>>
    %c1_i32_87 = arith.constant 1 : i32
    %201 = arith.addi %198, %c1_i32_87 : i32
    %202 = arith.index_cast %c1_i32_61 : i32 to index
    %203 = memref.load %arg17[%202] : memref<8xi32, #tpu.memory_space<smem>>
    memref.store %201, %arg17[%202] : memref<8xi32, #tpu.memory_space<smem>>
    %204 = arith.index_cast %c1_i32_61 : i32 to index
    %c0_88 = arith.constant 0 : index
    %205 = vector.load %arg15[%204, %c0_88] : memref<8x128xf32, #tpu.memory_space<vmem>>, vector<1x128xf32>
    tpu.vector_store %arg15[%204, %c0_88], %181 {strides = array<i32>} : memref<8x128xf32, #tpu.memory_space<vmem>>, vector<1x128xf32>,
    %206 = arith.index_cast %c1_i32_61 : i32 to index
    %c0_89 = arith.constant 0 : index
    %207 = vector.load %arg16[%206, %c0_89] : memref<8x128xf32, #tpu.memory_space<vmem>>, vector<1x128xf32>
    tpu.vector_store %arg16[%206, %c0_89], %174 {strides = array<i32>} : memref<8x128xf32, #tpu.memory_space<vmem>>, vector<1x128xf32>,
    %c2_i32 = arith.constant 2 : i32
    %208 = arith.index_cast %c2_i32 : i32 to index
    %209 = memref.load %arg0[%208] : memref<7xi32, #tpu.memory_space<smem>>
    %210 = arith.index_cast %c2_i32 : i32 to index
    %211 = memref.load %arg1[%210] : memref<7xi32, #tpu.memory_space<smem>>
    %c0_i32_90 = arith.constant 0 : i32
    %212 = arith.cmpi slt, %211, %c0_i32_90 : i32
    %c7_i32_91 = arith.constant 7 : i32
    %213 = arith.select %212, %c7_i32_91, %211 : i32
    %214 = arith.index_cast %213 : i32 to index
    %c0_92 = arith.constant 0 : index
    %215 = vector.load %arg15[%214, %c0_92] : memref<8x128xf32, #tpu.memory_space<vmem>>, vector<1x128xf32>
    %216 = arith.index_cast %213 : i32 to index
    %c0_93 = arith.constant 0 : index
    %217 = vector.load %arg16[%216, %c0_93] : memref<8x128xf32, #tpu.memory_space<vmem>>, vector<1x128xf32>
    %218 = arith.index_cast %213 : i32 to index
    %219 = memref.load %arg17[%218] : memref<8xi32, #tpu.memory_space<smem>>
    %220 = arith.index_cast %209 : i32 to index
    %c0_94 = arith.constant 0 : index
    %221 = vector.load %arg18[%220, %c0_94] : memref<7x640xf32, #tpu.memory_space<vmem>>, vector<1x640xf32>
    %222 = arith.index_cast %219 : i32 to index
    %c0_95 = arith.constant 0 : index
    %223 = vector.load %arg20[%222, %c0_95] : memref<24x640xf32, #tpu.memory_space<vmem>>, vector<1x640xf32>
    %224 = arith.addf %221, %223 : vector<1x640xf32>
    %c0_96 = arith.constant 0 : index
    %c0_97 = arith.constant 0 : index
    %225 = vector.load %arg9[%c0_96, %c0_97] : memref<128x640xf32, #tpu.memory_space<vmem>>, vector<128x640xf32>
    %cst_98 = arith.constant dense<0.000000e+00> : vector<1x640xf32>
    %226 = tpu.matmul %215, %225, %cst_98 {dimension_numbers = #tpu.dot_dimension_numbers<[1], [0], [0], [1], [0, 0, 1, 1], [], []>} : vector<1x128xf32>, vector<128x640xf32>, vector<1x640xf32> -> vector<1x640xf32>
    %227 = arith.addf %224, %226 : vector<1x640xf32>
    %228 = arith.index_cast %209 : i32 to index
    %c0_99 = arith.constant 0 : index
    %229 = vector.load %arg19[%228, %c0_99] : memref<7x128xf32, #tpu.memory_space<vmem>>, vector<1x128xf32>
    %230 = arith.index_cast %219 : i32 to index
    %c0_100 = arith.constant 0 : index
    %231 = vector.load %arg21[%230, %c0_100] : memref<24x128xf32, #tpu.memory_space<vmem>>, vector<1x128xf32>
    %232 = arith.addf %229, %231 : vector<1x128xf32>
    %233 = vector.extract_strided_slice %227 {offsets = [0, 0], sizes = [1, 128], strides = [1, 1]} : vector<1x640xf32> to vector<1x128xf32>
    %234 = arith.negf %233 : vector<1x128xf32>
    %235 = math.exp %234 : vector<1x128xf32>
    %cst_101 = arith.constant 1.000000e+00 : f32
    %236 = vector.broadcast %cst_101 : f32 to vector<1x128xf32>
    %237 = arith.addf %236, %235 : vector<1x128xf32>
    %238 = arith.divf %236, %237 : vector<1x128xf32>
    %239 = vector.extract_strided_slice %227 {offsets = [0, 128], sizes = [1, 128], strides = [1, 1]} : vector<1x640xf32> to vector<1x128xf32>
    %240 = arith.negf %239 : vector<1x128xf32>
    %241 = math.exp %240 : vector<1x128xf32>
    %cst_102 = arith.constant 1.000000e+00 : f32
    %242 = vector.broadcast %cst_102 : f32 to vector<1x128xf32>
    %243 = arith.addf %242, %241 : vector<1x128xf32>
    %244 = arith.divf %242, %243 : vector<1x128xf32>
    %245 = vector.extract_strided_slice %227 {offsets = [0, 256], sizes = [1, 128], strides = [1, 1]} : vector<1x640xf32> to vector<1x128xf32>
    %246 = arith.negf %245 : vector<1x128xf32>
    %247 = math.exp %246 : vector<1x128xf32>
    %cst_103 = arith.constant 1.000000e+00 : f32
    %248 = vector.broadcast %cst_103 : f32 to vector<1x128xf32>
    %249 = arith.addf %248, %247 : vector<1x128xf32>
    %250 = arith.divf %248, %249 : vector<1x128xf32>
    %251 = vector.extract_strided_slice %227 {offsets = [0, 384], sizes = [1, 128], strides = [1, 1]} : vector<1x640xf32> to vector<1x128xf32>
    %252 = math.tanh %251 : vector<1x128xf32>
    %253 = vector.extract_strided_slice %227 {offsets = [0, 512], sizes = [1, 128], strides = [1, 1]} : vector<1x640xf32> to vector<1x128xf32>
    %254 = arith.negf %253 : vector<1x128xf32>
    %255 = math.exp %254 : vector<1x128xf32>
    %cst_104 = arith.constant 1.000000e+00 : f32
    %256 = vector.broadcast %cst_104 : f32 to vector<1x128xf32>
    %257 = arith.addf %256, %255 : vector<1x128xf32>
    %258 = arith.divf %256, %257 : vector<1x128xf32>
    %259 = arith.mulf %238, %252 : vector<1x128xf32>
    %260 = arith.mulf %250, %217 : vector<1x128xf32>
    %261 = arith.addf %259, %260 : vector<1x128xf32>
    %262 = math.tanh %261 : vector<1x128xf32>
    %263 = arith.mulf %244, %262 : vector<1x128xf32>
    %264 = arith.mulf %258, %263 : vector<1x128xf32>
    %cst_105 = arith.constant 1.000000e+00 : f32
    %265 = vector.broadcast %cst_105 : f32 to vector<1x128xf32>
    %266 = arith.subf %265, %258 : vector<1x128xf32>
    %267 = arith.mulf %266, %232 : vector<1x128xf32>
    %268 = arith.addf %264, %267 : vector<1x128xf32>
    %c0_106 = arith.constant 0 : index
    %c0_107 = arith.constant 0 : index
    %269 = vector.load %arg11[%c0_106, %c0_107] : memref<128x128xf32, #tpu.memory_space<vmem>>, vector<128x128xf32>
    %cst_108 = arith.constant dense<0.000000e+00> : vector<1x128xf32>
    %270 = tpu.matmul %268, %269, %cst_108 {dimension_numbers = #tpu.dot_dimension_numbers<[1], [0], [0], [1], [0, 0, 1, 1], [], []>} : vector<1x128xf32>, vector<128x128xf32>, vector<1x128xf32> -> vector<1x128xf32>
    %c0_109 = arith.constant 0 : index
    %c0_110 = arith.constant 0 : index
    %271 = vector.load %arg12[%c0_109, %c0_110] : memref<1x128xf32, #tpu.memory_space<vmem>>, vector<1x128xf32>
    %272 = arith.addf %270, %271 : vector<1x128xf32>
    %273 = arith.index_cast %209 : i32 to index
    %c0_111 = arith.constant 0 : index
    %274 = vector.load %arg13[%273, %c0_111] : memref<7x128xf32, #tpu.memory_space<vmem>>, vector<1x128xf32>
    tpu.vector_store %arg13[%273, %c0_111], %272 {strides = array<i32>} : memref<7x128xf32, #tpu.memory_space<vmem>>, vector<1x128xf32>,
    %275 = arith.addf %272, %33 : vector<1x128xf32>
    %cst_112 = arith.constant dense<0xFF800000> : vector<1xf32>
    %276 = vector.multi_reduction <maximumf>, %275, %cst_112 [1] : vector<1x128xf32> to vector<1xf32>
    %277 = vector.shape_cast %276 : vector<1xf32> to vector<1x1xf32>
    %278 = vector.broadcast %277 : vector<1x1xf32> to vector<1x128xf32>
    %279 = arith.cmpf oge, %275, %278 : vector<1x128xf32>
    %c128_i32_113 = arith.constant 128 : i32
    %280 = vector.broadcast %c128_i32_113 : i32 to vector<1x128xi32>
    %281 = arith.select %279, %25, %280 : vector<1x128xi1>, vector<1x128xi32>
    %282 = vector.shape_cast %281 : vector<1x128xi32> to vector<1x1x128xi32>
    %cst_114 = arith.constant dense<2147483647> : vector<1xi32>
    %283 = vector.multi_reduction <minsi>, %282, %cst_114 [1, 2] : vector<1x1x128xi32> to vector<1xi32>
    %284 = vector.shape_cast %283 : vector<1xi32> to vector<1x1x1xi32>
    %285 = vector.extract %284[0, 0, 0] : i32 from vector<1x1x1xi32>
    %286 = arith.index_cast %209 : i32 to index
    %287 = memref.load %arg14[%286] : memref<7xi32, #tpu.memory_space<smem>>
    memref.store %285, %arg14[%286] : memref<7xi32, #tpu.memory_space<smem>>
    %c1_i32_115 = arith.constant 1 : i32
    %288 = arith.addi %285, %c1_i32_115 : i32
    %289 = arith.index_cast %c2_i32 : i32 to index
    %290 = memref.load %arg17[%289] : memref<8xi32, #tpu.memory_space<smem>>
    memref.store %288, %arg17[%289] : memref<8xi32, #tpu.memory_space<smem>>
    %291 = arith.index_cast %c2_i32 : i32 to index
    %c0_116 = arith.constant 0 : index
    %292 = vector.load %arg15[%291, %c0_116] : memref<8x128xf32, #tpu.memory_space<vmem>>, vector<1x128xf32>
    tpu.vector_store %arg15[%291, %c0_116], %268 {strides = array<i32>} : memref<8x128xf32, #tpu.memory_space<vmem>>, vector<1x128xf32>,
    %293 = arith.index_cast %c2_i32 : i32 to index
    %c0_117 = arith.constant 0 : index
    %294 = vector.load %arg16[%293, %c0_117] : memref<8x128xf32, #tpu.memory_space<vmem>>, vector<1x128xf32>
    tpu.vector_store %arg16[%293, %c0_117], %261 {strides = array<i32>} : memref<8x128xf32, #tpu.memory_space<vmem>>, vector<1x128xf32>,
    %c3_i32 = arith.constant 3 : i32
    %295 = arith.index_cast %c3_i32 : i32 to index
    %296 = memref.load %arg0[%295] : memref<7xi32, #tpu.memory_space<smem>>
    %297 = arith.index_cast %c3_i32 : i32 to index
    %298 = memref.load %arg1[%297] : memref<7xi32, #tpu.memory_space<smem>>
    %c0_i32_118 = arith.constant 0 : i32
    %299 = arith.cmpi slt, %298, %c0_i32_118 : i32
    %c7_i32_119 = arith.constant 7 : i32
    %300 = arith.select %299, %c7_i32_119, %298 : i32
    %301 = arith.index_cast %300 : i32 to index
    %c0_120 = arith.constant 0 : index
    %302 = vector.load %arg15[%301, %c0_120] : memref<8x128xf32, #tpu.memory_space<vmem>>, vector<1x128xf32>
    %303 = arith.index_cast %300 : i32 to index
    %c0_121 = arith.constant 0 : index
    %304 = vector.load %arg16[%303, %c0_121] : memref<8x128xf32, #tpu.memory_space<vmem>>, vector<1x128xf32>
    %305 = arith.index_cast %300 : i32 to index
    %306 = memref.load %arg17[%305] : memref<8xi32, #tpu.memory_space<smem>>
    %307 = arith.index_cast %296 : i32 to index
    %c0_122 = arith.constant 0 : index
    %308 = vector.load %arg18[%307, %c0_122] : memref<7x640xf32, #tpu.memory_space<vmem>>, vector<1x640xf32>
    %309 = arith.index_cast %306 : i32 to index
    %c0_123 = arith.constant 0 : index
    %310 = vector.load %arg20[%309, %c0_123] : memref<24x640xf32, #tpu.memory_space<vmem>>, vector<1x640xf32>
    %311 = arith.addf %308, %310 : vector<1x640xf32>
    %c0_124 = arith.constant 0 : index
    %c0_125 = arith.constant 0 : index
    %312 = vector.load %arg9[%c0_124, %c0_125] : memref<128x640xf32, #tpu.memory_space<vmem>>, vector<128x640xf32>
    %cst_126 = arith.constant dense<0.000000e+00> : vector<1x640xf32>
    %313 = tpu.matmul %302, %312, %cst_126 {dimension_numbers = #tpu.dot_dimension_numbers<[1], [0], [0], [1], [0, 0, 1, 1], [], []>} : vector<1x128xf32>, vector<128x640xf32>, vector<1x640xf32> -> vector<1x640xf32>
    %314 = arith.addf %311, %313 : vector<1x640xf32>
    %315 = arith.index_cast %296 : i32 to index
    %c0_127 = arith.constant 0 : index
    %316 = vector.load %arg19[%315, %c0_127] : memref<7x128xf32, #tpu.memory_space<vmem>>, vector<1x128xf32>
    %317 = arith.index_cast %306 : i32 to index
    %c0_128 = arith.constant 0 : index
    %318 = vector.load %arg21[%317, %c0_128] : memref<24x128xf32, #tpu.memory_space<vmem>>, vector<1x128xf32>
    %319 = arith.addf %316, %318 : vector<1x128xf32>
    %320 = vector.extract_strided_slice %314 {offsets = [0, 0], sizes = [1, 128], strides = [1, 1]} : vector<1x640xf32> to vector<1x128xf32>
    %321 = arith.negf %320 : vector<1x128xf32>
    %322 = math.exp %321 : vector<1x128xf32>
    %cst_129 = arith.constant 1.000000e+00 : f32
    %323 = vector.broadcast %cst_129 : f32 to vector<1x128xf32>
    %324 = arith.addf %323, %322 : vector<1x128xf32>
    %325 = arith.divf %323, %324 : vector<1x128xf32>
    %326 = vector.extract_strided_slice %314 {offsets = [0, 128], sizes = [1, 128], strides = [1, 1]} : vector<1x640xf32> to vector<1x128xf32>
    %327 = arith.negf %326 : vector<1x128xf32>
    %328 = math.exp %327 : vector<1x128xf32>
    %cst_130 = arith.constant 1.000000e+00 : f32
    %329 = vector.broadcast %cst_130 : f32 to vector<1x128xf32>
    %330 = arith.addf %329, %328 : vector<1x128xf32>
    %331 = arith.divf %329, %330 : vector<1x128xf32>
    %332 = vector.extract_strided_slice %314 {offsets = [0, 256], sizes = [1, 128], strides = [1, 1]} : vector<1x640xf32> to vector<1x128xf32>
    %333 = arith.negf %332 : vector<1x128xf32>
    %334 = math.exp %333 : vector<1x128xf32>
    %cst_131 = arith.constant 1.000000e+00 : f32
    %335 = vector.broadcast %cst_131 : f32 to vector<1x128xf32>
    %336 = arith.addf %335, %334 : vector<1x128xf32>
    %337 = arith.divf %335, %336 : vector<1x128xf32>
    %338 = vector.extract_strided_slice %314 {offsets = [0, 384], sizes = [1, 128], strides = [1, 1]} : vector<1x640xf32> to vector<1x128xf32>
    %339 = math.tanh %338 : vector<1x128xf32>
    %340 = vector.extract_strided_slice %314 {offsets = [0, 512], sizes = [1, 128], strides = [1, 1]} : vector<1x640xf32> to vector<1x128xf32>
    %341 = arith.negf %340 : vector<1x128xf32>
    %342 = math.exp %341 : vector<1x128xf32>
    %cst_132 = arith.constant 1.000000e+00 : f32
    %343 = vector.broadcast %cst_132 : f32 to vector<1x128xf32>
    %344 = arith.addf %343, %342 : vector<1x128xf32>
    %345 = arith.divf %343, %344 : vector<1x128xf32>
    %346 = arith.mulf %325, %339 : vector<1x128xf32>
    %347 = arith.mulf %337, %304 : vector<1x128xf32>
    %348 = arith.addf %346, %347 : vector<1x128xf32>
    %349 = math.tanh %348 : vector<1x128xf32>
    %350 = arith.mulf %331, %349 : vector<1x128xf32>
    %351 = arith.mulf %345, %350 : vector<1x128xf32>
    %cst_133 = arith.constant 1.000000e+00 : f32
    %352 = vector.broadcast %cst_133 : f32 to vector<1x128xf32>
    %353 = arith.subf %352, %345 : vector<1x128xf32>
    %354 = arith.mulf %353, %319 : vector<1x128xf32>
    %355 = arith.addf %351, %354 : vector<1x128xf32>
    %c0_134 = arith.constant 0 : index
    %c0_135 = arith.constant 0 : index
    %356 = vector.load %arg11[%c0_134, %c0_135] : memref<128x128xf32, #tpu.memory_space<vmem>>, vector<128x128xf32>
    %cst_136 = arith.constant dense<0.000000e+00> : vector<1x128xf32>
    %357 = tpu.matmul %355, %356, %cst_136 {dimension_numbers = #tpu.dot_dimension_numbers<[1], [0], [0], [1], [0, 0, 1, 1], [], []>} : vector<1x128xf32>, vector<128x128xf32>, vector<1x128xf32> -> vector<1x128xf32>
    %c0_137 = arith.constant 0 : index
    %c0_138 = arith.constant 0 : index
    %358 = vector.load %arg12[%c0_137, %c0_138] : memref<1x128xf32, #tpu.memory_space<vmem>>, vector<1x128xf32>
    %359 = arith.addf %357, %358 : vector<1x128xf32>
    %360 = arith.index_cast %296 : i32 to index
    %c0_139 = arith.constant 0 : index
    %361 = vector.load %arg13[%360, %c0_139] : memref<7x128xf32, #tpu.memory_space<vmem>>, vector<1x128xf32>
    tpu.vector_store %arg13[%360, %c0_139], %359 {strides = array<i32>} : memref<7x128xf32, #tpu.memory_space<vmem>>, vector<1x128xf32>,
    %362 = arith.addf %359, %33 : vector<1x128xf32>
    %cst_140 = arith.constant dense<0xFF800000> : vector<1xf32>
    %363 = vector.multi_reduction <maximumf>, %362, %cst_140 [1] : vector<1x128xf32> to vector<1xf32>
    %364 = vector.shape_cast %363 : vector<1xf32> to vector<1x1xf32>
    %365 = vector.broadcast %364 : vector<1x1xf32> to vector<1x128xf32>
    %366 = arith.cmpf oge, %362, %365 : vector<1x128xf32>
    %c128_i32_141 = arith.constant 128 : i32
    %367 = vector.broadcast %c128_i32_141 : i32 to vector<1x128xi32>
    %368 = arith.select %366, %25, %367 : vector<1x128xi1>, vector<1x128xi32>
    %369 = vector.shape_cast %368 : vector<1x128xi32> to vector<1x1x128xi32>
    %cst_142 = arith.constant dense<2147483647> : vector<1xi32>
    %370 = vector.multi_reduction <minsi>, %369, %cst_142 [1, 2] : vector<1x1x128xi32> to vector<1xi32>
    %371 = vector.shape_cast %370 : vector<1xi32> to vector<1x1x1xi32>
    %372 = vector.extract %371[0, 0, 0] : i32 from vector<1x1x1xi32>
    %373 = arith.index_cast %296 : i32 to index
    %374 = memref.load %arg14[%373] : memref<7xi32, #tpu.memory_space<smem>>
    memref.store %372, %arg14[%373] : memref<7xi32, #tpu.memory_space<smem>>
    %c1_i32_143 = arith.constant 1 : i32
    %375 = arith.addi %372, %c1_i32_143 : i32
    %376 = arith.index_cast %c3_i32 : i32 to index
    %377 = memref.load %arg17[%376] : memref<8xi32, #tpu.memory_space<smem>>
    memref.store %375, %arg17[%376] : memref<8xi32, #tpu.memory_space<smem>>
    %378 = arith.index_cast %c3_i32 : i32 to index
    %c0_144 = arith.constant 0 : index
    %379 = vector.load %arg15[%378, %c0_144] : memref<8x128xf32, #tpu.memory_space<vmem>>, vector<1x128xf32>
    tpu.vector_store %arg15[%378, %c0_144], %355 {strides = array<i32>} : memref<8x128xf32, #tpu.memory_space<vmem>>, vector<1x128xf32>,
    %380 = arith.index_cast %c3_i32 : i32 to index
    %c0_145 = arith.constant 0 : index
    %381 = vector.load %arg16[%380, %c0_145] : memref<8x128xf32, #tpu.memory_space<vmem>>, vector<1x128xf32>
    tpu.vector_store %arg16[%380, %c0_145], %348 {strides = array<i32>} : memref<8x128xf32, #tpu.memory_space<vmem>>, vector<1x128xf32>,
    %c4_i32 = arith.constant 4 : i32
    %382 = arith.index_cast %c4_i32 : i32 to index
    %383 = memref.load %arg0[%382] : memref<7xi32, #tpu.memory_space<smem>>
    %384 = arith.index_cast %c4_i32 : i32 to index
    %385 = memref.load %arg1[%384] : memref<7xi32, #tpu.memory_space<smem>>
    %c0_i32_146 = arith.constant 0 : i32
    %386 = arith.cmpi slt, %385, %c0_i32_146 : i32
    %c7_i32_147 = arith.constant 7 : i32
    %387 = arith.select %386, %c7_i32_147, %385 : i32
    %388 = arith.index_cast %387 : i32 to index
    %c0_148 = arith.constant 0 : index
    %389 = vector.load %arg15[%388, %c0_148] : memref<8x128xf32, #tpu.memory_space<vmem>>, vector<1x128xf32>
    %390 = arith.index_cast %387 : i32 to index
    %c0_149 = arith.constant 0 : index
    %391 = vector.load %arg16[%390, %c0_149] : memref<8x128xf32, #tpu.memory_space<vmem>>, vector<1x128xf32>
    %392 = arith.index_cast %387 : i32 to index
    %393 = memref.load %arg17[%392] : memref<8xi32, #tpu.memory_space<smem>>
    %394 = arith.index_cast %383 : i32 to index
    %c0_150 = arith.constant 0 : index
    %395 = vector.load %arg18[%394, %c0_150] : memref<7x640xf32, #tpu.memory_space<vmem>>, vector<1x640xf32>
    %396 = arith.index_cast %393 : i32 to index
    %c0_151 = arith.constant 0 : index
    %397 = vector.load %arg20[%396, %c0_151] : memref<24x640xf32, #tpu.memory_space<vmem>>, vector<1x640xf32>
    %398 = arith.addf %395, %397 : vector<1x640xf32>
    %c0_152 = arith.constant 0 : index
    %c0_153 = arith.constant 0 : index
    %399 = vector.load %arg9[%c0_152, %c0_153] : memref<128x640xf32, #tpu.memory_space<vmem>>, vector<128x640xf32>
    %cst_154 = arith.constant dense<0.000000e+00> : vector<1x640xf32>
    %400 = tpu.matmul %389, %399, %cst_154 {dimension_numbers = #tpu.dot_dimension_numbers<[1], [0], [0], [1], [0, 0, 1, 1], [], []>} : vector<1x128xf32>, vector<128x640xf32>, vector<1x640xf32> -> vector<1x640xf32>
    %401 = arith.addf %398, %400 : vector<1x640xf32>
    %402 = arith.index_cast %383 : i32 to index
    %c0_155 = arith.constant 0 : index
    %403 = vector.load %arg19[%402, %c0_155] : memref<7x128xf32, #tpu.memory_space<vmem>>, vector<1x128xf32>
    %404 = arith.index_cast %393 : i32 to index
    %c0_156 = arith.constant 0 : index
    %405 = vector.load %arg21[%404, %c0_156] : memref<24x128xf32, #tpu.memory_space<vmem>>, vector<1x128xf32>
    %406 = arith.addf %403, %405 : vector<1x128xf32>
    %407 = vector.extract_strided_slice %401 {offsets = [0, 0], sizes = [1, 128], strides = [1, 1]} : vector<1x640xf32> to vector<1x128xf32>
    %408 = arith.negf %407 : vector<1x128xf32>
    %409 = math.exp %408 : vector<1x128xf32>
    %cst_157 = arith.constant 1.000000e+00 : f32
    %410 = vector.broadcast %cst_157 : f32 to vector<1x128xf32>
    %411 = arith.addf %410, %409 : vector<1x128xf32>
    %412 = arith.divf %410, %411 : vector<1x128xf32>
    %413 = vector.extract_strided_slice %401 {offsets = [0, 128], sizes = [1, 128], strides = [1, 1]} : vector<1x640xf32> to vector<1x128xf32>
    %414 = arith.negf %413 : vector<1x128xf32>
    %415 = math.exp %414 : vector<1x128xf32>
    %cst_158 = arith.constant 1.000000e+00 : f32
    %416 = vector.broadcast %cst_158 : f32 to vector<1x128xf32>
    %417 = arith.addf %416, %415 : vector<1x128xf32>
    %418 = arith.divf %416, %417 : vector<1x128xf32>
    %419 = vector.extract_strided_slice %401 {offsets = [0, 256], sizes = [1, 128], strides = [1, 1]} : vector<1x640xf32> to vector<1x128xf32>
    %420 = arith.negf %419 : vector<1x128xf32>
    %421 = math.exp %420 : vector<1x128xf32>
    %cst_159 = arith.constant 1.000000e+00 : f32
    %422 = vector.broadcast %cst_159 : f32 to vector<1x128xf32>
    %423 = arith.addf %422, %421 : vector<1x128xf32>
    %424 = arith.divf %422, %423 : vector<1x128xf32>
    %425 = vector.extract_strided_slice %401 {offsets = [0, 384], sizes = [1, 128], strides = [1, 1]} : vector<1x640xf32> to vector<1x128xf32>
    %426 = math.tanh %425 : vector<1x128xf32>
    %427 = vector.extract_strided_slice %401 {offsets = [0, 512], sizes = [1, 128], strides = [1, 1]} : vector<1x640xf32> to vector<1x128xf32>
    %428 = arith.negf %427 : vector<1x128xf32>
    %429 = math.exp %428 : vector<1x128xf32>
    %cst_160 = arith.constant 1.000000e+00 : f32
    %430 = vector.broadcast %cst_160 : f32 to vector<1x128xf32>
    %431 = arith.addf %430, %429 : vector<1x128xf32>
    %432 = arith.divf %430, %431 : vector<1x128xf32>
    %433 = arith.mulf %412, %426 : vector<1x128xf32>
    %434 = arith.mulf %424, %391 : vector<1x128xf32>
    %435 = arith.addf %433, %434 : vector<1x128xf32>
    %436 = math.tanh %435 : vector<1x128xf32>
    %437 = arith.mulf %418, %436 : vector<1x128xf32>
    %438 = arith.mulf %432, %437 : vector<1x128xf32>
    %cst_161 = arith.constant 1.000000e+00 : f32
    %439 = vector.broadcast %cst_161 : f32 to vector<1x128xf32>
    %440 = arith.subf %439, %432 : vector<1x128xf32>
    %441 = arith.mulf %440, %406 : vector<1x128xf32>
    %442 = arith.addf %438, %441 : vector<1x128xf32>
    %c0_162 = arith.constant 0 : index
    %c0_163 = arith.constant 0 : index
    %443 = vector.load %arg11[%c0_162, %c0_163] : memref<128x128xf32, #tpu.memory_space<vmem>>, vector<128x128xf32>
    %cst_164 = arith.constant dense<0.000000e+00> : vector<1x128xf32>
    %444 = tpu.matmul %442, %443, %cst_164 {dimension_numbers = #tpu.dot_dimension_numbers<[1], [0], [0], [1], [0, 0, 1, 1], [], []>} : vector<1x128xf32>, vector<128x128xf32>, vector<1x128xf32> -> vector<1x128xf32>
    %c0_165 = arith.constant 0 : index
    %c0_166 = arith.constant 0 : index
    %445 = vector.load %arg12[%c0_165, %c0_166] : memref<1x128xf32, #tpu.memory_space<vmem>>, vector<1x128xf32>
    %446 = arith.addf %444, %445 : vector<1x128xf32>
    %447 = arith.index_cast %383 : i32 to index
    %c0_167 = arith.constant 0 : index
    %448 = vector.load %arg13[%447, %c0_167] : memref<7x128xf32, #tpu.memory_space<vmem>>, vector<1x128xf32>
    tpu.vector_store %arg13[%447, %c0_167], %446 {strides = array<i32>} : memref<7x128xf32, #tpu.memory_space<vmem>>, vector<1x128xf32>,
    %449 = arith.addf %446, %33 : vector<1x128xf32>
    %cst_168 = arith.constant dense<0xFF800000> : vector<1xf32>
    %450 = vector.multi_reduction <maximumf>, %449, %cst_168 [1] : vector<1x128xf32> to vector<1xf32>
    %451 = vector.shape_cast %450 : vector<1xf32> to vector<1x1xf32>
    %452 = vector.broadcast %451 : vector<1x1xf32> to vector<1x128xf32>
    %453 = arith.cmpf oge, %449, %452 : vector<1x128xf32>
    %c128_i32_169 = arith.constant 128 : i32
    %454 = vector.broadcast %c128_i32_169 : i32 to vector<1x128xi32>
    %455 = arith.select %453, %25, %454 : vector<1x128xi1>, vector<1x128xi32>
    %456 = vector.shape_cast %455 : vector<1x128xi32> to vector<1x1x128xi32>
    %cst_170 = arith.constant dense<2147483647> : vector<1xi32>
    %457 = vector.multi_reduction <minsi>, %456, %cst_170 [1, 2] : vector<1x1x128xi32> to vector<1xi32>
    %458 = vector.shape_cast %457 : vector<1xi32> to vector<1x1x1xi32>
    %459 = vector.extract %458[0, 0, 0] : i32 from vector<1x1x1xi32>
    %460 = arith.index_cast %383 : i32 to index
    %461 = memref.load %arg14[%460] : memref<7xi32, #tpu.memory_space<smem>>
    memref.store %459, %arg14[%460] : memref<7xi32, #tpu.memory_space<smem>>
    %c1_i32_171 = arith.constant 1 : i32
    %462 = arith.addi %459, %c1_i32_171 : i32
    %463 = arith.index_cast %c4_i32 : i32 to index
    %464 = memref.load %arg17[%463] : memref<8xi32, #tpu.memory_space<smem>>
    memref.store %462, %arg17[%463] : memref<8xi32, #tpu.memory_space<smem>>
    %465 = arith.index_cast %c4_i32 : i32 to index
    %c0_172 = arith.constant 0 : index
    %466 = vector.load %arg15[%465, %c0_172] : memref<8x128xf32, #tpu.memory_space<vmem>>, vector<1x128xf32>
    tpu.vector_store %arg15[%465, %c0_172], %442 {strides = array<i32>} : memref<8x128xf32, #tpu.memory_space<vmem>>, vector<1x128xf32>,
    %467 = arith.index_cast %c4_i32 : i32 to index
    %c0_173 = arith.constant 0 : index
    %468 = vector.load %arg16[%467, %c0_173] : memref<8x128xf32, #tpu.memory_space<vmem>>, vector<1x128xf32>
    tpu.vector_store %arg16[%467, %c0_173], %435 {strides = array<i32>} : memref<8x128xf32, #tpu.memory_space<vmem>>, vector<1x128xf32>,
    %c5_i32 = arith.constant 5 : i32
    %469 = arith.index_cast %c5_i32 : i32 to index
    %470 = memref.load %arg0[%469] : memref<7xi32, #tpu.memory_space<smem>>
    %471 = arith.index_cast %c5_i32 : i32 to index
    %472 = memref.load %arg1[%471] : memref<7xi32, #tpu.memory_space<smem>>
    %c0_i32_174 = arith.constant 0 : i32
    %473 = arith.cmpi slt, %472, %c0_i32_174 : i32
    %c7_i32_175 = arith.constant 7 : i32
    %474 = arith.select %473, %c7_i32_175, %472 : i32
    %475 = arith.index_cast %474 : i32 to index
    %c0_176 = arith.constant 0 : index
    %476 = vector.load %arg15[%475, %c0_176] : memref<8x128xf32, #tpu.memory_space<vmem>>, vector<1x128xf32>
    %477 = arith.index_cast %474 : i32 to index
    %c0_177 = arith.constant 0 : index
    %478 = vector.load %arg16[%477, %c0_177] : memref<8x128xf32, #tpu.memory_space<vmem>>, vector<1x128xf32>
    %479 = arith.index_cast %474 : i32 to index
    %480 = memref.load %arg17[%479] : memref<8xi32, #tpu.memory_space<smem>>
    %481 = arith.index_cast %470 : i32 to index
    %c0_178 = arith.constant 0 : index
    %482 = vector.load %arg18[%481, %c0_178] : memref<7x640xf32, #tpu.memory_space<vmem>>, vector<1x640xf32>
    %483 = arith.index_cast %480 : i32 to index
    %c0_179 = arith.constant 0 : index
    %484 = vector.load %arg20[%483, %c0_179] : memref<24x640xf32, #tpu.memory_space<vmem>>, vector<1x640xf32>
    %485 = arith.addf %482, %484 : vector<1x640xf32>
    %c0_180 = arith.constant 0 : index
    %c0_181 = arith.constant 0 : index
    %486 = vector.load %arg9[%c0_180, %c0_181] : memref<128x640xf32, #tpu.memory_space<vmem>>, vector<128x640xf32>
    %cst_182 = arith.constant dense<0.000000e+00> : vector<1x640xf32>
    %487 = tpu.matmul %476, %486, %cst_182 {dimension_numbers = #tpu.dot_dimension_numbers<[1], [0], [0], [1], [0, 0, 1, 1], [], []>} : vector<1x128xf32>, vector<128x640xf32>, vector<1x640xf32> -> vector<1x640xf32>
    %488 = arith.addf %485, %487 : vector<1x640xf32>
    %489 = arith.index_cast %470 : i32 to index
    %c0_183 = arith.constant 0 : index
    %490 = vector.load %arg19[%489, %c0_183] : memref<7x128xf32, #tpu.memory_space<vmem>>, vector<1x128xf32>
    %491 = arith.index_cast %480 : i32 to index
    %c0_184 = arith.constant 0 : index
    %492 = vector.load %arg21[%491, %c0_184] : memref<24x128xf32, #tpu.memory_space<vmem>>, vector<1x128xf32>
    %493 = arith.addf %490, %492 : vector<1x128xf32>
    %494 = vector.extract_strided_slice %488 {offsets = [0, 0], sizes = [1, 128], strides = [1, 1]} : vector<1x640xf32> to vector<1x128xf32>
    %495 = arith.negf %494 : vector<1x128xf32>
    %496 = math.exp %495 : vector<1x128xf32>
    %cst_185 = arith.constant 1.000000e+00 : f32
    %497 = vector.broadcast %cst_185 : f32 to vector<1x128xf32>
    %498 = arith.addf %497, %496 : vector<1x128xf32>
    %499 = arith.divf %497, %498 : vector<1x128xf32>
    %500 = vector.extract_strided_slice %488 {offsets = [0, 128], sizes = [1, 128], strides = [1, 1]} : vector<1x640xf32> to vector<1x128xf32>
    %501 = arith.negf %500 : vector<1x128xf32>
    %502 = math.exp %501 : vector<1x128xf32>
    %cst_186 = arith.constant 1.000000e+00 : f32
    %503 = vector.broadcast %cst_186 : f32 to vector<1x128xf32>
    %504 = arith.addf %503, %502 : vector<1x128xf32>
    %505 = arith.divf %503, %504 : vector<1x128xf32>
    %506 = vector.extract_strided_slice %488 {offsets = [0, 256], sizes = [1, 128], strides = [1, 1]} : vector<1x640xf32> to vector<1x128xf32>
    %507 = arith.negf %506 : vector<1x128xf32>
    %508 = math.exp %507 : vector<1x128xf32>
    %cst_187 = arith.constant 1.000000e+00 : f32
    %509 = vector.broadcast %cst_187 : f32 to vector<1x128xf32>
    %510 = arith.addf %509, %508 : vector<1x128xf32>
    %511 = arith.divf %509, %510 : vector<1x128xf32>
    %512 = vector.extract_strided_slice %488 {offsets = [0, 384], sizes = [1, 128], strides = [1, 1]} : vector<1x640xf32> to vector<1x128xf32>
    %513 = math.tanh %512 : vector<1x128xf32>
    %514 = vector.extract_strided_slice %488 {offsets = [0, 512], sizes = [1, 128], strides = [1, 1]} : vector<1x640xf32> to vector<1x128xf32>
    %515 = arith.negf %514 : vector<1x128xf32>
    %516 = math.exp %515 : vector<1x128xf32>
    %cst_188 = arith.constant 1.000000e+00 : f32
    %517 = vector.broadcast %cst_188 : f32 to vector<1x128xf32>
    %518 = arith.addf %517, %516 : vector<1x128xf32>
    %519 = arith.divf %517, %518 : vector<1x128xf32>
    %520 = arith.mulf %499, %513 : vector<1x128xf32>
    %521 = arith.mulf %511, %478 : vector<1x128xf32>
    %522 = arith.addf %520, %521 : vector<1x128xf32>
    %523 = math.tanh %522 : vector<1x128xf32>
    %524 = arith.mulf %505, %523 : vector<1x128xf32>
    %525 = arith.mulf %519, %524 : vector<1x128xf32>
    %cst_189 = arith.constant 1.000000e+00 : f32
    %526 = vector.broadcast %cst_189 : f32 to vector<1x128xf32>
    %527 = arith.subf %526, %519 : vector<1x128xf32>
    %528 = arith.mulf %527, %493 : vector<1x128xf32>
    %529 = arith.addf %525, %528 : vector<1x128xf32>
    %c0_190 = arith.constant 0 : index
    %c0_191 = arith.constant 0 : index
    %530 = vector.load %arg11[%c0_190, %c0_191] : memref<128x128xf32, #tpu.memory_space<vmem>>, vector<128x128xf32>
    %cst_192 = arith.constant dense<0.000000e+00> : vector<1x128xf32>
    %531 = tpu.matmul %529, %530, %cst_192 {dimension_numbers = #tpu.dot_dimension_numbers<[1], [0], [0], [1], [0, 0, 1, 1], [], []>} : vector<1x128xf32>, vector<128x128xf32>, vector<1x128xf32> -> vector<1x128xf32>
    %c0_193 = arith.constant 0 : index
    %c0_194 = arith.constant 0 : index
    %532 = vector.load %arg12[%c0_193, %c0_194] : memref<1x128xf32, #tpu.memory_space<vmem>>, vector<1x128xf32>
    %533 = arith.addf %531, %532 : vector<1x128xf32>
    %534 = arith.index_cast %470 : i32 to index
    %c0_195 = arith.constant 0 : index
    %535 = vector.load %arg13[%534, %c0_195] : memref<7x128xf32, #tpu.memory_space<vmem>>, vector<1x128xf32>
    tpu.vector_store %arg13[%534, %c0_195], %533 {strides = array<i32>} : memref<7x128xf32, #tpu.memory_space<vmem>>, vector<1x128xf32>,
    %536 = arith.addf %533, %33 : vector<1x128xf32>
    %cst_196 = arith.constant dense<0xFF800000> : vector<1xf32>
    %537 = vector.multi_reduction <maximumf>, %536, %cst_196 [1] : vector<1x128xf32> to vector<1xf32>
    %538 = vector.shape_cast %537 : vector<1xf32> to vector<1x1xf32>
    %539 = vector.broadcast %538 : vector<1x1xf32> to vector<1x128xf32>
    %540 = arith.cmpf oge, %536, %539 : vector<1x128xf32>
    %c128_i32_197 = arith.constant 128 : i32
    %541 = vector.broadcast %c128_i32_197 : i32 to vector<1x128xi32>
    %542 = arith.select %540, %25, %541 : vector<1x128xi1>, vector<1x128xi32>
    %543 = vector.shape_cast %542 : vector<1x128xi32> to vector<1x1x128xi32>
    %cst_198 = arith.constant dense<2147483647> : vector<1xi32>
    %544 = vector.multi_reduction <minsi>, %543, %cst_198 [1, 2] : vector<1x1x128xi32> to vector<1xi32>
    %545 = vector.shape_cast %544 : vector<1xi32> to vector<1x1x1xi32>
    %546 = vector.extract %545[0, 0, 0] : i32 from vector<1x1x1xi32>
    %547 = arith.index_cast %470 : i32 to index
    %548 = memref.load %arg14[%547] : memref<7xi32, #tpu.memory_space<smem>>
    memref.store %546, %arg14[%547] : memref<7xi32, #tpu.memory_space<smem>>
    %c1_i32_199 = arith.constant 1 : i32
    %549 = arith.addi %546, %c1_i32_199 : i32
    %550 = arith.index_cast %c5_i32 : i32 to index
    %551 = memref.load %arg17[%550] : memref<8xi32, #tpu.memory_space<smem>>
    memref.store %549, %arg17[%550] : memref<8xi32, #tpu.memory_space<smem>>
    %552 = arith.index_cast %c5_i32 : i32 to index
    %c0_200 = arith.constant 0 : index
    %553 = vector.load %arg15[%552, %c0_200] : memref<8x128xf32, #tpu.memory_space<vmem>>, vector<1x128xf32>
    tpu.vector_store %arg15[%552, %c0_200], %529 {strides = array<i32>} : memref<8x128xf32, #tpu.memory_space<vmem>>, vector<1x128xf32>,
    %554 = arith.index_cast %c5_i32 : i32 to index
    %c0_201 = arith.constant 0 : index
    %555 = vector.load %arg16[%554, %c0_201] : memref<8x128xf32, #tpu.memory_space<vmem>>, vector<1x128xf32>
    tpu.vector_store %arg16[%554, %c0_201], %522 {strides = array<i32>} : memref<8x128xf32, #tpu.memory_space<vmem>>, vector<1x128xf32>,
    %c6_i32 = arith.constant 6 : i32
    %556 = arith.index_cast %c6_i32 : i32 to index
    %557 = memref.load %arg0[%556] : memref<7xi32, #tpu.memory_space<smem>>
    %558 = arith.index_cast %c6_i32 : i32 to index
    %559 = memref.load %arg1[%558] : memref<7xi32, #tpu.memory_space<smem>>
    %c0_i32_202 = arith.constant 0 : i32
    %560 = arith.cmpi slt, %559, %c0_i32_202 : i32
    %c7_i32_203 = arith.constant 7 : i32
    %561 = arith.select %560, %c7_i32_203, %559 : i32
    %562 = arith.index_cast %561 : i32 to index
    %c0_204 = arith.constant 0 : index
    %563 = vector.load %arg15[%562, %c0_204] : memref<8x128xf32, #tpu.memory_space<vmem>>, vector<1x128xf32>
    %564 = arith.index_cast %561 : i32 to index
    %c0_205 = arith.constant 0 : index
    %565 = vector.load %arg16[%564, %c0_205] : memref<8x128xf32, #tpu.memory_space<vmem>>, vector<1x128xf32>
    %566 = arith.index_cast %561 : i32 to index
    %567 = memref.load %arg17[%566] : memref<8xi32, #tpu.memory_space<smem>>
    %568 = arith.index_cast %557 : i32 to index
    %c0_206 = arith.constant 0 : index
    %569 = vector.load %arg18[%568, %c0_206] : memref<7x640xf32, #tpu.memory_space<vmem>>, vector<1x640xf32>
    %570 = arith.index_cast %567 : i32 to index
    %c0_207 = arith.constant 0 : index
    %571 = vector.load %arg20[%570, %c0_207] : memref<24x640xf32, #tpu.memory_space<vmem>>, vector<1x640xf32>
    %572 = arith.addf %569, %571 : vector<1x640xf32>
    %c0_208 = arith.constant 0 : index
    %c0_209 = arith.constant 0 : index
    %573 = vector.load %arg9[%c0_208, %c0_209] : memref<128x640xf32, #tpu.memory_space<vmem>>, vector<128x640xf32>
    %cst_210 = arith.constant dense<0.000000e+00> : vector<1x640xf32>
    %574 = tpu.matmul %563, %573, %cst_210 {dimension_numbers = #tpu.dot_dimension_numbers<[1], [0], [0], [1], [0, 0, 1, 1], [], []>} : vector<1x128xf32>, vector<128x640xf32>, vector<1x640xf32> -> vector<1x640xf32>
    %575 = arith.addf %572, %574 : vector<1x640xf32>
    %576 = arith.index_cast %557 : i32 to index
    %c0_211 = arith.constant 0 : index
    %577 = vector.load %arg19[%576, %c0_211] : memref<7x128xf32, #tpu.memory_space<vmem>>, vector<1x128xf32>
    %578 = arith.index_cast %567 : i32 to index
    %c0_212 = arith.constant 0 : index
    %579 = vector.load %arg21[%578, %c0_212] : memref<24x128xf32, #tpu.memory_space<vmem>>, vector<1x128xf32>
    %580 = arith.addf %577, %579 : vector<1x128xf32>
    %581 = vector.extract_strided_slice %575 {offsets = [0, 0], sizes = [1, 128], strides = [1, 1]} : vector<1x640xf32> to vector<1x128xf32>
    %582 = arith.negf %581 : vector<1x128xf32>
    %583 = math.exp %582 : vector<1x128xf32>
    %cst_213 = arith.constant 1.000000e+00 : f32
    %584 = vector.broadcast %cst_213 : f32 to vector<1x128xf32>
    %585 = arith.addf %584, %583 : vector<1x128xf32>
    %586 = arith.divf %584, %585 : vector<1x128xf32>
    %587 = vector.extract_strided_slice %575 {offsets = [0, 128], sizes = [1, 128], strides = [1, 1]} : vector<1x640xf32> to vector<1x128xf32>
    %588 = arith.negf %587 : vector<1x128xf32>
    %589 = math.exp %588 : vector<1x128xf32>
    %cst_214 = arith.constant 1.000000e+00 : f32
    %590 = vector.broadcast %cst_214 : f32 to vector<1x128xf32>
    %591 = arith.addf %590, %589 : vector<1x128xf32>
    %592 = arith.divf %590, %591 : vector<1x128xf32>
    %593 = vector.extract_strided_slice %575 {offsets = [0, 256], sizes = [1, 128], strides = [1, 1]} : vector<1x640xf32> to vector<1x128xf32>
    %594 = arith.negf %593 : vector<1x128xf32>
    %595 = math.exp %594 : vector<1x128xf32>
    %cst_215 = arith.constant 1.000000e+00 : f32
    %596 = vector.broadcast %cst_215 : f32 to vector<1x128xf32>
    %597 = arith.addf %596, %595 : vector<1x128xf32>
    %598 = arith.divf %596, %597 : vector<1x128xf32>
    %599 = vector.extract_strided_slice %575 {offsets = [0, 384], sizes = [1, 128], strides = [1, 1]} : vector<1x640xf32> to vector<1x128xf32>
    %600 = math.tanh %599 : vector<1x128xf32>
    %601 = vector.extract_strided_slice %575 {offsets = [0, 512], sizes = [1, 128], strides = [1, 1]} : vector<1x640xf32> to vector<1x128xf32>
    %602 = arith.negf %601 : vector<1x128xf32>
    %603 = math.exp %602 : vector<1x128xf32>
    %cst_216 = arith.constant 1.000000e+00 : f32
    %604 = vector.broadcast %cst_216 : f32 to vector<1x128xf32>
    %605 = arith.addf %604, %603 : vector<1x128xf32>
    %606 = arith.divf %604, %605 : vector<1x128xf32>
    %607 = arith.mulf %586, %600 : vector<1x128xf32>
    %608 = arith.mulf %598, %565 : vector<1x128xf32>
    %609 = arith.addf %607, %608 : vector<1x128xf32>
    %610 = math.tanh %609 : vector<1x128xf32>
    %611 = arith.mulf %592, %610 : vector<1x128xf32>
    %612 = arith.mulf %606, %611 : vector<1x128xf32>
    %cst_217 = arith.constant 1.000000e+00 : f32
    %613 = vector.broadcast %cst_217 : f32 to vector<1x128xf32>
    %614 = arith.subf %613, %606 : vector<1x128xf32>
    %615 = arith.mulf %614, %580 : vector<1x128xf32>
    %616 = arith.addf %612, %615 : vector<1x128xf32>
    %c0_218 = arith.constant 0 : index
    %c0_219 = arith.constant 0 : index
    %617 = vector.load %arg11[%c0_218, %c0_219] : memref<128x128xf32, #tpu.memory_space<vmem>>, vector<128x128xf32>
    %cst_220 = arith.constant dense<0.000000e+00> : vector<1x128xf32>
    %618 = tpu.matmul %616, %617, %cst_220 {dimension_numbers = #tpu.dot_dimension_numbers<[1], [0], [0], [1], [0, 0, 1, 1], [], []>} : vector<1x128xf32>, vector<128x128xf32>, vector<1x128xf32> -> vector<1x128xf32>
    %c0_221 = arith.constant 0 : index
    %c0_222 = arith.constant 0 : index
    %619 = vector.load %arg12[%c0_221, %c0_222] : memref<1x128xf32, #tpu.memory_space<vmem>>, vector<1x128xf32>
    %620 = arith.addf %618, %619 : vector<1x128xf32>
    %621 = arith.index_cast %557 : i32 to index
    %c0_223 = arith.constant 0 : index
    %622 = vector.load %arg13[%621, %c0_223] : memref<7x128xf32, #tpu.memory_space<vmem>>, vector<1x128xf32>
    tpu.vector_store %arg13[%621, %c0_223], %620 {strides = array<i32>} : memref<7x128xf32, #tpu.memory_space<vmem>>, vector<1x128xf32>,
    %623 = arith.addf %620, %33 : vector<1x128xf32>
    %cst_224 = arith.constant dense<0xFF800000> : vector<1xf32>
    %624 = vector.multi_reduction <maximumf>, %623, %cst_224 [1] : vector<1x128xf32> to vector<1xf32>
    %625 = vector.shape_cast %624 : vector<1xf32> to vector<1x1xf32>
    %626 = vector.broadcast %625 : vector<1x1xf32> to vector<1x128xf32>
    %627 = arith.cmpf oge, %623, %626 : vector<1x128xf32>
    %c128_i32_225 = arith.constant 128 : i32
    %628 = vector.broadcast %c128_i32_225 : i32 to vector<1x128xi32>
    %629 = arith.select %627, %25, %628 : vector<1x128xi1>, vector<1x128xi32>
    %630 = vector.shape_cast %629 : vector<1x128xi32> to vector<1x1x128xi32>
    %cst_226 = arith.constant dense<2147483647> : vector<1xi32>
    %631 = vector.multi_reduction <minsi>, %630, %cst_226 [1, 2] : vector<1x1x128xi32> to vector<1xi32>
    %632 = vector.shape_cast %631 : vector<1xi32> to vector<1x1x1xi32>
    %633 = vector.extract %632[0, 0, 0] : i32 from vector<1x1x1xi32>
    %634 = arith.index_cast %557 : i32 to index
    %635 = memref.load %arg14[%634] : memref<7xi32, #tpu.memory_space<smem>>
    memref.store %633, %arg14[%634] : memref<7xi32, #tpu.memory_space<smem>>
    %c1_i32_227 = arith.constant 1 : i32
    %636 = arith.addi %633, %c1_i32_227 : i32
    %637 = arith.index_cast %c6_i32 : i32 to index
    %638 = memref.load %arg17[%637] : memref<8xi32, #tpu.memory_space<smem>>
    memref.store %636, %arg17[%637] : memref<8xi32, #tpu.memory_space<smem>>
    %639 = arith.index_cast %c6_i32 : i32 to index
    %c0_228 = arith.constant 0 : index
    %640 = vector.load %arg15[%639, %c0_228] : memref<8x128xf32, #tpu.memory_space<vmem>>, vector<1x128xf32>
    tpu.vector_store %arg15[%639, %c0_228], %616 {strides = array<i32>} : memref<8x128xf32, #tpu.memory_space<vmem>>, vector<1x128xf32>,
    %641 = arith.index_cast %c6_i32 : i32 to index
    %c0_229 = arith.constant 0 : index
    %642 = vector.load %arg16[%641, %c0_229] : memref<8x128xf32, #tpu.memory_space<vmem>>, vector<1x128xf32>
    tpu.vector_store %arg16[%641, %c0_229], %609 {strides = array<i32>} : memref<8x128xf32, #tpu.memory_space<vmem>>, vector<1x128xf32>,
    %c7_i32_230 = arith.constant 7 : i32
    return
  }
}

</mosaic_0001>

<llo_original>
// kernel: tpu_custom_call.1
$region0: #{tpu_custom_call.1}
  #allocation0 [shape = 'u32[]', space=smem, size = 0x4, offset = 0x4, fixed_abs, tag = 'smem constant byte address 0x4 - core index']
  #allocation1 [shape = 'u32[144,128]{1,0:T(1,128)}', space=vmem, size = 0x12000, scoped, tag = 'internal scratch']
  #allocation2 [shape = 'f32[8,128]{1,0:T(8,128)}', space=vmem, size = 0x1000, scoped, tag = 'scratch operand']
  #allocation3 [shape = 'f32[8,128]{1,0:T(8,128)}', space=vmem, size = 0x1000, scoped, tag = 'scratch operand']
  #allocation4 [shape = 's32[8]{0:T(128)}', space=smem, size = 0x200, scoped, tag = 'scratch operand']
  #allocation5 [shape = 'f32[7,640]{1,0:T(8,128)}', space=vmem, size = 0x5000, scoped, tag = 'scratch operand']
  #allocation6 [shape = 'f32[7,128]{1,0:T(8,128)}', space=vmem, size = 0x1000, scoped, tag = 'scratch operand']
  #allocation7 [shape = 'f32[24,640]{1,0:T(8,128)}', space=vmem, size = 0xf000, scoped, tag = 'scratch operand']
  #allocation8 [shape = 'f32[24,128]{1,0:T(8,128)}', space=vmem, size = 0x3000, scoped, tag = 'scratch operand']
  %s0 = inlined_call_operand.hbm [shape: s32[7], index: 0, kind: input, shape index: {}]
  %s1 = inlined_call_operand.vmem [shape: s32[7], index: 1, kind: input, shape index: {}]
  %s2 = inlined_call_operand.hbm [shape: f32[7,128], index: 2, kind: input, shape index: {}]
  %s3 = inlined_call_operand.hbm [shape: f32[24,128], index: 3, kind: input, shape index: {}]
  %s4 = inlined_call_operand.hbm [shape: f32[128,128], index: 4, kind: input, shape index: {}]
  %s5 = inlined_call_operand.hbm [shape: f32[128,128], index: 5, kind: input, shape index: {}]
  %s6 = inlined_call_operand.vmem [shape: f32[1,128], index: 6, kind: input, shape index: {}]
  %s7 = inlined_call_operand.hbm [shape: f32[128,640], index: 7, kind: input, shape index: {}]
  %s8 = inlined_call_operand.hbm [shape: f32[128,640], index: 8, kind: input, shape index: {}]
  %s9 = inlined_call_operand.hbm [shape: f32[128,640], index: 9, kind: input, shape index: {}]
  %s10 = inlined_call_operand.vmem [shape: f32[1,640], index: 10, kind: input, shape index: {}]
  %s11 = inlined_call_operand.hbm [shape: f32[128,128], index: 11, kind: input, shape index: {}]
  %s12 = inlined_call_operand.vmem [shape: f32[1,128], index: 12, kind: input, shape index: {}]
  %s13 = inlined_call_operand.hbm [shape: f32[7,128], index: 13, kind: output, shape index: {0}]
  %s14 = inlined_call_operand.hbm [shape: s32[7], index: 14, kind: output, shape index: {1}]
  %15 = xla_tuple %s13, %s14
  %s16 = sld [smem:[#allocation0]]
  $region110: #{tpu_custom_call.1} parent=0
    _
  %s18 = ssub.s32 1, %s16
  %s19 = scalar_select 0, %s18, %s16
  $region1: #{tpu_custom_call.1} parent=0
    #allocation9 [shape = 'u8[512]{0}', space=smem, size = 0x200, scoped, tag = 'input window, operand 0, single buffered']
    #allocation10 [shape = 's32[1]{0}', space=sflag, size = 0x4, scoped, tag = 'scoped memory for tpu_custom_call.1']
    #allocation11 [shape = 's32[1]{0}', space=sflag, size = 0x4, scoped, tag = 'scoped memory for tpu_custom_call.1']
    #allocation12 [shape = 's32[1]{0}', space=sflag, size = 0x4, scoped, tag = 'scoped memory for tpu_custom_call.1']
    #allocation13 [shape = 's32[1]{0}', space=sflag, size = 0x4, scoped, tag = 'scoped memory for tpu_custom_call.1']
    #allocation14 [shape = 's32[1]{0}', space=sflag, size = 0x4, scoped, tag = 'scoped memory for tpu_custom_call.1']
    #allocation15 [shape = 'u8[512]{0}', space=smem, size = 0x200, scoped, tag = 'input window, operand 1, single buffered']
    #allocation16 [shape = 'u8[4096]{0}', space=vmem, size = 0x1000, scoped, tag = 'input window, operand 2, single buffered']
    #allocation17 [shape = 'u8[12288]{0}', space=vmem, size = 0x3000, scoped, tag = 'input window, operand 3, single buffered']
    #allocation18 [shape = 's32[1]{0}', space=sflag, size = 0x4, scoped, tag = 'scoped memory for tpu_custom_call.1']
    #allocation19 [shape = 'u8[65536]{0}', space=vmem, size = 0x10000, scoped, tag = 'input window, operand 4, single buffered']
    #allocation20 [shape = 'u8[65536]{0}', space=vmem, size = 0x10000, scoped, tag = 'input window, operand 5, single buffered']
    #allocation21 [shape = 's32[1]{0}', space=sflag, size = 0x4, scoped, tag = 'scoped memory for tpu_custom_call.1']
    #allocation22 [shape = 'u8[327680]{0}', space=vmem, size = 0x50000, scoped, tag = 'input window, operand 7, single buffered']
    #allocation23 [shape = 'u8[327680]{0}', space=vmem, size = 0x50000, scoped, tag = 'input window, operand 8, single buffered']
    #allocation24 [shape = 's32[1]{0}', space=sflag, size = 0x4, scoped, tag = 'scoped memory for tpu_custom_call.1']
    #allocation25 [shape = 'u8[327680]{0}', space=vmem, size = 0x50000, scoped, tag = 'input window, operand 9, single buffered']
    #allocation26 [shape = 'u8[65536]{0}', space=vmem, size = 0x10000, scoped, tag = 'input window, operand 11, single buffered']
    #allocation27 [shape = 's32[1]{0}', space=sflag, size = 0x4, scoped, tag = 'scoped memory for tpu_custom_call.1']
    #allocation28 [shape = 'u8[4096]{0}', space=vmem, size = 0x1000, scoped, tag = 'output window, operand 0, single buffered']
    #allocation29 [shape = 'u8[512]{0}', space=smem, size = 0x200, scoped, tag = 'output window, operand 1, single buffered']
    %20 = vsyncpa [#allocation12], 0
    %21 = vsyncpa [#allocation14], 0
    %22 = vsyncpa [#allocation10], 0
    %23 = vsyncpa [#allocation18], 0
    %24 = vsyncpa [#allocation21], 0
    %25 = vsyncpa [#allocation24], 0
    %26 = vsyncpa [#allocation27], 0
    %27 = vsyncpa [#allocation11], 0
    %28 = vsyncpa [#allocation13], 0
    // Predicated region
    $region2: #{tpu_custom_call.1} parent=1 // pred_check
      _
    $region3: #{tpu_custom_call.1} parent=1 // pred_check_branch
      %30 = sbr.rel (0) target = $region5
    $region4: #{tpu_custom_call.1} parent=1 // pred_region
      %s32 = ssub.s32 16, 16
      %33 = vsyncadd [#allocation12], %s32
      %36 = dma.hbm_to_smem %s0, 16, [#allocation9], [#allocation12]
    $region5: #{tpu_custom_call.1} parent=1 // pred_fallthru
      _
    // Predicated region
    $region6: #{tpu_custom_call.1} parent=1 // pred_check
      _
    $region7: #{tpu_custom_call.1} parent=1 // pred_check_branch
      %38 = sbr.rel (0) target = $region9
    $region8: #{tpu_custom_call.1} parent=1 // pred_region
      %s40 = ssub.s32 16, 16
      %41 = vsyncadd [#allocation14], %s40
      %s43 = sshll.u32 %s1, 4
      %s44 = int_to_ptr.vmem [resolvable:$true] %s43
      %46 = dma.vmem_to_smem %s44, 16, [#allocation15], [#allocation14]
    $region9: #{tpu_custom_call.1} parent=1 // pred_fallthru
      _
    // Predicated region
    $region10: #{tpu_custom_call.1} parent=1 // pred_check
      _
    $region11: #{tpu_custom_call.1} parent=1 // pred_check_branch
      %48 = sbr.rel (0) target = $region13
    $region12: #{tpu_custom_call.1} parent=1 // pred_region
      %s50 = ssub.s32 128, 128
      %51 = vsyncadd [#allocation10], %s50
      %s53 = sshll.u32 [#allocation16], 4
      %s54 = int_to_ptr.vmem [resolvable:$true] %s53
      %56 = dma.hbm_to_vmem [thread:$0]  %s2, 128, %s54, [#allocation10]
    $region13: #{tpu_custom_call.1} parent=1 // pred_fallthru
      _
    // Predicated region
    $region14: #{tpu_custom_call.1} parent=1 // pred_check
      _
    $region15: #{tpu_custom_call.1} parent=1 // pred_check_branch
      %58 = sbr.rel (0) target = $region17
    $region16: #{tpu_custom_call.1} parent=1 // pred_region
      %s60 = ssub.s32 384, 384
      %61 = vsyncadd [#allocation18], %s60
      %s62 = sshll.u32 [#allocation17], 4
      %s63 = int_to_ptr.vmem [resolvable:$true] %s62
      %68 = dma.hbm_to_vmem [thread:$0]  %s3, 384, %s63, [#allocation18], 128, 128, 8
    $region17: #{tpu_custom_call.1} parent=1 // pred_fallthru
      _
    // Predicated region
    $region18: #{tpu_custom_call.1} parent=1 // pred_check
      _
    $region19: #{tpu_custom_call.1} parent=1 // pred_check_branch
      %70 = sbr.rel (0) target = $region21
    $region20: #{tpu_custom_call.1} parent=1 // pred_region
      %s72 = ssub.s32 2048, 2048
      %73 = vsyncadd [#allocation18], %s72
      %s74 = sshll.u32 [#allocation19], 4
      %s75 = int_to_ptr.vmem [resolvable:$true] %s74
      %80 = dma.hbm_to_vmem [thread:$0]  %s4, 2048, %s75, [#allocation18], 128, 128, 8
    $region21: #{tpu_custom_call.1} parent=1 // pred_fallthru
      _
    // Predicated region
    $region22: #{tpu_custom_call.1} parent=1 // pred_check
      _
    $region23: #{tpu_custom_call.1} parent=1 // pred_check_branch
      %82 = sbr.rel (0) target = $region25
    $region24: #{tpu_custom_call.1} parent=1 // pred_region
      %s84 = ssub.s32 2048, 2048
      %85 = vsyncadd [#allocation21], %s84
      %s86 = sshll.u32 [#allocation20], 4
      %s87 = int_to_ptr.vmem [resolvable:$true] %s86
      %92 = dma.hbm_to_vmem [thread:$0]  %s5, 2048, %s87, [#allocation21], 128, 128, 8
    $region25: #{tpu_custom_call.1} parent=1 // pred_fallthru
      _
    // Predicated region
    $region26: #{tpu_custom_call.1} parent=1 // pred_check
      _
    $region27: #{tpu_custom_call.1} parent=1 // pred_check_branch
      %94 = sbr.rel (0) target = $region29
    $region28: #{tpu_custom_call.1} parent=1 // pred_region
      _
    $region29: #{tpu_custom_call.1} parent=1 // pred_fallthru
      _
    // Predicated region
    $region30: #{tpu_custom_call.1} parent=1 // pred_check
      _
    $region31: #{tpu_custom_call.1} parent=1 // pred_check_branch
      %96 = sbr.rel (0) target = $region33
    $region32: #{tpu_custom_call.1} parent=1 // pred_region
      %s98 = ssub.s32 10240, 10240
      %99 = vsyncadd [#allocation21], %s98
      %s100 = sshll.u32 [#allocation22], 4
      %s101 = int_to_ptr.vmem [resolvable:$true] %s100
      %106 = dma.hbm_to_vmem [thread:$0]  %s7, 10240, %s101, [#allocation21], 640, 640, 40
    $region33: #{tpu_custom_call.1} parent=1 // pred_fallthru
      _
    // Predicated region
    $region34: #{tpu_custom_call.1} parent=1 // pred_check
      _
    $region35: #{tpu_custom_call.1} parent=1 // pred_check_branch
      %108 = sbr.rel (0) target = $region37
    $region36: #{tpu_custom_call.1} parent=1 // pred_region
      %s110 = ssub.s32 10240, 10240
      %111 = vsyncadd [#allocation24], %s110
      %s112 = sshll.u32 [#allocation23], 4
      %s113 = int_to_ptr.vmem [resolvable:$true] %s112
      %118 = dma.hbm_to_vmem [thread:$0]  %s8, 10240, %s113, [#allocation24], 640, 640, 40
    $region37: #{tpu_custom_call.1} parent=1 // pred_fallthru
      _
    // Predicated region
    $region38: #{tpu_custom_call.1} parent=1 // pred_check
      _
    $region39: #{tpu_custom_call.1} parent=1 // pred_check_branch
      %120 = sbr.rel (0) target = $region41
    $region40: #{tpu_custom_call.1} parent=1 // pred_region
      %s122 = ssub.s32 10240, 10240
      %123 = vsyncadd [#allocation24], %s122
      %s124 = sshll.u32 [#allocation25], 4
      %s125 = int_to_ptr.vmem [resolvable:$true] %s124
      %130 = dma.hbm_to_vmem [thread:$0]  %s9, 10240, %s125, [#allocation24], 640, 640, 40
    $region41: #{tpu_custom_call.1} parent=1 // pred_fallthru
      _
    // Predicated region
    $region42: #{tpu_custom_call.1} parent=1 // pred_check
      _
    $region43: #{tpu_custom_call.1} parent=1 // pred_check_branch
      %132 = sbr.rel (0) target = $region45
    $region44: #{tpu_custom_call.1} parent=1 // pred_region
      _
    $region45: #{tpu_custom_call.1} parent=1 // pred_fallthru
      _
    // Predicated region
    $region46: #{tpu_custom_call.1} parent=1 // pred_check
      _
    $region47: #{tpu_custom_call.1} parent=1 // pred_check_branch
      %134 = sbr.rel (0) target = $region49
    $region48: #{tpu_custom_call.1} parent=1 // pred_region
      %s136 = ssub.s32 2048, 2048
      %137 = vsyncadd [#allocation27], %s136
      %s138 = sshll.u32 [#allocation26], 4
      %s139 = int_to_ptr.vmem [resolvable:$true] %s138
      %144 = dma.hbm_to_vmem [thread:$0]  %s11, 2048, %s139, [#allocation27], 128, 128, 8
    $region49: #{tpu_custom_call.1} parent=1 // pred_fallthru
      _
    // Predicated region
    $region50: #{tpu_custom_call.1} parent=1 // pred_check
      _
    $region51: #{tpu_custom_call.1} parent=1 // pred_check_branch
      %146 = sbr.rel (0) target = $region53
    $region52: #{tpu_custom_call.1} parent=1 // pred_region
      _
    $region53: #{tpu_custom_call.1} parent=1 // pred_fallthru
      _
    // Predicated region
    $region54: #{tpu_custom_call.1} parent=1 // pred_check
      _
    $region55: #{tpu_custom_call.1} parent=1 // pred_check_branch
      %148 = sbr.rel (0) target = $region57
    $region56: #{tpu_custom_call.1} parent=1 // pred_region
      %149 = dma.done [#allocation12], 16
    $region57: #{tpu_custom_call.1} parent=1 // pred_fallthru
      _
    // Predicated region
    $region58: #{tpu_custom_call.1} parent=1 // pred_check
      _
    $region59: #{tpu_custom_call.1} parent=1 // pred_check_branch
      %151 = sbr.rel (0) target = $region61
    $region60: #{tpu_custom_call.1} parent=1 // pred_region
      %152 = dma.done [#allocation14], 16
    $region61: #{tpu_custom_call.1} parent=1 // pred_fallthru
      _
    // Predicated region
    $region62: #{tpu_custom_call.1} parent=1 // pred_check
      _
    $region63: #{tpu_custom_call.1} parent=1 // pred_check_branch
      %154 = sbr.rel (0) target = $region65
    $region64: #{tpu_custom_call.1} parent=1 // pred_region
      %155 = dma.done [#allocation10], 128
    $region65: #{tpu_custom_call.1} parent=1 // pred_fallthru
      _
    // Predicated region
    $region66: #{tpu_custom_call.1} parent=1 // pred_check
      _
    $region67: #{tpu_custom_call.1} parent=1 // pred_check_branch
      %157 = sbr.rel (0) target = $region69
    $region68: #{tpu_custom_call.1} parent=1 // pred_region
      %158 = dma.done [#allocation18], 384
    $region69: #{tpu_custom_call.1} parent=1 // pred_fallthru
      _
    // Predicated region
    $region70: #{tpu_custom_call.1} parent=1 // pred_check
      _
    $region71: #{tpu_custom_call.1} parent=1 // pred_check_branch
      %160 = sbr.rel (0) target = $region73
    $region72: #{tpu_custom_call.1} parent=1 // pred_region
      %161 = dma.done [#allocation18], 2048
    $region73: #{tpu_custom_call.1} parent=1 // pred_fallthru
      _
    // Predicated region
    $region74: #{tpu_custom_call.1} parent=1 // pred_check
      _
    $region75: #{tpu_custom_call.1} parent=1 // pred_check_branch
      %163 = sbr.rel (0) target = $region77
    $region76: #{tpu_custom_call.1} parent=1 // pred_region
      %164 = dma.done [#allocation21], 2048
    $region77: #{tpu_custom_call.1} parent=1 // pred_fallthru
      _
    // Predicated region
    $region78: #{tpu_custom_call.1} parent=1 // pred_check
      _
    $region79: #{tpu_custom_call.1} parent=1 // pred_check_branch
      %166 = sbr.rel (0) target = $region81
    $region80: #{tpu_custom_call.1} parent=1 // pred_region
      %167 = dma.done [#allocation21], 10240
    $region81: #{tpu_custom_call.1} parent=1 // pred_fallthru
      _
    // Predicated region
    $region82: #{tpu_custom_call.1} parent=1 // pred_check
      _
    $region83: #{tpu_custom_call.1} parent=1 // pred_check_branch
      %169 = sbr.rel (0) target = $region85
    $region84: #{tpu_custom_call.1} parent=1 // pred_region
      %170 = dma.done [#allocation24], 10240
    $region85: #{tpu_custom_call.1} parent=1 // pred_fallthru
      _
    // Predicated region
    $region86: #{tpu_custom_call.1} parent=1 // pred_check
      _
    $region87: #{tpu_custom_call.1} parent=1 // pred_check_branch
      %172 = sbr.rel (0) target = $region89
    $region88: #{tpu_custom_call.1} parent=1 // pred_region
      %173 = dma.done [#allocation24], 10240
    $region89: #{tpu_custom_call.1} parent=1 // pred_fallthru
      _
    // Predicated region
    $region90: #{tpu_custom_call.1} parent=1 // pred_check
      _
    $region91: #{tpu_custom_call.1} parent=1 // pred_check_branch
      %175 = sbr.rel (0) target = $region93
    $region92: #{tpu_custom_call.1} parent=1 // pred_region
      %176 = dma.done [#allocation27], 2048
    $region93: #{tpu_custom_call.1} parent=1 // pred_fallthru
      _
    %177 = sfence
    %v178 = vld [vmem:[#allocation16] sm:$0x7f]
    %v179 = vld [vmem:[#allocation22] sm:$0xff]
    %v180 = vld [vmem:[#allocation22 + $0x8] sm:$0xff]
    %v181 = vld [vmem:[#allocation22 + $0x10] sm:$0xff]
    %v182 = vld [vmem:[#allocation22 + $0x18] sm:$0xff]
    %v183 = vld [vmem:[#allocation22 + $0x20] sm:$0xff]
    %v184 = vld [vmem:[#allocation22 + $0x28] sm:$0xff]
    %v185 = vld [vmem:[#allocation22 + $0x30] sm:$0xff]
    %v186 = vld [vmem:[#allocation22 + $0x38] sm:$0xff]
    %v187 = vld [vmem:[#allocation22 + $0x40] sm:$0xff]
    %v188 = vld [vmem:[#allocation22 + $0x48] sm:$0xff]
    %v189 = vld [vmem:[#allocation22 + $0x50] sm:$0xff]
    %v190 = vld [vmem:[#allocation22 + $0x58] sm:$0xff]
    %v191 = vld [vmem:[#allocation22 + $0x60] sm:$0xff]
    %v192 = vld [vmem:[#allocation22 + $0x68] sm:$0xff]
    %v193 = vld [vmem:[#allocation22 + $0x70] sm:$0xff]
    %v194 = vld [vmem:[#allocation22 + $0x78] sm:$0xff]
    %v195 = vld [vmem:[#allocation22 + $0x80] sm:$0xff]
    %v196 = vld [vmem:[#allocation22 + $0x88] sm:$0xff]
    %v197 = vld [vmem:[#allocation22 + $0x90] sm:$0xff]
    %v198 = vld [vmem:[#allocation22 + $0x98] sm:$0xff]
    %v199 = vld [vmem:[#allocation22 + $0xa0] sm:$0xff]
    %v200 = vld [vmem:[#allocation22 + $0xa8] sm:$0xff]
    %v201 = vld [vmem:[#allocation22 + $0xb0] sm:$0xff]
    %v202 = vld [vmem:[#allocation22 + $0xb8] sm:$0xff]
    %v203 = vld [vmem:[#allocation22 + $0xc0] sm:$0xff]
    %v204 = vld [vmem:[#allocation22 + $0xc8] sm:$0xff]
    %v205 = vld [vmem:[#allocation22 + $0xd0] sm:$0xff]
    %v206 = vld [vmem:[#allocation22 + $0xd8] sm:$0xff]
    %v207 = vld [vmem:[#allocation22 + $0xe0] sm:$0xff]
    %v208 = vld [vmem:[#allocation22 + $0xe8] sm:$0xff]
    %v209 = vld [vmem:[#allocation22 + $0xf0] sm:$0xff]
    %v210 = vld [vmem:[#allocation22 + $0xf8] sm:$0xff]
    %v211 = vld [vmem:[#allocation22 + $0x100] sm:$0xff]
    %v212 = vld [vmem:[#allocation22 + $0x108] sm:$0xff]
    %v213 = vld [vmem:[#allocation22 + $0x110] sm:$0xff]
    %v214 = vld [vmem:[#allocation22 + $0x118] sm:$0xff]
    %v215 = vld [vmem:[#allocation22 + $0x120] sm:$0xff]
    %v216 = vld [vmem:[#allocation22 + $0x128] sm:$0xff]
    %v217 = vld [vmem:[#allocation22 + $0x130] sm:$0xff]
    %v218 = vld [vmem:[#allocation22 + $0x138] sm:$0xff]
    %v219 = vld [vmem:[#allocation22 + $0x140] sm:$0xff]
    %v220 = vld [vmem:[#allocation22 + $0x148] sm:$0xff]
    %v221 = vld [vmem:[#allocation22 + $0x150] sm:$0xff]
    %v222 = vld [vmem:[#allocation22 + $0x158] sm:$0xff]
    %v223 = vld [vmem:[#allocation22 + $0x160] sm:$0xff]
    %v224 = vld [vmem:[#allocation22 + $0x168] sm:$0xff]
    %v225 = vld [vmem:[#allocation22 + $0x170] sm:$0xff]
    %v226 = vld [vmem:[#allocation22 + $0x178] sm:$0xff]
    %v227 = vld [vmem:[#allocation22 + $0x180] sm:$0xff]
    %v228 = vld [vmem:[#allocation22 + $0x188] sm:$0xff]
    %v229 = vld [vmem:[#allocation22 + $0x190] sm:$0xff]
    %v230 = vld [vmem:[#allocation22 + $0x198] sm:$0xff]
    %v231 = vld [vmem:[#allocation22 + $0x1a0] sm:$0xff]
    %v232 = vld [vmem:[#allocation22 + $0x1a8] sm:$0xff]
    %v233 = vld [vmem:[#allocation22 + $0x1b0] sm:$0xff]
    %v234 = vld [vmem:[#allocation22 + $0x1b8] sm:$0xff]
    %v235 = vld [vmem:[#allocation22 + $0x1c0] sm:$0xff]
    %v236 = vld [vmem:[#allocation22 + $0x1c8] sm:$0xff]
    %v237 = vld [vmem:[#allocation22 + $0x1d0] sm:$0xff]
    %v238 = vld [vmem:[#allocation22 + $0x1d8] sm:$0xff]
    %v239 = vld [vmem:[#allocation22 + $0x1e0] sm:$0xff]
    %v240 = vld [vmem:[#allocation22 + $0x1e8] sm:$0xff]
    %v241 = vld [vmem:[#allocation22 + $0x1f0] sm:$0xff]
    %v242 = vld [vmem:[#allocation22 + $0x1f8] sm:$0xff]
    %v243 = vld [vmem:[#allocation22 + $0x200] sm:$0xff]
    %v244 = vld [vmem:[#allocation22 + $0x208] sm:$0xff]
    %v245 = vld [vmem:[#allocation22 + $0x210] sm:$0xff]
    %v246 = vld [vmem:[#allocation22 + $0x218] sm:$0xff]
    %v247 = vld [vmem:[#allocation22 + $0x220] sm:$0xff]
    %v248 = vld [vmem:[#allocation22 + $0x228] sm:$0xff]
    %v249 = vld [vmem:[#allocation22 + $0x230] sm:$0xff]
    %v250 = vld [vmem:[#allocation22 + $0x238] sm:$0xff]
    %v251 = vld [vmem:[#allocation22 + $0x240] sm:$0xff]
    %v252 = vld [vmem:[#allocation22 + $0x248] sm:$0xff]
    %v253 = vld [vmem:[#allocation22 + $0x250] sm:$0xff]
    %v254 = vld [vmem:[#allocation22 + $0x258] sm:$0xff]
    %v255 = vld [vmem:[#allocation22 + $0x260] sm:$0xff]
    %v256 = vld [vmem:[#allocation22 + $0x268] sm:$0xff]
    %v257 = vld [vmem:[#allocation22 + $0x270] sm:$0xff]
    %v258 = vld [vmem:[#allocation22 + $0x278] sm:$0xff]
    %v259 = vld [vmem:[%s10] sm:$0x1f]
    %v261 = vlaneseq
    %v262 = vshrl.u32 %v261, 7
    %v263 = vsub.s32 0, %v262
    %v264 = vrot.slane %v259, %v263
    %v265 = vlaneseq
    %v266 = vshrl.u32 %v265, 7
    %v267 = vsub.s32 1, %v266
    %v268 = vrot.slane %v259, %v267
    %v269 = vlaneseq
    %v270 = vshrl.u32 %v269, 7
    %v271 = vsub.s32 2, %v270
    %v272 = vrot.slane %v259, %v271
    %v273 = vlaneseq
    %v274 = vshrl.u32 %v273, 7
    %v275 = vsub.s32 3, %v274
    %v276 = vrot.slane %v259, %v275
    %v277 = vlaneseq
    %v278 = vshrl.u32 %v277, 7
    %v279 = vsub.s32 4, %v278
    %v280 = vrot.slane %v259, %v279
    %286 = vmatprep.subr.mxu0 %v180
    %287 = vmatpush1.msra.mxu0 %v179
    %288 = vmatprep.subr.mxu0 %v185
    %289 = vmatpush1.msra.mxu0 %v184
    %290 = vmatprep.subr.mxu0 %v190
    %291 = vmatpush1.msra.mxu0 %v189
    %292 = vmatprep.subr.mxu0 %v195
    %293 = vmatpush1.msra.mxu0 %v194
    %294 = vmatprep.subr.mxu0 %v200
    %295 = vmatpush1.msra.mxu0 %v199
    %296 = vmatprep.subr.mxu0 %v205
    %297 = vmatpush1.msra.mxu0 %v204
    %298 = vmatprep.subr.mxu0 %v210
    %299 = vmatpush1.msra.mxu0 %v209
    %300 = vmatprep.subr.mxu0 %v215
    %301 = vmatpush1.msra.mxu0 %v214
    %302 = vmatprep.subr.mxu0 %v220
    %303 = vmatpush1.msra.mxu0 %v219
    %304 = vmatprep.subr.mxu0 %v225
    %305 = vmatpush1.msra.mxu0 %v224
    %306 = vmatprep.subr.mxu0 %v230
    %307 = vmatpush1.msra.mxu0 %v229
    %308 = vmatprep.subr.mxu0 %v235
    %309 = vmatpush1.msra.mxu0 %v234
    %310 = vmatprep.subr.mxu0 %v240
    %311 = vmatpush1.msra.mxu0 %v239
    %312 = vmatprep.subr.mxu0 %v245
    %313 = vmatpush1.msra.mxu0 %v244
    %314 = vmatprep.subr.mxu0 %v250
    %315 = vmatpush1.msra.mxu0 %v249
    %316 = vmatprep.subr.mxu0 %v255
    %317 = vmatpush1.msra.mxu0 %v254
    %318 = vmatprep.subr.mxu0 0.0
    %319 = vmatpush1.msra.mxu0 0.0
    %320 = vmatprep.subr.mxu0 0.0
    %321 = vmatpush1.msra.mxu0 0.0
    %322 = vmatprep.subr.mxu0 0.0
    %323 = vmatpush1.msra.mxu0 0.0
    %324 = vmatprep.subr.mxu0 0.0
    %325 = vmatpush1.msra.mxu0 0.0
    %326 = vmatprep.subr.mxu0 0.0
    %327 = vmatpush1.msra.mxu0 0.0
    %328 = vmatprep.subr.mxu0 0.0
    %329 = vmatpush1.msra.mxu0 0.0
    %330 = vmatprep.subr.mxu0 0.0
    %331 = vmatpush1.msra.mxu0 0.0
    %332 = vmatprep.subr.mxu0 0.0
    %333 = vmatpush1.msra.mxu0 0.0
    %334 = vmatprep.subr.mxu0 0.0
    %335 = vmatpush1.msra.mxu0 0.0
    %336 = vmatprep.subr.mxu0 0.0
    %337 = vmatpush1.msra.mxu0 0.0
    %338 = vmatprep.subr.mxu0 0.0
    %339 = vmatpush1.msra.mxu0 0.0
    %340 = vmatprep.subr.mxu0 0.0
    %341 = vmatpush1.msra.mxu0 0.0
    %342 = vmatprep.subr.mxu0 0.0
    %343 = vmatpush1.msra.mxu0 0.0
    %344 = vmatprep.subr.mxu0 0.0
    %345 = vmatpush1.msra.mxu0 0.0
    %346 = vmatprep.subr.mxu0 0.0
    %347 = vmatpush1.msra.mxu0 0.0
    %348 = vmatprep.subr.mxu0 0.0
    %349 = vmatpush1.msra.mxu0 0.0
    %350 = vmatprep.mubr.f32.mxu0 0.0
    %351 = vmatmul.mubr.f32.gmra.mrb[0].mxu0 %v178
    %v352 = vpop.f32.mrb[0].mxu0
    %v353 = vadd.f32 %v264, %v352
    %v354 = vpop.f32.mrb[0].mxu0
    %v355 = vadd.f32 %v268, %v354
    %356 = vdwg.mxu0
    %357 = vmatprep.subr.mxu0 %v182
    %358 = vmatpush1.msra.mxu0 %v181
    %359 = vmatprep.subr.mxu0 %v187
    %360 = vmatpush1.msra.mxu0 %v186
    %361 = vmatprep.subr.mxu0 %v192
    %362 = vmatpush1.msra.mxu0 %v191
    %363 = vmatprep.subr.mxu0 %v197
    %364 = vmatpush1.msra.mxu0 %v196
    %365 = vmatprep.subr.mxu0 %v202
    %366 = vmatpush1.msra.mxu0 %v201
    %367 = vmatprep.subr.mxu0 %v207
    %368 = vmatpush1.msra.mxu0 %v206
    %369 = vmatprep.subr.mxu0 %v212
    %370 = vmatpush1.msra.mxu0 %v211
    %371 = vmatprep.subr.mxu0 %v217
    %372 = vmatpush1.msra.mxu0 %v216
    %373 = vmatprep.subr.mxu0 %v222
    %374 = vmatpush1.msra.mxu0 %v221
    %375 = vmatprep.subr.mxu0 %v227
    %376 = vmatpush1.msra.mxu0 %v226
    %377 = vmatprep.subr.mxu0 %v232
    %378 = vmatpush1.msra.mxu0 %v231
    %379 = vmatprep.subr.mxu0 %v237
    %380 = vmatpush1.msra.mxu0 %v236
    %381 = vmatprep.subr.mxu0 %v242
    %382 = vmatpush1.msra.mxu0 %v241
    %383 = vmatprep.subr.mxu0 %v247
    %384 = vmatpush1.msra.mxu0 %v246
    %385 = vmatprep.subr.mxu0 %v252
    %386 = vmatpush1.msra.mxu0 %v251
    %387 = vmatprep.subr.mxu0 %v257
    %388 = vmatpush1.msra.mxu0 %v256
    %389 = vmatprep.subr.mxu0 0.0
    %390 = vmatpush1.msra.mxu0 0.0
    %391 = vmatprep.subr.mxu0 0.0
    %392 = vmatpush1.msra.mxu0 0.0
    %393 = vmatprep.subr.mxu0 0.0
    %394 = vmatpush1.msra.mxu0 0.0
    %395 = vmatprep.subr.mxu0 0.0
    %396 = vmatpush1.msra.mxu0 0.0
    %397 = vmatprep.subr.mxu0 0.0
    %398 = vmatpush1.msra.mxu0 0.0
    %399 = vmatprep.subr.mxu0 0.0
    %400 = vmatpush1.msra.mxu0 0.0
    %401 = vmatprep.subr.mxu0 0.0
    %402 = vmatpush1.msra.mxu0 0.0
    %403 = vmatprep.subr.mxu0 0.0
    %404 = vmatpush1.msra.mxu0 0.0
    %405 = vmatprep.subr.mxu0 0.0
    %406 = vmatpush1.msra.mxu0 0.0
    %407 = vmatprep.subr.mxu0 0.0
    %408 = vmatpush1.msra.mxu0 0.0
    %409 = vmatprep.subr.mxu0 0.0
    %410 = vmatpush1.msra.mxu0 0.0
    %411 = vmatprep.subr.mxu0 0.0
    %412 = vmatpush1.msra.mxu0 0.0
    %413 = vmatprep.subr.mxu0 0.0
    %414 = vmatpush1.msra.mxu0 0.0
    %415 = vmatprep.subr.mxu0 0.0
    %416 = vmatpush1.msra.mxu0 0.0
    %417 = vmatprep.subr.mxu0 0.0
    %418 = vmatpush1.msra.mxu0 0.0
    %419 = vmatprep.subr.mxu0 0.0
    %420 = vmatpush1.msra.mxu0 0.0
    %421 = vmatprep.mubr.f32.mxu0 0.0
    %422 = vmatmul.mubr.f32.gmra.mrb[0].mxu0 %v178
    %v423 = vpop.f32.mrb[0].mxu0
    %v424 = vadd.f32 %v272, %v423
    %v425 = vpop.f32.mrb[0].mxu0
    %v426 = vadd.f32 %v276, %v425
    %427 = vdwg.mxu0
    %428 = vmatprep.subr.mxu0 0.0
    %429 = vmatpush1.msra.mxu0 %v183
    %430 = vmatprep.subr.mxu0 0.0
    %431 = vmatpush1.msra.mxu0 %v188
    %432 = vmatprep.subr.mxu0 0.0
    %433 = vmatpush1.msra.mxu0 %v193
    %434 = vmatprep.subr.mxu0 0.0
    %435 = vmatpush1.msra.mxu0 %v198
    %436 = vmatprep.subr.mxu0 0.0
    %437 = vmatpush1.msra.mxu0 %v203
    %438 = vmatprep.subr.mxu0 0.0
    %439 = vmatpush1.msra.mxu0 %v208
    %440 = vmatprep.subr.mxu0 0.0
    %441 = vmatpush1.msra.mxu0 %v213
    %442 = vmatprep.subr.mxu0 0.0
    %443 = vmatpush1.msra.mxu0 %v218
    %444 = vmatprep.subr.mxu0 0.0
    %445 = vmatpush1.msra.mxu0 %v223
    %446 = vmatprep.subr.mxu0 0.0
    %447 = vmatpush1.msra.mxu0 %v228
    %448 = vmatprep.subr.mxu0 0.0
    %449 = vmatpush1.msra.mxu0 %v233
    %450 = vmatprep.subr.mxu0 0.0
    %451 = vmatpush1.msra.mxu0 %v238
    %452 = vmatprep.subr.mxu0 0.0
    %453 = vmatpush1.msra.mxu0 %v243
    %454 = vmatprep.subr.mxu0 0.0
    %455 = vmatpush1.msra.mxu0 %v248
    %456 = vmatprep.subr.mxu0 0.0
    %457 = vmatpush1.msra.mxu0 %v253
    %458 = vmatprep.subr.mxu0 0.0
    %459 = vmatpush1.msra.mxu0 %v258
    %460 = vmatprep.subr.mxu0 0.0
    %461 = vmatpush1.msra.mxu0 0.0
    %462 = vmatprep.subr.mxu0 0.0
    %463 = vmatpush1.msra.mxu0 0.0
    %464 = vmatprep.subr.mxu0 0.0
    %465 = vmatpush1.msra.mxu0 0.0
    %466 = vmatprep.subr.mxu0 0.0
    %467 = vmatpush1.msra.mxu0 0.0
    %468 = vmatprep.subr.mxu0 0.0
    %469 = vmatpush1.msra.mxu0 0.0
    %470 = vmatprep.subr.mxu0 0.0
    %471 = vmatpush1.msra.mxu0 0.0
    %472 = vmatprep.subr.mxu0 0.0
    %473 = vmatpush1.msra.mxu0 0.0
    %474 = vmatprep.subr.mxu0 0.0
    %475 = vmatpush1.msra.mxu0 0.0
    %476 = vmatprep.subr.mxu0 0.0
    %477 = vmatpush1.msra.mxu0 0.0
    %478 = vmatprep.subr.mxu0 0.0
    %479 = vmatpush1.msra.mxu0 0.0
    %480 = vmatprep.subr.mxu0 0.0
    %481 = vmatpush1.msra.mxu0 0.0
    %482 = vmatprep.subr.mxu0 0.0
    %483 = vmatpush1.msra.mxu0 0.0
    %484 = vmatprep.subr.mxu0 0.0
    %485 = vmatpush1.msra.mxu0 0.0
    %486 = vmatprep.subr.mxu0 0.0
    %487 = vmatpush1.msra.mxu0 0.0
    %488 = vmatprep.subr.mxu0 0.0
    %489 = vmatpush1.msra.mxu0 0.0
    %490 = vmatprep.subr.mxu0 0.0
    %491 = vmatpush1.msra.mxu0 0.0
    %492 = vmatprep.mubr.f32.mxu0 0.0
    %493 = vmatmul.mubr.f32.gmra.mrb[0].mxu0 %v178
    %v494 = vpop.f32.mrb[0].mxu0
    %v495 = vadd.f32 %v280, %v494
    %v496 = vpop.f32.mrb[0].mxu0
    %497 = vdwg.mxu0
    %498 = vst [vmem:[#allocation5] sm:$0x7f] %v353
    %499 = vst [vmem:[#allocation5 + $0x8] sm:$0x7f] %v355
    %500 = vst [vmem:[#allocation5 + $0x10] sm:$0x7f] %v424
    %501 = vst [vmem:[#allocation5 + $0x18] sm:$0x7f] %v426
    %502 = vst [vmem:[#allocation5 + $0x20] sm:$0x7f] %v495
    %v503 = vld [vmem:[#allocation19] sm:$0xff]
    %v504 = vld [vmem:[#allocation19 + $0x8] sm:$0xff]
    %v505 = vld [vmem:[#allocation19 + $0x10] sm:$0xff]
    %v506 = vld [vmem:[#allocation19 + $0x18] sm:$0xff]
    %v507 = vld [vmem:[#allocation19 + $0x20] sm:$0xff]
    %v508 = vld [vmem:[#allocation19 + $0x28] sm:$0xff]
    %v509 = vld [vmem:[#allocation19 + $0x30] sm:$0xff]
    %v510 = vld [vmem:[#allocation19 + $0x38] sm:$0xff]
    %v511 = vld [vmem:[#allocation19 + $0x40] sm:$0xff]
    %v512 = vld [vmem:[#allocation19 + $0x48] sm:$0xff]
    %v513 = vld [vmem:[#allocation19 + $0x50] sm:$0xff]
    %v514 = vld [vmem:[#allocation19 + $0x58] sm:$0xff]
    %v515 = vld [vmem:[#allocation19 + $0x60] sm:$0xff]
    %v516 = vld [vmem:[#allocation19 + $0x68] sm:$0xff]
    %v517 = vld [vmem:[#allocation19 + $0x70] sm:$0xff]
    %v518 = vld [vmem:[#allocation19 + $0x78] sm:$0xff]
    %v519 = vld [vmem:[%s6] sm:$0x1]
    %v521 = vlaneseq
    %v522 = vshrl.u32 %v521, 7
    %v523 = vsub.s32 0, %v522
    %v524 = vrot.slane %v519, %v523
    %526 = vmatprep.subr.mxu0 0.0
    %527 = vmatpush1.msra.mxu0 %v503
    %528 = vmatprep.subr.mxu0 0.0
    %529 = vmatpush1.msra.mxu0 %v504
    %530 = vmatprep.subr.mxu0 0.0
    %531 = vmatpush1.msra.mxu0 %v505
    %532 = vmatprep.subr.mxu0 0.0
    %533 = vmatpush1.msra.mxu0 %v506
    %534 = vmatprep.subr.mxu0 0.0
    %535 = vmatpush1.msra.mxu0 %v507
    %536 = vmatprep.subr.mxu0 0.0
    %537 = vmatpush1.msra.mxu0 %v508
    %538 = vmatprep.subr.mxu0 0.0
    %539 = vmatpush1.msra.mxu0 %v509
    %540 = vmatprep.subr.mxu0 0.0
    %541 = vmatpush1.msra.mxu0 %v510
    %542 = vmatprep.subr.mxu0 0.0
    %543 = vmatpush1.msra.mxu0 %v511
    %544 = vmatprep.subr.mxu0 0.0
    %545 = vmatpush1.msra.mxu0 %v512
    %546 = vmatprep.subr.mxu0 0.0
    %547 = vmatpush1.msra.mxu0 %v513
    %548 = vmatprep.subr.mxu0 0.0
    %549 = vmatpush1.msra.mxu0 %v514
    %550 = vmatprep.subr.mxu0 0.0
    %551 = vmatpush1.msra.mxu0 %v515
    %552 = vmatprep.subr.mxu0 0.0
    %553 = vmatpush1.msra.mxu0 %v516
    %554 = vmatprep.subr.mxu0 0.0
    %555 = vmatpush1.msra.mxu0 %v517
    %556 = vmatprep.subr.mxu0 0.0
    %557 = vmatpush1.msra.mxu0 %v518
    %558 = vmatprep.subr.mxu0 0.0
    %559 = vmatpush1.msra.mxu0 0.0
    %560 = vmatprep.subr.mxu0 0.0
    %561 = vmatpush1.msra.mxu0 0.0
    %562 = vmatprep.subr.mxu0 0.0
    %563 = vmatpush1.msra.mxu0 0.0
    %564 = vmatprep.subr.mxu0 0.0
    %565 = vmatpush1.msra.mxu0 0.0
    %566 = vmatprep.subr.mxu0 0.0
    %567 = vmatpush1.msra.mxu0 0.0
    %568 = vmatprep.subr.mxu0 0.0
    %569 = vmatpush1.msra.mxu0 0.0
    %570 = vmatprep.subr.mxu0 0.0
    %571 = vmatpush1.msra.mxu0 0.0
    %572 = vmatprep.subr.mxu0 0.0
    %573 = vmatpush1.msra.mxu0 0.0
    %574 = vmatprep.subr.mxu0 0.0
    %575 = vmatpush1.msra.mxu0 0.0
    %576 = vmatprep.subr.mxu0 0.0
    %577 = vmatpush1.msra.mxu0 0.0
    %578 = vmatprep.subr.mxu0 0.0
    %579 = vmatpush1.msra.mxu0 0.0
    %580 = vmatprep.subr.mxu0 0.0
    %581 = vmatpush1.msra.mxu0 0.0
    %582 = vmatprep.subr.mxu0 0.0
    %583 = vmatpush1.msra.mxu0 0.0
    %584 = vmatprep.subr.mxu0 0.0
    %585 = vmatpush1.msra.mxu0 0.0
    %586 = vmatprep.subr.mxu0 0.0
    %587 = vmatpush1.msra.mxu0 0.0
    %588 = vmatprep.subr.mxu0 0.0
    %589 = vmatpush1.msra.mxu0 0.0
    %590 = vmatprep.mubr.f32.mxu0 0.0
    %591 = vmatmul.mubr.f32.gmra.mrb[0].mxu0 %v178
    %v592 = vpop.f32.mrb[0].mxu0
    %v593 = vadd.f32 %v524, %v592
    %v594 = vpop.f32.mrb[0].mxu0
    %595 = vdwg.mxu0
    %596 = vst [vmem:[#allocation6] sm:$0x7f] %v593
    %v597 = vld [vmem:[#allocation17] sm:$0xff]
    %v598 = vld [vmem:[#allocation17 + $0x8] sm:$0xff]
    %v599 = vld [vmem:[#allocation17 + $0x10] sm:$0xff]
    %v600 = vld [vmem:[#allocation23] sm:$0xff]
    %v601 = vld [vmem:[#allocation23 + $0x8] sm:$0xff]
    %v602 = vld [vmem:[#allocation23 + $0x10] sm:$0xff]
    %v603 = vld [vmem:[#allocation23 + $0x18] sm:$0xff]
    %v604 = vld [vmem:[#allocation23 + $0x20] sm:$0xff]
    %v605 = vld [vmem:[#allocation23 + $0x28] sm:$0xff]
    %v606 = vld [vmem:[#allocation23 + $0x30] sm:$0xff]
    %v607 = vld [vmem:[#allocation23 + $0x38] sm:$0xff]
    %v608 = vld [vmem:[#allocation23 + $0x40] sm:$0xff]
    %v609 = vld [vmem:[#allocation23 + $0x48] sm:$0xff]
    %v610 = vld [vmem:[#allocation23 + $0x50] sm:$0xff]
    %v611 = vld [vmem:[#allocation23 + $0x58] sm:$0xff]
    %v612 = vld [vmem:[#allocation23 + $0x60] sm:$0xff]
    %v613 = vld [vmem:[#allocation23 + $0x68] sm:$0xff]
    %v614 = vld [vmem:[#allocation23 + $0x70] sm:$0xff]
    %v615 = vld [vmem:[#allocation23 + $0x78] sm:$0xff]
    %v616 = vld [vmem:[#allocation23 + $0x80] sm:$0xff]
    %v617 = vld [vmem:[#allocation23 + $0x88] sm:$0xff]
    %v618 = vld [vmem:[#allocation23 + $0x90] sm:$0xff]
    %v619 = vld [vmem:[#allocation23 + $0x98] sm:$0xff]
    %v620 = vld [vmem:[#allocation23 + $0xa0] sm:$0xff]
    %v621 = vld [vmem:[#allocation23 + $0xa8] sm:$0xff]
    %v622 = vld [vmem:[#allocation23 + $0xb0] sm:$0xff]
    %v623 = vld [vmem:[#allocation23 + $0xb8] sm:$0xff]
    %v624 = vld [vmem:[#allocation23 + $0xc0] sm:$0xff]
    %v625 = vld [vmem:[#allocation23 + $0xc8] sm:$0xff]
    %v626 = vld [vmem:[#allocation23 + $0xd0] sm:$0xff]
    %v627 = vld [vmem:[#allocation23 + $0xd8] sm:$0xff]
    %v628 = vld [vmem:[#allocation23 + $0xe0] sm:$0xff]
    %v629 = vld [vmem:[#allocation23 + $0xe8] sm:$0xff]
    %v630 = vld [vmem:[#allocation23 + $0xf0] sm:$0xff]
    %v631 = vld [vmem:[#allocation23 + $0xf8] sm:$0xff]
    %v632 = vld [vmem:[#allocation23 + $0x100] sm:$0xff]
    %v633 = vld [vmem:[#allocation23 + $0x108] sm:$0xff]
    %v634 = vld [vmem:[#allocation23 + $0x110] sm:$0xff]
    %v635 = vld [vmem:[#allocation23 + $0x118] sm:$0xff]
    %v636 = vld [vmem:[#allocation23 + $0x120] sm:$0xff]
    %v637 = vld [vmem:[#allocation23 + $0x128] sm:$0xff]
    %v638 = vld [vmem:[#allocation23 + $0x130] sm:$0xff]
    %v639 = vld [vmem:[#allocation23 + $0x138] sm:$0xff]
    %v640 = vld [vmem:[#allocation23 + $0x140] sm:$0xff]
    %v641 = vld [vmem:[#allocation23 + $0x148] sm:$0xff]
    %v642 = vld [vmem:[#allocation23 + $0x150] sm:$0xff]
    %v643 = vld [vmem:[#allocation23 + $0x158] sm:$0xff]
    %v644 = vld [vmem:[#allocation23 + $0x160] sm:$0xff]
    %v645 = vld [vmem:[#allocation23 + $0x168] sm:$0xff]
    %v646 = vld [vmem:[#allocation23 + $0x170] sm:$0xff]
    %v647 = vld [vmem:[#allocation23 + $0x178] sm:$0xff]
    %v648 = vld [vmem:[#allocation23 + $0x180] sm:$0xff]
    %v649 = vld [vmem:[#allocation23 + $0x188] sm:$0xff]
    %v650 = vld [vmem:[#allocation23 + $0x190] sm:$0xff]
    %v651 = vld [vmem:[#allocation23 + $0x198] sm:$0xff]
    %v652 = vld [vmem:[#allocation23 + $0x1a0] sm:$0xff]
    %v653 = vld [vmem:[#allocation23 + $0x1a8] sm:$0xff]
    %v654 = vld [vmem:[#allocation23 + $0x1b0] sm:$0xff]
    %v655 = vld [vmem:[#allocation23 + $0x1b8] sm:$0xff]
    %v656 = vld [vmem:[#allocation23 + $0x1c0] sm:$0xff]
    %v657 = vld [vmem:[#allocation23 + $0x1c8] sm:$0xff]
    %v658 = vld [vmem:[#allocation23 + $0x1d0] sm:$0xff]
    %v659 = vld [vmem:[#allocation23 + $0x1d8] sm:$0xff]
    %v660 = vld [vmem:[#allocation23 + $0x1e0] sm:$0xff]
    %v661 = vld [vmem:[#allocation23 + $0x1e8] sm:$0xff]
    %v662 = vld [vmem:[#allocation23 + $0x1f0] sm:$0xff]
    %v663 = vld [vmem:[#allocation23 + $0x1f8] sm:$0xff]
    %v664 = vld [vmem:[#allocation23 + $0x200] sm:$0xff]
    %v665 = vld [vmem:[#allocation23 + $0x208] sm:$0xff]
    %v666 = vld [vmem:[#allocation23 + $0x210] sm:$0xff]
    %v667 = vld [vmem:[#allocation23 + $0x218] sm:$0xff]
    %v668 = vld [vmem:[#allocation23 + $0x220] sm:$0xff]
    %v669 = vld [vmem:[#allocation23 + $0x228] sm:$0xff]
    %v670 = vld [vmem:[#allocation23 + $0x230] sm:$0xff]
    %v671 = vld [vmem:[#allocation23 + $0x238] sm:$0xff]
    %v672 = vld [vmem:[#allocation23 + $0x240] sm:$0xff]
    %v673 = vld [vmem:[#allocation23 + $0x248] sm:$0xff]
    %v674 = vld [vmem:[#allocation23 + $0x250] sm:$0xff]
    %v675 = vld [vmem:[#allocation23 + $0x258] sm:$0xff]
    %v676 = vld [vmem:[#allocation23 + $0x260] sm:$0xff]
    %v677 = vld [vmem:[#allocation23 + $0x268] sm:$0xff]
    %v678 = vld [vmem:[#allocation23 + $0x270] sm:$0xff]
    %v679 = vld [vmem:[#allocation23 + $0x278] sm:$0xff]
    %680 = vmatprep.subr.mxu0 %v601
    %681 = vmatpush1.msra.mxu0 %v600
    %682 = vmatprep.subr.mxu0 %v606
    %683 = vmatpush1.msra.mxu0 %v605
    %684 = vmatprep.subr.mxu0 %v611
    %685 = vmatpush1.msra.mxu0 %v610
    %686 = vmatprep.subr.mxu0 %v616
    %687 = vmatpush1.msra.mxu0 %v615
    %688 = vmatprep.subr.mxu0 %v621
    %689 = vmatpush1.msra.mxu0 %v620
    %690 = vmatprep.subr.mxu0 %v626
    %691 = vmatpush1.msra.mxu0 %v625
    %692 = vmatprep.subr.mxu0 %v631
    %693 = vmatpush1.msra.mxu0 %v630
    %694 = vmatprep.subr.mxu0 %v636
    %695 = vmatpush1.msra.mxu0 %v635
    %696 = vmatprep.subr.mxu0 %v641
    %697 = vmatpush1.msra.mxu0 %v640
    %698 = vmatprep.subr.mxu0 %v646
    %699 = vmatpush1.msra.mxu0 %v645
    %700 = vmatprep.subr.mxu0 %v651
    %701 = vmatpush1.msra.mxu0 %v650
    %702 = vmatprep.subr.mxu0 %v656
    %703 = vmatpush1.msra.mxu0 %v655
    %704 = vmatprep.subr.mxu0 %v661
    %705 = vmatpush1.msra.mxu0 %v660
    %706 = vmatprep.subr.mxu0 %v666
    %707 = vmatpush1.msra.mxu0 %v665
    %708 = vmatprep.subr.mxu0 %v671
    %709 = vmatpush1.msra.mxu0 %v670
    %710 = vmatprep.subr.mxu0 %v676
    %711 = vmatpush1.msra.mxu0 %v675
    %712 = vmatprep.subr.mxu0 0.0
    %713 = vmatpush1.msra.mxu0 0.0
    %714 = vmatprep.subr.mxu0 0.0
    %715 = vmatpush1.msra.mxu0 0.0
    %716 = vmatprep.subr.mxu0 0.0
    %717 = vmatpush1.msra.mxu0 0.0
    %718 = vmatprep.subr.mxu0 0.0
    %719 = vmatpush1.msra.mxu0 0.0
    %720 = vmatprep.subr.mxu0 0.0
    %721 = vmatpush1.msra.mxu0 0.0
    %722 = vmatprep.subr.mxu0 0.0
    %723 = vmatpush1.msra.mxu0 0.0
    %724 = vmatprep.subr.mxu0 0.0
    %725 = vmatpush1.msra.mxu0 0.0
    %726 = vmatprep.subr.mxu0 0.0
    %727 = vmatpush1.msra.mxu0 0.0
    %728 = vmatprep.subr.mxu0 0.0
    %729 = vmatpush1.msra.mxu0 0.0
    %730 = vmatprep.subr.mxu0 0.0
    %731 = vmatpush1.msra.mxu0 0.0
    %732 = vmatprep.subr.mxu0 0.0
    %733 = vmatpush1.msra.mxu0 0.0
    %734 = vmatprep.subr.mxu0 0.0
    %735 = vmatpush1.msra.mxu0 0.0
    %736 = vmatprep.subr.mxu0 0.0
    %737 = vmatpush1.msra.mxu0 0.0
    %738 = vmatprep.subr.mxu0 0.0
    %739 = vmatpush1.msra.mxu0 0.0
    %740 = vmatprep.subr.mxu0 0.0
    %741 = vmatpush1.msra.mxu0 0.0
    %742 = vmatprep.subr.mxu0 0.0
    %743 = vmatpush1.msra.mxu0 0.0
    %744 = vmatprep.mubr.f32.mxu0 0.0
    %745 = vmatmul.mubr.f32.gmra.mrb[0].mxu0 %v597
    %v746 = vpop.f32.mrb[0].mxu0
    %v747 = vadd.f32 0.0, %v746
    %v748 = vpop.f32.mrb[0].mxu0
    %v749 = vadd.f32 0.0, %v748
    %750 = vmatprep.mubr.f32.mxu0 0.0
    %751 = vmatmul.mubr.f32.gmra.mrb[0].mxu0 %v598
    %v752 = vpop.f32.mrb[0].mxu0
    %v753 = vadd.f32 0.0, %v752
    %v754 = vpop.f32.mrb[0].mxu0
    %v755 = vadd.f32 0.0, %v754
    %756 = vmatprep.mubr.f32.mxu0 0.0
    %757 = vmatmul.mubr.f32.gmra.mrb[0].mxu0 %v599
    %v758 = vpop.f32.mrb[0].mxu0
    %v759 = vadd.f32 0.0, %v758
    %v760 = vpop.f32.mrb[0].mxu0
    %v761 = vadd.f32 0.0, %v760
    %762 = vdwg.mxu0
    %763 = vmatprep.subr.mxu0 %v603
    %764 = vmatpush1.msra.mxu0 %v602
    %765 = vmatprep.subr.mxu0 %v608
    %766 = vmatpush1.msra.mxu0 %v607
    %767 = vmatprep.subr.mxu0 %v613
    %768 = vmatpush1.msra.mxu0 %v612
    %769 = vmatprep.subr.mxu0 %v618
    %770 = vmatpush1.msra.mxu0 %v617
    %771 = vmatprep.subr.mxu0 %v623
    %772 = vmatpush1.msra.mxu0 %v622
    %773 = vmatprep.subr.mxu0 %v628
    %774 = vmatpush1.msra.mxu0 %v627
    %775 = vmatprep.subr.mxu0 %v633
    %776 = vmatpush1.msra.mxu0 %v632
    %777 = vmatprep.subr.mxu0 %v638
    %778 = vmatpush1.msra.mxu0 %v637
    %779 = vmatprep.subr.mxu0 %v643
    %780 = vmatpush1.msra.mxu0 %v642
    %781 = vmatprep.subr.mxu0 %v648
    %782 = vmatpush1.msra.mxu0 %v647
    %783 = vmatprep.subr.mxu0 %v653
    %784 = vmatpush1.msra.mxu0 %v652
    %785 = vmatprep.subr.mxu0 %v658
    %786 = vmatpush1.msra.mxu0 %v657
    %787 = vmatprep.subr.mxu0 %v663
    %788 = vmatpush1.msra.mxu0 %v662
    %789 = vmatprep.subr.mxu0 %v668
    %790 = vmatpush1.msra.mxu0 %v667
    %791 = vmatprep.subr.mxu0 %v673
    %792 = vmatpush1.msra.mxu0 %v672
    %793 = vmatprep.subr.mxu0 %v678
    %794 = vmatpush1.msra.mxu0 %v677
    %795 = vmatprep.subr.mxu0 0.0
    %796 = vmatpush1.msra.mxu0 0.0
    %797 = vmatprep.subr.mxu0 0.0
    %798 = vmatpush1.msra.mxu0 0.0
    %799 = vmatprep.subr.mxu0 0.0
    %800 = vmatpush1.msra.mxu0 0.0
    %801 = vmatprep.subr.mxu0 0.0
    %802 = vmatpush1.msra.mxu0 0.0
    %803 = vmatprep.subr.mxu0 0.0
    %804 = vmatpush1.msra.mxu0 0.0
    %805 = vmatprep.subr.mxu0 0.0
    %806 = vmatpush1.msra.mxu0 0.0
    %807 = vmatprep.subr.mxu0 0.0
    %808 = vmatpush1.msra.mxu0 0.0
    %809 = vmatprep.subr.mxu0 0.0
    %810 = vmatpush1.msra.mxu0 0.0
    %811 = vmatprep.subr.mxu0 0.0
    %812 = vmatpush1.msra.mxu0 0.0
    %813 = vmatprep.subr.mxu0 0.0
    %814 = vmatpush1.msra.mxu0 0.0
    %815 = vmatprep.subr.mxu0 0.0
    %816 = vmatpush1.msra.mxu0 0.0
    %817 = vmatprep.subr.mxu0 0.0
    %818 = vmatpush1.msra.mxu0 0.0
    %819 = vmatprep.subr.mxu0 0.0
    %820 = vmatpush1.msra.mxu0 0.0
    %821 = vmatprep.subr.mxu0 0.0
    %822 = vmatpush1.msra.mxu0 0.0
    %823 = vmatprep.subr.mxu0 0.0
    %824 = vmatpush1.msra.mxu0 0.0
    %825 = vmatprep.subr.mxu0 0.0
    %826 = vmatpush1.msra.mxu0 0.0
    %827 = vmatprep.mubr.f32.mxu0 0.0
    %828 = vmatmul.mubr.f32.gmra.mrb[0].mxu0 %v597
    %v829 = vpop.f32.mrb[0].mxu0
    %v830 = vadd.f32 0.0, %v829
    %v831 = vpop.f32.mrb[0].mxu0
    %v832 = vadd.f32 0.0, %v831
    %833 = vmatprep.mubr.f32.mxu0 0.0
    %834 = vmatmul.mubr.f32.gmra.mrb[0].mxu0 %v598
    %v835 = vpop.f32.mrb[0].mxu0
    %v836 = vadd.f32 0.0, %v835
    %v837 = vpop.f32.mrb[0].mxu0
    %v838 = vadd.f32 0.0, %v837
    %839 = vmatprep.mubr.f32.mxu0 0.0
    %840 = vmatmul.mubr.f32.gmra.mrb[0].mxu0 %v599
    %v841 = vpop.f32.mrb[0].mxu0
    %v842 = vadd.f32 0.0, %v841
    %v843 = vpop.f32.mrb[0].mxu0
    %v844 = vadd.f32 0.0, %v843
    %845 = vdwg.mxu0
    %846 = vmatprep.subr.mxu0 0.0
    %847 = vmatpush1.msra.mxu0 %v604
    %848 = vmatprep.subr.mxu0 0.0
    %849 = vmatpush1.msra.mxu0 %v609
    %850 = vmatprep.subr.mxu0 0.0
    %851 = vmatpush1.msra.mxu0 %v614
    %852 = vmatprep.subr.mxu0 0.0
    %853 = vmatpush1.msra.mxu0 %v619
    %854 = vmatprep.subr.mxu0 0.0
    %855 = vmatpush1.msra.mxu0 %v624
    %856 = vmatprep.subr.mxu0 0.0
    %857 = vmatpush1.msra.mxu0 %v629
    %858 = vmatprep.subr.mxu0 0.0
    %859 = vmatpush1.msra.mxu0 %v634
    %860 = vmatprep.subr.mxu0 0.0
    %861 = vmatpush1.msra.mxu0 %v639
    %862 = vmatprep.subr.mxu0 0.0
    %863 = vmatpush1.msra.mxu0 %v644
    %864 = vmatprep.subr.mxu0 0.0
    %865 = vmatpush1.msra.mxu0 %v649
    %866 = vmatprep.subr.mxu0 0.0
    %867 = vmatpush1.msra.mxu0 %v654
    %868 = vmatprep.subr.mxu0 0.0
    %869 = vmatpush1.msra.mxu0 %v659
    %870 = vmatprep.subr.mxu0 0.0
    %871 = vmatpush1.msra.mxu0 %v664
    %872 = vmatprep.subr.mxu0 0.0
    %873 = vmatpush1.msra.mxu0 %v669
    %874 = vmatprep.subr.mxu0 0.0
    %875 = vmatpush1.msra.mxu0 %v674
    %876 = vmatprep.subr.mxu0 0.0
    %877 = vmatpush1.msra.mxu0 %v679
    %878 = vmatprep.subr.mxu0 0.0
    %879 = vmatpush1.msra.mxu0 0.0
    %880 = vmatprep.subr.mxu0 0.0
    %881 = vmatpush1.msra.mxu0 0.0
    %882 = vmatprep.subr.mxu0 0.0
    %883 = vmatpush1.msra.mxu0 0.0
    %884 = vmatprep.subr.mxu0 0.0
    %885 = vmatpush1.msra.mxu0 0.0
    %886 = vmatprep.subr.mxu0 0.0
    %887 = vmatpush1.msra.mxu0 0.0
    %888 = vmatprep.subr.mxu0 0.0
    %889 = vmatpush1.msra.mxu0 0.0
    %890 = vmatprep.subr.mxu0 0.0
    %891 = vmatpush1.msra.mxu0 0.0
    %892 = vmatprep.subr.mxu0 0.0
    %893 = vmatpush1.msra.mxu0 0.0
    %894 = vmatprep.subr.mxu0 0.0
    %895 = vmatpush1.msra.mxu0 0.0
    %896 = vmatprep.subr.mxu0 0.0
    %897 = vmatpush1.msra.mxu0 0.0
    %898 = vmatprep.subr.mxu0 0.0
    %899 = vmatpush1.msra.mxu0 0.0
    %900 = vmatprep.subr.mxu0 0.0
    %901 = vmatpush1.msra.mxu0 0.0
    %902 = vmatprep.subr.mxu0 0.0
    %903 = vmatpush1.msra.mxu0 0.0
    %904 = vmatprep.subr.mxu0 0.0
    %905 = vmatpush1.msra.mxu0 0.0
    %906 = vmatprep.subr.mxu0 0.0
    %907 = vmatpush1.msra.mxu0 0.0
    %908 = vmatprep.subr.mxu0 0.0
    %909 = vmatpush1.msra.mxu0 0.0
    %910 = vmatprep.mubr.f32.mxu0 0.0
    %911 = vmatmul.mubr.f32.gmra.mrb[0].mxu0 %v597
    %v912 = vpop.f32.mrb[0].mxu0
    %v913 = vadd.f32 0.0, %v912
    %v914 = vpop.f32.mrb[0].mxu0
    %915 = vmatprep.mubr.f32.mxu0 0.0
    %916 = vmatmul.mubr.f32.gmra.mrb[0].mxu0 %v598
    %v917 = vpop.f32.mrb[0].mxu0
    %v918 = vadd.f32 0.0, %v917
    %v919 = vpop.f32.mrb[0].mxu0
    %920 = vmatprep.mubr.f32.mxu0 0.0
    %921 = vmatmul.mubr.f32.gmra.mrb[0].mxu0 %v599
    %v922 = vpop.f32.mrb[0].mxu0
    %v923 = vadd.f32 0.0, %v922
    %v924 = vpop.f32.mrb[0].mxu0
    %925 = vdwg.mxu0
    %926 = vst [vmem:[#allocation7] sm:$0xff] %v747
    %927 = vst [vmem:[#allocation7 + $0x8] sm:$0xff] %v749
    %928 = vst [vmem:[#allocation7 + $0x10] sm:$0xff] %v830
    %929 = vst [vmem:[#allocation7 + $0x18] sm:$0xff] %v832
    %930 = vst [vmem:[#allocation7 + $0x20] sm:$0xff] %v913
    %931 = vst [vmem:[#allocation7 + $0x28] sm:$0xff] %v753
    %932 = vst [vmem:[#allocation7 + $0x30] sm:$0xff] %v755
    %933 = vst [vmem:[#allocation7 + $0x38] sm:$0xff] %v836
    %934 = vst [vmem:[#allocation7 + $0x40] sm:$0xff] %v838
    %935 = vst [vmem:[#allocation7 + $0x48] sm:$0xff] %v918
    %936 = vst [vmem:[#allocation7 + $0x50] sm:$0xff] %v759
    %937 = vst [vmem:[#allocation7 + $0x58] sm:$0xff] %v761
    %938 = vst [vmem:[#allocation7 + $0x60] sm:$0xff] %v842
    %939 = vst [vmem:[#allocation7 + $0x68] sm:$0xff] %v844
    %940 = vst [vmem:[#allocation7 + $0x70] sm:$0xff] %v923
    %v941 = vld [vmem:[#allocation20] sm:$0xff]
    %v942 = vld [vmem:[#allocation20 + $0x8] sm:$0xff]
    %v943 = vld [vmem:[#allocation20 + $0x10] sm:$0xff]
    %v944 = vld [vmem:[#allocation20 + $0x18] sm:$0xff]
    %v945 = vld [vmem:[#allocation20 + $0x20] sm:$0xff]
    %v946 = vld [vmem:[#allocation20 + $0x28] sm:$0xff]
    %v947 = vld [vmem:[#allocation20 + $0x30] sm:$0xff]
    %v948 = vld [vmem:[#allocation20 + $0x38] sm:$0xff]
    %v949 = vld [vmem:[#allocation20 + $0x40] sm:$0xff]
    %v950 = vld [vmem:[#allocation20 + $0x48] sm:$0xff]
    %v951 = vld [vmem:[#allocation20 + $0x50] sm:$0xff]
    %v952 = vld [vmem:[#allocation20 + $0x58] sm:$0xff]
    %v953 = vld [vmem:[#allocation20 + $0x60] sm:$0xff]
    %v954 = vld [vmem:[#allocation20 + $0x68] sm:$0xff]
    %v955 = vld [vmem:[#allocation20 + $0x70] sm:$0xff]
    %v956 = vld [vmem:[#allocation20 + $0x78] sm:$0xff]
    %957 = vmatprep.subr.mxu0 0.0
    %958 = vmatpush1.msra.mxu0 %v941
    %959 = vmatprep.subr.mxu0 0.0
    %960 = vmatpush1.msra.mxu0 %v942
    %961 = vmatprep.subr.mxu0 0.0
    %962 = vmatpush1.msra.mxu0 %v943
    %963 = vmatprep.subr.mxu0 0.0
    %964 = vmatpush1.msra.mxu0 %v944
    %965 = vmatprep.subr.mxu0 0.0
    %966 = vmatpush1.msra.mxu0 %v945
    %967 = vmatprep.subr.mxu0 0.0
    %968 = vmatpush1.msra.mxu0 %v946
    %969 = vmatprep.subr.mxu0 0.0
    %970 = vmatpush1.msra.mxu0 %v947
    %971 = vmatprep.subr.mxu0 0.0
    %972 = vmatpush1.msra.mxu0 %v948
    %973 = vmatprep.subr.mxu0 0.0
    %974 = vmatpush1.msra.mxu0 %v949
    %975 = vmatprep.subr.mxu0 0.0
    %976 = vmatpush1.msra.mxu0 %v950
    %977 = vmatprep.subr.mxu0 0.0
    %978 = vmatpush1.msra.mxu0 %v951
    %979 = vmatprep.subr.mxu0 0.0
    %980 = vmatpush1.msra.mxu0 %v952
    %981 = vmatprep.subr.mxu0 0.0
    %982 = vmatpush1.msra.mxu0 %v953
    %983 = vmatprep.subr.mxu0 0.0
    %984 = vmatpush1.msra.mxu0 %v954
    %985 = vmatprep.subr.mxu0 0.0
    %986 = vmatpush1.msra.mxu0 %v955
    %987 = vmatprep.subr.mxu0 0.0
    %988 = vmatpush1.msra.mxu0 %v956
    %989 = vmatprep.subr.mxu0 0.0
    %990 = vmatpush1.msra.mxu0 0.0
    %991 = vmatprep.subr.mxu0 0.0
    %992 = vmatpush1.msra.mxu0 0.0
    %993 = vmatprep.subr.mxu0 0.0
    %994 = vmatpush1.msra.mxu0 0.0
    %995 = vmatprep.subr.mxu0 0.0
    %996 = vmatpush1.msra.mxu0 0.0
    %997 = vmatprep.subr.mxu0 0.0
    %998 = vmatpush1.msra.mxu0 0.0
    %999 = vmatprep.subr.mxu0 0.0
    %1000 = vmatpush1.msra.mxu0 0.0
    %1001 = vmatprep.subr.mxu0 0.0
    %1002 = vmatpush1.msra.mxu0 0.0
    %1003 = vmatprep.subr.mxu0 0.0
    %1004 = vmatpush1.msra.mxu0 0.0
    %1005 = vmatprep.subr.mxu0 0.0
    %1006 = vmatpush1.msra.mxu0 0.0
    %1007 = vmatprep.subr.mxu0 0.0
    %1008 = vmatpush1.msra.mxu0 0.0
    %1009 = vmatprep.subr.mxu0 0.0
    %1010 = vmatpush1.msra.mxu0 0.0
    %1011 = vmatprep.subr.mxu0 0.0
    %1012 = vmatpush1.msra.mxu0 0.0
    %1013 = vmatprep.subr.mxu0 0.0
    %1014 = vmatpush1.msra.mxu0 0.0
    %1015 = vmatprep.subr.mxu0 0.0
    %1016 = vmatpush1.msra.mxu0 0.0
    %1017 = vmatprep.subr.mxu0 0.0
    %1018 = vmatpush1.msra.mxu0 0.0
    %1019 = vmatprep.subr.mxu0 0.0
    %1020 = vmatpush1.msra.mxu0 0.0
    %1021 = vmatprep.mubr.f32.mxu0 0.0
    %1022 = vmatmul.mubr.f32.gmra.mrb[0].mxu0 %v597
    %v1023 = vpop.f32.mrb[0].mxu0
    %v1024 = vadd.f32 0.0, %v1023
    %v1025 = vpop.f32.mrb[0].mxu0
    %1026 = vmatprep.mubr.f32.mxu0 0.0
    %1027 = vmatmul.mubr.f32.gmra.mrb[0].mxu0 %v598
    %v1028 = vpop.f32.mrb[0].mxu0
    %v1029 = vadd.f32 0.0, %v1028
    %v1030 = vpop.f32.mrb[0].mxu0
    %1031 = vmatprep.mubr.f32.mxu0 0.0
    %1032 = vmatmul.mubr.f32.gmra.mrb[0].mxu0 %v599
    %v1033 = vpop.f32.mrb[0].mxu0
    %v1034 = vadd.f32 0.0, %v1033
    %v1035 = vpop.f32.mrb[0].mxu0
    %1036 = vdwg.mxu0
    %1037 = vst [vmem:[#allocation8] sm:$0xff] %v1024
    %1038 = vst [vmem:[#allocation8 + $0x8] sm:$0xff] %v1029
    %1039 = vst [vmem:[#allocation8 + $0x10] sm:$0xff] %v1034
    %1040 = vst [vmem:[#allocation2 + $0x7] sm:$0x1] 0.0
    %1041 = vst [vmem:[#allocation3 + $0x7] sm:$0x1] 0.0
    %s1042 = scalar_lea.smem [#allocation4], 7
    %1043 = sst [smem:[%s1042]] 0
    %v1044 = vlaneseq
    %v1045 = vand.u32 %v1044, 127
    %vm1046 = vcmp.ge.s32.totalorder %v1045, 1
    %vm1047 = vcmp.lt.s32.totalorder %v1045, 16
    %vm1048 = vmand %vm1046, %vm1047
    %v1049 = vsel %vm1048, 0.0, -1e+30
    %s1050 = sld [smem:[#allocation9]]
    %s1051 = sld [smem:[#allocation15]]
    %p1052 = scmp.lt.s32.totalorder %s1051, 0
    %s1053 = scalar_select %p1052, 7, %s1051
    %s1054 = scalar_lea.vmem [#allocation2], %s1053
    %v1055 = vld [vmem:[%s1054] sm:$0x1]
    %s1056 = scalar_lea.vmem [#allocation3], %s1053
    %v1057 = vld [vmem:[%s1056] sm:$0x1]
    %s1058 = sld [smem:[#allocation4 + %s1053]]
    %s1059 = sshra.s32 %s1050, 3
    %s1060 = sand.u32 %s1050, 7
    %s1061 = sshra.s32 %s1050, 3
    %s1062 = sand.u32 %s1050, 7
    %s1063 = smul.u32 %s1059, 5
    %s1064 = smul.u32 %s1063, 8
    %s1065 = sadd.s32 %s1064, %s1062
    %s1066 = scalar_lea.vmem [#allocation5], %s1065
    %v1067 = vld [vmem:[%s1066] ss:$8 sm:$0xf]
    %v1068 = vld [vmem:[%s1066] ss:$8 sm:$0x10]
    %v1069 = vor.u32 %v1067, %v1068
    %s1070 = sshra.s32 %s1058, 3
    %s1071 = sand.u32 %s1058, 7
    %s1072 = sshra.s32 %s1058, 3
    %s1073 = sand.u32 %s1058, 7
    %s1074 = smul.u32 %s1070, 5
    %s1075 = smul.u32 %s1074, 8
    %s1076 = sadd.s32 %s1075, %s1073
    %s1077 = scalar_lea.vmem [#allocation7], %s1076
    %v1078 = vld [vmem:[%s1077] ss:$8 sm:$0xf]
    %v1079 = vld [vmem:[%s1077] ss:$8 sm:$0x10]
    %v1080 = vor.u32 %v1078, %v1079
    %v1081 = vadd.f32 %v1069, %v1080
    %v1082 = vld [vmem:[#allocation25] sm:$0xff]
    %v1083 = vld [vmem:[#allocation25 + $0x8] sm:$0xff]
    %v1084 = vld [vmem:[#allocation25 + $0x10] sm:$0xff]
    %v1085 = vld [vmem:[#allocation25 + $0x18] sm:$0xff]
    %v1086 = vld [vmem:[#allocation25 + $0x20] sm:$0xff]
    %v1087 = vld [vmem:[#allocation25 + $0x28] sm:$0xff]
    %v1088 = vld [vmem:[#allocation25 + $0x30] sm:$0xff]
    %v1089 = vld [vmem:[#allocation25 + $0x38] sm:$0xff]
    %v1090 = vld [vmem:[#allocation25 + $0x40] sm:$0xff]
    %v1091 = vld [vmem:[#allocation25 + $0x48] sm:$0xff]
    %v1092 = vld [vmem:[#allocation25 + $0x50] sm:$0xff]
    %v1093 = vld [vmem:[#allocation25 + $0x58] sm:$0xff]
    %v1094 = vld [vmem:[#allocation25 + $0x60] sm:$0xff]
    %v1095 = vld [vmem:[#allocation25 + $0x68] sm:$0xff]
    %v1096 = vld [vmem:[#allocation25 + $0x70] sm:$0xff]
    %v1097 = vld [vmem:[#allocation25 + $0x78] sm:$0xff]
    %v1098 = vld [vmem:[#allocation25 + $0x80] sm:$0xff]
    %v1099 = vld [vmem:[#allocation25 + $0x88] sm:$0xff]
    %v1100 = vld [vmem:[#allocation25 + $0x90] sm:$0xff]
    %v1101 = vld [vmem:[#allocation25 + $0x98] sm:$0xff]
    %v1102 = vld [vmem:[#allocation25 + $0xa0] sm:$0xff]
    %v1103 = vld [vmem:[#allocation25 + $0xa8] sm:$0xff]
    %v1104 = vld [vmem:[#allocation25 + $0xb0] sm:$0xff]
    %v1105 = vld [vmem:[#allocation25 + $0xb8] sm:$0xff]
    %v1106 = vld [vmem:[#allocation25 + $0xc0] sm:$0xff]
    %v1107 = vld [vmem:[#allocation25 + $0xc8] sm:$0xff]
    %v1108 = vld [vmem:[#allocation25 + $0xd0] sm:$0xff]
    %v1109 = vld [vmem:[#allocation25 + $0xd8] sm:$0xff]
    %v1110 = vld [vmem:[#allocation25 + $0xe0] sm:$0xff]
    %v1111 = vld [vmem:[#allocation25 + $0xe8] sm:$0xff]
    %v1112 = vld [vmem:[#allocation25 + $0xf0] sm:$0xff]
    %v1113 = vld [vmem:[#allocation25 + $0xf8] sm:$0xff]
    %v1114 = vld [vmem:[#allocation25 + $0x100] sm:$0xff]
    %v1115 = vld [vmem:[#allocation25 + $0x108] sm:$0xff]
    %v1116 = vld [vmem:[#allocation25 + $0x110] sm:$0xff]
    %v1117 = vld [vmem:[#allocation25 + $0x118] sm:$0xff]
    %v1118 = vld [vmem:[#allocation25 + $0x120] sm:$0xff]
    %v1119 = vld [vmem:[#allocation25 + $0x128] sm:$0xff]
    %v1120 = vld [vmem:[#allocation25 + $0x130] sm:$0xff]
    %v1121 = vld [vmem:[#allocation25 + $0x138] sm:$0xff]
    %v1122 = vld [vmem:[#allocation25 + $0x140] sm:$0xff]
    %v1123 = vld [vmem:[#allocation25 + $0x148] sm:$0xff]
    %v1124 = vld [vmem:[#allocation25 + $0x150] sm:$0xff]
    %v1125 = vld [vmem:[#allocation25 + $0x158] sm:$0xff]
    %v1126 = vld [vmem:[#allocation25 + $0x160] sm:$0xff]
    %v1127 = vld [vmem:[#allocation25 + $0x168] sm:$0xff]
    %v1128 = vld [vmem:[#allocation25 + $0x170] sm:$0xff]
    %v1129 = vld [vmem:[#allocation25 + $0x178] sm:$0xff]
    %v1130 = vld [vmem:[#allocation25 + $0x180] sm:$0xff]
    %v1131 = vld [vmem:[#allocation25 + $0x188] sm:$0xff]
    %v1132 = vld [vmem:[#allocation25 + $0x190] sm:$0xff]
    %v1133 = vld [vmem:[#allocation25 + $0x198] sm:$0xff]
    %v1134 = vld [vmem:[#allocation25 + $0x1a0] sm:$0xff]
    %v1135 = vld [vmem:[#allocation25 + $0x1a8] sm:$0xff]
    %v1136 = vld [vmem:[#allocation25 + $0x1b0] sm:$0xff]
    %v1137 = vld [vmem:[#allocation25 + $0x1b8] sm:$0xff]
    %v1138 = vld [vmem:[#allocation25 + $0x1c0] sm:$0xff]
    %v1139 = vld [vmem:[#allocation25 + $0x1c8] sm:$0xff]
    %v1140 = vld [vmem:[#allocation25 + $0x1d0] sm:$0xff]
    %v1141 = vld [vmem:[#allocation25 + $0x1d8] sm:$0xff]
    %v1142 = vld [vmem:[#allocation25 + $0x1e0] sm:$0xff]
    %v1143 = vld [vmem:[#allocation25 + $0x1e8] sm:$0xff]
    %v1144 = vld [vmem:[#allocation25 + $0x1f0] sm:$0xff]
    %v1145 = vld [vmem:[#allocation25 + $0x1f8] sm:$0xff]
    %v1146 = vld [vmem:[#allocation25 + $0x200] sm:$0xff]
    %v1147 = vld [vmem:[#allocation25 + $0x208] sm:$0xff]
    %v1148 = vld [vmem:[#allocation25 + $0x210] sm:$0xff]
    %v1149 = vld [vmem:[#allocation25 + $0x218] sm:$0xff]
    %v1150 = vld [vmem:[#allocation25 + $0x220] sm:$0xff]
    %v1151 = vld [vmem:[#allocation25 + $0x228] sm:$0xff]
    %v1152 = vld [vmem:[#allocation25 + $0x230] sm:$0xff]
    %v1153 = vld [vmem:[#allocation25 + $0x238] sm:$0xff]
    %v1154 = vld [vmem:[#allocation25 + $0x240] sm:$0xff]
    %v1155 = vld [vmem:[#allocation25 + $0x248] sm:$0xff]
    %v1156 = vld [vmem:[#allocation25 + $0x250] sm:$0xff]
    %v1157 = vld [vmem:[#allocation25 + $0x258] sm:$0xff]
    %v1158 = vld [vmem:[#allocation25 + $0x260] sm:$0xff]
    %v1159 = vld [vmem:[#allocation25 + $0x268] sm:$0xff]
    %v1160 = vld [vmem:[#allocation25 + $0x270] sm:$0xff]
    %v1161 = vld [vmem:[#allocation25 + $0x278] sm:$0xff]
    %1162 = vmatprep.subr.mxu0 %v1083
    %1163 = vmatpush1.msra.mxu0 %v1082
    %1164 = vmatprep.subr.mxu0 %v1088
    %1165 = vmatpush1.msra.mxu0 %v1087
    %1166 = vmatprep.subr.mxu0 %v1093
    %1167 = vmatpush1.msra.mxu0 %v1092
    %1168 = vmatprep.subr.mxu0 %v1098
    %1169 = vmatpush1.msra.mxu0 %v1097
    %1170 = vmatprep.subr.mxu0 %v1103
    %1171 = vmatpush1.msra.mxu0 %v1102
    %1172 = vmatprep.subr.mxu0 %v1108
    %1173 = vmatpush1.msra.mxu0 %v1107
    %1174 = vmatprep.subr.mxu0 %v1113
    %1175 = vmatpush1.msra.mxu0 %v1112
    %1176 = vmatprep.subr.mxu0 %v1118
    %1177 = vmatpush1.msra.mxu0 %v1117
    %1178 = vmatprep.subr.mxu0 %v1123
    %1179 = vmatpush1.msra.mxu0 %v1122
    %1180 = vmatprep.subr.mxu0 %v1128
    %1181 = vmatpush1.msra.mxu0 %v1127
    %1182 = vmatprep.subr.mxu0 %v1133
    %1183 = vmatpush1.msra.mxu0 %v1132
    %1184 = vmatprep.subr.mxu0 %v1138
    %1185 = vmatpush1.msra.mxu0 %v1137
    %1186 = vmatprep.subr.mxu0 %v1143
    %1187 = vmatpush1.msra.mxu0 %v1142
    %1188 = vmatprep.subr.mxu0 %v1148
    %1189 = vmatpush1.msra.mxu0 %v1147
    %1190 = vmatprep.subr.mxu0 %v1153
    %1191 = vmatpush1.msra.mxu0 %v1152
    %1192 = vmatprep.subr.mxu0 %v1158
    %1193 = vmatpush1.msra.mxu0 %v1157
    %1194 = vmatprep.subr.mxu0 0.0
    %1195 = vmatpush1.msra.mxu0 0.0
    %1196 = vmatprep.subr.mxu0 0.0
    %1197 = vmatpush1.msra.mxu0 0.0
    %1198 = vmatprep.subr.mxu0 0.0
    %1199 = vmatpush1.msra.mxu0 0.0
    %1200 = vmatprep.subr.mxu0 0.0
    %1201 = vmatpush1.msra.mxu0 0.0
    %1202 = vmatprep.subr.mxu0 0.0
    %1203 = vmatpush1.msra.mxu0 0.0
    %1204 = vmatprep.subr.mxu0 0.0
    %1205 = vmatpush1.msra.mxu0 0.0
    %1206 = vmatprep.subr.mxu0 0.0
    %1207 = vmatpush1.msra.mxu0 0.0
    %1208 = vmatprep.subr.mxu0 0.0
    %1209 = vmatpush1.msra.mxu0 0.0
    %1210 = vmatprep.subr.mxu0 0.0
    %1211 = vmatpush1.msra.mxu0 0.0
    %1212 = vmatprep.subr.mxu0 0.0
    %1213 = vmatpush1.msra.mxu0 0.0
    %1214 = vmatprep.subr.mxu0 0.0
    %1215 = vmatpush1.msra.mxu0 0.0
    %1216 = vmatprep.subr.mxu0 0.0
    %1217 = vmatpush1.msra.mxu0 0.0
    %1218 = vmatprep.subr.mxu0 0.0
    %1219 = vmatpush1.msra.mxu0 0.0
    %1220 = vmatprep.subr.mxu0 0.0
    %1221 = vmatpush1.msra.mxu0 0.0
    %1222 = vmatprep.subr.mxu0 0.0
    %1223 = vmatpush1.msra.mxu0 0.0
    %1224 = vmatprep.subr.mxu0 0.0
    %1225 = vmatpush1.msra.mxu0 0.0
    %1226 = vmatprep.mubr.f32.mxu0 0.0
    %1227 = vmatmul.mubr.f32.gmra.mrb[0].mxu0 %v1055
    %v1228 = vpop.f32.mrb[0].mxu0
    %v1229 = vadd.f32 0.0, %v1228
    %v1230 = vpop.f32.mrb[0].mxu0
    %v1231 = vadd.f32 0.0, %v1230
    %1232 = vdwg.mxu0
    %1233 = vmatprep.subr.mxu0 %v1085
    %1234 = vmatpush1.msra.mxu0 %v1084
    %1235 = vmatprep.subr.mxu0 %v1090
    %1236 = vmatpush1.msra.mxu0 %v1089
    %1237 = vmatprep.subr.mxu0 %v1095
    %1238 = vmatpush1.msra.mxu0 %v1094
    %1239 = vmatprep.subr.mxu0 %v1100
    %1240 = vmatpush1.msra.mxu0 %v1099
    %1241 = vmatprep.subr.mxu0 %v1105
    %1242 = vmatpush1.msra.mxu0 %v1104
    %1243 = vmatprep.subr.mxu0 %v1110
    %1244 = vmatpush1.msra.mxu0 %v1109
    %1245 = vmatprep.subr.mxu0 %v1115
    %1246 = vmatpush1.msra.mxu0 %v1114
    %1247 = vmatprep.subr.mxu0 %v1120
    %1248 = vmatpush1.msra.mxu0 %v1119
    %1249 = vmatprep.subr.mxu0 %v1125
    %1250 = vmatpush1.msra.mxu0 %v1124
    %1251 = vmatprep.subr.mxu0 %v1130
    %1252 = vmatpush1.msra.mxu0 %v1129
    %1253 = vmatprep.subr.mxu0 %v1135
    %1254 = vmatpush1.msra.mxu0 %v1134
    %1255 = vmatprep.subr.mxu0 %v1140
    %1256 = vmatpush1.msra.mxu0 %v1139
    %1257 = vmatprep.subr.mxu0 %v1145
    %1258 = vmatpush1.msra.mxu0 %v1144
    %1259 = vmatprep.subr.mxu0 %v1150
    %1260 = vmatpush1.msra.mxu0 %v1149
    %1261 = vmatprep.subr.mxu0 %v1155
    %1262 = vmatpush1.msra.mxu0 %v1154
    %1263 = vmatprep.subr.mxu0 %v1160
    %1264 = vmatpush1.msra.mxu0 %v1159
    %1265 = vmatprep.subr.mxu0 0.0
    %1266 = vmatpush1.msra.mxu0 0.0
    %1267 = vmatprep.subr.mxu0 0.0
    %1268 = vmatpush1.msra.mxu0 0.0
    %1269 = vmatprep.subr.mxu0 0.0
    %1270 = vmatpush1.msra.mxu0 0.0
    %1271 = vmatprep.subr.mxu0 0.0
    %1272 = vmatpush1.msra.mxu0 0.0
    %1273 = vmatprep.subr.mxu0 0.0
    %1274 = vmatpush1.msra.mxu0 0.0
    %1275 = vmatprep.subr.mxu0 0.0
    %1276 = vmatpush1.msra.mxu0 0.0
    %1277 = vmatprep.subr.mxu0 0.0
    %1278 = vmatpush1.msra.mxu0 0.0
    %1279 = vmatprep.subr.mxu0 0.0
    %1280 = vmatpush1.msra.mxu0 0.0
    %1281 = vmatprep.subr.mxu0 0.0
    %1282 = vmatpush1.msra.mxu0 0.0
    %1283 = vmatprep.subr.mxu0 0.0
    %1284 = vmatpush1.msra.mxu0 0.0
    %1285 = vmatprep.subr.mxu0 0.0
    %1286 = vmatpush1.msra.mxu0 0.0
    %1287 = vmatprep.subr.mxu0 0.0
    %1288 = vmatpush1.msra.mxu0 0.0
    %1289 = vmatprep.subr.mxu0 0.0
    %1290 = vmatpush1.msra.mxu0 0.0
    %1291 = vmatprep.subr.mxu0 0.0
    %1292 = vmatpush1.msra.mxu0 0.0
    %1293 = vmatprep.subr.mxu0 0.0
    %1294 = vmatpush1.msra.mxu0 0.0
    %1295 = vmatprep.subr.mxu0 0.0
    %1296 = vmatpush1.msra.mxu0 0.0
    %1297 = vmatprep.mubr.f32.mxu0 0.0
    %1298 = vmatmul.mubr.f32.gmra.mrb[0].mxu0 %v1055
    %v1299 = vpop.f32.mrb[0].mxu0
    %v1300 = vadd.f32 0.0, %v1299
    %v1301 = vpop.f32.mrb[0].mxu0
    %v1302 = vadd.f32 0.0, %v1301
    %1303 = vdwg.mxu0
    %1304 = vmatprep.subr.mxu0 0.0
    %1305 = vmatpush1.msra.mxu0 %v1086
    %1306 = vmatprep.subr.mxu0 0.0
    %1307 = vmatpush1.msra.mxu0 %v1091
    %1308 = vmatprep.subr.mxu0 0.0
    %1309 = vmatpush1.msra.mxu0 %v1096
    %1310 = vmatprep.subr.mxu0 0.0
    %1311 = vmatpush1.msra.mxu0 %v1101
    %1312 = vmatprep.subr.mxu0 0.0
    %1313 = vmatpush1.msra.mxu0 %v1106
    %1314 = vmatprep.subr.mxu0 0.0
    %1315 = vmatpush1.msra.mxu0 %v1111
    %1316 = vmatprep.subr.mxu0 0.0
    %1317 = vmatpush1.msra.mxu0 %v1116
    %1318 = vmatprep.subr.mxu0 0.0
    %1319 = vmatpush1.msra.mxu0 %v1121
    %1320 = vmatprep.subr.mxu0 0.0
    %1321 = vmatpush1.msra.mxu0 %v1126
    %1322 = vmatprep.subr.mxu0 0.0
    %1323 = vmatpush1.msra.mxu0 %v1131
    %1324 = vmatprep.subr.mxu0 0.0
    %1325 = vmatpush1.msra.mxu0 %v1136
    %1326 = vmatprep.subr.mxu0 0.0
    %1327 = vmatpush1.msra.mxu0 %v1141
    %1328 = vmatprep.subr.mxu0 0.0
    %1329 = vmatpush1.msra.mxu0 %v1146
    %1330 = vmatprep.subr.mxu0 0.0
    %1331 = vmatpush1.msra.mxu0 %v1151
    %1332 = vmatprep.subr.mxu0 0.0
    %1333 = vmatpush1.msra.mxu0 %v1156
    %1334 = vmatprep.subr.mxu0 0.0
    %1335 = vmatpush1.msra.mxu0 %v1161
    %1336 = vmatprep.subr.mxu0 0.0
    %1337 = vmatpush1.msra.mxu0 0.0
    %1338 = vmatprep.subr.mxu0 0.0
    %1339 = vmatpush1.msra.mxu0 0.0
    %1340 = vmatprep.subr.mxu0 0.0
    %1341 = vmatpush1.msra.mxu0 0.0
    %1342 = vmatprep.subr.mxu0 0.0
    %1343 = vmatpush1.msra.mxu0 0.0
    %1344 = vmatprep.subr.mxu0 0.0
    %1345 = vmatpush1.msra.mxu0 0.0
    %1346 = vmatprep.subr.mxu0 0.0
    %1347 = vmatpush1.msra.mxu0 0.0
    %1348 = vmatprep.subr.mxu0 0.0
    %1349 = vmatpush1.msra.mxu0 0.0
    %1350 = vmatprep.subr.mxu0 0.0
    %1351 = vmatpush1.msra.mxu0 0.0
    %1352 = vmatprep.subr.mxu0 0.0
    %1353 = vmatpush1.msra.mxu0 0.0
    %1354 = vmatprep.subr.mxu0 0.0
    %1355 = vmatpush1.msra.mxu0 0.0
    %1356 = vmatprep.subr.mxu0 0.0
    %1357 = vmatpush1.msra.mxu0 0.0
    %1358 = vmatprep.subr.mxu0 0.0
    %1359 = vmatpush1.msra.mxu0 0.0
    %1360 = vmatprep.subr.mxu0 0.0
    %1361 = vmatpush1.msra.mxu0 0.0
    %1362 = vmatprep.subr.mxu0 0.0
    %1363 = vmatpush1.msra.mxu0 0.0
    %1364 = vmatprep.subr.mxu0 0.0
    %1365 = vmatpush1.msra.mxu0 0.0
    %1366 = vmatprep.subr.mxu0 0.0
    %1367 = vmatpush1.msra.mxu0 0.0
    %1368 = vmatprep.mubr.f32.mxu0 0.0
    %1369 = vmatmul.mubr.f32.gmra.mrb[0].mxu0 %v1055
    %v1370 = vpop.f32.mrb[0].mxu0
    %v1371 = vadd.f32 0.0, %v1370
    %v1372 = vpop.f32.mrb[0].mxu0
    %1373 = vdwg.mxu0
    %v1379 = vcombine.low %v1229, %v1231
    %v1380 = vcombine.low %v1300, %v1302
    %v1382 = vunpack.c.l.s4 1966171168
    %v1383 = vunpack.c.0.s8 %v1382
    %v1384 = vlaneseq
    %v1385 = vshrl.u32 %v1384, 7
    %v1386 = vsub.s32 %v1383, %v1385
    %v1387 = vrot.slane %v1379, %v1386
    %v1389 = vunpack.c.l.s4 1966171168
    %v1390 = vunpack.c.0.s8 %v1389
    %v1391 = vlaneseq
    %v1392 = vshrl.u32 %v1391, 7
    %v1393 = vsub.s32 %v1390, %v1392
    %v1394 = vrot.slane %v1380, %v1393
    %v1396 = vunpack.c.l.s4 1966171168
    %v1397 = vunpack.c.0.s8 %v1396
    %v1398 = vlaneseq
    %v1399 = vshrl.u32 %v1398, 7
    %v1400 = vsub.s32 %v1397, %v1399
    %v1401 = vrot.slane %v1371, %v1400
    %v1402 = vcombine.low %v1387, %v1394
    %v1404 = vunpack.c.l.s4 1966171168
    %v1405 = vunpack.c.0.s8 %v1404
    %v1406 = vlaneseq
    %v1407 = vshrl.u32 %v1406, 7
    %v1408 = vsub.s32 %v1405, %v1407
    %v1409 = vrot.slane %v1402, %v1408
    %v1411 = vunpack.c.l.s4 1966171168
    %v1412 = vunpack.c.0.s8 %v1411
    %v1413 = vlaneseq
    %v1414 = vshrl.u32 %v1413, 7
    %v1415 = vsub.s32 %v1412, %v1414
    %v1416 = vrot.slane %v1401, %v1415
    %v1417 = vcombine.low %v1409, %v1416
    %v1419 = vadd.f32 %v1081, %v1417
    %s1420 = scalar_lea.vmem [#allocation6], %s1050
    %v1421 = vld [vmem:[%s1420] sm:$0x1]
    %s1422 = scalar_lea.vmem [#allocation8], %s1058
    %v1423 = vld [vmem:[%s1422] sm:$0x1]
    %v1424 = vadd.f32 %v1421, %v1423
    %v1425 = vxor.u32 %v1419, 2147483648
    %v1426 = vmul.f32 %v1425, 1.442695
    %v1427 = vpow.pop %v1426
    %v1428 = vadd.f32 %v1427, 1.0
    %v1429 = vrcp.pop %v1428
    %v1430 = vmul.f32 1.0, %v1429
    %v1432 = vrot.slane %v1419, 1
    %v1434 = vxor.u32 %v1432, 2147483648
    %v1435 = vmul.f32 %v1434, 1.442695
    %v1436 = vpow.pop %v1435
    %v1437 = vadd.f32 %v1436, 1.0
    %v1438 = vrcp.pop %v1437
    %v1439 = vmul.f32 1.0, %v1438
    %v1440 = vrot.slane %v1419, 2
    %v1442 = vxor.u32 %v1440, 2147483648
    %v1443 = vmul.f32 %v1442, 1.442695
    %v1444 = vpow.pop %v1443
    %v1445 = vadd.f32 %v1444, 1.0
    %v1446 = vrcp.pop %v1445
    %v1447 = vmul.f32 1.0, %v1446
    %v1448 = vrot.slane %v1419, 3
    %v1450 = vtanh.pop %v1448
    %v1451 = vrot.slane %v1419, 4
    %v1453 = vxor.u32 %v1451, 2147483648
    %v1454 = vmul.f32 %v1453, 1.442695
    %v1455 = vpow.pop %v1454
    %v1456 = vadd.f32 %v1455, 1.0
    %v1457 = vrcp.pop %v1456
    %v1458 = vmul.f32 1.0, %v1457
    %v1459 = vmul.f32 %v1430, %v1450
    %v1460 = vmul.f32 %v1447, %v1057
    %v1461 = vadd.f32 %v1459, %v1460
    %v1462 = vtanh.pop %v1461
    %v1463 = vmul.f32 %v1439, %v1462
    %v1464 = vmul.f32 %v1458, %v1463
    %v1465 = vsub.f32 1.0, %v1458
    %v1466 = vmul.f32 %v1465, %v1424
    %v1467 = vadd.f32 %v1464, %v1466
    %v1468 = vld [vmem:[#allocation26] sm:$0xff]
    %v1469 = vld [vmem:[#allocation26 + $0x8] sm:$0xff]
    %v1470 = vld [vmem:[#allocation26 + $0x10] sm:$0xff]
    %v1471 = vld [vmem:[#allocation26 + $0x18] sm:$0xff]
    %v1472 = vld [vmem:[#allocation26 + $0x20] sm:$0xff]
    %v1473 = vld [vmem:[#allocation26 + $0x28] sm:$0xff]
    %v1474 = vld [vmem:[#allocation26 + $0x30] sm:$0xff]
    %v1475 = vld [vmem:[#allocation26 + $0x38] sm:$0xff]
    %v1476 = vld [vmem:[#allocation26 + $0x40] sm:$0xff]
    %v1477 = vld [vmem:[#allocation26 + $0x48] sm:$0xff]
    %v1478 = vld [vmem:[#allocation26 + $0x50] sm:$0xff]
    %v1479 = vld [vmem:[#allocation26 + $0x58] sm:$0xff]
    %v1480 = vld [vmem:[#allocation26 + $0x60] sm:$0xff]
    %v1481 = vld [vmem:[#allocation26 + $0x68] sm:$0xff]
    %v1482 = vld [vmem:[#allocation26 + $0x70] sm:$0xff]
    %v1483 = vld [vmem:[#allocation26 + $0x78] sm:$0xff]
    %v1484 = vld [vmem:[%s12] sm:$0x1]
    %1485 = vmatprep.subr.mxu0 0.0
    %1486 = vmatpush1.msra.mxu0 %v1468
    %1487 = vmatprep.subr.mxu0 0.0
    %1488 = vmatpush1.msra.mxu0 %v1469
    %1489 = vmatprep.subr.mxu0 0.0
    %1490 = vmatpush1.msra.mxu0 %v1470
    %1491 = vmatprep.subr.mxu0 0.0
    %1492 = vmatpush1.msra.mxu0 %v1471
    %1493 = vmatprep.subr.mxu0 0.0
    %1494 = vmatpush1.msra.mxu0 %v1472
    %1495 = vmatprep.subr.mxu0 0.0
    %1496 = vmatpush1.msra.mxu0 %v1473
    %1497 = vmatprep.subr.mxu0 0.0
    %1498 = vmatpush1.msra.mxu0 %v1474
    %1499 = vmatprep.subr.mxu0 0.0
    %1500 = vmatpush1.msra.mxu0 %v1475
    %1501 = vmatprep.subr.mxu0 0.0
    %1502 = vmatpush1.msra.mxu0 %v1476
    %1503 = vmatprep.subr.mxu0 0.0
    %1504 = vmatpush1.msra.mxu0 %v1477
    %1505 = vmatprep.subr.mxu0 0.0
    %1506 = vmatpush1.msra.mxu0 %v1478
    %1507 = vmatprep.subr.mxu0 0.0
    %1508 = vmatpush1.msra.mxu0 %v1479
    %1509 = vmatprep.subr.mxu0 0.0
    %1510 = vmatpush1.msra.mxu0 %v1480
    %1511 = vmatprep.subr.mxu0 0.0
    %1512 = vmatpush1.msra.mxu0 %v1481
    %1513 = vmatprep.subr.mxu0 0.0
    %1514 = vmatpush1.msra.mxu0 %v1482
    %1515 = vmatprep.subr.mxu0 0.0
    %1516 = vmatpush1.msra.mxu0 %v1483
    %1517 = vmatprep.subr.mxu0 0.0
    %1518 = vmatpush1.msra.mxu0 0.0
    %1519 = vmatprep.subr.mxu0 0.0
    %1520 = vmatpush1.msra.mxu0 0.0
    %1521 = vmatprep.subr.mxu0 0.0
    %1522 = vmatpush1.msra.mxu0 0.0
    %1523 = vmatprep.subr.mxu0 0.0
    %1524 = vmatpush1.msra.mxu0 0.0
    %1525 = vmatprep.subr.mxu0 0.0
    %1526 = vmatpush1.msra.mxu0 0.0
    %1527 = vmatprep.subr.mxu0 0.0
    %1528 = vmatpush1.msra.mxu0 0.0
    %1529 = vmatprep.subr.mxu0 0.0
    %1530 = vmatpush1.msra.mxu0 0.0
    %1531 = vmatprep.subr.mxu0 0.0
    %1532 = vmatpush1.msra.mxu0 0.0
    %1533 = vmatprep.subr.mxu0 0.0
    %1534 = vmatpush1.msra.mxu0 0.0
    %1535 = vmatprep.subr.mxu0 0.0
    %1536 = vmatpush1.msra.mxu0 0.0
    %1537 = vmatprep.subr.mxu0 0.0
    %1538 = vmatpush1.msra.mxu0 0.0
    %1539 = vmatprep.subr.mxu0 0.0
    %1540 = vmatpush1.msra.mxu0 0.0
    %1541 = vmatprep.subr.mxu0 0.0
    %1542 = vmatpush1.msra.mxu0 0.0
    %1543 = vmatprep.subr.mxu0 0.0
    %1544 = vmatpush1.msra.mxu0 0.0
    %1545 = vmatprep.subr.mxu0 0.0
    %1546 = vmatpush1.msra.mxu0 0.0
    %1547 = vmatprep.subr.mxu0 0.0
    %1548 = vmatpush1.msra.mxu0 0.0
    %1549 = vmatprep.mubr.f32.mxu0 0.0
    %1550 = vmatmul.mubr.f32.gmra.mrb[0].mxu0 %v1467
    %v1551 = vpop.f32.mrb[0].mxu0
    %v1552 = vadd.f32 %v1484, %v1551
    %v1553 = vpop.f32.mrb[0].mxu0
    %1554 = vdwg.mxu0
    %s1555 = scalar_lea.vmem [#allocation28], %s1050
    %1556 = vst [vmem:[%s1555] sm:$0x1] %v1552
    %v1557 = vadd.f32 %v1552, %v1049
    %vm1558 = vcmask 1040384
    %v1559 = vsel %vm1558, %v1557, -inf
    %1560 = vmax.xlane.f32.xlu0 %v1559
    %v1561 = vpop.xlane.xlu0 %1560
    %vm1562 = vcmp.ge.f32.partialorder %v1557, %v1561
    %v1563 = vsel %vm1562, %v1045, 128
    %v1564 = vsel %vm1558, %v1563, 2147483647
    %v1565 = vand.u32 %v1564, 65535
    %v1566 = vshra.s32 %v1564, 16
    %v1567 = vcvt.s32.f32 %v1565
    %v1568 = vcvt.s32.f32 %v1566
    %1569 = vmin.xlane.f32.xlu0 %v1568
    %v1570 = vpop.xlane.xlu0 %1569
    %vm1571 = vcmp.eq.f32.partialorder %v1568, %v1570
    %v1572 = vsel %vm1571, %v1567, inf
    %1573 = vmin.xlane.f32.xlu0 %v1572
    %v1574 = vpop.xlane.xlu0 %1573
    %v1575 = vcvt.f32.s32 %v1574
    %v1576 = vcvt.f32.s32 %v1570
    %v1577 = vshll.u32 %v1576, 16
    %v1578 = vadd.s32 %v1577, %v1575
    %v1579 = vrot.slane %v1578, 4
    %vm1580 = vcmp.lt.s32.totalorder %v1578, %v1579
    %v1581 = vsel %vm1580, %v1578, %v1579
    %v1582 = vrot.slane %v1581, 2
    %vm1583 = vcmp.lt.s32.totalorder %v1581, %v1582
    %v1584 = vsel %vm1583, %v1581, %v1582
    %v1585 = vrot.slane %v1584, 1
    %vm1586 = vcmp.lt.s32.totalorder %v1584, %v1585
    %v1587 = vsel %vm1586, %v1584, %v1585
    %s1588 = vtos %v1587
    %s1589 = scalar_lea.smem [#allocation29], %s1050
    %1590 = sst [smem:[%s1589]] %s1588
    %s1591 = sadd.s32 %s1588, 1
    %s1592 = scalar_lea.smem [#allocation4], 0
    %1593 = sst [smem:[%s1592]] %s1591
    %1594 = vst [vmem:[#allocation2] sm:$0x1] %v1467
    %1595 = vst [vmem:[#allocation3] sm:$0x1] %v1461
    %s1596 = sld [smem:[#allocation9 + $0x1]]
    %s1597 = sld [smem:[#allocation15 + $0x1]]
    %p1598 = scmp.lt.s32.totalorder %s1597, 0
    %s1599 = scalar_select %p1598, 7, %s1597
    %s1600 = scalar_lea.vmem [#allocation2], %s1599
    %v1601 = vld [vmem:[%s1600] sm:$0x1]
    %s1602 = scalar_lea.vmem [#allocation3], %s1599
    %v1603 = vld [vmem:[%s1602] sm:$0x1]
    %s1604 = sld [smem:[#allocation4 + %s1599]]
    %s1605 = sshra.s32 %s1596, 3
    %s1606 = sand.u32 %s1596, 7
    %s1607 = sshra.s32 %s1596, 3
    %s1608 = sand.u32 %s1596, 7
    %s1609 = smul.u32 %s1605, 5
    %s1610 = smul.u32 %s1609, 8
    %s1611 = sadd.s32 %s1610, %s1608
    %s1612 = scalar_lea.vmem [#allocation5], %s1611
    %v1613 = vld [vmem:[%s1612] ss:$8 sm:$0xf]
    %v1614 = vld [vmem:[%s1612] ss:$8 sm:$0x10]
    %v1615 = vor.u32 %v1613, %v1614
    %s1616 = sshra.s32 %s1604, 3
    %s1617 = sand.u32 %s1604, 7
    %s1618 = sshra.s32 %s1604, 3
    %s1619 = sand.u32 %s1604, 7
    %s1620 = smul.u32 %s1616, 5
    %s1621 = smul.u32 %s1620, 8
    %s1622 = sadd.s32 %s1621, %s1619
    %s1623 = scalar_lea.vmem [#allocation7], %s1622
    %v1624 = vld [vmem:[%s1623] ss:$8 sm:$0xf]
    %v1625 = vld [vmem:[%s1623] ss:$8 sm:$0x10]
    %v1626 = vor.u32 %v1624, %v1625
    %v1627 = vadd.f32 %v1615, %v1626
    %v1628 = vld [vmem:[#allocation25] sm:$0xff]
    %v1629 = vld [vmem:[#allocation25 + $0x8] sm:$0xff]
    %v1630 = vld [vmem:[#allocation25 + $0x10] sm:$0xff]
    %v1631 = vld [vmem:[#allocation25 + $0x18] sm:$0xff]
    %v1632 = vld [vmem:[#allocation25 + $0x20] sm:$0xff]
    %v1633 = vld [vmem:[#allocation25 + $0x28] sm:$0xff]
    %v1634 = vld [vmem:[#allocation25 + $0x30] sm:$0xff]
    %v1635 = vld [vmem:[#allocation25 + $0x38] sm:$0xff]
    %v1636 = vld [vmem:[#allocation25 + $0x40] sm:$0xff]
    %v1637 = vld [vmem:[#allocation25 + $0x48] sm:$0xff]
    %v1638 = vld [vmem:[#allocation25 + $0x50] sm:$0xff]
    %v1639 = vld [vmem:[#allocation25 + $0x58] sm:$0xff]
    %v1640 = vld [vmem:[#allocation25 + $0x60] sm:$0xff]
    %v1641 = vld [vmem:[#allocation25 + $0x68] sm:$0xff]
    %v1642 = vld [vmem:[#allocation25 + $0x70] sm:$0xff]
    %v1643 = vld [vmem:[#allocation25 + $0x78] sm:$0xff]
    %v1644 = vld [vmem:[#allocation25 + $0x80] sm:$0xff]
    %v1645 = vld [vmem:[#allocation25 + $0x88] sm:$0xff]
    %v1646 = vld [vmem:[#allocation25 + $0x90] sm:$0xff]
    %v1647 = vld [vmem:[#allocation25 + $0x98] sm:$0xff]
    %v1648 = vld [vmem:[#allocation25 + $0xa0] sm:$0xff]
    %v1649 = vld [vmem:[#allocation25 + $0xa8] sm:$0xff]
    %v1650 = vld [vmem:[#allocation25 + $0xb0] sm:$0xff]
    %v1651 = vld [vmem:[#allocation25 + $0xb8] sm:$0xff]
    %v1652 = vld [vmem:[#allocation25 + $0xc0] sm:$0xff]
    %v1653 = vld [vmem:[#allocation25 + $0xc8] sm:$0xff]
    %v1654 = vld [vmem:[#allocation25 + $0xd0] sm:$0xff]
    %v1655 = vld [vmem:[#allocation25 + $0xd8] sm:$0xff]
    %v1656 = vld [vmem:[#allocation25 + $0xe0] sm:$0xff]
    %v1657 = vld [vmem:[#allocation25 + $0xe8] sm:$0xff]
    %v1658 = vld [vmem:[#allocation25 + $0xf0] sm:$0xff]
    %v1659 = vld [vmem:[#allocation25 + $0xf8] sm:$0xff]
    %v1660 = vld [vmem:[#allocation25 + $0x100] sm:$0xff]
    %v1661 = vld [vmem:[#allocation25 + $0x108] sm:$0xff]
    %v1662 = vld [vmem:[#allocation25 + $0x110] sm:$0xff]
    %v1663 = vld [vmem:[#allocation25 + $0x118] sm:$0xff]
    %v1664 = vld [vmem:[#allocation25 + $0x120] sm:$0xff]
    %v1665 = vld [vmem:[#allocation25 + $0x128] sm:$0xff]
    %v1666 = vld [vmem:[#allocation25 + $0x130] sm:$0xff]
    %v1667 = vld [vmem:[#allocation25 + $0x138] sm:$0xff]
    %v1668 = vld [vmem:[#allocation25 + $0x140] sm:$0xff]
    %v1669 = vld [vmem:[#allocation25 + $0x148] sm:$0xff]
    %v1670 = vld [vmem:[#allocation25 + $0x150] sm:$0xff]
    %v1671 = vld [vmem:[#allocation25 + $0x158] sm:$0xff]
    %v1672 = vld [vmem:[#allocation25 + $0x160] sm:$0xff]
    %v1673 = vld [vmem:[#allocation25 + $0x168] sm:$0xff]
    %v1674 = vld [vmem:[#allocation25 + $0x170] sm:$0xff]
    %v1675 = vld [vmem:[#allocation25 + $0x178] sm:$0xff]
    %v1676 = vld [vmem:[#allocation25 + $0x180] sm:$0xff]
    %v1677 = vld [vmem:[#allocation25 + $0x188] sm:$0xff]
    %v1678 = vld [vmem:[#allocation25 + $0x190] sm:$0xff]
    %v1679 = vld [vmem:[#allocation25 + $0x198] sm:$0xff]
    %v1680 = vld [vmem:[#allocation25 + $0x1a0] sm:$0xff]
    %v1681 = vld [vmem:[#allocation25 + $0x1a8] sm:$0xff]
    %v1682 = vld [vmem:[#allocation25 + $0x1b0] sm:$0xff]
    %v1683 = vld [vmem:[#allocation25 + $0x1b8] sm:$0xff]
    %v1684 = vld [vmem:[#allocation25 + $0x1c0] sm:$0xff]
    %v1685 = vld [vmem:[#allocation25 + $0x1c8] sm:$0xff]
    %v1686 = vld [vmem:[#allocation25 + $0x1d0] sm:$0xff]
    %v1687 = vld [vmem:[#allocation25 + $0x1d8] sm:$0xff]
    %v1688 = vld [vmem:[#allocation25 + $0x1e0] sm:$0xff]
    %v1689 = vld [vmem:[#allocation25 + $0x1e8] sm:$0xff]
    %v1690 = vld [vmem:[#allocation25 + $0x1f0] sm:$0xff]
    %v1691 = vld [vmem:[#allocation25 + $0x1f8] sm:$0xff]
    %v1692 = vld [vmem:[#allocation25 + $0x200] sm:$0xff]
    %v1693 = vld [vmem:[#allocation25 + $0x208] sm:$0xff]
    %v1694 = vld [vmem:[#allocation25 + $0x210] sm:$0xff]
    %v1695 = vld [vmem:[#allocation25 + $0x218] sm:$0xff]
    %v1696 = vld [vmem:[#allocation25 + $0x220] sm:$0xff]
    %v1697 = vld [vmem:[#allocation25 + $0x228] sm:$0xff]
    %v1698 = vld [vmem:[#allocation25 + $0x230] sm:$0xff]
    %v1699 = vld [vmem:[#allocation25 + $0x238] sm:$0xff]
    %v1700 = vld [vmem:[#allocation25 + $0x240] sm:$0xff]
    %v1701 = vld [vmem:[#allocation25 + $0x248] sm:$0xff]
    %v1702 = vld [vmem:[#allocation25 + $0x250] sm:$0xff]
    %v1703 = vld [vmem:[#allocation25 + $0x258] sm:$0xff]
    %v1704 = vld [vmem:[#allocation25 + $0x260] sm:$0xff]
    %v1705 = vld [vmem:[#allocation25 + $0x268] sm:$0xff]
    %v1706 = vld [vmem:[#allocation25 + $0x270] sm:$0xff]
    %v1707 = vld [vmem:[#allocation25 + $0x278] sm:$0xff]
    %1708 = vmatprep.subr.mxu0 %v1629
    %1709 = vmatpush1.msra.mxu0 %v1628
    %1710 = vmatprep.subr.mxu0 %v1634
    %1711 = vmatpush1.msra.mxu0 %v1633
    %1712 = vmatprep.subr.mxu0 %v1639
    %1713 = vmatpush1.msra.mxu0 %v1638
    %1714 = vmatprep.subr.mxu0 %v1644
    %1715 = vmatpush1.msra.mxu0 %v1643
    %1716 = vmatprep.subr.mxu0 %v1649
    %1717 = vmatpush1.msra.mxu0 %v1648
    %1718 = vmatprep.subr.mxu0 %v1654
    %1719 = vmatpush1.msra.mxu0 %v1653
    %1720 = vmatprep.subr.mxu0 %v1659
    %1721 = vmatpush1.msra.mxu0 %v1658
    %1722 = vmatprep.subr.mxu0 %v1664
    %1723 = vmatpush1.msra.mxu0 %v1663
    %1724 = vmatprep.subr.mxu0 %v1669
    %1725 = vmatpush1.msra.mxu0 %v1668
    %1726 = vmatprep.subr.mxu0 %v1674
    %1727 = vmatpush1.msra.mxu0 %v1673
    %1728 = vmatprep.subr.mxu0 %v1679
    %1729 = vmatpush1.msra.mxu0 %v1678
    %1730 = vmatprep.subr.mxu0 %v1684
    %1731 = vmatpush1.msra.mxu0 %v1683
    %1732 = vmatprep.subr.mxu0 %v1689
    %1733 = vmatpush1.msra.mxu0 %v1688
    %1734 = vmatprep.subr.mxu0 %v1694
    %1735 = vmatpush1.msra.mxu0 %v1693
    %1736 = vmatprep.subr.mxu0 %v1699
    %1737 = vmatpush1.msra.mxu0 %v1698
    %1738 = vmatprep.subr.mxu0 %v1704
    %1739 = vmatpush1.msra.mxu0 %v1703
    %1740 = vmatprep.subr.mxu0 0.0
    %1741 = vmatpush1.msra.mxu0 0.0
    %1742 = vmatprep.subr.mxu0 0.0
    %1743 = vmatpush1.msra.mxu0 0.0
    %1744 = vmatprep.subr.mxu0 0.0
    %1745 = vmatpush1.msra.mxu0 0.0
    %1746 = vmatprep.subr.mxu0 0.0
    %1747 = vmatpush1.msra.mxu0 0.0
    %1748 = vmatprep.subr.mxu0 0.0
    %1749 = vmatpush1.msra.mxu0 0.0
    %1750 = vmatprep.subr.mxu0 0.0
    %1751 = vmatpush1.msra.mxu0 0.0
    %1752 = vmatprep.subr.mxu0 0.0
    %1753 = vmatpush1.msra.mxu0 0.0
    %1754 = vmatprep.subr.mxu0 0.0
    %1755 = vmatpush1.msra.mxu0 0.0
    %1756 = vmatprep.subr.mxu0 0.0
    %1757 = vmatpush1.msra.mxu0 0.0
    %1758 = vmatprep.subr.mxu0 0.0
    %1759 = vmatpush1.msra.mxu0 0.0
    %1760 = vmatprep.subr.mxu0 0.0
    %1761 = vmatpush1.msra.mxu0 0.0
    %1762 = vmatprep.subr.mxu0 0.0
    %1763 = vmatpush1.msra.mxu0 0.0
    %1764 = vmatprep.subr.mxu0 0.0
    %1765 = vmatpush1.msra.mxu0 0.0
    %1766 = vmatprep.subr.mxu0 0.0
    %1767 = vmatpush1.msra.mxu0 0.0
    %1768 = vmatprep.subr.mxu0 0.0
    %1769 = vmatpush1.msra.mxu0 0.0
    %1770 = vmatprep.subr.mxu0 0.0
    %1771 = vmatpush1.msra.mxu0 0.0
    %1772 = vmatprep.mubr.f32.mxu0 0.0
    %1773 = vmatmul.mubr.f32.gmra.mrb[0].mxu0 %v1601
    %v1774 = vpop.f32.mrb[0].mxu0
    %v1775 = vadd.f32 0.0, %v1774
    %v1776 = vpop.f32.mrb[0].mxu0
    %v1777 = vadd.f32 0.0, %v1776
    %1778 = vdwg.mxu0
    %1779 = vmatprep.subr.mxu0 %v1631
    %1780 = vmatpush1.msra.mxu0 %v1630
    %1781 = vmatprep.subr.mxu0 %v1636
    %1782 = vmatpush1.msra.mxu0 %v1635
    %1783 = vmatprep.subr.mxu0 %v1641
    %1784 = vmatpush1.msra.mxu0 %v1640
    %1785 = vmatprep.subr.mxu0 %v1646
    %1786 = vmatpush1.msra.mxu0 %v1645
    %1787 = vmatprep.subr.mxu0 %v1651
    %1788 = vmatpush1.msra.mxu0 %v1650
    %1789 = vmatprep.subr.mxu0 %v1656
    %1790 = vmatpush1.msra.mxu0 %v1655
    %1791 = vmatprep.subr.mxu0 %v1661
    %1792 = vmatpush1.msra.mxu0 %v1660
    %1793 = vmatprep.subr.mxu0 %v1666
    %1794 = vmatpush1.msra.mxu0 %v1665
    %1795 = vmatprep.subr.mxu0 %v1671
    %1796 = vmatpush1.msra.mxu0 %v1670
    %1797 = vmatprep.subr.mxu0 %v1676
    %1798 = vmatpush1.msra.mxu0 %v1675
    %1799 = vmatprep.subr.mxu0 %v1681
    %1800 = vmatpush1.msra.mxu0 %v1680
    %1801 = vmatprep.subr.mxu0 %v1686
    %1802 = vmatpush1.msra.mxu0 %v1685
    %1803 = vmatprep.subr.mxu0 %v1691
    %1804 = vmatpush1.msra.mxu0 %v1690
    %1805 = vmatprep.subr.mxu0 %v1696
    %1806 = vmatpush1.msra.mxu0 %v1695
    %1807 = vmatprep.subr.mxu0 %v1701
    %1808 = vmatpush1.msra.mxu0 %v1700
    %1809 = vmatprep.subr.mxu0 %v1706
    %1810 = vmatpush1.msra.mxu0 %v1705
    %1811 = vmatprep.subr.mxu0 0.0
    %1812 = vmatpush1.msra.mxu0 0.0
    %1813 = vmatprep.subr.mxu0 0.0
    %1814 = vmatpush1.msra.mxu0 0.0
    %1815 = vmatprep.subr.mxu0 0.0
    %1816 = vmatpush1.msra.mxu0 0.0
    %1817 = vmatprep.subr.mxu0 0.0
    %1818 = vmatpush1.msra.mxu0 0.0
    %1819 = vmatprep.subr.mxu0 0.0
    %1820 = vmatpush1.msra.mxu0 0.0
    %1821 = vmatprep.subr.mxu0 0.0
    %1822 = vmatpush1.msra.mxu0 0.0
    %1823 = vmatprep.subr.mxu0 0.0
    %1824 = vmatpush1.msra.mxu0 0.0
    %1825 = vmatprep.subr.mxu0 0.0
    %1826 = vmatpush1.msra.mxu0 0.0
    %1827 = vmatprep.subr.mxu0 0.0
    %1828 = vmatpush1.msra.mxu0 0.0
    %1829 = vmatprep.subr.mxu0 0.0
    %1830 = vmatpush1.msra.mxu0 0.0
    %1831 = vmatprep.subr.mxu0 0.0
    %1832 = vmatpush1.msra.mxu0 0.0
    %1833 = vmatprep.subr.mxu0 0.0
    %1834 = vmatpush1.msra.mxu0 0.0
    %1835 = vmatprep.subr.mxu0 0.0
    %1836 = vmatpush1.msra.mxu0 0.0
    %1837 = vmatprep.subr.mxu0 0.0
    %1838 = vmatpush1.msra.mxu0 0.0
    %1839 = vmatprep.subr.mxu0 0.0
    %1840 = vmatpush1.msra.mxu0 0.0
    %1841 = vmatprep.subr.mxu0 0.0
    %1842 = vmatpush1.msra.mxu0 0.0
    %1843 = vmatprep.mubr.f32.mxu0 0.0
    %1844 = vmatmul.mubr.f32.gmra.mrb[0].mxu0 %v1601
    %v1845 = vpop.f32.mrb[0].mxu0
    %v1846 = vadd.f32 0.0, %v1845
    %v1847 = vpop.f32.mrb[0].mxu0
    %v1848 = vadd.f32 0.0, %v1847
    %1849 = vdwg.mxu0
    %1850 = vmatprep.subr.mxu0 0.0
    %1851 = vmatpush1.msra.mxu0 %v1632
    %1852 = vmatprep.subr.mxu0 0.0
    %1853 = vmatpush1.msra.mxu0 %v1637
    %1854 = vmatprep.subr.mxu0 0.0
    %1855 = vmatpush1.msra.mxu0 %v1642
    %1856 = vmatprep.subr.mxu0 0.0
    %1857 = vmatpush1.msra.mxu0 %v1647
    %1858 = vmatprep.subr.mxu0 0.0
    %1859 = vmatpush1.msra.mxu0 %v1652
    %1860 = vmatprep.subr.mxu0 0.0
    %1861 = vmatpush1.msra.mxu0 %v1657
    %1862 = vmatprep.subr.mxu0 0.0
    %1863 = vmatpush1.msra.mxu0 %v1662
    %1864 = vmatprep.subr.mxu0 0.0
    %1865 = vmatpush1.msra.mxu0 %v1667
    %1866 = vmatprep.subr.mxu0 0.0
    %1867 = vmatpush1.msra.mxu0 %v1672
    %1868 = vmatprep.subr.mxu0 0.0
    %1869 = vmatpush1.msra.mxu0 %v1677
    %1870 = vmatprep.subr.mxu0 0.0
    %1871 = vmatpush1.msra.mxu0 %v1682
    %1872 = vmatprep.subr.mxu0 0.0
    %1873 = vmatpush1.msra.mxu0 %v1687
    %1874 = vmatprep.subr.mxu0 0.0
    %1875 = vmatpush1.msra.mxu0 %v1692
    %1876 = vmatprep.subr.mxu0 0.0
    %1877 = vmatpush1.msra.mxu0 %v1697
    %1878 = vmatprep.subr.mxu0 0.0
    %1879 = vmatpush1.msra.mxu0 %v1702
    %1880 = vmatprep.subr.mxu0 0.0
    %1881 = vmatpush1.msra.mxu0 %v1707
    %1882 = vmatprep.subr.mxu0 0.0
    %1883 = vmatpush1.msra.mxu0 0.0
    %1884 = vmatprep.subr.mxu0 0.0
    %1885 = vmatpush1.msra.mxu0 0.0
    %1886 = vmatprep.subr.mxu0 0.0
    %1887 = vmatpush1.msra.mxu0 0.0
    %1888 = vmatprep.subr.mxu0 0.0
    %1889 = vmatpush1.msra.mxu0 0.0
    %1890 = vmatprep.subr.mxu0 0.0
    %1891 = vmatpush1.msra.mxu0 0.0
    %1892 = vmatprep.subr.mxu0 0.0
    %1893 = vmatpush1.msra.mxu0 0.0
    %1894 = vmatprep.subr.mxu0 0.0
    %1895 = vmatpush1.msra.mxu0 0.0
    %1896 = vmatprep.subr.mxu0 0.0
    %1897 = vmatpush1.msra.mxu0 0.0
    %1898 = vmatprep.subr.mxu0 0.0
    %1899 = vmatpush1.msra.mxu0 0.0
    %1900 = vmatprep.subr.mxu0 0.0
    %1901 = vmatpush1.msra.mxu0 0.0
    %1902 = vmatprep.subr.mxu0 0.0
    %1903 = vmatpush1.msra.mxu0 0.0
    %1904 = vmatprep.subr.mxu0 0.0
    %1905 = vmatpush1.msra.mxu0 0.0
    %1906 = vmatprep.subr.mxu0 0.0
    %1907 = vmatpush1.msra.mxu0 0.0
    %1908 = vmatprep.subr.mxu0 0.0
    %1909 = vmatpush1.msra.mxu0 0.0
    %1910 = vmatprep.subr.mxu0 0.0
    %1911 = vmatpush1.msra.mxu0 0.0
    %1912 = vmatprep.subr.mxu0 0.0
    %1913 = vmatpush1.msra.mxu0 0.0
    %1914 = vmatprep.mubr.f32.mxu0 0.0
    %1915 = vmatmul.mubr.f32.gmra.mrb[0].mxu0 %v1601
    %v1916 = vpop.f32.mrb[0].mxu0
    %v1917 = vadd.f32 0.0, %v1916
    %v1918 = vpop.f32.mrb[0].mxu0
    %1919 = vdwg.mxu0
    %v1925 = vcombine.low %v1775, %v1777
    %v1926 = vcombine.low %v1846, %v1848
    %v1928 = vunpack.c.l.s4 1966171168
    %v1929 = vunpack.c.0.s8 %v1928
    %v1930 = vlaneseq
    %v1931 = vshrl.u32 %v1930, 7
    %v1932 = vsub.s32 %v1929, %v1931
    %v1933 = vrot.slane %v1925, %v1932
    %v1935 = vunpack.c.l.s4 1966171168
    %v1936 = vunpack.c.0.s8 %v1935
    %v1937 = vlaneseq
    %v1938 = vshrl.u32 %v1937, 7
    %v1939 = vsub.s32 %v1936, %v1938
    %v1940 = vrot.slane %v1926, %v1939
    %v1942 = vunpack.c.l.s4 1966171168
    %v1943 = vunpack.c.0.s8 %v1942
    %v1944 = vlaneseq
    %v1945 = vshrl.u32 %v1944, 7
    %v1946 = vsub.s32 %v1943, %v1945
    %v1947 = vrot.slane %v1917, %v1946
    %v1948 = vcombine.low %v1933, %v1940
    %v1950 = vunpack.c.l.s4 1966171168
    %v1951 = vunpack.c.0.s8 %v1950
    %v1952 = vlaneseq
    %v1953 = vshrl.u32 %v1952, 7
    %v1954 = vsub.s32 %v1951, %v1953
    %v1955 = vrot.slane %v1948, %v1954
    %v1957 = vunpack.c.l.s4 1966171168
    %v1958 = vunpack.c.0.s8 %v1957
    %v1959 = vlaneseq
    %v1960 = vshrl.u32 %v1959, 7
    %v1961 = vsub.s32 %v1958, %v1960
    %v1962 = vrot.slane %v1947, %v1961
    %v1963 = vcombine.low %v1955, %v1962
    %v1965 = vadd.f32 %v1627, %v1963
    %s1966 = scalar_lea.vmem [#allocation6], %s1596
    %v1967 = vld [vmem:[%s1966] sm:$0x1]
    %s1968 = scalar_lea.vmem [#allocation8], %s1604
    %v1969 = vld [vmem:[%s1968] sm:$0x1]
    %v1970 = vadd.f32 %v1967, %v1969
    %v1971 = vxor.u32 %v1965, 2147483648
    %v1972 = vmul.f32 %v1971, 1.442695
    %v1973 = vpow.pop %v1972
    %v1974 = vadd.f32 %v1973, 1.0
    %v1975 = vrcp.pop %v1974
    %v1976 = vmul.f32 1.0, %v1975
    %v1978 = vrot.slane %v1965, 1
    %v1980 = vxor.u32 %v1978, 2147483648
    %v1981 = vmul.f32 %v1980, 1.442695
    %v1982 = vpow.pop %v1981
    %v1983 = vadd.f32 %v1982, 1.0
    %v1984 = vrcp.pop %v1983
    %v1985 = vmul.f32 1.0, %v1984
    %v1986 = vrot.slane %v1965, 2
    %v1988 = vxor.u32 %v1986, 2147483648
    %v1989 = vmul.f32 %v1988, 1.442695
    %v1990 = vpow.pop %v1989
    %v1991 = vadd.f32 %v1990, 1.0
    %v1992 = vrcp.pop %v1991
    %v1993 = vmul.f32 1.0, %v1992
    %v1994 = vrot.slane %v1965, 3
    %v1996 = vtanh.pop %v1994
    %v1997 = vrot.slane %v1965, 4
    %v1999 = vxor.u32 %v1997, 2147483648
    %v2000 = vmul.f32 %v1999, 1.442695
    %v2001 = vpow.pop %v2000
    %v2002 = vadd.f32 %v2001, 1.0
    %v2003 = vrcp.pop %v2002
    %v2004 = vmul.f32 1.0, %v2003
    %v2005 = vmul.f32 %v1976, %v1996
    %v2006 = vmul.f32 %v1993, %v1603
    %v2007 = vadd.f32 %v2005, %v2006
    %v2008 = vtanh.pop %v2007
    %v2009 = vmul.f32 %v1985, %v2008
    %v2010 = vmul.f32 %v2004, %v2009
    %v2011 = vsub.f32 1.0, %v2004
    %v2012 = vmul.f32 %v2011, %v1970
    %v2013 = vadd.f32 %v2010, %v2012
    %v2014 = vld [vmem:[#allocation26] sm:$0xff]
    %v2015 = vld [vmem:[#allocation26 + $0x8] sm:$0xff]
    %v2016 = vld [vmem:[#allocation26 + $0x10] sm:$0xff]
    %v2017 = vld [vmem:[#allocation26 + $0x18] sm:$0xff]
    %v2018 = vld [vmem:[#allocation26 + $0x20] sm:$0xff]
    %v2019 = vld [vmem:[#allocation26 + $0x28] sm:$0xff]
    %v2020 = vld [vmem:[#allocation26 + $0x30] sm:$0xff]
    %v2021 = vld [vmem:[#allocation26 + $0x38] sm:$0xff]
    %v2022 = vld [vmem:[#allocation26 + $0x40] sm:$0xff]
    %v2023 = vld [vmem:[#allocation26 + $0x48] sm:$0xff]
    %v2024 = vld [vmem:[#allocation26 + $0x50] sm:$0xff]
    %v2025 = vld [vmem:[#allocation26 + $0x58] sm:$0xff]
    %v2026 = vld [vmem:[#allocation26 + $0x60] sm:$0xff]
    %v2027 = vld [vmem:[#allocation26 + $0x68] sm:$0xff]
    %v2028 = vld [vmem:[#allocation26 + $0x70] sm:$0xff]
    %v2029 = vld [vmem:[#allocation26 + $0x78] sm:$0xff]
    %v2030 = vld [vmem:[%s12] sm:$0x1]
    %2031 = vmatprep.subr.mxu0 0.0
    %2032 = vmatpush1.msra.mxu0 %v2014
    %2033 = vmatprep.subr.mxu0 0.0
    %2034 = vmatpush1.msra.mxu0 %v2015
    %2035 = vmatprep.subr.mxu0 0.0
    %2036 = vmatpush1.msra.mxu0 %v2016
    %2037 = vmatprep.subr.mxu0 0.0
    %2038 = vmatpush1.msra.mxu0 %v2017
    %2039 = vmatprep.subr.mxu0 0.0
    %2040 = vmatpush1.msra.mxu0 %v2018
    %2041 = vmatprep.subr.mxu0 0.0
    %2042 = vmatpush1.msra.mxu0 %v2019
    %2043 = vmatprep.subr.mxu0 0.0
    %2044 = vmatpush1.msra.mxu0 %v2020
    %2045 = vmatprep.subr.mxu0 0.0
    %2046 = vmatpush1.msra.mxu0 %v2021
    %2047 = vmatprep.subr.mxu0 0.0
    %2048 = vmatpush1.msra.mxu0 %v2022
    %2049 = vmatprep.subr.mxu0 0.0
    %2050 = vmatpush1.msra.mxu0 %v2023
    %2051 = vmatprep.subr.mxu0 0.0
    %2052 = vmatpush1.msra.mxu0 %v2024
    %2053 = vmatprep.subr.mxu0 0.0
    %2054 = vmatpush1.msra.mxu0 %v2025
    %2055 = vmatprep.subr.mxu0 0.0
    %2056 = vmatpush1.msra.mxu0 %v2026
    %2057 = vmatprep.subr.mxu0 0.0
    %2058 = vmatpush1.msra.mxu0 %v2027
    %2059 = vmatprep.subr.mxu0 0.0
    %2060 = vmatpush1.msra.mxu0 %v2028
    %2061 = vmatprep.subr.mxu0 0.0
    %2062 = vmatpush1.msra.mxu0 %v2029
    %2063 = vmatprep.subr.mxu0 0.0
    %2064 = vmatpush1.msra.mxu0 0.0
    %2065 = vmatprep.subr.mxu0 0.0
    %2066 = vmatpush1.msra.mxu0 0.0
    %2067 = vmatprep.subr.mxu0 0.0
    %2068 = vmatpush1.msra.mxu0 0.0
    %2069 = vmatprep.subr.mxu0 0.0
    %2070 = vmatpush1.msra.mxu0 0.0
    %2071 = vmatprep.subr.mxu0 0.0
    %2072 = vmatpush1.msra.mxu0 0.0
    %2073 = vmatprep.subr.mxu0 0.0
    %2074 = vmatpush1.msra.mxu0 0.0
    %2075 = vmatprep.subr.mxu0 0.0
    %2076 = vmatpush1.msra.mxu0 0.0
    %2077 = vmatprep.subr.mxu0 0.0
    %2078 = vmatpush1.msra.mxu0 0.0
    %2079 = vmatprep.subr.mxu0 0.0
    %2080 = vmatpush1.msra.mxu0 0.0
    %2081 = vmatprep.subr.mxu0 0.0
    %2082 = vmatpush1.msra.mxu0 0.0
    %2083 = vmatprep.subr.mxu0 0.0
    %2084 = vmatpush1.msra.mxu0 0.0
    %2085 = vmatprep.subr.mxu0 0.0
    %2086 = vmatpush1.msra.mxu0 0.0
    %2087 = vmatprep.subr.mxu0 0.0
    %2088 = vmatpush1.msra.mxu0 0.0
    %2089 = vmatprep.subr.mxu0 0.0
    %2090 = vmatpush1.msra.mxu0 0.0
    %2091 = vmatprep.subr.mxu0 0.0
    %2092 = vmatpush1.msra.mxu0 0.0
    %2093 = vmatprep.subr.mxu0 0.0
    %2094 = vmatpush1.msra.mxu0 0.0
    %2095 = vmatprep.mubr.f32.mxu0 0.0
    %2096 = vmatmul.mubr.f32.gmra.mrb[0].mxu0 %v2013
    %v2097 = vpop.f32.mrb[0].mxu0
    %v2098 = vadd.f32 %v2030, %v2097
    %v2099 = vpop.f32.mrb[0].mxu0
    %2100 = vdwg.mxu0
    %s2101 = scalar_lea.vmem [#allocation28], %s1596
    %2102 = vst [vmem:[%s2101] sm:$0x1] %v2098
    %v2103 = vadd.f32 %v2098, %v1049
    %v2104 = vsel %vm1558, %v2103, -inf
    %2105 = vmax.xlane.f32.xlu0 %v2104
    %v2106 = vpop.xlane.xlu0 %2105
    %vm2107 = vcmp.ge.f32.partialorder %v2103, %v2106
    %v2108 = vsel %vm2107, %v1045, 128
    %v2109 = vsel %vm1558, %v2108, 2147483647
    %v2110 = vand.u32 %v2109, 65535
    %v2111 = vshra.s32 %v2109, 16
    %v2112 = vcvt.s32.f32 %v2110
    %v2113 = vcvt.s32.f32 %v2111
    %2114 = vmin.xlane.f32.xlu0 %v2113
    %v2115 = vpop.xlane.xlu0 %2114
    %vm2116 = vcmp.eq.f32.partialorder %v2113, %v2115
    %v2117 = vsel %vm2116, %v2112, inf
    %2118 = vmin.xlane.f32.xlu0 %v2117
    %v2119 = vpop.xlane.xlu0 %2118
    %v2120 = vcvt.f32.s32 %v2119
    %v2121 = vcvt.f32.s32 %v2115
    %v2122 = vshll.u32 %v2121, 16
    %v2123 = vadd.s32 %v2122, %v2120
    %v2124 = vrot.slane %v2123, 4
    %vm2125 = vcmp.lt.s32.totalorder %v2123, %v2124
    %v2126 = vsel %vm2125, %v2123, %v2124
    %v2127 = vrot.slane %v2126, 2
    %vm2128 = vcmp.lt.s32.totalorder %v2126, %v2127
    %v2129 = vsel %vm2128, %v2126, %v2127
    %v2130 = vrot.slane %v2129, 1
    %vm2131 = vcmp.lt.s32.totalorder %v2129, %v2130
    %v2132 = vsel %vm2131, %v2129, %v2130
    %s2133 = vtos %v2132
    %s2134 = scalar_lea.smem [#allocation29], %s1596
    %2135 = sst [smem:[%s2134]] %s2133
    %s2136 = sadd.s32 %s2133, 1
    %s2137 = scalar_lea.smem [#allocation4], 1
    %2138 = sst [smem:[%s2137]] %s2136
    %2139 = vst [vmem:[#allocation2 + $0x1] sm:$0x1] %v2013
    %2140 = vst [vmem:[#allocation3 + $0x1] sm:$0x1] %v2007
    %s2141 = sld [smem:[#allocation9 + $0x2]]
    %s2142 = sld [smem:[#allocation15 + $0x2]]
    %p2143 = scmp.lt.s32.totalorder %s2142, 0
    %s2144 = scalar_select %p2143, 7, %s2142
    %s2145 = scalar_lea.vmem [#allocation2], %s2144
    %v2146 = vld [vmem:[%s2145] sm:$0x1]
    %s2147 = scalar_lea.vmem [#allocation3], %s2144
    %v2148 = vld [vmem:[%s2147] sm:$0x1]
    %s2149 = sld [smem:[#allocation4 + %s2144]]
    %s2150 = sshra.s32 %s2141, 3
    %s2151 = sand.u32 %s2141, 7
    %s2152 = sshra.s32 %s2141, 3
    %s2153 = sand.u32 %s2141, 7
    %s2154 = smul.u32 %s2150, 5
    %s2155 = smul.u32 %s2154, 8
    %s2156 = sadd.s32 %s2155, %s2153
    %s2157 = scalar_lea.vmem [#allocation5], %s2156
    %v2158 = vld [vmem:[%s2157] ss:$8 sm:$0xf]
    %v2159 = vld [vmem:[%s2157] ss:$8 sm:$0x10]
    %v2160 = vor.u32 %v2158, %v2159
    %s2161 = sshra.s32 %s2149, 3
    %s2162 = sand.u32 %s2149, 7
    %s2163 = sshra.s32 %s2149, 3
    %s2164 = sand.u32 %s2149, 7
    %s2165 = smul.u32 %s2161, 5
    %s2166 = smul.u32 %s2165, 8
    %s2167 = sadd.s32 %s2166, %s2164
    %s2168 = scalar_lea.vmem [#allocation7], %s2167
    %v2169 = vld [vmem:[%s2168] ss:$8 sm:$0xf]
    %v2170 = vld [vmem:[%s2168] ss:$8 sm:$0x10]
    %v2171 = vor.u32 %v2169, %v2170
    %v2172 = vadd.f32 %v2160, %v2171
    %v2173 = vld [vmem:[#allocation25] sm:$0xff]
    %v2174 = vld [vmem:[#allocation25 + $0x8] sm:$0xff]
    %v2175 = vld [vmem:[#allocation25 + $0x10] sm:$0xff]
    %v2176 = vld [vmem:[#allocation25 + $0x18] sm:$0xff]
    %v2177 = vld [vmem:[#allocation25 + $0x20] sm:$0xff]
    %v2178 = vld [vmem:[#allocation25 + $0x28] sm:$0xff]
    %v2179 = vld [vmem:[#allocation25 + $0x30] sm:$0xff]
    %v2180 = vld [vmem:[#allocation25 + $0x38] sm:$0xff]
    %v2181 = vld [vmem:[#allocation25 + $0x40] sm:$0xff]
    %v2182 = vld [vmem:[#allocation25 + $0x48] sm:$0xff]
    %v2183 = vld [vmem:[#allocation25 + $0x50] sm:$0xff]
    %v2184 = vld [vmem:[#allocation25 + $0x58] sm:$0xff]
    %v2185 = vld [vmem:[#allocation25 + $0x60] sm:$0xff]
    %v2186 = vld [vmem:[#allocation25 + $0x68] sm:$0xff]
    %v2187 = vld [vmem:[#allocation25 + $0x70] sm:$0xff]
    %v2188 = vld [vmem:[#allocation25 + $0x78] sm:$0xff]
    %v2189 = vld [vmem:[#allocation25 + $0x80] sm:$0xff]
    %v2190 = vld [vmem:[#allocation25 + $0x88] sm:$0xff]
    %v2191 = vld [vmem:[#allocation25 + $0x90] sm:$0xff]
    %v2192 = vld [vmem:[#allocation25 + $0x98] sm:$0xff]
    %v2193 = vld [vmem:[#allocation25 + $0xa0] sm:$0xff]
    %v2194 = vld [vmem:[#allocation25 + $0xa8] sm:$0xff]
    %v2195 = vld [vmem:[#allocation25 + $0xb0] sm:$0xff]
    %v2196 = vld [vmem:[#allocation25 + $0xb8] sm:$0xff]
    %v2197 = vld [vmem:[#allocation25 + $0xc0] sm:$0xff]
    %v2198 = vld [vmem:[#allocation25 + $0xc8] sm:$0xff]
    %v2199 = vld [vmem:[#allocation25 + $0xd0] sm:$0xff]
    %v2200 = vld [vmem:[#allocation25 + $0xd8] sm:$0xff]
    %v2201 = vld [vmem:[#allocation25 + $0xe0] sm:$0xff]
    %v2202 = vld [vmem:[#allocation25 + $0xe8] sm:$0xff]
    %v2203 = vld [vmem:[#allocation25 + $0xf0] sm:$0xff]
    %v2204 = vld [vmem:[#allocation25 + $0xf8] sm:$0xff]
    %v2205 = vld [vmem:[#allocation25 + $0x100] sm:$0xff]
    %v2206 = vld [vmem:[#allocation25 + $0x108] sm:$0xff]
    %v2207 = vld [vmem:[#allocation25 + $0x110] sm:$0xff]
    %v2208 = vld [vmem:[#allocation25 + $0x118] sm:$0xff]
    %v2209 = vld [vmem:[#allocation25 + $0x120] sm:$0xff]
    %v2210 = vld [vmem:[#allocation25 + $0x128] sm:$0xff]
    %v2211 = vld [vmem:[#allocation25 + $0x130] sm:$0xff]
    %v2212 = vld [vmem:[#allocation25 + $0x138] sm:$0xff]
    %v2213 = vld [vmem:[#allocation25 + $0x140] sm:$0xff]
    %v2214 = vld [vmem:[#allocation25 + $0x148] sm:$0xff]
    %v2215 = vld [vmem:[#allocation25 + $0x150] sm:$0xff]
    %v2216 = vld [vmem:[#allocation25 + $0x158] sm:$0xff]
    %v2217 = vld [vmem:[#allocation25 + $0x160] sm:$0xff]
    %v2218 = vld [vmem:[#allocation25 + $0x168] sm:$0xff]
    %v2219 = vld [vmem:[#allocation25 + $0x170] sm:$0xff]
    %v2220 = vld [vmem:[#allocation25 + $0x178] sm:$0xff]
    %v2221 = vld [vmem:[#allocation25 + $0x180] sm:$0xff]
    %v2222 = vld [vmem:[#allocation25 + $0x188] sm:$0xff]
    %v2223 = vld [vmem:[#allocation25 + $0x190] sm:$0xff]
    %v2224 = vld [vmem:[#allocation25 + $0x198] sm:$0xff]
    %v2225 = vld [vmem:[#allocation25 + $0x1a0] sm:$0xff]
    %v2226 = vld [vmem:[#allocation25 + $0x1a8] sm:$0xff]
    %v2227 = vld [vmem:[#allocation25 + $0x1b0] sm:$0xff]
    %v2228 = vld [vmem:[#allocation25 + $0x1b8] sm:$0xff]
    %v2229 = vld [vmem:[#allocation25 + $0x1c0] sm:$0xff]
    %v2230 = vld [vmem:[#allocation25 + $0x1c8] sm:$0xff]
    %v2231 = vld [vmem:[#allocation25 + $0x1d0] sm:$0xff]
    %v2232 = vld [vmem:[#allocation25 + $0x1d8] sm:$0xff]
    %v2233 = vld [vmem:[#allocation25 + $0x1e0] sm:$0xff]
    %v2234 = vld [vmem:[#allocation25 + $0x1e8] sm:$0xff]
    %v2235 = vld [vmem:[#allocation25 + $0x1f0] sm:$0xff]
    %v2236 = vld [vmem:[#allocation25 + $0x1f8] sm:$0xff]
    %v2237 = vld [vmem:[#allocation25 + $0x200] sm:$0xff]
    %v2238 = vld [vmem:[#allocation25 + $0x208] sm:$0xff]
    %v2239 = vld [vmem:[#allocation25 + $0x210] sm:$0xff]
    %v2240 = vld [vmem:[#allocation25 + $0x218] sm:$0xff]
    %v2241 = vld [vmem:[#allocation25 + $0x220] sm:$0xff]
    %v2242 = vld [vmem:[#allocation25 + $0x228] sm:$0xff]
    %v2243 = vld [vmem:[#allocation25 + $0x230] sm:$0xff]
    %v2244 = vld [vmem:[#allocation25 + $0x238] sm:$0xff]
    %v2245 = vld [vmem:[#allocation25 + $0x240] sm:$0xff]
    %v2246 = vld [vmem:[#allocation25 + $0x248] sm:$0xff]
    %v2247 = vld [vmem:[#allocation25 + $0x250] sm:$0xff]
    %v2248 = vld [vmem:[#allocation25 + $0x258] sm:$0xff]
    %v2249 = vld [vmem:[#allocation25 + $0x260] sm:$0xff]
    %v2250 = vld [vmem:[#allocation25 + $0x268] sm:$0xff]
    %v2251 = vld [vmem:[#allocation25 + $0x270] sm:$0xff]
    %v2252 = vld [vmem:[#allocation25 + $0x278] sm:$0xff]
    %2253 = vmatprep.subr.mxu0 %v2174
    %2254 = vmatpush1.msra.mxu0 %v2173
    %2255 = vmatprep.subr.mxu0 %v2179
    %2256 = vmatpush1.msra.mxu0 %v2178
    %2257 = vmatprep.subr.mxu0 %v2184
    %2258 = vmatpush1.msra.mxu0 %v2183
    %2259 = vmatprep.subr.mxu0 %v2189
    %2260 = vmatpush1.msra.mxu0 %v2188
    %2261 = vmatprep.subr.mxu0 %v2194
    %2262 = vmatpush1.msra.mxu0 %v2193
    %2263 = vmatprep.subr.mxu0 %v2199
    %2264 = vmatpush1.msra.mxu0 %v2198
    %2265 = vmatprep.subr.mxu0 %v2204
    %2266 = vmatpush1.msra.mxu0 %v2203
    %2267 = vmatprep.subr.mxu0 %v2209
    %2268 = vmatpush1.msra.mxu0 %v2208
    %2269 = vmatprep.subr.mxu0 %v2214
    %2270 = vmatpush1.msra.mxu0 %v2213
    %2271 = vmatprep.subr.mxu0 %v2219
    %2272 = vmatpush1.msra.mxu0 %v2218
    %2273 = vmatprep.subr.mxu0 %v2224
    %2274 = vmatpush1.msra.mxu0 %v2223
    %2275 = vmatprep.subr.mxu0 %v2229
    %2276 = vmatpush1.msra.mxu0 %v2228
    %2277 = vmatprep.subr.mxu0 %v2234
    %2278 = vmatpush1.msra.mxu0 %v2233
    %2279 = vmatprep.subr.mxu0 %v2239
    %2280 = vmatpush1.msra.mxu0 %v2238
    %2281 = vmatprep.subr.mxu0 %v2244
    %2282 = vmatpush1.msra.mxu0 %v2243
    %2283 = vmatprep.subr.mxu0 %v2249
    %2284 = vmatpush1.msra.mxu0 %v2248
    %2285 = vmatprep.subr.mxu0 0.0
    %2286 = vmatpush1.msra.mxu0 0.0
    %2287 = vmatprep.subr.mxu0 0.0
    %2288 = vmatpush1.msra.mxu0 0.0
    %2289 = vmatprep.subr.mxu0 0.0
    %2290 = vmatpush1.msra.mxu0 0.0
    %2291 = vmatprep.subr.mxu0 0.0
    %2292 = vmatpush1.msra.mxu0 0.0
    %2293 = vmatprep.subr.mxu0 0.0
    %2294 = vmatpush1.msra.mxu0 0.0
    %2295 = vmatprep.subr.mxu0 0.0
    %2296 = vmatpush1.msra.mxu0 0.0
    %2297 = vmatprep.subr.mxu0 0.0
    %2298 = vmatpush1.msra.mxu0 0.0
    %2299 = vmatprep.subr.mxu0 0.0
    %2300 = vmatpush1.msra.mxu0 0.0
    %2301 = vmatprep.subr.mxu0 0.0
    %2302 = vmatpush1.msra.mxu0 0.0
    %2303 = vmatprep.subr.mxu0 0.0
    %2304 = vmatpush1.msra.mxu0 0.0
    %2305 = vmatprep.subr.mxu0 0.0
    %2306 = vmatpush1.msra.mxu0 0.0
    %2307 = vmatprep.subr.mxu0 0.0
    %2308 = vmatpush1.msra.mxu0 0.0
    %2309 = vmatprep.subr.mxu0 0.0
    %2310 = vmatpush1.msra.mxu0 0.0
    %2311 = vmatprep.subr.mxu0 0.0
    %2312 = vmatpush1.msra.mxu0 0.0
    %2313 = vmatprep.subr.mxu0 0.0
    %2314 = vmatpush1.msra.mxu0 0.0
    %2315 = vmatprep.subr.mxu0 0.0
    %2316 = vmatpush1.msra.mxu0 0.0
    %2317 = vmatprep.mubr.f32.mxu0 0.0
    %2318 = vmatmul.mubr.f32.gmra.mrb[0].mxu0 %v2146
    %v2319 = vpop.f32.mrb[0].mxu0
    %v2320 = vadd.f32 0.0, %v2319
    %v2321 = vpop.f32.mrb[0].mxu0
    %v2322 = vadd.f32 0.0, %v2321
    %2323 = vdwg.mxu0
    %2324 = vmatprep.subr.mxu0 %v2176
    %2325 = vmatpush1.msra.mxu0 %v2175
    %2326 = vmatprep.subr.mxu0 %v2181
    %2327 = vmatpush1.msra.mxu0 %v2180
    %2328 = vmatprep.subr.mxu0 %v2186
    %2329 = vmatpush1.msra.mxu0 %v2185
    %2330 = vmatprep.subr.mxu0 %v2191
    %2331 = vmatpush1.msra.mxu0 %v2190
    %2332 = vmatprep.subr.mxu0 %v2196
    %2333 = vmatpush1.msra.mxu0 %v2195
    %2334 = vmatprep.subr.mxu0 %v2201
    %2335 = vmatpush1.msra.mxu0 %v2200
    %2336 = vmatprep.subr.mxu0 %v2206
    %2337 = vmatpush1.msra.mxu0 %v2205
    %2338 = vmatprep.subr.mxu0 %v2211
    %2339 = vmatpush1.msra.mxu0 %v2210
    %2340 = vmatprep.subr.mxu0 %v2216
    %2341 = vmatpush1.msra.mxu0 %v2215
    %2342 = vmatprep.subr.mxu0 %v2221
    %2343 = vmatpush1.msra.mxu0 %v2220
    %2344 = vmatprep.subr.mxu0 %v2226
    %2345 = vmatpush1.msra.mxu0 %v2225
    %2346 = vmatprep.subr.mxu0 %v2231
    %2347 = vmatpush1.msra.mxu0 %v2230
    %2348 = vmatprep.subr.mxu0 %v2236
    %2349 = vmatpush1.msra.mxu0 %v2235
    %2350 = vmatprep.subr.mxu0 %v2241
    %2351 = vmatpush1.msra.mxu0 %v2240
    %2352 = vmatprep.subr.mxu0 %v2246
    %2353 = vmatpush1.msra.mxu0 %v2245
    %2354 = vmatprep.subr.mxu0 %v2251
    %2355 = vmatpush1.msra.mxu0 %v2250
    %2356 = vmatprep.subr.mxu0 0.0
    %2357 = vmatpush1.msra.mxu0 0.0
    %2358 = vmatprep.subr.mxu0 0.0
    %2359 = vmatpush1.msra.mxu0 0.0
    %2360 = vmatprep.subr.mxu0 0.0
    %2361 = vmatpush1.msra.mxu0 0.0
    %2362 = vmatprep.subr.mxu0 0.0
    %2363 = vmatpush1.msra.mxu0 0.0
    %2364 = vmatprep.subr.mxu0 0.0
    %2365 = vmatpush1.msra.mxu0 0.0
    %2366 = vmatprep.subr.mxu0 0.0
    %2367 = vmatpush1.msra.mxu0 0.0
    %2368 = vmatprep.subr.mxu0 0.0
    %2369 = vmatpush1.msra.mxu0 0.0
    %2370 = vmatprep.subr.mxu0 0.0
    %2371 = vmatpush1.msra.mxu0 0.0
    %2372 = vmatprep.subr.mxu0 0.0
    %2373 = vmatpush1.msra.mxu0 0.0
    %2374 = vmatprep.subr.mxu0 0.0
    %2375 = vmatpush1.msra.mxu0 0.0
    %2376 = vmatprep.subr.mxu0 0.0
    %2377 = vmatpush1.msra.mxu0 0.0
    %2378 = vmatprep.subr.mxu0 0.0
    %2379 = vmatpush1.msra.mxu0 0.0
    %2380 = vmatprep.subr.mxu0 0.0
    %2381 = vmatpush1.msra.mxu0 0.0
    %2382 = vmatprep.subr.mxu0 0.0
    %2383 = vmatpush1.msra.mxu0 0.0
    %2384 = vmatprep.subr.mxu0 0.0
    %2385 = vmatpush1.msra.mxu0 0.0
    %2386 = vmatprep.subr.mxu0 0.0
    %2387 = vmatpush1.msra.mxu0 0.0
    %2388 = vmatprep.mubr.f32.mxu0 0.0
    %2389 = vmatmul.mubr.f32.gmra.mrb[0].mxu0 %v2146
    %v2390 = vpop.f32.mrb[0].mxu0
    %v2391 = vadd.f32 0.0, %v2390
    %v2392 = vpop.f32.mrb[0].mxu0
    %v2393 = vadd.f32 0.0, %v2392
    %2394 = vdwg.mxu0
    %2395 = vmatprep.subr.mxu0 0.0
    %2396 = vmatpush1.msra.mxu0 %v2177
    %2397 = vmatprep.subr.mxu0 0.0
    %2398 = vmatpush1.msra.mxu0 %v2182
    %2399 = vmatprep.subr.mxu0 0.0
    %2400 = vmatpush1.msra.mxu0 %v2187
    %2401 = vmatprep.subr.mxu0 0.0
    %2402 = vmatpush1.msra.mxu0 %v2192
    %2403 = vmatprep.subr.mxu0 0.0
    %2404 = vmatpush1.msra.mxu0 %v2197
    %2405 = vmatprep.subr.mxu0 0.0
    %2406 = vmatpush1.msra.mxu0 %v2202
    %2407 = vmatprep.subr.mxu0 0.0
    %2408 = vmatpush1.msra.mxu0 %v2207
    %2409 = vmatprep.subr.mxu0 0.0
    %2410 = vmatpush1.msra.mxu0 %v2212
    %2411 = vmatprep.subr.mxu0 0.0
    %2412 = vmatpush1.msra.mxu0 %v2217
    %2413 = vmatprep.subr.mxu0 0.0
    %2414 = vmatpush1.msra.mxu0 %v2222
    %2415 = vmatprep.subr.mxu0 0.0
    %2416 = vmatpush1.msra.mxu0 %v2227
    %2417 = vmatprep.subr.mxu0 0.0
    %2418 = vmatpush1.msra.mxu0 %v2232
    %2419 = vmatprep.subr.mxu0 0.0
    %2420 = vmatpush1.msra.mxu0 %v2237
    %2421 = vmatprep.subr.mxu0 0.0
    %2422 = vmatpush1.msra.mxu0 %v2242
    %2423 = vmatprep.subr.mxu0 0.0
    %2424 = vmatpush1.msra.mxu0 %v2247
    %2425 = vmatprep.subr.mxu0 0.0
    %2426 = vmatpush1.msra.mxu0 %v2252
    %2427 = vmatprep.subr.mxu0 0.0
    %2428 = vmatpush1.msra.mxu0 0.0
    %2429 = vmatprep.subr.mxu0 0.0
    %2430 = vmatpush1.msra.mxu0 0.0
    %2431 = vmatprep.subr.mxu0 0.0
    %2432 = vmatpush1.msra.mxu0 0.0
    %2433 = vmatprep.subr.mxu0 0.0
    %2434 = vmatpush1.msra.mxu0 0.0
    %2435 = vmatprep.subr.mxu0 0.0
    %2436 = vmatpush1.msra.mxu0 0.0
    %2437 = vmatprep.subr.mxu0 0.0
    %2438 = vmatpush1.msra.mxu0 0.0
    %2439 = vmatprep.subr.mxu0 0.0
    %2440 = vmatpush1.msra.mxu0 0.0
    %2441 = vmatprep.subr.mxu0 0.0
    %2442 = vmatpush1.msra.mxu0 0.0
    %2443 = vmatprep.subr.mxu0 0.0
    %2444 = vmatpush1.msra.mxu0 0.0
    %2445 = vmatprep.subr.mxu0 0.0
    %2446 = vmatpush1.msra.mxu0 0.0
    %2447 = vmatprep.subr.mxu0 0.0
    %2448 = vmatpush1.msra.mxu0 0.0
    %2449 = vmatprep.subr.mxu0 0.0
    %2450 = vmatpush1.msra.mxu0 0.0
    %2451 = vmatprep.subr.mxu0 0.0
    %2452 = vmatpush1.msra.mxu0 0.0
    %2453 = vmatprep.subr.mxu0 0.0
    %2454 = vmatpush1.msra.mxu0 0.0
    %2455 = vmatprep.subr.mxu0 0.0
    %2456 = vmatpush1.msra.mxu0 0.0
    %2457 = vmatprep.subr.mxu0 0.0
    %2458 = vmatpush1.msra.mxu0 0.0
    %2459 = vmatprep.mubr.f32.mxu0 0.0
    %2460 = vmatmul.mubr.f32.gmra.mrb[0].mxu0 %v2146
    %v2461 = vpop.f32.mrb[0].mxu0
    %v2462 = vadd.f32 0.0, %v2461
    %v2463 = vpop.f32.mrb[0].mxu0
    %2464 = vdwg.mxu0
    %v2470 = vcombine.low %v2320, %v2322
    %v2471 = vcombine.low %v2391, %v2393
    %v2473 = vunpack.c.l.s4 1966171168
    %v2474 = vunpack.c.0.s8 %v2473
    %v2475 = vlaneseq
    %v2476 = vshrl.u32 %v2475, 7
    %v2477 = vsub.s32 %v2474, %v2476
    %v2478 = vrot.slane %v2470, %v2477
    %v2480 = vunpack.c.l.s4 1966171168
    %v2481 = vunpack.c.0.s8 %v2480
    %v2482 = vlaneseq
    %v2483 = vshrl.u32 %v2482, 7
    %v2484 = vsub.s32 %v2481, %v2483
    %v2485 = vrot.slane %v2471, %v2484
    %v2487 = vunpack.c.l.s4 1966171168
    %v2488 = vunpack.c.0.s8 %v2487
    %v2489 = vlaneseq
    %v2490 = vshrl.u32 %v2489, 7
    %v2491 = vsub.s32 %v2488, %v2490
    %v2492 = vrot.slane %v2462, %v2491
    %v2493 = vcombine.low %v2478, %v2485
    %v2495 = vunpack.c.l.s4 1966171168
    %v2496 = vunpack.c.0.s8 %v2495
    %v2497 = vlaneseq
    %v2498 = vshrl.u32 %v2497, 7
    %v2499 = vsub.s32 %v2496, %v2498
    %v2500 = vrot.slane %v2493, %v2499
    %v2502 = vunpack.c.l.s4 1966171168
    %v2503 = vunpack.c.0.s8 %v2502
    %v2504 = vlaneseq
    %v2505 = vshrl.u32 %v2504, 7
    %v2506 = vsub.s32 %v2503, %v2505
    %v2507 = vrot.slane %v2492, %v2506
    %v2508 = vcombine.low %v2500, %v2507
    %v2510 = vadd.f32 %v2172, %v2508
    %s2511 = scalar_lea.vmem [#allocation6], %s2141
    %v2512 = vld [vmem:[%s2511] sm:$0x1]
    %s2513 = scalar_lea.vmem [#allocation8], %s2149
    %v2514 = vld [vmem:[%s2513] sm:$0x1]
    %v2515 = vadd.f32 %v2512, %v2514
    %v2516 = vxor.u32 %v2510, 2147483648
    %v2517 = vmul.f32 %v2516, 1.442695
    %v2518 = vpow.pop %v2517
    %v2519 = vadd.f32 %v2518, 1.0
    %v2520 = vrcp.pop %v2519
    %v2521 = vmul.f32 1.0, %v2520
    %v2523 = vrot.slane %v2510, 1
    %v2525 = vxor.u32 %v2523, 2147483648
    %v2526 = vmul.f32 %v2525, 1.442695
    %v2527 = vpow.pop %v2526
    %v2528 = vadd.f32 %v2527, 1.0
    %v2529 = vrcp.pop %v2528
    %v2530 = vmul.f32 1.0, %v2529
    %v2531 = vrot.slane %v2510, 2
    %v2533 = vxor.u32 %v2531, 2147483648
    %v2534 = vmul.f32 %v2533, 1.442695
    %v2535 = vpow.pop %v2534
    %v2536 = vadd.f32 %v2535, 1.0
    %v2537 = vrcp.pop %v2536
    %v2538 = vmul.f32 1.0, %v2537
    %v2539 = vrot.slane %v2510, 3
    %v2541 = vtanh.pop %v2539
    %v2542 = vrot.slane %v2510, 4
    %v2544 = vxor.u32 %v2542, 2147483648
    %v2545 = vmul.f32 %v2544, 1.442695
    %v2546 = vpow.pop %v2545
    %v2547 = vadd.f32 %v2546, 1.0
    %v2548 = vrcp.pop %v2547
    %v2549 = vmul.f32 1.0, %v2548
    %v2550 = vmul.f32 %v2521, %v2541
    %v2551 = vmul.f32 %v2538, %v2148
    %v2552 = vadd.f32 %v2550, %v2551
    %v2553 = vtanh.pop %v2552
    %v2554 = vmul.f32 %v2530, %v2553
    %v2555 = vmul.f32 %v2549, %v2554
    %v2556 = vsub.f32 1.0, %v2549
    %v2557 = vmul.f32 %v2556, %v2515
    %v2558 = vadd.f32 %v2555, %v2557
    %v2559 = vld [vmem:[#allocation26] sm:$0xff]
    %v2560 = vld [vmem:[#allocation26 + $0x8] sm:$0xff]
    %v2561 = vld [vmem:[#allocation26 + $0x10] sm:$0xff]
    %v2562 = vld [vmem:[#allocation26 + $0x18] sm:$0xff]
    %v2563 = vld [vmem:[#allocation26 + $0x20] sm:$0xff]
    %v2564 = vld [vmem:[#allocation26 + $0x28] sm:$0xff]
    %v2565 = vld [vmem:[#allocation26 + $0x30] sm:$0xff]
    %v2566 = vld [vmem:[#allocation26 + $0x38] sm:$0xff]
    %v2567 = vld [vmem:[#allocation26 + $0x40] sm:$0xff]
    %v2568 = vld [vmem:[#allocation26 + $0x48] sm:$0xff]
    %v2569 = vld [vmem:[#allocation26 + $0x50] sm:$0xff]
    %v2570 = vld [vmem:[#allocation26 + $0x58] sm:$0xff]
    %v2571 = vld [vmem:[#allocation26 + $0x60] sm:$0xff]
    %v2572 = vld [vmem:[#allocation26 + $0x68] sm:$0xff]
    %v2573 = vld [vmem:[#allocation26 + $0x70] sm:$0xff]
    %v2574 = vld [vmem:[#allocation26 + $0x78] sm:$0xff]
    %v2575 = vld [vmem:[%s12] sm:$0x1]
    %2576 = vmatprep.subr.mxu0 0.0
    %2577 = vmatpush1.msra.mxu0 %v2559
    %2578 = vmatprep.subr.mxu0 0.0
    %2579 = vmatpush1.msra.mxu0 %v2560
    %2580 = vmatprep.subr.mxu0 0.0
    %2581 = vmatpush1.msra.mxu0 %v2561
    %2582 = vmatprep.subr.mxu0 0.0
    %2583 = vmatpush1.msra.mxu0 %v2562
    %2584 = vmatprep.subr.mxu0 0.0
    %2585 = vmatpush1.msra.mxu0 %v2563
    %2586 = vmatprep.subr.mxu0 0.0
    %2587 = vmatpush1.msra.mxu0 %v2564
    %2588 = vmatprep.subr.mxu0 0.0
    %2589 = vmatpush1.msra.mxu0 %v2565
    %2590 = vmatprep.subr.mxu0 0.0
    %2591 = vmatpush1.msra.mxu0 %v2566
    %2592 = vmatprep.subr.mxu0 0.0
    %2593 = vmatpush1.msra.mxu0 %v2567
    %2594 = vmatprep.subr.mxu0 0.0
    %2595 = vmatpush1.msra.mxu0 %v2568
    %2596 = vmatprep.subr.mxu0 0.0
    %2597 = vmatpush1.msra.mxu0 %v2569
    %2598 = vmatprep.subr.mxu0 0.0
    %2599 = vmatpush1.msra.mxu0 %v2570
    %2600 = vmatprep.subr.mxu0 0.0
    %2601 = vmatpush1.msra.mxu0 %v2571
    %2602 = vmatprep.subr.mxu0 0.0
    %2603 = vmatpush1.msra.mxu0 %v2572
    %2604 = vmatprep.subr.mxu0 0.0
    %2605 = vmatpush1.msra.mxu0 %v2573
    %2606 = vmatprep.subr.mxu0 0.0
    %2607 = vmatpush1.msra.mxu0 %v2574
    %2608 = vmatprep.subr.mxu0 0.0
    %2609 = vmatpush1.msra.mxu0 0.0
    %2610 = vmatprep.subr.mxu0 0.0
    %2611 = vmatpush1.msra.mxu0 0.0
    %2612 = vmatprep.subr.mxu0 0.0
    %2613 = vmatpush1.msra.mxu0 0.0
    %2614 = vmatprep.subr.mxu0 0.0
    %2615 = vmatpush1.msra.mxu0 0.0
    %2616 = vmatprep.subr.mxu0 0.0
    %2617 = vmatpush1.msra.mxu0 0.0
    %2618 = vmatprep.subr.mxu0 0.0
    %2619 = vmatpush1.msra.mxu0 0.0
    %2620 = vmatprep.subr.mxu0 0.0
    %2621 = vmatpush1.msra.mxu0 0.0
    %2622 = vmatprep.subr.mxu0 0.0
    %2623 = vmatpush1.msra.mxu0 0.0
    %2624 = vmatprep.subr.mxu0 0.0
    %2625 = vmatpush1.msra.mxu0 0.0
    %2626 = vmatprep.subr.mxu0 0.0
    %2627 = vmatpush1.msra.mxu0 0.0
    %2628 = vmatprep.subr.mxu0 0.0
    %2629 = vmatpush1.msra.mxu0 0.0
    %2630 = vmatprep.subr.mxu0 0.0
    %2631 = vmatpush1.msra.mxu0 0.0
    %2632 = vmatprep.subr.mxu0 0.0
    %2633 = vmatpush1.msra.mxu0 0.0
    %2634 = vmatprep.subr.mxu0 0.0
    %2635 = vmatpush1.msra.mxu0 0.0
    %2636 = vmatprep.subr.mxu0 0.0
    %2637 = vmatpush1.msra.mxu0 0.0
    %2638 = vmatprep.subr.mxu0 0.0
    %2639 = vmatpush1.msra.mxu0 0.0
    %2640 = vmatprep.mubr.f32.mxu0 0.0
    %2641 = vmatmul.mubr.f32.gmra.mrb[0].mxu0 %v2558
    %v2642 = vpop.f32.mrb[0].mxu0
    %v2643 = vadd.f32 %v2575, %v2642
    %v2644 = vpop.f32.mrb[0].mxu0
    %2645 = vdwg.mxu0
    %s2646 = scalar_lea.vmem [#allocation28], %s2141
    %2647 = vst [vmem:[%s2646] sm:$0x1] %v2643
    %v2648 = vadd.f32 %v2643, %v1049
    %v2649 = vsel %vm1558, %v2648, -inf
    %2650 = vmax.xlane.f32.xlu0 %v2649
    %v2651 = vpop.xlane.xlu0 %2650
    %vm2652 = vcmp.ge.f32.partialorder %v2648, %v2651
    %v2653 = vsel %vm2652, %v1045, 128
    %v2654 = vsel %vm1558, %v2653, 2147483647
    %v2655 = vand.u32 %v2654, 65535
    %v2656 = vshra.s32 %v2654, 16
    %v2657 = vcvt.s32.f32 %v2655
    %v2658 = vcvt.s32.f32 %v2656
    %2659 = vmin.xlane.f32.xlu0 %v2658
    %v2660 = vpop.xlane.xlu0 %2659
    %vm2661 = vcmp.eq.f32.partialorder %v2658, %v2660
    %v2662 = vsel %vm2661, %v2657, inf
    %2663 = vmin.xlane.f32.xlu0 %v2662
    %v2664 = vpop.xlane.xlu0 %2663
    %v2665 = vcvt.f32.s32 %v2664
    %v2666 = vcvt.f32.s32 %v2660
    %v2667 = vshll.u32 %v2666, 16
    %v2668 = vadd.s32 %v2667, %v2665
    %v2669 = vrot.slane %v2668, 4
    %vm2670 = vcmp.lt.s32.totalorder %v2668, %v2669
    %v2671 = vsel %vm2670, %v2668, %v2669
    %v2672 = vrot.slane %v2671, 2
    %vm2673 = vcmp.lt.s32.totalorder %v2671, %v2672
    %v2674 = vsel %vm2673, %v2671, %v2672
    %v2675 = vrot.slane %v2674, 1
    %vm2676 = vcmp.lt.s32.totalorder %v2674, %v2675
    %v2677 = vsel %vm2676, %v2674, %v2675
    %s2678 = vtos %v2677
    %s2679 = scalar_lea.smem [#allocation29], %s2141
    %2680 = sst [smem:[%s2679]] %s2678
    %s2681 = sadd.s32 %s2678, 1
    %s2682 = scalar_lea.smem [#allocation4], 2
    %2683 = sst [smem:[%s2682]] %s2681
    %2684 = vst [vmem:[#allocation2 + $0x2] sm:$0x1] %v2558
    %2685 = vst [vmem:[#allocation3 + $0x2] sm:$0x1] %v2552
    %s2686 = sld [smem:[#allocation9 + $0x3]]
    %s2687 = sld [smem:[#allocation15 + $0x3]]
    %p2688 = scmp.lt.s32.totalorder %s2687, 0
    %s2689 = scalar_select %p2688, 7, %s2687
    %s2690 = scalar_lea.vmem [#allocation2], %s2689
    %v2691 = vld [vmem:[%s2690] sm:$0x1]
    %s2692 = scalar_lea.vmem [#allocation3], %s2689
    %v2693 = vld [vmem:[%s2692] sm:$0x1]
    %s2694 = sld [smem:[#allocation4 + %s2689]]
    %s2695 = sshra.s32 %s2686, 3
    %s2696 = sand.u32 %s2686, 7
    %s2697 = sshra.s32 %s2686, 3
    %s2698 = sand.u32 %s2686, 7
    %s2699 = smul.u32 %s2695, 5
    %s2700 = smul.u32 %s2699, 8
    %s2701 = sadd.s32 %s2700, %s2698
    %s2702 = scalar_lea.vmem [#allocation5], %s2701
    %v2703 = vld [vmem:[%s2702] ss:$8 sm:$0xf]
    %v2704 = vld [vmem:[%s2702] ss:$8 sm:$0x10]
    %v2705 = vor.u32 %v2703, %v2704
    %s2706 = sshra.s32 %s2694, 3
    %s2707 = sand.u32 %s2694, 7
    %s2708 = sshra.s32 %s2694, 3
    %s2709 = sand.u32 %s2694, 7
    %s2710 = smul.u32 %s2706, 5
    %s2711 = smul.u32 %s2710, 8
    %s2712 = sadd.s32 %s2711, %s2709
    %s2713 = scalar_lea.vmem [#allocation7], %s2712
    %v2714 = vld [vmem:[%s2713] ss:$8 sm:$0xf]
    %v2715 = vld [vmem:[%s2713] ss:$8 sm:$0x10]
    %v2716 = vor.u32 %v2714, %v2715
    %v2717 = vadd.f32 %v2705, %v2716
    %v2718 = vld [vmem:[#allocation25] sm:$0xff]
    %v2719 = vld [vmem:[#allocation25 + $0x8] sm:$0xff]
    %v2720 = vld [vmem:[#allocation25 + $0x10] sm:$0xff]
    %v2721 = vld [vmem:[#allocation25 + $0x18] sm:$0xff]
    %v2722 = vld [vmem:[#allocation25 + $0x20] sm:$0xff]
    %v2723 = vld [vmem:[#allocation25 + $0x28] sm:$0xff]
    %v2724 = vld [vmem:[#allocation25 + $0x30] sm:$0xff]
    %v2725 = vld [vmem:[#allocation25 + $0x38] sm:$0xff]
    %v2726 = vld [vmem:[#allocation25 + $0x40] sm:$0xff]
    %v2727 = vld [vmem:[#allocation25 + $0x48] sm:$0xff]
    %v2728 = vld [vmem:[#allocation25 + $0x50] sm:$0xff]
    %v2729 = vld [vmem:[#allocation25 + $0x58] sm:$0xff]
    %v2730 = vld [vmem:[#allocation25 + $0x60] sm:$0xff]
    %v2731 = vld [vmem:[#allocation25 + $0x68] sm:$0xff]
    %v2732 = vld [vmem:[#allocation25 + $0x70] sm:$0xff]
    %v2733 = vld [vmem:[#allocation25 + $0x78] sm:$0xff]
    %v2734 = vld [vmem:[#allocation25 + $0x80] sm:$0xff]
    %v2735 = vld [vmem:[#allocation25 + $0x88] sm:$0xff]
    %v2736 = vld [vmem:[#allocation25 + $0x90] sm:$0xff]
    %v2737 = vld [vmem:[#allocation25 + $0x98] sm:$0xff]
    %v2738 = vld [vmem:[#allocation25 + $0xa0] sm:$0xff]
    %v2739 = vld [vmem:[#allocation25 + $0xa8] sm:$0xff]
    %v2740 = vld [vmem:[#allocation25 + $0xb0] sm:$0xff]
    %v2741 = vld [vmem:[#allocation25 + $0xb8] sm:$0xff]
    %v2742 = vld [vmem:[#allocation25 + $0xc0] sm:$0xff]
    %v2743 = vld [vmem:[#allocation25 + $0xc8] sm:$0xff]
    %v2744 = vld [vmem:[#allocation25 + $0xd0] sm:$0xff]
    %v2745 = vld [vmem:[#allocation25 + $0xd8] sm:$0xff]
    %v2746 = vld [vmem:[#allocation25 + $0xe0] sm:$0xff]
    %v2747 = vld [vmem:[#allocation25 + $0xe8] sm:$0xff]
    %v2748 = vld [vmem:[#allocation25 + $0xf0] sm:$0xff]
    %v2749 = vld [vmem:[#allocation25 + $0xf8] sm:$0xff]
    %v2750 = vld [vmem:[#allocation25 + $0x100] sm:$0xff]
    %v2751 = vld [vmem:[#allocation25 + $0x108] sm:$0xff]
    %v2752 = vld [vmem:[#allocation25 + $0x110] sm:$0xff]
    %v2753 = vld [vmem:[#allocation25 + $0x118] sm:$0xff]
    %v2754 = vld [vmem:[#allocation25 + $0x120] sm:$0xff]
    %v2755 = vld [vmem:[#allocation25 + $0x128] sm:$0xff]
    %v2756 = vld [vmem:[#allocation25 + $0x130] sm:$0xff]
    %v2757 = vld [vmem:[#allocation25 + $0x138] sm:$0xff]
    %v2758 = vld [vmem:[#allocation25 + $0x140] sm:$0xff]
    %v2759 = vld [vmem:[#allocation25 + $0x148] sm:$0xff]
    %v2760 = vld [vmem:[#allocation25 + $0x150] sm:$0xff]
    %v2761 = vld [vmem:[#allocation25 + $0x158] sm:$0xff]
    %v2762 = vld [vmem:[#allocation25 + $0x160] sm:$0xff]
    %v2763 = vld [vmem:[#allocation25 + $0x168] sm:$0xff]
    %v2764 = vld [vmem:[#allocation25 + $0x170] sm:$0xff]
    %v2765 = vld [vmem:[#allocation25 + $0x178] sm:$0xff]
    %v2766 = vld [vmem:[#allocation25 + $0x180] sm:$0xff]
    %v2767 = vld [vmem:[#allocation25 + $0x188] sm:$0xff]
    %v2768 = vld [vmem:[#allocation25 + $0x190] sm:$0xff]
    %v2769 = vld [vmem:[#allocation25 + $0x198] sm:$0xff]
    %v2770 = vld [vmem:[#allocation25 + $0x1a0] sm:$0xff]
    %v2771 = vld [vmem:[#allocation25 + $0x1a8] sm:$0xff]
    %v2772 = vld [vmem:[#allocation25 + $0x1b0] sm:$0xff]
    %v2773 = vld [vmem:[#allocation25 + $0x1b8] sm:$0xff]
    %v2774 = vld [vmem:[#allocation25 + $0x1c0] sm:$0xff]
    %v2775 = vld [vmem:[#allocation25 + $0x1c8] sm:$0xff]
    %v2776 = vld [vmem:[#allocation25 + $0x1d0] sm:$0xff]
    %v2777 = vld [vmem:[#allocation25 + $0x1d8] sm:$0xff]
    %v2778 = vld [vmem:[#allocation25 + $0x1e0] sm:$0xff]
    %v2779 = vld [vmem:[#allocation25 + $0x1e8] sm:$0xff]
    %v2780 = vld [vmem:[#allocation25 + $0x1f0] sm:$0xff]
    %v2781 = vld [vmem:[#allocation25 + $0x1f8] sm:$0xff]
    %v2782 = vld [vmem:[#allocation25 + $0x200] sm:$0xff]
    %v2783 = vld [vmem:[#allocation25 + $0x208] sm:$0xff]
    %v2784 = vld [vmem:[#allocation25 + $0x210] sm:$0xff]
    %v2785 = vld [vmem:[#allocation25 + $0x218] sm:$0xff]
    %v2786 = vld [vmem:[#allocation25 + $0x220] sm:$0xff]
    %v2787 = vld [vmem:[#allocation25 + $0x228] sm:$0xff]
    %v2788 = vld [vmem:[#allocation25 + $0x230] sm:$0xff]
    %v2789 = vld [vmem:[#allocation25 + $0x238] sm:$0xff]
    %v2790 = vld [vmem:[#allocation25 + $0x240] sm:$0xff]
    %v2791 = vld [vmem:[#allocation25 + $0x248] sm:$0xff]
    %v2792 = vld [vmem:[#allocation25 + $0x250] sm:$0xff]
    %v2793 = vld [vmem:[#allocation25 + $0x258] sm:$0xff]
    %v2794 = vld [vmem:[#allocation25 + $0x260] sm:$0xff]
    %v2795 = vld [vmem:[#allocation25 + $0x268] sm:$0xff]
    %v2796 = vld [vmem:[#allocation25 + $0x270] sm:$0xff]
    %v2797 = vld [vmem:[#allocation25 + $0x278] sm:$0xff]
    %2798 = vmatprep.subr.mxu0 %v2719
    %2799 = vmatpush1.msra.mxu0 %v2718
    %2800 = vmatprep.subr.mxu0 %v2724
    %2801 = vmatpush1.msra.mxu0 %v2723
    %2802 = vmatprep.subr.mxu0 %v2729
    %2803 = vmatpush1.msra.mxu0 %v2728
    %2804 = vmatprep.subr.mxu0 %v2734
    %2805 = vmatpush1.msra.mxu0 %v2733
    %2806 = vmatprep.subr.mxu0 %v2739
    %2807 = vmatpush1.msra.mxu0 %v2738
    %2808 = vmatprep.subr.mxu0 %v2744
    %2809 = vmatpush1.msra.mxu0 %v2743
    %2810 = vmatprep.subr.mxu0 %v2749
    %2811 = vmatpush1.msra.mxu0 %v2748
    %2812 = vmatprep.subr.mxu0 %v2754
    %2813 = vmatpush1.msra.mxu0 %v2753
    %2814 = vmatprep.subr.mxu0 %v2759
    %2815 = vmatpush1.msra.mxu0 %v2758
    %2816 = vmatprep.subr.mxu0 %v2764
    %2817 = vmatpush1.msra.mxu0 %v2763
    %2818 = vmatprep.subr.mxu0 %v2769
    %2819 = vmatpush1.msra.mxu0 %v2768
    %2820 = vmatprep.subr.mxu0 %v2774
    %2821 = vmatpush1.msra.mxu0 %v2773
    %2822 = vmatprep.subr.mxu0 %v2779
    %2823 = vmatpush1.msra.mxu0 %v2778
    %2824 = vmatprep.subr.mxu0 %v2784
    %2825 = vmatpush1.msra.mxu0 %v2783
    %2826 = vmatprep.subr.mxu0 %v2789
    %2827 = vmatpush1.msra.mxu0 %v2788
    %2828 = vmatprep.subr.mxu0 %v2794
    %2829 = vmatpush1.msra.mxu0 %v2793
    %2830 = vmatprep.subr.mxu0 0.0
    %2831 = vmatpush1.msra.mxu0 0.0
    %2832 = vmatprep.subr.mxu0 0.0
    %2833 = vmatpush1.msra.mxu0 0.0
    %2834 = vmatprep.subr.mxu0 0.0
    %2835 = vmatpush1.msra.mxu0 0.0
    %2836 = vmatprep.subr.mxu0 0.0
    %2837 = vmatpush1.msra.mxu0 0.0
    %2838 = vmatprep.subr.mxu0 0.0
    %2839 = vmatpush1.msra.mxu0 0.0
    %2840 = vmatprep.subr.mxu0 0.0
    %2841 = vmatpush1.msra.mxu0 0.0
    %2842 = vmatprep.subr.mxu0 0.0
    %2843 = vmatpush1.msra.mxu0 0.0
    %2844 = vmatprep.subr.mxu0 0.0
    %2845 = vmatpush1.msra.mxu0 0.0
    %2846 = vmatprep.subr.mxu0 0.0
    %2847 = vmatpush1.msra.mxu0 0.0
    %2848 = vmatprep.subr.mxu0 0.0
    %2849 = vmatpush1.msra.mxu0 0.0
    %2850 = vmatprep.subr.mxu0 0.0
    %2851 = vmatpush1.msra.mxu0 0.0
    %2852 = vmatprep.subr.mxu0 0.0
    %2853 = vmatpush1.msra.mxu0 0.0
    %2854 = vmatprep.subr.mxu0 0.0
    %2855 = vmatpush1.msra.mxu0 0.0
    %2856 = vmatprep.subr.mxu0 0.0
    %2857 = vmatpush1.msra.mxu0 0.0
    %2858 = vmatprep.subr.mxu0 0.0
    %2859 = vmatpush1.msra.mxu0 0.0
    %2860 = vmatprep.subr.mxu0 0.0
    %2861 = vmatpush1.msra.mxu0 0.0
    %2862 = vmatprep.mubr.f32.mxu0 0.0
    %2863 = vmatmul.mubr.f32.gmra.mrb[0].mxu0 %v2691
    %v2864 = vpop.f32.mrb[0].mxu0
    %v2865 = vadd.f32 0.0, %v2864
    %v2866 = vpop.f32.mrb[0].mxu0
    %v2867 = vadd.f32 0.0, %v2866
    %2868 = vdwg.mxu0
    %2869 = vmatprep.subr.mxu0 %v2721
    %2870 = vmatpush1.msra.mxu0 %v2720
    %2871 = vmatprep.subr.mxu0 %v2726
    %2872 = vmatpush1.msra.mxu0 %v2725
    %2873 = vmatprep.subr.mxu0 %v2731
    %2874 = vmatpush1.msra.mxu0 %v2730
    %2875 = vmatprep.subr.mxu0 %v2736
    %2876 = vmatpush1.msra.mxu0 %v2735
    %2877 = vmatprep.subr.mxu0 %v2741
    %2878 = vmatpush1.msra.mxu0 %v2740
    %2879 = vmatprep.subr.mxu0 %v2746
    %2880 = vmatpush1.msra.mxu0 %v2745
    %2881 = vmatprep.subr.mxu0 %v2751
    %2882 = vmatpush1.msra.mxu0 %v2750
    %2883 = vmatprep.subr.mxu0 %v2756
    %2884 = vmatpush1.msra.mxu0 %v2755
    %2885 = vmatprep.subr.mxu0 %v2761
    %2886 = vmatpush1.msra.mxu0 %v2760
    %2887 = vmatprep.subr.mxu0 %v2766
    %2888 = vmatpush1.msra.mxu0 %v2765
    %2889 = vmatprep.subr.mxu0 %v2771
    %2890 = vmatpush1.msra.mxu0 %v2770
    %2891 = vmatprep.subr.mxu0 %v2776
    %2892 = vmatpush1.msra.mxu0 %v2775
    %2893 = vmatprep.subr.mxu0 %v2781
    %2894 = vmatpush1.msra.mxu0 %v2780
    %2895 = vmatprep.subr.mxu0 %v2786
    %2896 = vmatpush1.msra.mxu0 %v2785
    %2897 = vmatprep.subr.mxu0 %v2791
    %2898 = vmatpush1.msra.mxu0 %v2790
    %2899 = vmatprep.subr.mxu0 %v2796
    %2900 = vmatpush1.msra.mxu0 %v2795
    %2901 = vmatprep.subr.mxu0 0.0
    %2902 = vmatpush1.msra.mxu0 0.0
    %2903 = vmatprep.subr.mxu0 0.0
    %2904 = vmatpush1.msra.mxu0 0.0
    %2905 = vmatprep.subr.mxu0 0.0
    %2906 = vmatpush1.msra.mxu0 0.0
    %2907 = vmatprep.subr.mxu0 0.0
    %2908 = vmatpush1.msra.mxu0 0.0
    %2909 = vmatprep.subr.mxu0 0.0
    %2910 = vmatpush1.msra.mxu0 0.0
    %2911 = vmatprep.subr.mxu0 0.0
    %2912 = vmatpush1.msra.mxu0 0.0
    %2913 = vmatprep.subr.mxu0 0.0
    %2914 = vmatpush1.msra.mxu0 0.0
    %2915 = vmatprep.subr.mxu0 0.0
    %2916 = vmatpush1.msra.mxu0 0.0
    %2917 = vmatprep.subr.mxu0 0.0
    %2918 = vmatpush1.msra.mxu0 0.0
    %2919 = vmatprep.subr.mxu0 0.0
    %2920 = vmatpush1.msra.mxu0 0.0
    %2921 = vmatprep.subr.mxu0 0.0
    %2922 = vmatpush1.msra.mxu0 0.0
    %2923 = vmatprep.subr.mxu0 0.0
    %2924 = vmatpush1.msra.mxu0 0.0
    %2925 = vmatprep.subr.mxu0 0.0
    %2926 = vmatpush1.msra.mxu0 0.0
    %2927 = vmatprep.subr.mxu0 0.0
    %2928 = vmatpush1.msra.mxu0 0.0
    %2929 = vmatprep.subr.mxu0 0.0
    %2930 = vmatpush1.msra.mxu0 0.0
    %2931 = vmatprep.subr.mxu0 0.0
    %2932 = vmatpush1.msra.mxu0 0.0
    %2933 = vmatprep.mubr.f32.mxu0 0.0
    %2934 = vmatmul.mubr.f32.gmra.mrb[0].mxu0 %v2691
    %v2935 = vpop.f32.mrb[0].mxu0
    %v2936 = vadd.f32 0.0, %v2935
    %v2937 = vpop.f32.mrb[0].mxu0
    %v2938 = vadd.f32 0.0, %v2937
    %2939 = vdwg.mxu0
    %2940 = vmatprep.subr.mxu0 0.0
    %2941 = vmatpush1.msra.mxu0 %v2722
    %2942 = vmatprep.subr.mxu0 0.0
    %2943 = vmatpush1.msra.mxu0 %v2727
    %2944 = vmatprep.subr.mxu0 0.0
    %2945 = vmatpush1.msra.mxu0 %v2732
    %2946 = vmatprep.subr.mxu0 0.0
    %2947 = vmatpush1.msra.mxu0 %v2737
    %2948 = vmatprep.subr.mxu0 0.0
    %2949 = vmatpush1.msra.mxu0 %v2742
    %2950 = vmatprep.subr.mxu0 0.0
    %2951 = vmatpush1.msra.mxu0 %v2747
    %2952 = vmatprep.subr.mxu0 0.0
    %2953 = vmatpush1.msra.mxu0 %v2752
    %2954 = vmatprep.subr.mxu0 0.0
    %2955 = vmatpush1.msra.mxu0 %v2757
    %2956 = vmatprep.subr.mxu0 0.0
    %2957 = vmatpush1.msra.mxu0 %v2762
    %2958 = vmatprep.subr.mxu0 0.0
    %2959 = vmatpush1.msra.mxu0 %v2767
    %2960 = vmatprep.subr.mxu0 0.0
    %2961 = vmatpush1.msra.mxu0 %v2772
    %2962 = vmatprep.subr.mxu0 0.0
    %2963 = vmatpush1.msra.mxu0 %v2777
    %2964 = vmatprep.subr.mxu0 0.0
    %2965 = vmatpush1.msra.mxu0 %v2782
    %2966 = vmatprep.subr.mxu0 0.0
    %2967 = vmatpush1.msra.mxu0 %v2787
    %2968 = vmatprep.subr.mxu0 0.0
    %2969 = vmatpush1.msra.mxu0 %v2792
    %2970 = vmatprep.subr.mxu0 0.0
    %2971 = vmatpush1.msra.mxu0 %v2797
    %2972 = vmatprep.subr.mxu0 0.0
    %2973 = vmatpush1.msra.mxu0 0.0
    %2974 = vmatprep.subr.mxu0 0.0
    %2975 = vmatpush1.msra.mxu0 0.0
    %2976 = vmatprep.subr.mxu0 0.0
    %2977 = vmatpush1.msra.mxu0 0.0
    %2978 = vmatprep.subr.mxu0 0.0
    %2979 = vmatpush1.msra.mxu0 0.0
    %2980 = vmatprep.subr.mxu0 0.0
    %2981 = vmatpush1.msra.mxu0 0.0
    %2982 = vmatprep.subr.mxu0 0.0
    %2983 = vmatpush1.msra.mxu0 0.0
    %2984 = vmatprep.subr.mxu0 0.0
    %2985 = vmatpush1.msra.mxu0 0.0
    %2986 = vmatprep.subr.mxu0 0.0
    %2987 = vmatpush1.msra.mxu0 0.0
    %2988 = vmatprep.subr.mxu0 0.0
    %2989 = vmatpush1.msra.mxu0 0.0
    %2990 = vmatprep.subr.mxu0 0.0
    %2991 = vmatpush1.msra.mxu0 0.0
    %2992 = vmatprep.subr.mxu0 0.0
    %2993 = vmatpush1.msra.mxu0 0.0
    %2994 = vmatprep.subr.mxu0 0.0
    %2995 = vmatpush1.msra.mxu0 0.0
    %2996 = vmatprep.subr.mxu0 0.0
    %2997 = vmatpush1.msra.mxu0 0.0
    %2998 = vmatprep.subr.mxu0 0.0
    %2999 = vmatpush1.msra.mxu0 0.0
    %3000 = vmatprep.subr.mxu0 0.0
    %3001 = vmatpush1.msra.mxu0 0.0
    %3002 = vmatprep.subr.mxu0 0.0
    %3003 = vmatpush1.msra.mxu0 0.0
    %3004 = vmatprep.mubr.f32.mxu0 0.0
    %3005 = vmatmul.mubr.f32.gmra.mrb[0].mxu0 %v2691
    %v3006 = vpop.f32.mrb[0].mxu0
    %v3007 = vadd.f32 0.0, %v3006
    %v3008 = vpop.f32.mrb[0].mxu0
    %3009 = vdwg.mxu0
    %v3015 = vcombine.low %v2865, %v2867
    %v3016 = vcombine.low %v2936, %v2938
    %v3018 = vunpack.c.l.s4 1966171168
    %v3019 = vunpack.c.0.s8 %v3018
    %v3020 = vlaneseq
    %v3021 = vshrl.u32 %v3020, 7
    %v3022 = vsub.s32 %v3019, %v3021
    %v3023 = vrot.slane %v3015, %v3022
    %v3025 = vunpack.c.l.s4 1966171168
    %v3026 = vunpack.c.0.s8 %v3025
    %v3027 = vlaneseq
    %v3028 = vshrl.u32 %v3027, 7
    %v3029 = vsub.s32 %v3026, %v3028
    %v3030 = vrot.slane %v3016, %v3029
    %v3032 = vunpack.c.l.s4 1966171168
    %v3033 = vunpack.c.0.s8 %v3032
    %v3034 = vlaneseq
    %v3035 = vshrl.u32 %v3034, 7
    %v3036 = vsub.s32 %v3033, %v3035
    %v3037 = vrot.slane %v3007, %v3036
    %v3038 = vcombine.low %v3023, %v3030
    %v3040 = vunpack.c.l.s4 1966171168
    %v3041 = vunpack.c.0.s8 %v3040
    %v3042 = vlaneseq
    %v3043 = vshrl.u32 %v3042, 7
    %v3044 = vsub.s32 %v3041, %v3043
    %v3045 = vrot.slane %v3038, %v3044
    %v3047 = vunpack.c.l.s4 1966171168
    %v3048 = vunpack.c.0.s8 %v3047
    %v3049 = vlaneseq
    %v3050 = vshrl.u32 %v3049, 7
    %v3051 = vsub.s32 %v3048, %v3050
    %v3052 = vrot.slane %v3037, %v3051
    %v3053 = vcombine.low %v3045, %v3052
    %v3055 = vadd.f32 %v2717, %v3053
    %s3056 = scalar_lea.vmem [#allocation6], %s2686
    %v3057 = vld [vmem:[%s3056] sm:$0x1]
    %s3058 = scalar_lea.vmem [#allocation8], %s2694
    %v3059 = vld [vmem:[%s3058] sm:$0x1]
    %v3060 = vadd.f32 %v3057, %v3059
    %v3061 = vxor.u32 %v3055, 2147483648
    %v3062 = vmul.f32 %v3061, 1.442695
    %v3063 = vpow.pop %v3062
    %v3064 = vadd.f32 %v3063, 1.0
    %v3065 = vrcp.pop %v3064
    %v3066 = vmul.f32 1.0, %v3065
    %v3068 = vrot.slane %v3055, 1
    %v3070 = vxor.u32 %v3068, 2147483648
    %v3071 = vmul.f32 %v3070, 1.442695
    %v3072 = vpow.pop %v3071
    %v3073 = vadd.f32 %v3072, 1.0
    %v3074 = vrcp.pop %v3073
    %v3075 = vmul.f32 1.0, %v3074
    %v3076 = vrot.slane %v3055, 2
    %v3078 = vxor.u32 %v3076, 2147483648
    %v3079 = vmul.f32 %v3078, 1.442695
    %v3080 = vpow.pop %v3079
    %v3081 = vadd.f32 %v3080, 1.0
    %v3082 = vrcp.pop %v3081
    %v3083 = vmul.f32 1.0, %v3082
    %v3084 = vrot.slane %v3055, 3
    %v3086 = vtanh.pop %v3084
    %v3087 = vrot.slane %v3055, 4
    %v3089 = vxor.u32 %v3087, 2147483648
    %v3090 = vmul.f32 %v3089, 1.442695
    %v3091 = vpow.pop %v3090
    %v3092 = vadd.f32 %v3091, 1.0
    %v3093 = vrcp.pop %v3092
    %v3094 = vmul.f32 1.0, %v3093
    %v3095 = vmul.f32 %v3066, %v3086
    %v3096 = vmul.f32 %v3083, %v2693
    %v3097 = vadd.f32 %v3095, %v3096
    %v3098 = vtanh.pop %v3097
    %v3099 = vmul.f32 %v3075, %v3098
    %v3100 = vmul.f32 %v3094, %v3099
    %v3101 = vsub.f32 1.0, %v3094
    %v3102 = vmul.f32 %v3101, %v3060
    %v3103 = vadd.f32 %v3100, %v3102
    %v3104 = vld [vmem:[#allocation26] sm:$0xff]
    %v3105 = vld [vmem:[#allocation26 + $0x8] sm:$0xff]
    %v3106 = vld [vmem:[#allocation26 + $0x10] sm:$0xff]
    %v3107 = vld [vmem:[#allocation26 + $0x18] sm:$0xff]
    %v3108 = vld [vmem:[#allocation26 + $0x20] sm:$0xff]
    %v3109 = vld [vmem:[#allocation26 + $0x28] sm:$0xff]
    %v3110 = vld [vmem:[#allocation26 + $0x30] sm:$0xff]
    %v3111 = vld [vmem:[#allocation26 + $0x38] sm:$0xff]
    %v3112 = vld [vmem:[#allocation26 + $0x40] sm:$0xff]
    %v3113 = vld [vmem:[#allocation26 + $0x48] sm:$0xff]
    %v3114 = vld [vmem:[#allocation26 + $0x50] sm:$0xff]
    %v3115 = vld [vmem:[#allocation26 + $0x58] sm:$0xff]
    %v3116 = vld [vmem:[#allocation26 + $0x60] sm:$0xff]
    %v3117 = vld [vmem:[#allocation26 + $0x68] sm:$0xff]
    %v3118 = vld [vmem:[#allocation26 + $0x70] sm:$0xff]
    %v3119 = vld [vmem:[#allocation26 + $0x78] sm:$0xff]
    %v3120 = vld [vmem:[%s12] sm:$0x1]
    %3121 = vmatprep.subr.mxu0 0.0
    %3122 = vmatpush1.msra.mxu0 %v3104
    %3123 = vmatprep.subr.mxu0 0.0
    %3124 = vmatpush1.msra.mxu0 %v3105
    %3125 = vmatprep.subr.mxu0 0.0
    %3126 = vmatpush1.msra.mxu0 %v3106
    %3127 = vmatprep.subr.mxu0 0.0
    %3128 = vmatpush1.msra.mxu0 %v3107
    %3129 = vmatprep.subr.mxu0 0.0
    %3130 = vmatpush1.msra.mxu0 %v3108
    %3131 = vmatprep.subr.mxu0 0.0
    %3132 = vmatpush1.msra.mxu0 %v3109
    %3133 = vmatprep.subr.mxu0 0.0
    %3134 = vmatpush1.msra.mxu0 %v3110
    %3135 = vmatprep.subr.mxu0 0.0
    %3136 = vmatpush1.msra.mxu0 %v3111
    %3137 = vmatprep.subr.mxu0 0.0
    %3138 = vmatpush1.msra.mxu0 %v3112
    %3139 = vmatprep.subr.mxu0 0.0
    %3140 = vmatpush1.msra.mxu0 %v3113
    %3141 = vmatprep.subr.mxu0 0.0
    %3142 = vmatpush1.msra.mxu0 %v3114
    %3143 = vmatprep.subr.mxu0 0.0
    %3144 = vmatpush1.msra.mxu0 %v3115
    %3145 = vmatprep.subr.mxu0 0.0
    %3146 = vmatpush1.msra.mxu0 %v3116
    %3147 = vmatprep.subr.mxu0 0.0
    %3148 = vmatpush1.msra.mxu0 %v3117
    %3149 = vmatprep.subr.mxu0 0.0
    %3150 = vmatpush1.msra.mxu0 %v3118
    %3151 = vmatprep.subr.mxu0 0.0
    %3152 = vmatpush1.msra.mxu0 %v3119
    %3153 = vmatprep.subr.mxu0 0.0
    %3154 = vmatpush1.msra.mxu0 0.0
    %3155 = vmatprep.subr.mxu0 0.0
    %3156 = vmatpush1.msra.mxu0 0.0
    %3157 = vmatprep.subr.mxu0 0.0
    %3158 = vmatpush1.msra.mxu0 0.0
    %3159 = vmatprep.subr.mxu0 0.0
    %3160 = vmatpush1.msra.mxu0 0.0
    %3161 = vmatprep.subr.mxu0 0.0
    %3162 = vmatpush1.msra.mxu0 0.0
    %3163 = vmatprep.subr.mxu0 0.0
    %3164 = vmatpush1.msra.mxu0 0.0
    %3165 = vmatprep.subr.mxu0 0.0
    %3166 = vmatpush1.msra.mxu0 0.0
    %3167 = vmatprep.subr.mxu0 0.0
    %3168 = vmatpush1.msra.mxu0 0.0
    %3169 = vmatprep.subr.mxu0 0.0
    %3170 = vmatpush1.msra.mxu0 0.0
    %3171 = vmatprep.subr.mxu0 0.0
    %3172 = vmatpush1.msra.mxu0 0.0
    %3173 = vmatprep.subr.mxu0 0.0
    %3174 = vmatpush1.msra.mxu0 0.0
    %3175 = vmatprep.subr.mxu0 0.0
    %3176 = vmatpush1.msra.mxu0 0.0
    %3177 = vmatprep.subr.mxu0 0.0
    %3178 = vmatpush1.msra.mxu0 0.0
    %3179 = vmatprep.subr.mxu0 0.0
    %3180 = vmatpush1.msra.mxu0 0.0
    %3181 = vmatprep.subr.mxu0 0.0
    %3182 = vmatpush1.msra.mxu0 0.0
    %3183 = vmatprep.subr.mxu0 0.0
    %3184 = vmatpush1.msra.mxu0 0.0
    %3185 = vmatprep.mubr.f32.mxu0 0.0
    %3186 = vmatmul.mubr.f32.gmra.mrb[0].mxu0 %v3103
    %v3187 = vpop.f32.mrb[0].mxu0
    %v3188 = vadd.f32 %v3120, %v3187
    %v3189 = vpop.f32.mrb[0].mxu0
    %3190 = vdwg.mxu0
    %s3191 = scalar_lea.vmem [#allocation28], %s2686
    %3192 = vst [vmem:[%s3191] sm:$0x1] %v3188
    %v3193 = vadd.f32 %v3188, %v1049
    %v3194 = vsel %vm1558, %v3193, -inf
    %3195 = vmax.xlane.f32.xlu0 %v3194
    %v3196 = vpop.xlane.xlu0 %3195
    %vm3197 = vcmp.ge.f32.partialorder %v3193, %v3196
    %v3198 = vsel %vm3197, %v1045, 128
    %v3199 = vsel %vm1558, %v3198, 2147483647
    %v3200 = vand.u32 %v3199, 65535
    %v3201 = vshra.s32 %v3199, 16
    %v3202 = vcvt.s32.f32 %v3200
    %v3203 = vcvt.s32.f32 %v3201
    %3204 = vmin.xlane.f32.xlu0 %v3203
    %v3205 = vpop.xlane.xlu0 %3204
    %vm3206 = vcmp.eq.f32.partialorder %v3203, %v3205
    %v3207 = vsel %vm3206, %v3202, inf
    %3208 = vmin.xlane.f32.xlu0 %v3207
    %v3209 = vpop.xlane.xlu0 %3208
    %v3210 = vcvt.f32.s32 %v3209
    %v3211 = vcvt.f32.s32 %v3205
    %v3212 = vshll.u32 %v3211, 16
    %v3213 = vadd.s32 %v3212, %v3210
    %v3214 = vrot.slane %v3213, 4
    %vm3215 = vcmp.lt.s32.totalorder %v3213, %v3214
    %v3216 = vsel %vm3215, %v3213, %v3214
    %v3217 = vrot.slane %v3216, 2
    %vm3218 = vcmp.lt.s32.totalorder %v3216, %v3217
    %v3219 = vsel %vm3218, %v3216, %v3217
    %v3220 = vrot.slane %v3219, 1
    %vm3221 = vcmp.lt.s32.totalorder %v3219, %v3220
    %v3222 = vsel %vm3221, %v3219, %v3220
    %s3223 = vtos %v3222
    %s3224 = scalar_lea.smem [#allocation29], %s2686
    %3225 = sst [smem:[%s3224]] %s3223
    %s3226 = sadd.s32 %s3223, 1
    %s3227 = scalar_lea.smem [#allocation4], 3
    %3228 = sst [smem:[%s3227]] %s3226
    %3229 = vst [vmem:[#allocation2 + $0x3] sm:$0x1] %v3103
    %3230 = vst [vmem:[#allocation3 + $0x3] sm:$0x1] %v3097
    %s3231 = sld [smem:[#allocation9 + $0x4]]
    %s3232 = sld [smem:[#allocation15 + $0x4]]
    %p3233 = scmp.lt.s32.totalorder %s3232, 0
    %s3234 = scalar_select %p3233, 7, %s3232
    %s3235 = scalar_lea.vmem [#allocation2], %s3234
    %v3236 = vld [vmem:[%s3235] sm:$0x1]
    %s3237 = scalar_lea.vmem [#allocation3], %s3234
    %v3238 = vld [vmem:[%s3237] sm:$0x1]
    %s3239 = sld [smem:[#allocation4 + %s3234]]
    %s3240 = sshra.s32 %s3231, 3
    %s3241 = sand.u32 %s3231, 7
    %s3242 = sshra.s32 %s3231, 3
    %s3243 = sand.u32 %s3231, 7
    %s3244 = smul.u32 %s3240, 5
    %s3245 = smul.u32 %s3244, 8
    %s3246 = sadd.s32 %s3245, %s3243
    %s3247 = scalar_lea.vmem [#allocation5], %s3246
    %v3248 = vld [vmem:[%s3247] ss:$8 sm:$0xf]
    %v3249 = vld [vmem:[%s3247] ss:$8 sm:$0x10]
    %v3250 = vor.u32 %v3248, %v3249
    %s3251 = sshra.s32 %s3239, 3
    %s3252 = sand.u32 %s3239, 7
    %s3253 = sshra.s32 %s3239, 3
    %s3254 = sand.u32 %s3239, 7
    %s3255 = smul.u32 %s3251, 5
    %s3256 = smul.u32 %s3255, 8
    %s3257 = sadd.s32 %s3256, %s3254
    %s3258 = scalar_lea.vmem [#allocation7], %s3257
    %v3259 = vld [vmem:[%s3258] ss:$8 sm:$0xf]
    %v3260 = vld [vmem:[%s3258] ss:$8 sm:$0x10]
    %v3261 = vor.u32 %v3259, %v3260
    %v3262 = vadd.f32 %v3250, %v3261
    %v3263 = vld [vmem:[#allocation25] sm:$0xff]
    %v3264 = vld [vmem:[#allocation25 + $0x8] sm:$0xff]
    %v3265 = vld [vmem:[#allocation25 + $0x10] sm:$0xff]
    %v3266 = vld [vmem:[#allocation25 + $0x18] sm:$0xff]
    %v3267 = vld [vmem:[#allocation25 + $0x20] sm:$0xff]
    %v3268 = vld [vmem:[#allocation25 + $0x28] sm:$0xff]
    %v3269 = vld [vmem:[#allocation25 + $0x30] sm:$0xff]
    %v3270 = vld [vmem:[#allocation25 + $0x38] sm:$0xff]
    %v3271 = vld [vmem:[#allocation25 + $0x40] sm:$0xff]
    %v3272 = vld [vmem:[#allocation25 + $0x48] sm:$0xff]
    %v3273 = vld [vmem:[#allocation25 + $0x50] sm:$0xff]
    %v3274 = vld [vmem:[#allocation25 + $0x58] sm:$0xff]
    %v3275 = vld [vmem:[#allocation25 + $0x60] sm:$0xff]
    %v3276 = vld [vmem:[#allocation25 + $0x68] sm:$0xff]
    %v3277 = vld [vmem:[#allocation25 + $0x70] sm:$0xff]
    %v3278 = vld [vmem:[#allocation25 + $0x78] sm:$0xff]
    %v3279 = vld [vmem:[#allocation25 + $0x80] sm:$0xff]
    %v3280 = vld [vmem:[#allocation25 + $0x88] sm:$0xff]
    %v3281 = vld [vmem:[#allocation25 + $0x90] sm:$0xff]
    %v3282 = vld [vmem:[#allocation25 + $0x98] sm:$0xff]
    %v3283 = vld [vmem:[#allocation25 + $0xa0] sm:$0xff]
    %v3284 = vld [vmem:[#allocation25 + $0xa8] sm:$0xff]
    %v3285 = vld [vmem:[#allocation25 + $0xb0] sm:$0xff]
    %v3286 = vld [vmem:[#allocation25 + $0xb8] sm:$0xff]
    %v3287 = vld [vmem:[#allocation25 + $0xc0] sm:$0xff]
    %v3288 = vld [vmem:[#allocation25 + $0xc8] sm:$0xff]
    %v3289 = vld [vmem:[#allocation25 + $0xd0] sm:$0xff]
    %v3290 = vld [vmem:[#allocation25 + $0xd8] sm:$0xff]
    %v3291 = vld [vmem:[#allocation25 + $0xe0] sm:$0xff]
    %v3292 = vld [vmem:[#allocation25 + $0xe8] sm:$0xff]
    %v3293 = vld [vmem:[#allocation25 + $0xf0] sm:$0xff]
    %v3294 = vld [vmem:[#allocation25 + $0xf8] sm:$0xff]
    %v3295 = vld [vmem:[#allocation25 + $0x100] sm:$0xff]
    %v3296 = vld [vmem:[#allocation25 + $0x108] sm:$0xff]
    %v3297 = vld [vmem:[#allocation25 + $0x110] sm:$0xff]
    %v3298 = vld [vmem:[#allocation25 + $0x118] sm:$0xff]
    %v3299 = vld [vmem:[#allocation25 + $0x120] sm:$0xff]
    %v3300 = vld [vmem:[#allocation25 + $0x128] sm:$0xff]
    %v3301 = vld [vmem:[#allocation25 + $0x130] sm:$0xff]
    %v3302 = vld [vmem:[#allocation25 + $0x138] sm:$0xff]
    %v3303 = vld [vmem:[#allocation25 + $0x140] sm:$0xff]
    %v3304 = vld [vmem:[#allocation25 + $0x148] sm:$0xff]
    %v3305 = vld [vmem:[#allocation25 + $0x150] sm:$0xff]
    %v3306 = vld [vmem:[#allocation25 + $0x158] sm:$0xff]
    %v3307 = vld [vmem:[#allocation25 + $0x160] sm:$0xff]
    %v3308 = vld [vmem:[#allocation25 + $0x168] sm:$0xff]
    %v3309 = vld [vmem:[#allocation25 + $0x170] sm:$0xff]
    %v3310 = vld [vmem:[#allocation25 + $0x178] sm:$0xff]
    %v3311 = vld [vmem:[#allocation25 + $0x180] sm:$0xff]
    %v3312 = vld [vmem:[#allocation25 + $0x188] sm:$0xff]
    %v3313 = vld [vmem:[#allocation25 + $0x190] sm:$0xff]
    %v3314 = vld [vmem:[#allocation25 + $0x198] sm:$0xff]
    %v3315 = vld [vmem:[#allocation25 + $0x1a0] sm:$0xff]
    %v3316 = vld [vmem:[#allocation25 + $0x1a8] sm:$0xff]
    %v3317 = vld [vmem:[#allocation25 + $0x1b0] sm:$0xff]
    %v3318 = vld [vmem:[#allocation25 + $0x1b8] sm:$0xff]
    %v3319 = vld [vmem:[#allocation25 + $0x1c0] sm:$0xff]
    %v3320 = vld [vmem:[#allocation25 + $0x1c8] sm:$0xff]
    %v3321 = vld [vmem:[#allocation25 + $0x1d0] sm:$0xff]
    %v3322 = vld [vmem:[#allocation25 + $0x1d8] sm:$0xff]
    %v3323 = vld [vmem:[#allocation25 + $0x1e0] sm:$0xff]
    %v3324 = vld [vmem:[#allocation25 + $0x1e8] sm:$0xff]
    %v3325 = vld [vmem:[#allocation25 + $0x1f0] sm:$0xff]
    %v3326 = vld [vmem:[#allocation25 + $0x1f8] sm:$0xff]
    %v3327 = vld [vmem:[#allocation25 + $0x200] sm:$0xff]
    %v3328 = vld [vmem:[#allocation25 + $0x208] sm:$0xff]
    %v3329 = vld [vmem:[#allocation25 + $0x210] sm:$0xff]
    %v3330 = vld [vmem:[#allocation25 + $0x218] sm:$0xff]
    %v3331 = vld [vmem:[#allocation25 + $0x220] sm:$0xff]
    %v3332 = vld [vmem:[#allocation25 + $0x228] sm:$0xff]
    %v3333 = vld [vmem:[#allocation25 + $0x230] sm:$0xff]
    %v3334 = vld [vmem:[#allocation25 + $0x238] sm:$0xff]
    %v3335 = vld [vmem:[#allocation25 + $0x240] sm:$0xff]
    %v3336 = vld [vmem:[#allocation25 + $0x248] sm:$0xff]
    %v3337 = vld [vmem:[#allocation25 + $0x250] sm:$0xff]
    %v3338 = vld [vmem:[#allocation25 + $0x258] sm:$0xff]
    %v3339 = vld [vmem:[#allocation25 + $0x260] sm:$0xff]
    %v3340 = vld [vmem:[#allocation25 + $0x268] sm:$0xff]
    %v3341 = vld [vmem:[#allocation25 + $0x270] sm:$0xff]
    %v3342 = vld [vmem:[#allocation25 + $0x278] sm:$0xff]
    %3343 = vmatprep.subr.mxu0 %v3264
    %3344 = vmatpush1.msra.mxu0 %v3263
    %3345 = vmatprep.subr.mxu0 %v3269
    %3346 = vmatpush1.msra.mxu0 %v3268
    %3347 = vmatprep.subr.mxu0 %v3274
    %3348 = vmatpush1.msra.mxu0 %v3273
    %3349 = vmatprep.subr.mxu0 %v3279
    %3350 = vmatpush1.msra.mxu0 %v3278
    %3351 = vmatprep.subr.mxu0 %v3284
    %3352 = vmatpush1.msra.mxu0 %v3283
    %3353 = vmatprep.subr.mxu0 %v3289
    %3354 = vmatpush1.msra.mxu0 %v3288
    %3355 = vmatprep.subr.mxu0 %v3294
    %3356 = vmatpush1.msra.mxu0 %v3293
    %3357 = vmatprep.subr.mxu0 %v3299
    %3358 = vmatpush1.msra.mxu0 %v3298
    %3359 = vmatprep.subr.mxu0 %v3304
    %3360 = vmatpush1.msra.mxu0 %v3303
    %3361 = vmatprep.subr.mxu0 %v3309
    %3362 = vmatpush1.msra.mxu0 %v3308
    %3363 = vmatprep.subr.mxu0 %v3314
    %3364 = vmatpush1.msra.mxu0 %v3313
    %3365 = vmatprep.subr.mxu0 %v3319
    %3366 = vmatpush1.msra.mxu0 %v3318
    %3367 = vmatprep.subr.mxu0 %v3324
    %3368 = vmatpush1.msra.mxu0 %v3323
    %3369 = vmatprep.subr.mxu0 %v3329
    %3370 = vmatpush1.msra.mxu0 %v3328
    %3371 = vmatprep.subr.mxu0 %v3334
    %3372 = vmatpush1.msra.mxu0 %v3333
    %3373 = vmatprep.subr.mxu0 %v3339
    %3374 = vmatpush1.msra.mxu0 %v3338
    %3375 = vmatprep.subr.mxu0 0.0
    %3376 = vmatpush1.msra.mxu0 0.0
    %3377 = vmatprep.subr.mxu0 0.0
    %3378 = vmatpush1.msra.mxu0 0.0
    %3379 = vmatprep.subr.mxu0 0.0
    %3380 = vmatpush1.msra.mxu0 0.0
    %3381 = vmatprep.subr.mxu0 0.0
    %3382 = vmatpush1.msra.mxu0 0.0
    %3383 = vmatprep.subr.mxu0 0.0
    %3384 = vmatpush1.msra.mxu0 0.0
    %3385 = vmatprep.subr.mxu0 0.0
    %3386 = vmatpush1.msra.mxu0 0.0
    %3387 = vmatprep.subr.mxu0 0.0
    %3388 = vmatpush1.msra.mxu0 0.0
    %3389 = vmatprep.subr.mxu0 0.0
    %3390 = vmatpush1.msra.mxu0 0.0
    %3391 = vmatprep.subr.mxu0 0.0
    %3392 = vmatpush1.msra.mxu0 0.0
    %3393 = vmatprep.subr.mxu0 0.0
    %3394 = vmatpush1.msra.mxu0 0.0
    %3395 = vmatprep.subr.mxu0 0.0
    %3396 = vmatpush1.msra.mxu0 0.0
    %3397 = vmatprep.subr.mxu0 0.0
    %3398 = vmatpush1.msra.mxu0 0.0
    %3399 = vmatprep.subr.mxu0 0.0
    %3400 = vmatpush1.msra.mxu0 0.0
    %3401 = vmatprep.subr.mxu0 0.0
    %3402 = vmatpush1.msra.mxu0 0.0
    %3403 = vmatprep.subr.mxu0 0.0
    %3404 = vmatpush1.msra.mxu0 0.0
    %3405 = vmatprep.subr.mxu0 0.0
    %3406 = vmatpush1.msra.mxu0 0.0
    %3407 = vmatprep.mubr.f32.mxu0 0.0
    %3408 = vmatmul.mubr.f32.gmra.mrb[0].mxu0 %v3236
    %v3409 = vpop.f32.mrb[0].mxu0
    %v3410 = vadd.f32 0.0, %v3409
    %v3411 = vpop.f32.mrb[0].mxu0
    %v3412 = vadd.f32 0.0, %v3411
    %3413 = vdwg.mxu0
    %3414 = vmatprep.subr.mxu0 %v3266
    %3415 = vmatpush1.msra.mxu0 %v3265
    %3416 = vmatprep.subr.mxu0 %v3271
    %3417 = vmatpush1.msra.mxu0 %v3270
    %3418 = vmatprep.subr.mxu0 %v3276
    %3419 = vmatpush1.msra.mxu0 %v3275
    %3420 = vmatprep.subr.mxu0 %v3281
    %3421 = vmatpush1.msra.mxu0 %v3280
    %3422 = vmatprep.subr.mxu0 %v3286
    %3423 = vmatpush1.msra.mxu0 %v3285
    %3424 = vmatprep.subr.mxu0 %v3291
    %3425 = vmatpush1.msra.mxu0 %v3290
    %3426 = vmatprep.subr.mxu0 %v3296
    %3427 = vmatpush1.msra.mxu0 %v3295
    %3428 = vmatprep.subr.mxu0 %v3301
    %3429 = vmatpush1.msra.mxu0 %v3300
    %3430 = vmatprep.subr.mxu0 %v3306
    %3431 = vmatpush1.msra.mxu0 %v3305
    %3432 = vmatprep.subr.mxu0 %v3311
    %3433 = vmatpush1.msra.mxu0 %v3310
    %3434 = vmatprep.subr.mxu0 %v3316
    %3435 = vmatpush1.msra.mxu0 %v3315
    %3436 = vmatprep.subr.mxu0 %v3321
    %3437 = vmatpush1.msra.mxu0 %v3320
    %3438 = vmatprep.subr.mxu0 %v3326
    %3439 = vmatpush1.msra.mxu0 %v3325
    %3440 = vmatprep.subr.mxu0 %v3331
    %3441 = vmatpush1.msra.mxu0 %v3330
    %3442 = vmatprep.subr.mxu0 %v3336
    %3443 = vmatpush1.msra.mxu0 %v3335
    %3444 = vmatprep.subr.mxu0 %v3341
    %3445 = vmatpush1.msra.mxu0 %v3340
    %3446 = vmatprep.subr.mxu0 0.0
    %3447 = vmatpush1.msra.mxu0 0.0
    %3448 = vmatprep.subr.mxu0 0.0
    %3449 = vmatpush1.msra.mxu0 0.0
    %3450 = vmatprep.subr.mxu0 0.0
    %3451 = vmatpush1.msra.mxu0 0.0
    %3452 = vmatprep.subr.mxu0 0.0
    %3453 = vmatpush1.msra.mxu0 0.0
    %3454 = vmatprep.subr.mxu0 0.0
    %3455 = vmatpush1.msra.mxu0 0.0
    %3456 = vmatprep.subr.mxu0 0.0
    %3457 = vmatpush1.msra.mxu0 0.0
    %3458 = vmatprep.subr.mxu0 0.0
    %3459 = vmatpush1.msra.mxu0 0.0
    %3460 = vmatprep.subr.mxu0 0.0
    %3461 = vmatpush1.msra.mxu0 0.0
    %3462 = vmatprep.subr.mxu0 0.0
    %3463 = vmatpush1.msra.mxu0 0.0
    %3464 = vmatprep.subr.mxu0 0.0
    %3465 = vmatpush1.msra.mxu0 0.0
    %3466 = vmatprep.subr.mxu0 0.0
    %3467 = vmatpush1.msra.mxu0 0.0
    %3468 = vmatprep.subr.mxu0 0.0
    %3469 = vmatpush1.msra.mxu0 0.0
    %3470 = vmatprep.subr.mxu0 0.0
    %3471 = vmatpush1.msra.mxu0 0.0
    %3472 = vmatprep.subr.mxu0 0.0
    %3473 = vmatpush1.msra.mxu0 0.0
    %3474 = vmatprep.subr.mxu0 0.0
    %3475 = vmatpush1.msra.mxu0 0.0
    %3476 = vmatprep.subr.mxu0 0.0
    %3477 = vmatpush1.msra.mxu0 0.0
    %3478 = vmatprep.mubr.f32.mxu0 0.0
    %3479 = vmatmul.mubr.f32.gmra.mrb[0].mxu0 %v3236
    %v3480 = vpop.f32.mrb[0].mxu0
    %v3481 = vadd.f32 0.0, %v3480
    %v3482 = vpop.f32.mrb[0].mxu0
    %v3483 = vadd.f32 0.0, %v3482
    %3484 = vdwg.mxu0
    %3485 = vmatprep.subr.mxu0 0.0
    %3486 = vmatpush1.msra.mxu0 %v3267
    %3487 = vmatprep.subr.mxu0 0.0
    %3488 = vmatpush1.msra.mxu0 %v3272
    %3489 = vmatprep.subr.mxu0 0.0
    %3490 = vmatpush1.msra.mxu0 %v3277
    %3491 = vmatprep.subr.mxu0 0.0
    %3492 = vmatpush1.msra.mxu0 %v3282
    %3493 = vmatprep.subr.mxu0 0.0
    %3494 = vmatpush1.msra.mxu0 %v3287
    %3495 = vmatprep.subr.mxu0 0.0
    %3496 = vmatpush1.msra.mxu0 %v3292
    %3497 = vmatprep.subr.mxu0 0.0
    %3498 = vmatpush1.msra.mxu0 %v3297
    %3499 = vmatprep.subr.mxu0 0.0
    %3500 = vmatpush1.msra.mxu0 %v3302
    %3501 = vmatprep.subr.mxu0 0.0
    %3502 = vmatpush1.msra.mxu0 %v3307
    %3503 = vmatprep.subr.mxu0 0.0
    %3504 = vmatpush1.msra.mxu0 %v3312
    %3505 = vmatprep.subr.mxu0 0.0
    %3506 = vmatpush1.msra.mxu0 %v3317
    %3507 = vmatprep.subr.mxu0 0.0
    %3508 = vmatpush1.msra.mxu0 %v3322
    %3509 = vmatprep.subr.mxu0 0.0
    %3510 = vmatpush1.msra.mxu0 %v3327
    %3511 = vmatprep.subr.mxu0 0.0
    %3512 = vmatpush1.msra.mxu0 %v3332
    %3513 = vmatprep.subr.mxu0 0.0
    %3514 = vmatpush1.msra.mxu0 %v3337
    %3515 = vmatprep.subr.mxu0 0.0
    %3516 = vmatpush1.msra.mxu0 %v3342
    %3517 = vmatprep.subr.mxu0 0.0
    %3518 = vmatpush1.msra.mxu0 0.0
    %3519 = vmatprep.subr.mxu0 0.0
    %3520 = vmatpush1.msra.mxu0 0.0
    %3521 = vmatprep.subr.mxu0 0.0
    %3522 = vmatpush1.msra.mxu0 0.0
    %3523 = vmatprep.subr.mxu0 0.0
    %3524 = vmatpush1.msra.mxu0 0.0
    %3525 = vmatprep.subr.mxu0 0.0
    %3526 = vmatpush1.msra.mxu0 0.0
    %3527 = vmatprep.subr.mxu0 0.0
    %3528 = vmatpush1.msra.mxu0 0.0
    %3529 = vmatprep.subr.mxu0 0.0
    %3530 = vmatpush1.msra.mxu0 0.0
    %3531 = vmatprep.subr.mxu0 0.0
    %3532 = vmatpush1.msra.mxu0 0.0
    %3533 = vmatprep.subr.mxu0 0.0
    %3534 = vmatpush1.msra.mxu0 0.0
    %3535 = vmatprep.subr.mxu0 0.0
    %3536 = vmatpush1.msra.mxu0 0.0
    %3537 = vmatprep.subr.mxu0 0.0
    %3538 = vmatpush1.msra.mxu0 0.0
    %3539 = vmatprep.subr.mxu0 0.0
    %3540 = vmatpush1.msra.mxu0 0.0
    %3541 = vmatprep.subr.mxu0 0.0
    %3542 = vmatpush1.msra.mxu0 0.0
    %3543 = vmatprep.subr.mxu0 0.0
    %3544 = vmatpush1.msra.mxu0 0.0
    %3545 = vmatprep.subr.mxu0 0.0
    %3546 = vmatpush1.msra.mxu0 0.0
    %3547 = vmatprep.subr.mxu0 0.0
    %3548 = vmatpush1.msra.mxu0 0.0
    %3549 = vmatprep.mubr.f32.mxu0 0.0
    %3550 = vmatmul.mubr.f32.gmra.mrb[0].mxu0 %v3236
    %v3551 = vpop.f32.mrb[0].mxu0
    %v3552 = vadd.f32 0.0, %v3551
    %v3553 = vpop.f32.mrb[0].mxu0
    %3554 = vdwg.mxu0
    %v3560 = vcombine.low %v3410, %v3412
    %v3561 = vcombine.low %v3481, %v3483
    %v3563 = vunpack.c.l.s4 1966171168
    %v3564 = vunpack.c.0.s8 %v3563
    %v3565 = vlaneseq
    %v3566 = vshrl.u32 %v3565, 7
    %v3567 = vsub.s32 %v3564, %v3566
    %v3568 = vrot.slane %v3560, %v3567
    %v3570 = vunpack.c.l.s4 1966171168
    %v3571 = vunpack.c.0.s8 %v3570
    %v3572 = vlaneseq
    %v3573 = vshrl.u32 %v3572, 7
    %v3574 = vsub.s32 %v3571, %v3573
    %v3575 = vrot.slane %v3561, %v3574
    %v3577 = vunpack.c.l.s4 1966171168
    %v3578 = vunpack.c.0.s8 %v3577
    %v3579 = vlaneseq
    %v3580 = vshrl.u32 %v3579, 7
    %v3581 = vsub.s32 %v3578, %v3580
    %v3582 = vrot.slane %v3552, %v3581
    %v3583 = vcombine.low %v3568, %v3575
    %v3585 = vunpack.c.l.s4 1966171168
    %v3586 = vunpack.c.0.s8 %v3585
    %v3587 = vlaneseq
    %v3588 = vshrl.u32 %v3587, 7
    %v3589 = vsub.s32 %v3586, %v3588
    %v3590 = vrot.slane %v3583, %v3589
    %v3592 = vunpack.c.l.s4 1966171168
    %v3593 = vunpack.c.0.s8 %v3592
    %v3594 = vlaneseq
    %v3595 = vshrl.u32 %v3594, 7
    %v3596 = vsub.s32 %v3593, %v3595
    %v3597 = vrot.slane %v3582, %v3596
    %v3598 = vcombine.low %v3590, %v3597
    %v3600 = vadd.f32 %v3262, %v3598
    %s3601 = scalar_lea.vmem [#allocation6], %s3231
    %v3602 = vld [vmem:[%s3601] sm:$0x1]
    %s3603 = scalar_lea.vmem [#allocation8], %s3239
    %v3604 = vld [vmem:[%s3603] sm:$0x1]
    %v3605 = vadd.f32 %v3602, %v3604
    %v3606 = vxor.u32 %v3600, 2147483648
    %v3607 = vmul.f32 %v3606, 1.442695
    %v3608 = vpow.pop %v3607
    %v3609 = vadd.f32 %v3608, 1.0
    %v3610 = vrcp.pop %v3609
    %v3611 = vmul.f32 1.0, %v3610
    %v3613 = vrot.slane %v3600, 1
    %v3615 = vxor.u32 %v3613, 2147483648
    %v3616 = vmul.f32 %v3615, 1.442695
    %v3617 = vpow.pop %v3616
    %v3618 = vadd.f32 %v3617, 1.0
    %v3619 = vrcp.pop %v3618
    %v3620 = vmul.f32 1.0, %v3619
    %v3621 = vrot.slane %v3600, 2
    %v3623 = vxor.u32 %v3621, 2147483648
    %v3624 = vmul.f32 %v3623, 1.442695
    %v3625 = vpow.pop %v3624
    %v3626 = vadd.f32 %v3625, 1.0
    %v3627 = vrcp.pop %v3626
    %v3628 = vmul.f32 1.0, %v3627
    %v3629 = vrot.slane %v3600, 3
    %v3631 = vtanh.pop %v3629
    %v3632 = vrot.slane %v3600, 4
    %v3634 = vxor.u32 %v3632, 2147483648
    %v3635 = vmul.f32 %v3634, 1.442695
    %v3636 = vpow.pop %v3635
    %v3637 = vadd.f32 %v3636, 1.0
    %v3638 = vrcp.pop %v3637
    %v3639 = vmul.f32 1.0, %v3638
    %v3640 = vmul.f32 %v3611, %v3631
    %v3641 = vmul.f32 %v3628, %v3238
    %v3642 = vadd.f32 %v3640, %v3641
    %v3643 = vtanh.pop %v3642
    %v3644 = vmul.f32 %v3620, %v3643
    %v3645 = vmul.f32 %v3639, %v3644
    %v3646 = vsub.f32 1.0, %v3639
    %v3647 = vmul.f32 %v3646, %v3605
    %v3648 = vadd.f32 %v3645, %v3647
    %v3649 = vld [vmem:[#allocation26] sm:$0xff]
    %v3650 = vld [vmem:[#allocation26 + $0x8] sm:$0xff]
    %v3651 = vld [vmem:[#allocation26 + $0x10] sm:$0xff]
    %v3652 = vld [vmem:[#allocation26 + $0x18] sm:$0xff]
    %v3653 = vld [vmem:[#allocation26 + $0x20] sm:$0xff]
    %v3654 = vld [vmem:[#allocation26 + $0x28] sm:$0xff]
    %v3655 = vld [vmem:[#allocation26 + $0x30] sm:$0xff]
    %v3656 = vld [vmem:[#allocation26 + $0x38] sm:$0xff]
    %v3657 = vld [vmem:[#allocation26 + $0x40] sm:$0xff]
    %v3658 = vld [vmem:[#allocation26 + $0x48] sm:$0xff]
    %v3659 = vld [vmem:[#allocation26 + $0x50] sm:$0xff]
    %v3660 = vld [vmem:[#allocation26 + $0x58] sm:$0xff]
    %v3661 = vld [vmem:[#allocation26 + $0x60] sm:$0xff]
    %v3662 = vld [vmem:[#allocation26 + $0x68] sm:$0xff]
    %v3663 = vld [vmem:[#allocation26 + $0x70] sm:$0xff]
    %v3664 = vld [vmem:[#allocation26 + $0x78] sm:$0xff]
    %v3665 = vld [vmem:[%s12] sm:$0x1]
    %3666 = vmatprep.subr.mxu0 0.0
    %3667 = vmatpush1.msra.mxu0 %v3649
    %3668 = vmatprep.subr.mxu0 0.0
    %3669 = vmatpush1.msra.mxu0 %v3650
    %3670 = vmatprep.subr.mxu0 0.0
    %3671 = vmatpush1.msra.mxu0 %v3651
    %3672 = vmatprep.subr.mxu0 0.0
    %3673 = vmatpush1.msra.mxu0 %v3652
    %3674 = vmatprep.subr.mxu0 0.0
    %3675 = vmatpush1.msra.mxu0 %v3653
    %3676 = vmatprep.subr.mxu0 0.0
    %3677 = vmatpush1.msra.mxu0 %v3654
    %3678 = vmatprep.subr.mxu0 0.0
    %3679 = vmatpush1.msra.mxu0 %v3655
    %3680 = vmatprep.subr.mxu0 0.0
    %3681 = vmatpush1.msra.mxu0 %v3656
    %3682 = vmatprep.subr.mxu0 0.0
    %3683 = vmatpush1.msra.mxu0 %v3657
    %3684 = vmatprep.subr.mxu0 0.0
    %3685 = vmatpush1.msra.mxu0 %v3658
    %3686 = vmatprep.subr.mxu0 0.0
    %3687 = vmatpush1.msra.mxu0 %v3659
    %3688 = vmatprep.subr.mxu0 0.0
    %3689 = vmatpush1.msra.mxu0 %v3660
    %3690 = vmatprep.subr.mxu0 0.0
    %3691 = vmatpush1.msra.mxu0 %v3661
    %3692 = vmatprep.subr.mxu0 0.0
    %3693 = vmatpush1.msra.mxu0 %v3662
    %3694 = vmatprep.subr.mxu0 0.0
    %3695 = vmatpush1.msra.mxu0 %v3663
    %3696 = vmatprep.subr.mxu0 0.0
    %3697 = vmatpush1.msra.mxu0 %v3664
    %3698 = vmatprep.subr.mxu0 0.0
    %3699 = vmatpush1.msra.mxu0 0.0
    %3700 = vmatprep.subr.mxu0 0.0
    %3701 = vmatpush1.msra.mxu0 0.0
    %3702 = vmatprep.subr.mxu0 0.0
    %3703 = vmatpush1.msra.mxu0 0.0
    %3704 = vmatprep.subr.mxu0 0.0
    %3705 = vmatpush1.msra.mxu0 0.0
    %3706 = vmatprep.subr.mxu0 0.0
    %3707 = vmatpush1.msra.mxu0 0.0
    %3708 = vmatprep.subr.mxu0 0.0
    %3709 = vmatpush1.msra.mxu0 0.0
    %3710 = vmatprep.subr.mxu0 0.0
    %3711 = vmatpush1.msra.mxu0 0.0
    %3712 = vmatprep.subr.mxu0 0.0
    %3713 = vmatpush1.msra.mxu0 0.0
    %3714 = vmatprep.subr.mxu0 0.0
    %3715 = vmatpush1.msra.mxu0 0.0
    %3716 = vmatprep.subr.mxu0 0.0
    %3717 = vmatpush1.msra.mxu0 0.0
    %3718 = vmatprep.subr.mxu0 0.0
    %3719 = vmatpush1.msra.mxu0 0.0
    %3720 = vmatprep.subr.mxu0 0.0
    %3721 = vmatpush1.msra.mxu0 0.0
    %3722 = vmatprep.subr.mxu0 0.0
    %3723 = vmatpush1.msra.mxu0 0.0
    %3724 = vmatprep.subr.mxu0 0.0
    %3725 = vmatpush1.msra.mxu0 0.0
    %3726 = vmatprep.subr.mxu0 0.0
    %3727 = vmatpush1.msra.mxu0 0.0
    %3728 = vmatprep.subr.mxu0 0.0
    %3729 = vmatpush1.msra.mxu0 0.0
    %3730 = vmatprep.mubr.f32.mxu0 0.0
    %3731 = vmatmul.mubr.f32.gmra.mrb[0].mxu0 %v3648
    %v3732 = vpop.f32.mrb[0].mxu0
    %v3733 = vadd.f32 %v3665, %v3732
    %v3734 = vpop.f32.mrb[0].mxu0
    %3735 = vdwg.mxu0
    %s3736 = scalar_lea.vmem [#allocation28], %s3231
    %3737 = vst [vmem:[%s3736] sm:$0x1] %v3733
    %v3738 = vadd.f32 %v3733, %v1049
    %v3739 = vsel %vm1558, %v3738, -inf
    %3740 = vmax.xlane.f32.xlu0 %v3739
    %v3741 = vpop.xlane.xlu0 %3740
    %vm3742 = vcmp.ge.f32.partialorder %v3738, %v3741
    %v3743 = vsel %vm3742, %v1045, 128
    %v3744 = vsel %vm1558, %v3743, 2147483647
    %v3745 = vand.u32 %v3744, 65535
    %v3746 = vshra.s32 %v3744, 16
    %v3747 = vcvt.s32.f32 %v3745
    %v3748 = vcvt.s32.f32 %v3746
    %3749 = vmin.xlane.f32.xlu0 %v3748
    %v3750 = vpop.xlane.xlu0 %3749
    %vm3751 = vcmp.eq.f32.partialorder %v3748, %v3750
    %v3752 = vsel %vm3751, %v3747, inf
    %3753 = vmin.xlane.f32.xlu0 %v3752
    %v3754 = vpop.xlane.xlu0 %3753
    %v3755 = vcvt.f32.s32 %v3754
    %v3756 = vcvt.f32.s32 %v3750
    %v3757 = vshll.u32 %v3756, 16
    %v3758 = vadd.s32 %v3757, %v3755
    %v3759 = vrot.slane %v3758, 4
    %vm3760 = vcmp.lt.s32.totalorder %v3758, %v3759
    %v3761 = vsel %vm3760, %v3758, %v3759
    %v3762 = vrot.slane %v3761, 2
    %vm3763 = vcmp.lt.s32.totalorder %v3761, %v3762
    %v3764 = vsel %vm3763, %v3761, %v3762
    %v3765 = vrot.slane %v3764, 1
    %vm3766 = vcmp.lt.s32.totalorder %v3764, %v3765
    %v3767 = vsel %vm3766, %v3764, %v3765
    %s3768 = vtos %v3767
    %s3769 = scalar_lea.smem [#allocation29], %s3231
    %3770 = sst [smem:[%s3769]] %s3768
    %s3771 = sadd.s32 %s3768, 1
    %s3772 = scalar_lea.smem [#allocation4], 4
    %3773 = sst [smem:[%s3772]] %s3771
    %3774 = vst [vmem:[#allocation2 + $0x4] sm:$0x1] %v3648
    %3775 = vst [vmem:[#allocation3 + $0x4] sm:$0x1] %v3642
    %s3776 = sld [smem:[#allocation9 + $0x5]]
    %s3777 = sld [smem:[#allocation15 + $0x5]]
    %p3778 = scmp.lt.s32.totalorder %s3777, 0
    %s3779 = scalar_select %p3778, 7, %s3777
    %s3780 = scalar_lea.vmem [#allocation2], %s3779
    %v3781 = vld [vmem:[%s3780] sm:$0x1]
    %s3782 = scalar_lea.vmem [#allocation3], %s3779
    %v3783 = vld [vmem:[%s3782] sm:$0x1]
    %s3784 = sld [smem:[#allocation4 + %s3779]]
    %s3785 = sshra.s32 %s3776, 3
    %s3786 = sand.u32 %s3776, 7
    %s3787 = sshra.s32 %s3776, 3
    %s3788 = sand.u32 %s3776, 7
    %s3789 = smul.u32 %s3785, 5
    %s3790 = smul.u32 %s3789, 8
    %s3791 = sadd.s32 %s3790, %s3788
    %s3792 = scalar_lea.vmem [#allocation5], %s3791
    %v3793 = vld [vmem:[%s3792] ss:$8 sm:$0xf]
    %v3794 = vld [vmem:[%s3792] ss:$8 sm:$0x10]
    %v3795 = vor.u32 %v3793, %v3794
    %s3796 = sshra.s32 %s3784, 3
    %s3797 = sand.u32 %s3784, 7
    %s3798 = sshra.s32 %s3784, 3
    %s3799 = sand.u32 %s3784, 7
    %s3800 = smul.u32 %s3796, 5
    %s3801 = smul.u32 %s3800, 8
    %s3802 = sadd.s32 %s3801, %s3799
    %s3803 = scalar_lea.vmem [#allocation7], %s3802
    %v3804 = vld [vmem:[%s3803] ss:$8 sm:$0xf]
    %v3805 = vld [vmem:[%s3803] ss:$8 sm:$0x10]
    %v3806 = vor.u32 %v3804, %v3805
    %v3807 = vadd.f32 %v3795, %v3806
    %v3808 = vld [vmem:[#allocation25] sm:$0xff]
    %v3809 = vld [vmem:[#allocation25 + $0x8] sm:$0xff]
    %v3810 = vld [vmem:[#allocation25 + $0x10] sm:$0xff]
    %v3811 = vld [vmem:[#allocation25 + $0x18] sm:$0xff]
    %v3812 = vld [vmem:[#allocation25 + $0x20] sm:$0xff]
    %v3813 = vld [vmem:[#allocation25 + $0x28] sm:$0xff]
    %v3814 = vld [vmem:[#allocation25 + $0x30] sm:$0xff]
    %v3815 = vld [vmem:[#allocation25 + $0x38] sm:$0xff]
    %v3816 = vld [vmem:[#allocation25 + $0x40] sm:$0xff]
    %v3817 = vld [vmem:[#allocation25 + $0x48] sm:$0xff]
    %v3818 = vld [vmem:[#allocation25 + $0x50] sm:$0xff]
    %v3819 = vld [vmem:[#allocation25 + $0x58] sm:$0xff]
    %v3820 = vld [vmem:[#allocation25 + $0x60] sm:$0xff]
    %v3821 = vld [vmem:[#allocation25 + $0x68] sm:$0xff]
    %v3822 = vld [vmem:[#allocation25 + $0x70] sm:$0xff]
    %v3823 = vld [vmem:[#allocation25 + $0x78] sm:$0xff]
    %v3824 = vld [vmem:[#allocation25 + $0x80] sm:$0xff]
    %v3825 = vld [vmem:[#allocation25 + $0x88] sm:$0xff]
    %v3826 = vld [vmem:[#allocation25 + $0x90] sm:$0xff]
    %v3827 = vld [vmem:[#allocation25 + $0x98] sm:$0xff]
    %v3828 = vld [vmem:[#allocation25 + $0xa0] sm:$0xff]
    %v3829 = vld [vmem:[#allocation25 + $0xa8] sm:$0xff]
    %v3830 = vld [vmem:[#allocation25 + $0xb0] sm:$0xff]
    %v3831 = vld [vmem:[#allocation25 + $0xb8] sm:$0xff]
    %v3832 = vld [vmem:[#allocation25 + $0xc0] sm:$0xff]
    %v3833 = vld [vmem:[#allocation25 + $0xc8] sm:$0xff]
    %v3834 = vld [vmem:[#allocation25 + $0xd0] sm:$0xff]
    %v3835 = vld [vmem:[#allocation25 + $0xd8] sm:$0xff]
    %v3836 = vld [vmem:[#allocation25 + $0xe0] sm:$0xff]
    %v3837 = vld [vmem:[#allocation25 + $0xe8] sm:$0xff]
    %v3838 = vld [vmem:[#allocation25 + $0xf0] sm:$0xff]
    %v3839 = vld [vmem:[#allocation25 + $0xf8] sm:$0xff]
    %v3840 = vld [vmem:[#allocation25 + $0x100] sm:$0xff]
    %v3841 = vld [vmem:[#allocation25 + $0x108] sm:$0xff]
    %v3842 = vld [vmem:[#allocation25 + $0x110] sm:$0xff]
    %v3843 = vld [vmem:[#allocation25 + $0x118] sm:$0xff]
    %v3844 = vld [vmem:[#allocation25 + $0x120] sm:$0xff]
    %v3845 = vld [vmem:[#allocation25 + $0x128] sm:$0xff]
    %v3846 = vld [vmem:[#allocation25 + $0x130] sm:$0xff]
    %v3847 = vld [vmem:[#allocation25 + $0x138] sm:$0xff]
    %v3848 = vld [vmem:[#allocation25 + $0x140] sm:$0xff]
    %v3849 = vld [vmem:[#allocation25 + $0x148] sm:$0xff]
    %v3850 = vld [vmem:[#allocation25 + $0x150] sm:$0xff]
    %v3851 = vld [vmem:[#allocation25 + $0x158] sm:$0xff]
    %v3852 = vld [vmem:[#allocation25 + $0x160] sm:$0xff]
    %v3853 = vld [vmem:[#allocation25 + $0x168] sm:$0xff]
    %v3854 = vld [vmem:[#allocation25 + $0x170] sm:$0xff]
    %v3855 = vld [vmem:[#allocation25 + $0x178] sm:$0xff]
    %v3856 = vld [vmem:[#allocation25 + $0x180] sm:$0xff]
    %v3857 = vld [vmem:[#allocation25 + $0x188] sm:$0xff]
    %v3858 = vld [vmem:[#allocation25 + $0x190] sm:$0xff]
    %v3859 = vld [vmem:[#allocation25 + $0x198] sm:$0xff]
    %v3860 = vld [vmem:[#allocation25 + $0x1a0] sm:$0xff]
    %v3861 = vld [vmem:[#allocation25 + $0x1a8] sm:$0xff]
    %v3862 = vld [vmem:[#allocation25 + $0x1b0] sm:$0xff]
    %v3863 = vld [vmem:[#allocation25 + $0x1b8] sm:$0xff]
    %v3864 = vld [vmem:[#allocation25 + $0x1c0] sm:$0xff]
    %v3865 = vld [vmem:[#allocation25 + $0x1c8] sm:$0xff]
    %v3866 = vld [vmem:[#allocation25 + $0x1d0] sm:$0xff]
    %v3867 = vld [vmem:[#allocation25 + $0x1d8] sm:$0xff]
    %v3868 = vld [vmem:[#allocation25 + $0x1e0] sm:$0xff]
    %v3869 = vld [vmem:[#allocation25 + $0x1e8] sm:$0xff]
    %v3870 = vld [vmem:[#allocation25 + $0x1f0] sm:$0xff]
    %v3871 = vld [vmem:[#allocation25 + $0x1f8] sm:$0xff]
    %v3872 = vld [vmem:[#allocation25 + $0x200] sm:$0xff]
    %v3873 = vld [vmem:[#allocation25 + $0x208] sm:$0xff]
    %v3874 = vld [vmem:[#allocation25 + $0x210] sm:$0xff]
    %v3875 = vld [vmem:[#allocation25 + $0x218] sm:$0xff]
    %v3876 = vld [vmem:[#allocation25 + $0x220] sm:$0xff]
    %v3877 = vld [vmem:[#allocation25 + $0x228] sm:$0xff]
    %v3878 = vld [vmem:[#allocation25 + $0x230] sm:$0xff]
    %v3879 = vld [vmem:[#allocation25 + $0x238] sm:$0xff]
    %v3880 = vld [vmem:[#allocation25 + $0x240] sm:$0xff]
    %v3881 = vld [vmem:[#allocation25 + $0x248] sm:$0xff]
    %v3882 = vld [vmem:[#allocation25 + $0x250] sm:$0xff]
    %v3883 = vld [vmem:[#allocation25 + $0x258] sm:$0xff]
    %v3884 = vld [vmem:[#allocation25 + $0x260] sm:$0xff]
    %v3885 = vld [vmem:[#allocation25 + $0x268] sm:$0xff]
    %v3886 = vld [vmem:[#allocation25 + $0x270] sm:$0xff]
    %v3887 = vld [vmem:[#allocation25 + $0x278] sm:$0xff]
    %3888 = vmatprep.subr.mxu0 %v3809
    %3889 = vmatpush1.msra.mxu0 %v3808
    %3890 = vmatprep.subr.mxu0 %v3814
    %3891 = vmatpush1.msra.mxu0 %v3813
    %3892 = vmatprep.subr.mxu0 %v3819
    %3893 = vmatpush1.msra.mxu0 %v3818
    %3894 = vmatprep.subr.mxu0 %v3824
    %3895 = vmatpush1.msra.mxu0 %v3823
    %3896 = vmatprep.subr.mxu0 %v3829
    %3897 = vmatpush1.msra.mxu0 %v3828
    %3898 = vmatprep.subr.mxu0 %v3834
    %3899 = vmatpush1.msra.mxu0 %v3833
    %3900 = vmatprep.subr.mxu0 %v3839
    %3901 = vmatpush1.msra.mxu0 %v3838
    %3902 = vmatprep.subr.mxu0 %v3844
    %3903 = vmatpush1.msra.mxu0 %v3843
    %3904 = vmatprep.subr.mxu0 %v3849
    %3905 = vmatpush1.msra.mxu0 %v3848
    %3906 = vmatprep.subr.mxu0 %v3854
    %3907 = vmatpush1.msra.mxu0 %v3853
    %3908 = vmatprep.subr.mxu0 %v3859
    %3909 = vmatpush1.msra.mxu0 %v3858
    %3910 = vmatprep.subr.mxu0 %v3864
    %3911 = vmatpush1.msra.mxu0 %v3863
    %3912 = vmatprep.subr.mxu0 %v3869
    %3913 = vmatpush1.msra.mxu0 %v3868
    %3914 = vmatprep.subr.mxu0 %v3874
    %3915 = vmatpush1.msra.mxu0 %v3873
    %3916 = vmatprep.subr.mxu0 %v3879
    %3917 = vmatpush1.msra.mxu0 %v3878
    %3918 = vmatprep.subr.mxu0 %v3884
    %3919 = vmatpush1.msra.mxu0 %v3883
    %3920 = vmatprep.subr.mxu0 0.0
    %3921 = vmatpush1.msra.mxu0 0.0
    %3922 = vmatprep.subr.mxu0 0.0
    %3923 = vmatpush1.msra.mxu0 0.0
    %3924 = vmatprep.subr.mxu0 0.0
    %3925 = vmatpush1.msra.mxu0 0.0
    %3926 = vmatprep.subr.mxu0 0.0
    %3927 = vmatpush1.msra.mxu0 0.0
    %3928 = vmatprep.subr.mxu0 0.0
    %3929 = vmatpush1.msra.mxu0 0.0
    %3930 = vmatprep.subr.mxu0 0.0
    %3931 = vmatpush1.msra.mxu0 0.0
    %3932 = vmatprep.subr.mxu0 0.0
    %3933 = vmatpush1.msra.mxu0 0.0
    %3934 = vmatprep.subr.mxu0 0.0
    %3935 = vmatpush1.msra.mxu0 0.0
    %3936 = vmatprep.subr.mxu0 0.0
    %3937 = vmatpush1.msra.mxu0 0.0
    %3938 = vmatprep.subr.mxu0 0.0
    %3939 = vmatpush1.msra.mxu0 0.0
    %3940 = vmatprep.subr.mxu0 0.0
    %3941 = vmatpush1.msra.mxu0 0.0
    %3942 = vmatprep.subr.mxu0 0.0
    %3943 = vmatpush1.msra.mxu0 0.0
    %3944 = vmatprep.subr.mxu0 0.0
    %3945 = vmatpush1.msra.mxu0 0.0
    %3946 = vmatprep.subr.mxu0 0.0
    %3947 = vmatpush1.msra.mxu0 0.0
    %3948 = vmatprep.subr.mxu0 0.0
    %3949 = vmatpush1.msra.mxu0 0.0
    %3950 = vmatprep.subr.mxu0 0.0
    %3951 = vmatpush1.msra.mxu0 0.0
    %3952 = vmatprep.mubr.f32.mxu0 0.0
    %3953 = vmatmul.mubr.f32.gmra.mrb[0].mxu0 %v3781
    %v3954 = vpop.f32.mrb[0].mxu0
    %v3955 = vadd.f32 0.0, %v3954
    %v3956 = vpop.f32.mrb[0].mxu0
    %v3957 = vadd.f32 0.0, %v3956
    %3958 = vdwg.mxu0
    %3959 = vmatprep.subr.mxu0 %v3811
    %3960 = vmatpush1.msra.mxu0 %v3810
    %3961 = vmatprep.subr.mxu0 %v3816
    %3962 = vmatpush1.msra.mxu0 %v3815
    %3963 = vmatprep.subr.mxu0 %v3821
    %3964 = vmatpush1.msra.mxu0 %v3820
    %3965 = vmatprep.subr.mxu0 %v3826
    %3966 = vmatpush1.msra.mxu0 %v3825
    %3967 = vmatprep.subr.mxu0 %v3831
    %3968 = vmatpush1.msra.mxu0 %v3830
    %3969 = vmatprep.subr.mxu0 %v3836
    %3970 = vmatpush1.msra.mxu0 %v3835
    %3971 = vmatprep.subr.mxu0 %v3841
    %3972 = vmatpush1.msra.mxu0 %v3840
    %3973 = vmatprep.subr.mxu0 %v3846
    %3974 = vmatpush1.msra.mxu0 %v3845
    %3975 = vmatprep.subr.mxu0 %v3851
    %3976 = vmatpush1.msra.mxu0 %v3850
    %3977 = vmatprep.subr.mxu0 %v3856
    %3978 = vmatpush1.msra.mxu0 %v3855
    %3979 = vmatprep.subr.mxu0 %v3861
    %3980 = vmatpush1.msra.mxu0 %v3860
    %3981 = vmatprep.subr.mxu0 %v3866
    %3982 = vmatpush1.msra.mxu0 %v3865
    %3983 = vmatprep.subr.mxu0 %v3871
    %3984 = vmatpush1.msra.mxu0 %v3870
    %3985 = vmatprep.subr.mxu0 %v3876
    %3986 = vmatpush1.msra.mxu0 %v3875
    %3987 = vmatprep.subr.mxu0 %v3881
    %3988 = vmatpush1.msra.mxu0 %v3880
    %3989 = vmatprep.subr.mxu0 %v3886
    %3990 = vmatpush1.msra.mxu0 %v3885
    %3991 = vmatprep.subr.mxu0 0.0
    %3992 = vmatpush1.msra.mxu0 0.0
    %3993 = vmatprep.subr.mxu0 0.0
    %3994 = vmatpush1.msra.mxu0 0.0
    %3995 = vmatprep.subr.mxu0 0.0
    %3996 = vmatpush1.msra.mxu0 0.0
    %3997 = vmatprep.subr.mxu0 0.0
    %3998 = vmatpush1.msra.mxu0 0.0
    %3999 = vmatprep.subr.mxu0 0.0
    %4000 = vmatpush1.msra.mxu0 0.0
    %4001 = vmatprep.subr.mxu0 0.0
    %4002 = vmatpush1.msra.mxu0 0.0
    %4003 = vmatprep.subr.mxu0 0.0
    %4004 = vmatpush1.msra.mxu0 0.0
    %4005 = vmatprep.subr.mxu0 0.0
    %4006 = vmatpush1.msra.mxu0 0.0
    %4007 = vmatprep.subr.mxu0 0.0
    %4008 = vmatpush1.msra.mxu0 0.0
    %4009 = vmatprep.subr.mxu0 0.0
    %4010 = vmatpush1.msra.mxu0 0.0
    %4011 = vmatprep.subr.mxu0 0.0
    %4012 = vmatpush1.msra.mxu0 0.0
    %4013 = vmatprep.subr.mxu0 0.0
    %4014 = vmatpush1.msra.mxu0 0.0
    %4015 = vmatprep.subr.mxu0 0.0
    %4016 = vmatpush1.msra.mxu0 0.0
    %4017 = vmatprep.subr.mxu0 0.0
    %4018 = vmatpush1.msra.mxu0 0.0
    %4019 = vmatprep.subr.mxu0 0.0
    %4020 = vmatpush1.msra.mxu0 0.0
    %4021 = vmatprep.subr.mxu0 0.0
    %4022 = vmatpush1.msra.mxu0 0.0
    %4023 = vmatprep.mubr.f32.mxu0 0.0
    %4024 = vmatmul.mubr.f32.gmra.mrb[0].mxu0 %v3781
    %v4025 = vpop.f32.mrb[0].mxu0
    %v4026 = vadd.f32 0.0, %v4025
    %v4027 = vpop.f32.mrb[0].mxu0
    %v4028 = vadd.f32 0.0, %v4027
    %4029 = vdwg.mxu0
    %4030 = vmatprep.subr.mxu0 0.0
    %4031 = vmatpush1.msra.mxu0 %v3812
    %4032 = vmatprep.subr.mxu0 0.0
    %4033 = vmatpush1.msra.mxu0 %v3817
    %4034 = vmatprep.subr.mxu0 0.0
    %4035 = vmatpush1.msra.mxu0 %v3822
    %4036 = vmatprep.subr.mxu0 0.0
    %4037 = vmatpush1.msra.mxu0 %v3827
    %4038 = vmatprep.subr.mxu0 0.0
    %4039 = vmatpush1.msra.mxu0 %v3832
    %4040 = vmatprep.subr.mxu0 0.0
    %4041 = vmatpush1.msra.mxu0 %v3837
    %4042 = vmatprep.subr.mxu0 0.0
    %4043 = vmatpush1.msra.mxu0 %v3842
    %4044 = vmatprep.subr.mxu0 0.0
    %4045 = vmatpush1.msra.mxu0 %v3847
    %4046 = vmatprep.subr.mxu0 0.0
    %4047 = vmatpush1.msra.mxu0 %v3852
    %4048 = vmatprep.subr.mxu0 0.0
    %4049 = vmatpush1.msra.mxu0 %v3857
    %4050 = vmatprep.subr.mxu0 0.0
    %4051 = vmatpush1.msra.mxu0 %v3862
    %4052 = vmatprep.subr.mxu0 0.0
    %4053 = vmatpush1.msra.mxu0 %v3867
    %4054 = vmatprep.subr.mxu0 0.0
    %4055 = vmatpush1.msra.mxu0 %v3872
    %4056 = vmatprep.subr.mxu0 0.0
    %4057 = vmatpush1.msra.mxu0 %v3877
    %4058 = vmatprep.subr.mxu0 0.0
    %4059 = vmatpush1.msra.mxu0 %v3882
    %4060 = vmatprep.subr.mxu0 0.0
    %4061 = vmatpush1.msra.mxu0 %v3887
    %4062 = vmatprep.subr.mxu0 0.0
    %4063 = vmatpush1.msra.mxu0 0.0
    %4064 = vmatprep.subr.mxu0 0.0
    %4065 = vmatpush1.msra.mxu0 0.0
    %4066 = vmatprep.subr.mxu0 0.0
    %4067 = vmatpush1.msra.mxu0 0.0
    %4068 = vmatprep.subr.mxu0 0.0
    %4069 = vmatpush1.msra.mxu0 0.0
    %4070 = vmatprep.subr.mxu0 0.0
    %4071 = vmatpush1.msra.mxu0 0.0
    %4072 = vmatprep.subr.mxu0 0.0
    %4073 = vmatpush1.msra.mxu0 0.0
    %4074 = vmatprep.subr.mxu0 0.0
    %4075 = vmatpush1.msra.mxu0 0.0
    %4076 = vmatprep.subr.mxu0 0.0
    %4077 = vmatpush1.msra.mxu0 0.0
    %4078 = vmatprep.subr.mxu0 0.0
    %4079 = vmatpush1.msra.mxu0 0.0
    %4080 = vmatprep.subr.mxu0 0.0
    %4081 = vmatpush1.msra.mxu0 0.0
    %4082 = vmatprep.subr.mxu0 0.0
    %4083 = vmatpush1.msra.mxu0 0.0
    %4084 = vmatprep.subr.mxu0 0.0
    %4085 = vmatpush1.msra.mxu0 0.0
    %4086 = vmatprep.subr.mxu0 0.0
    %4087 = vmatpush1.msra.mxu0 0.0
    %4088 = vmatprep.subr.mxu0 0.0
    %4089 = vmatpush1.msra.mxu0 0.0
    %4090 = vmatprep.subr.mxu0 0.0
    %4091 = vmatpush1.msra.mxu0 0.0
    %4092 = vmatprep.subr.mxu0 0.0
    %4093 = vmatpush1.msra.mxu0 0.0
    %4094 = vmatprep.mubr.f32.mxu0 0.0
    %4095 = vmatmul.mubr.f32.gmra.mrb[0].mxu0 %v3781
    %v4096 = vpop.f32.mrb[0].mxu0
    %v4097 = vadd.f32 0.0, %v4096
    %v4098 = vpop.f32.mrb[0].mxu0
    %4099 = vdwg.mxu0
    %v4105 = vcombine.low %v3955, %v3957
    %v4106 = vcombine.low %v4026, %v4028
    %v4108 = vunpack.c.l.s4 1966171168
    %v4109 = vunpack.c.0.s8 %v4108
    %v4110 = vlaneseq
    %v4111 = vshrl.u32 %v4110, 7
    %v4112 = vsub.s32 %v4109, %v4111
    %v4113 = vrot.slane %v4105, %v4112
    %v4115 = vunpack.c.l.s4 1966171168
    %v4116 = vunpack.c.0.s8 %v4115
    %v4117 = vlaneseq
    %v4118 = vshrl.u32 %v4117, 7
    %v4119 = vsub.s32 %v4116, %v4118
    %v4120 = vrot.slane %v4106, %v4119
    %v4122 = vunpack.c.l.s4 1966171168
    %v4123 = vunpack.c.0.s8 %v4122
    %v4124 = vlaneseq
    %v4125 = vshrl.u32 %v4124, 7
    %v4126 = vsub.s32 %v4123, %v4125
    %v4127 = vrot.slane %v4097, %v4126
    %v4128 = vcombine.low %v4113, %v4120
    %v4130 = vunpack.c.l.s4 1966171168
    %v4131 = vunpack.c.0.s8 %v4130
    %v4132 = vlaneseq
    %v4133 = vshrl.u32 %v4132, 7
    %v4134 = vsub.s32 %v4131, %v4133
    %v4135 = vrot.slane %v4128, %v4134
    %v4137 = vunpack.c.l.s4 1966171168
    %v4138 = vunpack.c.0.s8 %v4137
    %v4139 = vlaneseq
    %v4140 = vshrl.u32 %v4139, 7
    %v4141 = vsub.s32 %v4138, %v4140
    %v4142 = vrot.slane %v4127, %v4141
    %v4143 = vcombine.low %v4135, %v4142
    %v4145 = vadd.f32 %v3807, %v4143
    %s4146 = scalar_lea.vmem [#allocation6], %s3776
    %v4147 = vld [vmem:[%s4146] sm:$0x1]
    %s4148 = scalar_lea.vmem [#allocation8], %s3784
    %v4149 = vld [vmem:[%s4148] sm:$0x1]
    %v4150 = vadd.f32 %v4147, %v4149
    %v4151 = vxor.u32 %v4145, 2147483648
    %v4152 = vmul.f32 %v4151, 1.442695
    %v4153 = vpow.pop %v4152
    %v4154 = vadd.f32 %v4153, 1.0
    %v4155 = vrcp.pop %v4154
    %v4156 = vmul.f32 1.0, %v4155
    %v4158 = vrot.slane %v4145, 1
    %v4160 = vxor.u32 %v4158, 2147483648
    %v4161 = vmul.f32 %v4160, 1.442695
    %v4162 = vpow.pop %v4161
    %v4163 = vadd.f32 %v4162, 1.0
    %v4164 = vrcp.pop %v4163
    %v4165 = vmul.f32 1.0, %v4164
    %v4166 = vrot.slane %v4145, 2
    %v4168 = vxor.u32 %v4166, 2147483648
    %v4169 = vmul.f32 %v4168, 1.442695
    %v4170 = vpow.pop %v4169
    %v4171 = vadd.f32 %v4170, 1.0
    %v4172 = vrcp.pop %v4171
    %v4173 = vmul.f32 1.0, %v4172
    %v4174 = vrot.slane %v4145, 3
    %v4176 = vtanh.pop %v4174
    %v4177 = vrot.slane %v4145, 4
    %v4179 = vxor.u32 %v4177, 2147483648
    %v4180 = vmul.f32 %v4179, 1.442695
    %v4181 = vpow.pop %v4180
    %v4182 = vadd.f32 %v4181, 1.0
    %v4183 = vrcp.pop %v4182
    %v4184 = vmul.f32 1.0, %v4183
    %v4185 = vmul.f32 %v4156, %v4176
    %v4186 = vmul.f32 %v4173, %v3783
    %v4187 = vadd.f32 %v4185, %v4186
    %v4188 = vtanh.pop %v4187
    %v4189 = vmul.f32 %v4165, %v4188
    %v4190 = vmul.f32 %v4184, %v4189
    %v4191 = vsub.f32 1.0, %v4184
    %v4192 = vmul.f32 %v4191, %v4150
    %v4193 = vadd.f32 %v4190, %v4192
    %v4194 = vld [vmem:[#allocation26] sm:$0xff]
    %v4195 = vld [vmem:[#allocation26 + $0x8] sm:$0xff]
    %v4196 = vld [vmem:[#allocation26 + $0x10] sm:$0xff]
    %v4197 = vld [vmem:[#allocation26 + $0x18] sm:$0xff]
    %v4198 = vld [vmem:[#allocation26 + $0x20] sm:$0xff]
    %v4199 = vld [vmem:[#allocation26 + $0x28] sm:$0xff]
    %v4200 = vld [vmem:[#allocation26 + $0x30] sm:$0xff]
    %v4201 = vld [vmem:[#allocation26 + $0x38] sm:$0xff]
    %v4202 = vld [vmem:[#allocation26 + $0x40] sm:$0xff]
    %v4203 = vld [vmem:[#allocation26 + $0x48] sm:$0xff]
    %v4204 = vld [vmem:[#allocation26 + $0x50] sm:$0xff]
    %v4205 = vld [vmem:[#allocation26 + $0x58] sm:$0xff]
    %v4206 = vld [vmem:[#allocation26 + $0x60] sm:$0xff]
    %v4207 = vld [vmem:[#allocation26 + $0x68] sm:$0xff]
    %v4208 = vld [vmem:[#allocation26 + $0x70] sm:$0xff]
    %v4209 = vld [vmem:[#allocation26 + $0x78] sm:$0xff]
    %v4210 = vld [vmem:[%s12] sm:$0x1]
    %4211 = vmatprep.subr.mxu0 0.0
    %4212 = vmatpush1.msra.mxu0 %v4194
    %4213 = vmatprep.subr.mxu0 0.0
    %4214 = vmatpush1.msra.mxu0 %v4195
    %4215 = vmatprep.subr.mxu0 0.0
    %4216 = vmatpush1.msra.mxu0 %v4196
    %4217 = vmatprep.subr.mxu0 0.0
    %4218 = vmatpush1.msra.mxu0 %v4197
    %4219 = vmatprep.subr.mxu0 0.0
    %4220 = vmatpush1.msra.mxu0 %v4198
    %4221 = vmatprep.subr.mxu0 0.0
    %4222 = vmatpush1.msra.mxu0 %v4199
    %4223 = vmatprep.subr.mxu0 0.0
    %4224 = vmatpush1.msra.mxu0 %v4200
    %4225 = vmatprep.subr.mxu0 0.0
    %4226 = vmatpush1.msra.mxu0 %v4201
    %4227 = vmatprep.subr.mxu0 0.0
    %4228 = vmatpush1.msra.mxu0 %v4202
    %4229 = vmatprep.subr.mxu0 0.0
    %4230 = vmatpush1.msra.mxu0 %v4203
    %4231 = vmatprep.subr.mxu0 0.0
    %4232 = vmatpush1.msra.mxu0 %v4204
    %4233 = vmatprep.subr.mxu0 0.0
    %4234 = vmatpush1.msra.mxu0 %v4205
    %4235 = vmatprep.subr.mxu0 0.0
    %4236 = vmatpush1.msra.mxu0 %v4206
    %4237 = vmatprep.subr.mxu0 0.0
    %4238 = vmatpush1.msra.mxu0 %v4207
    %4239 = vmatprep.subr.mxu0 0.0
    %4240 = vmatpush1.msra.mxu0 %v4208
    %4241 = vmatprep.subr.mxu0 0.0
    %4242 = vmatpush1.msra.mxu0 %v4209
    %4243 = vmatprep.subr.mxu0 0.0
    %4244 = vmatpush1.msra.mxu0 0.0
    %4245 = vmatprep.subr.mxu0 0.0
    %4246 = vmatpush1.msra.mxu0 0.0
    %4247 = vmatprep.subr.mxu0 0.0
    %4248 = vmatpush1.msra.mxu0 0.0
    %4249 = vmatprep.subr.mxu0 0.0
    %4250 = vmatpush1.msra.mxu0 0.0
    %4251 = vmatprep.subr.mxu0 0.0
    %4252 = vmatpush1.msra.mxu0 0.0
    %4253 = vmatprep.subr.mxu0 0.0
    %4254 = vmatpush1.msra.mxu0 0.0
    %4255 = vmatprep.subr.mxu0 0.0
    %4256 = vmatpush1.msra.mxu0 0.0
    %4257 = vmatprep.subr.mxu0 0.0
    %4258 = vmatpush1.msra.mxu0 0.0
    %4259 = vmatprep.subr.mxu0 0.0
    %4260 = vmatpush1.msra.mxu0 0.0
    %4261 = vmatprep.subr.mxu0 0.0
    %4262 = vmatpush1.msra.mxu0 0.0
    %4263 = vmatprep.subr.mxu0 0.0
    %4264 = vmatpush1.msra.mxu0 0.0
    %4265 = vmatprep.subr.mxu0 0.0
    %4266 = vmatpush1.msra.mxu0 0.0
    %4267 = vmatprep.subr.mxu0 0.0
    %4268 = vmatpush1.msra.mxu0 0.0
    %4269 = vmatprep.subr.mxu0 0.0
    %4270 = vmatpush1.msra.mxu0 0.0
    %4271 = vmatprep.subr.mxu0 0.0
    %4272 = vmatpush1.msra.mxu0 0.0
    %4273 = vmatprep.subr.mxu0 0.0
    %4274 = vmatpush1.msra.mxu0 0.0
    %4275 = vmatprep.mubr.f32.mxu0 0.0
    %4276 = vmatmul.mubr.f32.gmra.mrb[0].mxu0 %v4193
    %v4277 = vpop.f32.mrb[0].mxu0
    %v4278 = vadd.f32 %v4210, %v4277
    %v4279 = vpop.f32.mrb[0].mxu0
    %4280 = vdwg.mxu0
    %s4281 = scalar_lea.vmem [#allocation28], %s3776
    %4282 = vst [vmem:[%s4281] sm:$0x1] %v4278
    %v4283 = vadd.f32 %v4278, %v1049
    %v4284 = vsel %vm1558, %v4283, -inf
    %4285 = vmax.xlane.f32.xlu0 %v4284
    %v4286 = vpop.xlane.xlu0 %4285
    %vm4287 = vcmp.ge.f32.partialorder %v4283, %v4286
    %v4288 = vsel %vm4287, %v1045, 128
    %v4289 = vsel %vm1558, %v4288, 2147483647
    %v4290 = vand.u32 %v4289, 65535
    %v4291 = vshra.s32 %v4289, 16
    %v4292 = vcvt.s32.f32 %v4290
    %v4293 = vcvt.s32.f32 %v4291
    %4294 = vmin.xlane.f32.xlu0 %v4293
    %v4295 = vpop.xlane.xlu0 %4294
    %vm4296 = vcmp.eq.f32.partialorder %v4293, %v4295
    %v4297 = vsel %vm4296, %v4292, inf
    %4298 = vmin.xlane.f32.xlu0 %v4297
    %v4299 = vpop.xlane.xlu0 %4298
    %v4300 = vcvt.f32.s32 %v4299
    %v4301 = vcvt.f32.s32 %v4295
    %v4302 = vshll.u32 %v4301, 16
    %v4303 = vadd.s32 %v4302, %v4300
    %v4304 = vrot.slane %v4303, 4
    %vm4305 = vcmp.lt.s32.totalorder %v4303, %v4304
    %v4306 = vsel %vm4305, %v4303, %v4304
    %v4307 = vrot.slane %v4306, 2
    %vm4308 = vcmp.lt.s32.totalorder %v4306, %v4307
    %v4309 = vsel %vm4308, %v4306, %v4307
    %v4310 = vrot.slane %v4309, 1
    %vm4311 = vcmp.lt.s32.totalorder %v4309, %v4310
    %v4312 = vsel %vm4311, %v4309, %v4310
    %s4313 = vtos %v4312
    %s4314 = scalar_lea.smem [#allocation29], %s3776
    %4315 = sst [smem:[%s4314]] %s4313
    %s4316 = sadd.s32 %s4313, 1
    %s4317 = scalar_lea.smem [#allocation4], 5
    %4318 = sst [smem:[%s4317]] %s4316
    %4319 = vst [vmem:[#allocation2 + $0x5] sm:$0x1] %v4193
    %4320 = vst [vmem:[#allocation3 + $0x5] sm:$0x1] %v4187
    %s4321 = sld [smem:[#allocation9 + $0x6]]
    %s4322 = sld [smem:[#allocation15 + $0x6]]
    %p4323 = scmp.lt.s32.totalorder %s4322, 0
    %s4324 = scalar_select %p4323, 7, %s4322
    %s4325 = scalar_lea.vmem [#allocation2], %s4324
    %v4326 = vld [vmem:[%s4325] sm:$0x1]
    %s4327 = scalar_lea.vmem [#allocation3], %s4324
    %v4328 = vld [vmem:[%s4327] sm:$0x1]
    %s4329 = sld [smem:[#allocation4 + %s4324]]
    %s4330 = sshra.s32 %s4321, 3
    %s4331 = sand.u32 %s4321, 7
    %s4332 = sshra.s32 %s4321, 3
    %s4333 = sand.u32 %s4321, 7
    %s4334 = smul.u32 %s4330, 5
    %s4335 = smul.u32 %s4334, 8
    %s4336 = sadd.s32 %s4335, %s4333
    %s4337 = scalar_lea.vmem [#allocation5], %s4336
    %v4338 = vld [vmem:[%s4337] ss:$8 sm:$0xf]
    %v4339 = vld [vmem:[%s4337] ss:$8 sm:$0x10]
    %v4340 = vor.u32 %v4338, %v4339
    %s4341 = sshra.s32 %s4329, 3
    %s4342 = sand.u32 %s4329, 7
    %s4343 = sshra.s32 %s4329, 3
    %s4344 = sand.u32 %s4329, 7
    %s4345 = smul.u32 %s4341, 5
    %s4346 = smul.u32 %s4345, 8
    %s4347 = sadd.s32 %s4346, %s4344
    %s4348 = scalar_lea.vmem [#allocation7], %s4347
    %v4349 = vld [vmem:[%s4348] ss:$8 sm:$0xf]
    %v4350 = vld [vmem:[%s4348] ss:$8 sm:$0x10]
    %v4351 = vor.u32 %v4349, %v4350
    %v4352 = vadd.f32 %v4340, %v4351
    %v4353 = vld [vmem:[#allocation25] sm:$0xff]
    %v4354 = vld [vmem:[#allocation25 + $0x8] sm:$0xff]
    %v4355 = vld [vmem:[#allocation25 + $0x10] sm:$0xff]
    %v4356 = vld [vmem:[#allocation25 + $0x18] sm:$0xff]
    %v4357 = vld [vmem:[#allocation25 + $0x20] sm:$0xff]
    %v4358 = vld [vmem:[#allocation25 + $0x28] sm:$0xff]
    %v4359 = vld [vmem:[#allocation25 + $0x30] sm:$0xff]
    %v4360 = vld [vmem:[#allocation25 + $0x38] sm:$0xff]
    %v4361 = vld [vmem:[#allocation25 + $0x40] sm:$0xff]
    %v4362 = vld [vmem:[#allocation25 + $0x48] sm:$0xff]
    %v4363 = vld [vmem:[#allocation25 + $0x50] sm:$0xff]
    %v4364 = vld [vmem:[#allocation25 + $0x58] sm:$0xff]
    %v4365 = vld [vmem:[#allocation25 + $0x60] sm:$0xff]
    %v4366 = vld [vmem:[#allocation25 + $0x68] sm:$0xff]
    %v4367 = vld [vmem:[#allocation25 + $0x70] sm:$0xff]
    %v4368 = vld [vmem:[#allocation25 + $0x78] sm:$0xff]
    %v4369 = vld [vmem:[#allocation25 + $0x80] sm:$0xff]
    %v4370 = vld [vmem:[#allocation25 + $0x88] sm:$0xff]
    %v4371 = vld [vmem:[#allocation25 + $0x90] sm:$0xff]
    %v4372 = vld [vmem:[#allocation25 + $0x98] sm:$0xff]
    %v4373 = vld [vmem:[#allocation25 + $0xa0] sm:$0xff]
    %v4374 = vld [vmem:[#allocation25 + $0xa8] sm:$0xff]
    %v4375 = vld [vmem:[#allocation25 + $0xb0] sm:$0xff]
    %v4376 = vld [vmem:[#allocation25 + $0xb8] sm:$0xff]
    %v4377 = vld [vmem:[#allocation25 + $0xc0] sm:$0xff]
    %v4378 = vld [vmem:[#allocation25 + $0xc8] sm:$0xff]
    %v4379 = vld [vmem:[#allocation25 + $0xd0] sm:$0xff]
    %v4380 = vld [vmem:[#allocation25 + $0xd8] sm:$0xff]
    %v4381 = vld [vmem:[#allocation25 + $0xe0] sm:$0xff]
    %v4382 = vld [vmem:[#allocation25 + $0xe8] sm:$0xff]
    %v4383 = vld [vmem:[#allocation25 + $0xf0] sm:$0xff]
    %v4384 = vld [vmem:[#allocation25 + $0xf8] sm:$0xff]
    %v4385 = vld [vmem:[#allocation25 + $0x100] sm:$0xff]
    %v4386 = vld [vmem:[#allocation25 + $0x108] sm:$0xff]
    %v4387 = vld [vmem:[#allocation25 + $0x110] sm:$0xff]
    %v4388 = vld [vmem:[#allocation25 + $0x118] sm:$0xff]
    %v4389 = vld [vmem:[#allocation25 + $0x120] sm:$0xff]
    %v4390 = vld [vmem:[#allocation25 + $0x128] sm:$0xff]
    %v4391 = vld [vmem:[#allocation25 + $0x130] sm:$0xff]
    %v4392 = vld [vmem:[#allocation25 + $0x138] sm:$0xff]
    %v4393 = vld [vmem:[#allocation25 + $0x140] sm:$0xff]
    %v4394 = vld [vmem:[#allocation25 + $0x148] sm:$0xff]
    %v4395 = vld [vmem:[#allocation25 + $0x150] sm:$0xff]
    %v4396 = vld [vmem:[#allocation25 + $0x158] sm:$0xff]
    %v4397 = vld [vmem:[#allocation25 + $0x160] sm:$0xff]
    %v4398 = vld [vmem:[#allocation25 + $0x168] sm:$0xff]
    %v4399 = vld [vmem:[#allocation25 + $0x170] sm:$0xff]
    %v4400 = vld [vmem:[#allocation25 + $0x178] sm:$0xff]
    %v4401 = vld [vmem:[#allocation25 + $0x180] sm:$0xff]
    %v4402 = vld [vmem:[#allocation25 + $0x188] sm:$0xff]
    %v4403 = vld [vmem:[#allocation25 + $0x190] sm:$0xff]
    %v4404 = vld [vmem:[#allocation25 + $0x198] sm:$0xff]
    %v4405 = vld [vmem:[#allocation25 + $0x1a0] sm:$0xff]
    %v4406 = vld [vmem:[#allocation25 + $0x1a8] sm:$0xff]
    %v4407 = vld [vmem:[#allocation25 + $0x1b0] sm:$0xff]
    %v4408 = vld [vmem:[#allocation25 + $0x1b8] sm:$0xff]
    %v4409 = vld [vmem:[#allocation25 + $0x1c0] sm:$0xff]
    %v4410 = vld [vmem:[#allocation25 + $0x1c8] sm:$0xff]
    %v4411 = vld [vmem:[#allocation25 + $0x1d0] sm:$0xff]
    %v4412 = vld [vmem:[#allocation25 + $0x1d8] sm:$0xff]
    %v4413 = vld [vmem:[#allocation25 + $0x1e0] sm:$0xff]
    %v4414 = vld [vmem:[#allocation25 + $0x1e8] sm:$0xff]
    %v4415 = vld [vmem:[#allocation25 + $0x1f0] sm:$0xff]
    %v4416 = vld [vmem:[#allocation25 + $0x1f8] sm:$0xff]
    %v4417 = vld [vmem:[#allocation25 + $0x200] sm:$0xff]
    %v4418 = vld [vmem:[#allocation25 + $0x208] sm:$0xff]
    %v4419 = vld [vmem:[#allocation25 + $0x210] sm:$0xff]
    %v4420 = vld [vmem:[#allocation25 + $0x218] sm:$0xff]
    %v4421 = vld [vmem:[#allocation25 + $0x220] sm:$0xff]
    %v4422 = vld [vmem:[#allocation25 + $0x228] sm:$0xff]
    %v4423 = vld [vmem:[#allocation25 + $0x230] sm:$0xff]
    %v4424 = vld [vmem:[#allocation25 + $0x238] sm:$0xff]
    %v4425 = vld [vmem:[#allocation25 + $0x240] sm:$0xff]
    %v4426 = vld [vmem:[#allocation25 + $0x248] sm:$0xff]
    %v4427 = vld [vmem:[#allocation25 + $0x250] sm:$0xff]
    %v4428 = vld [vmem:[#allocation25 + $0x258] sm:$0xff]
    %v4429 = vld [vmem:[#allocation25 + $0x260] sm:$0xff]
    %v4430 = vld [vmem:[#allocation25 + $0x268] sm:$0xff]
    %v4431 = vld [vmem:[#allocation25 + $0x270] sm:$0xff]
    %v4432 = vld [vmem:[#allocation25 + $0x278] sm:$0xff]
    %4433 = vmatprep.subr.mxu0 %v4354
    %4434 = vmatpush1.msra.mxu0 %v4353
    %4435 = vmatprep.subr.mxu0 %v4359
    %4436 = vmatpush1.msra.mxu0 %v4358
    %4437 = vmatprep.subr.mxu0 %v4364
    %4438 = vmatpush1.msra.mxu0 %v4363
    %4439 = vmatprep.subr.mxu0 %v4369
    %4440 = vmatpush1.msra.mxu0 %v4368
    %4441 = vmatprep.subr.mxu0 %v4374
    %4442 = vmatpush1.msra.mxu0 %v4373
    %4443 = vmatprep.subr.mxu0 %v4379
    %4444 = vmatpush1.msra.mxu0 %v4378
    %4445 = vmatprep.subr.mxu0 %v4384
    %4446 = vmatpush1.msra.mxu0 %v4383
    %4447 = vmatprep.subr.mxu0 %v4389
    %4448 = vmatpush1.msra.mxu0 %v4388
    %4449 = vmatprep.subr.mxu0 %v4394
    %4450 = vmatpush1.msra.mxu0 %v4393
    %4451 = vmatprep.subr.mxu0 %v4399
    %4452 = vmatpush1.msra.mxu0 %v4398
    %4453 = vmatprep.subr.mxu0 %v4404
    %4454 = vmatpush1.msra.mxu0 %v4403
    %4455 = vmatprep.subr.mxu0 %v4409
    %4456 = vmatpush1.msra.mxu0 %v4408
    %4457 = vmatprep.subr.mxu0 %v4414
    %4458 = vmatpush1.msra.mxu0 %v4413
    %4459 = vmatprep.subr.mxu0 %v4419
    %4460 = vmatpush1.msra.mxu0 %v4418
    %4461 = vmatprep.subr.mxu0 %v4424
    %4462 = vmatpush1.msra.mxu0 %v4423
    %4463 = vmatprep.subr.mxu0 %v4429
    %4464 = vmatpush1.msra.mxu0 %v4428
    %4465 = vmatprep.subr.mxu0 0.0
    %4466 = vmatpush1.msra.mxu0 0.0
    %4467 = vmatprep.subr.mxu0 0.0
    %4468 = vmatpush1.msra.mxu0 0.0
    %4469 = vmatprep.subr.mxu0 0.0
    %4470 = vmatpush1.msra.mxu0 0.0
    %4471 = vmatprep.subr.mxu0 0.0
    %4472 = vmatpush1.msra.mxu0 0.0
    %4473 = vmatprep.subr.mxu0 0.0
    %4474 = vmatpush1.msra.mxu0 0.0
    %4475 = vmatprep.subr.mxu0 0.0
    %4476 = vmatpush1.msra.mxu0 0.0
    %4477 = vmatprep.subr.mxu0 0.0
    %4478 = vmatpush1.msra.mxu0 0.0
    %4479 = vmatprep.subr.mxu0 0.0
    %4480 = vmatpush1.msra.mxu0 0.0
    %4481 = vmatprep.subr.mxu0 0.0
    %4482 = vmatpush1.msra.mxu0 0.0
    %4483 = vmatprep.subr.mxu0 0.0
    %4484 = vmatpush1.msra.mxu0 0.0
    %4485 = vmatprep.subr.mxu0 0.0
    %4486 = vmatpush1.msra.mxu0 0.0
    %4487 = vmatprep.subr.mxu0 0.0
    %4488 = vmatpush1.msra.mxu0 0.0
    %4489 = vmatprep.subr.mxu0 0.0
    %4490 = vmatpush1.msra.mxu0 0.0
    %4491 = vmatprep.subr.mxu0 0.0
    %4492 = vmatpush1.msra.mxu0 0.0
    %4493 = vmatprep.subr.mxu0 0.0
    %4494 = vmatpush1.msra.mxu0 0.0
    %4495 = vmatprep.subr.mxu0 0.0
    %4496 = vmatpush1.msra.mxu0 0.0
    %4497 = vmatprep.mubr.f32.mxu0 0.0
    %4498 = vmatmul.mubr.f32.gmra.mrb[0].mxu0 %v4326
    %v4499 = vpop.f32.mrb[0].mxu0
    %v4500 = vadd.f32 0.0, %v4499
    %v4501 = vpop.f32.mrb[0].mxu0
    %v4502 = vadd.f32 0.0, %v4501
    %4503 = vdwg.mxu0
    %4504 = vmatprep.subr.mxu0 %v4356
    %4505 = vmatpush1.msra.mxu0 %v4355
    %4506 = vmatprep.subr.mxu0 %v4361
    %4507 = vmatpush1.msra.mxu0 %v4360
    %4508 = vmatprep.subr.mxu0 %v4366
    %4509 = vmatpush1.msra.mxu0 %v4365
    %4510 = vmatprep.subr.mxu0 %v4371
    %4511 = vmatpush1.msra.mxu0 %v4370
    %4512 = vmatprep.subr.mxu0 %v4376
    %4513 = vmatpush1.msra.mxu0 %v4375
    %4514 = vmatprep.subr.mxu0 %v4381
    %4515 = vmatpush1.msra.mxu0 %v4380
    %4516 = vmatprep.subr.mxu0 %v4386
    %4517 = vmatpush1.msra.mxu0 %v4385
    %4518 = vmatprep.subr.mxu0 %v4391
    %4519 = vmatpush1.msra.mxu0 %v4390
    %4520 = vmatprep.subr.mxu0 %v4396
    %4521 = vmatpush1.msra.mxu0 %v4395
    %4522 = vmatprep.subr.mxu0 %v4401
    %4523 = vmatpush1.msra.mxu0 %v4400
    %4524 = vmatprep.subr.mxu0 %v4406
    %4525 = vmatpush1.msra.mxu0 %v4405
    %4526 = vmatprep.subr.mxu0 %v4411
    %4527 = vmatpush1.msra.mxu0 %v4410
    %4528 = vmatprep.subr.mxu0 %v4416
    %4529 = vmatpush1.msra.mxu0 %v4415
    %4530 = vmatprep.subr.mxu0 %v4421
    %4531 = vmatpush1.msra.mxu0 %v4420
    %4532 = vmatprep.subr.mxu0 %v4426
    %4533 = vmatpush1.msra.mxu0 %v4425
    %4534 = vmatprep.subr.mxu0 %v4431
    %4535 = vmatpush1.msra.mxu0 %v4430
    %4536 = vmatprep.subr.mxu0 0.0
    %4537 = vmatpush1.msra.mxu0 0.0
    %4538 = vmatprep.subr.mxu0 0.0
    %4539 = vmatpush1.msra.mxu0 0.0
    %4540 = vmatprep.subr.mxu0 0.0
    %4541 = vmatpush1.msra.mxu0 0.0
    %4542 = vmatprep.subr.mxu0 0.0
    %4543 = vmatpush1.msra.mxu0 0.0
    %4544 = vmatprep.subr.mxu0 0.0
    %4545 = vmatpush1.msra.mxu0 0.0
    %4546 = vmatprep.subr.mxu0 0.0
    %4547 = vmatpush1.msra.mxu0 0.0
    %4548 = vmatprep.subr.mxu0 0.0
    %4549 = vmatpush1.msra.mxu0 0.0
    %4550 = vmatprep.subr.mxu0 0.0
    %4551 = vmatpush1.msra.mxu0 0.0
    %4552 = vmatprep.subr.mxu0 0.0
    %4553 = vmatpush1.msra.mxu0 0.0
    %4554 = vmatprep.subr.mxu0 0.0
    %4555 = vmatpush1.msra.mxu0 0.0
    %4556 = vmatprep.subr.mxu0 0.0
    %4557 = vmatpush1.msra.mxu0 0.0
    %4558 = vmatprep.subr.mxu0 0.0
    %4559 = vmatpush1.msra.mxu0 0.0
    %4560 = vmatprep.subr.mxu0 0.0
    %4561 = vmatpush1.msra.mxu0 0.0
    %4562 = vmatprep.subr.mxu0 0.0
    %4563 = vmatpush1.msra.mxu0 0.0
    %4564 = vmatprep.subr.mxu0 0.0
    %4565 = vmatpush1.msra.mxu0 0.0
    %4566 = vmatprep.subr.mxu0 0.0
    %4567 = vmatpush1.msra.mxu0 0.0
    %4568 = vmatprep.mubr.f32.mxu0 0.0
    %4569 = vmatmul.mubr.f32.gmra.mrb[0].mxu0 %v4326
    %v4570 = vpop.f32.mrb[0].mxu0
    %v4571 = vadd.f32 0.0, %v4570
    %v4572 = vpop.f32.mrb[0].mxu0
    %v4573 = vadd.f32 0.0, %v4572
    %4574 = vdwg.mxu0
    %4575 = vmatprep.subr.mxu0 0.0
    %4576 = vmatpush1.msra.mxu0 %v4357
    %4577 = vmatprep.subr.mxu0 0.0
    %4578 = vmatpush1.msra.mxu0 %v4362
    %4579 = vmatprep.subr.mxu0 0.0
    %4580 = vmatpush1.msra.mxu0 %v4367
    %4581 = vmatprep.subr.mxu0 0.0
    %4582 = vmatpush1.msra.mxu0 %v4372
    %4583 = vmatprep.subr.mxu0 0.0
    %4584 = vmatpush1.msra.mxu0 %v4377
    %4585 = vmatprep.subr.mxu0 0.0
    %4586 = vmatpush1.msra.mxu0 %v4382
    %4587 = vmatprep.subr.mxu0 0.0
    %4588 = vmatpush1.msra.mxu0 %v4387
    %4589 = vmatprep.subr.mxu0 0.0
    %4590 = vmatpush1.msra.mxu0 %v4392
    %4591 = vmatprep.subr.mxu0 0.0
    %4592 = vmatpush1.msra.mxu0 %v4397
    %4593 = vmatprep.subr.mxu0 0.0
    %4594 = vmatpush1.msra.mxu0 %v4402
    %4595 = vmatprep.subr.mxu0 0.0
    %4596 = vmatpush1.msra.mxu0 %v4407
    %4597 = vmatprep.subr.mxu0 0.0
    %4598 = vmatpush1.msra.mxu0 %v4412
    %4599 = vmatprep.subr.mxu0 0.0
    %4600 = vmatpush1.msra.mxu0 %v4417
    %4601 = vmatprep.subr.mxu0 0.0
    %4602 = vmatpush1.msra.mxu0 %v4422
    %4603 = vmatprep.subr.mxu0 0.0
    %4604 = vmatpush1.msra.mxu0 %v4427
    %4605 = vmatprep.subr.mxu0 0.0
    %4606 = vmatpush1.msra.mxu0 %v4432
    %4607 = vmatprep.subr.mxu0 0.0
    %4608 = vmatpush1.msra.mxu0 0.0
    %4609 = vmatprep.subr.mxu0 0.0
    %4610 = vmatpush1.msra.mxu0 0.0
    %4611 = vmatprep.subr.mxu0 0.0
    %4612 = vmatpush1.msra.mxu0 0.0
    %4613 = vmatprep.subr.mxu0 0.0
    %4614 = vmatpush1.msra.mxu0 0.0
    %4615 = vmatprep.subr.mxu0 0.0
    %4616 = vmatpush1.msra.mxu0 0.0
    %4617 = vmatprep.subr.mxu0 0.0
    %4618 = vmatpush1.msra.mxu0 0.0
    %4619 = vmatprep.subr.mxu0 0.0
    %4620 = vmatpush1.msra.mxu0 0.0
    %4621 = vmatprep.subr.mxu0 0.0
    %4622 = vmatpush1.msra.mxu0 0.0
    %4623 = vmatprep.subr.mxu0 0.0
    %4624 = vmatpush1.msra.mxu0 0.0
    %4625 = vmatprep.subr.mxu0 0.0
    %4626 = vmatpush1.msra.mxu0 0.0
    %4627 = vmatprep.subr.mxu0 0.0
    %4628 = vmatpush1.msra.mxu0 0.0
    %4629 = vmatprep.subr.mxu0 0.0
    %4630 = vmatpush1.msra.mxu0 0.0
    %4631 = vmatprep.subr.mxu0 0.0
    %4632 = vmatpush1.msra.mxu0 0.0
    %4633 = vmatprep.subr.mxu0 0.0
    %4634 = vmatpush1.msra.mxu0 0.0
    %4635 = vmatprep.subr.mxu0 0.0
    %4636 = vmatpush1.msra.mxu0 0.0
    %4637 = vmatprep.subr.mxu0 0.0
    %4638 = vmatpush1.msra.mxu0 0.0
    %4639 = vmatprep.mubr.f32.mxu0 0.0
    %4640 = vmatmul.mubr.f32.gmra.mrb[0].mxu0 %v4326
    %v4641 = vpop.f32.mrb[0].mxu0
    %v4642 = vadd.f32 0.0, %v4641
    %v4643 = vpop.f32.mrb[0].mxu0
    %4644 = vdwg.mxu0
    %v4650 = vcombine.low %v4500, %v4502
    %v4651 = vcombine.low %v4571, %v4573
    %v4653 = vunpack.c.l.s4 1966171168
    %v4654 = vunpack.c.0.s8 %v4653
    %v4655 = vlaneseq
    %v4656 = vshrl.u32 %v4655, 7
    %v4657 = vsub.s32 %v4654, %v4656
    %v4658 = vrot.slane %v4650, %v4657
    %v4660 = vunpack.c.l.s4 1966171168
    %v4661 = vunpack.c.0.s8 %v4660
    %v4662 = vlaneseq
    %v4663 = vshrl.u32 %v4662, 7
    %v4664 = vsub.s32 %v4661, %v4663
    %v4665 = vrot.slane %v4651, %v4664
    %v4667 = vunpack.c.l.s4 1966171168
    %v4668 = vunpack.c.0.s8 %v4667
    %v4669 = vlaneseq
    %v4670 = vshrl.u32 %v4669, 7
    %v4671 = vsub.s32 %v4668, %v4670
    %v4672 = vrot.slane %v4642, %v4671
    %v4673 = vcombine.low %v4658, %v4665
    %v4675 = vunpack.c.l.s4 1966171168
    %v4676 = vunpack.c.0.s8 %v4675
    %v4677 = vlaneseq
    %v4678 = vshrl.u32 %v4677, 7
    %v4679 = vsub.s32 %v4676, %v4678
    %v4680 = vrot.slane %v4673, %v4679
    %v4682 = vunpack.c.l.s4 1966171168
    %v4683 = vunpack.c.0.s8 %v4682
    %v4684 = vlaneseq
    %v4685 = vshrl.u32 %v4684, 7
    %v4686 = vsub.s32 %v4683, %v4685
    %v4687 = vrot.slane %v4672, %v4686
    %v4688 = vcombine.low %v4680, %v4687
    %v4690 = vadd.f32 %v4352, %v4688
    %s4691 = scalar_lea.vmem [#allocation6], %s4321
    %v4692 = vld [vmem:[%s4691] sm:$0x1]
    %s4693 = scalar_lea.vmem [#allocation8], %s4329
    %v4694 = vld [vmem:[%s4693] sm:$0x1]
    %v4695 = vadd.f32 %v4692, %v4694
    %v4696 = vxor.u32 %v4690, 2147483648
    %v4697 = vmul.f32 %v4696, 1.442695
    %v4698 = vpow.pop %v4697
    %v4699 = vadd.f32 %v4698, 1.0
    %v4700 = vrcp.pop %v4699
    %v4701 = vmul.f32 1.0, %v4700
    %v4703 = vrot.slane %v4690, 1
    %v4705 = vxor.u32 %v4703, 2147483648
    %v4706 = vmul.f32 %v4705, 1.442695
    %v4707 = vpow.pop %v4706
    %v4708 = vadd.f32 %v4707, 1.0
    %v4709 = vrcp.pop %v4708
    %v4710 = vmul.f32 1.0, %v4709
    %v4711 = vrot.slane %v4690, 2
    %v4713 = vxor.u32 %v4711, 2147483648
    %v4714 = vmul.f32 %v4713, 1.442695
    %v4715 = vpow.pop %v4714
    %v4716 = vadd.f32 %v4715, 1.0
    %v4717 = vrcp.pop %v4716
    %v4718 = vmul.f32 1.0, %v4717
    %v4719 = vrot.slane %v4690, 3
    %v4721 = vtanh.pop %v4719
    %v4722 = vrot.slane %v4690, 4
    %v4724 = vxor.u32 %v4722, 2147483648
    %v4725 = vmul.f32 %v4724, 1.442695
    %v4726 = vpow.pop %v4725
    %v4727 = vadd.f32 %v4726, 1.0
    %v4728 = vrcp.pop %v4727
    %v4729 = vmul.f32 1.0, %v4728
    %v4730 = vmul.f32 %v4701, %v4721
    %v4731 = vmul.f32 %v4718, %v4328
    %v4732 = vadd.f32 %v4730, %v4731
    %v4733 = vtanh.pop %v4732
    %v4734 = vmul.f32 %v4710, %v4733
    %v4735 = vmul.f32 %v4729, %v4734
    %v4736 = vsub.f32 1.0, %v4729
    %v4737 = vmul.f32 %v4736, %v4695
    %v4738 = vadd.f32 %v4735, %v4737
    %v4739 = vld [vmem:[#allocation26] sm:$0xff]
    %v4740 = vld [vmem:[#allocation26 + $0x8] sm:$0xff]
    %v4741 = vld [vmem:[#allocation26 + $0x10] sm:$0xff]
    %v4742 = vld [vmem:[#allocation26 + $0x18] sm:$0xff]
    %v4743 = vld [vmem:[#allocation26 + $0x20] sm:$0xff]
    %v4744 = vld [vmem:[#allocation26 + $0x28] sm:$0xff]
    %v4745 = vld [vmem:[#allocation26 + $0x30] sm:$0xff]
    %v4746 = vld [vmem:[#allocation26 + $0x38] sm:$0xff]
    %v4747 = vld [vmem:[#allocation26 + $0x40] sm:$0xff]
    %v4748 = vld [vmem:[#allocation26 + $0x48] sm:$0xff]
    %v4749 = vld [vmem:[#allocation26 + $0x50] sm:$0xff]
    %v4750 = vld [vmem:[#allocation26 + $0x58] sm:$0xff]
    %v4751 = vld [vmem:[#allocation26 + $0x60] sm:$0xff]
    %v4752 = vld [vmem:[#allocation26 + $0x68] sm:$0xff]
    %v4753 = vld [vmem:[#allocation26 + $0x70] sm:$0xff]
    %v4754 = vld [vmem:[#allocation26 + $0x78] sm:$0xff]
    %v4755 = vld [vmem:[%s12] sm:$0x1]
    %4756 = vmatprep.subr.mxu0 0.0
    %4757 = vmatpush1.msra.mxu0 %v4739
    %4758 = vmatprep.subr.mxu0 0.0
    %4759 = vmatpush1.msra.mxu0 %v4740
    %4760 = vmatprep.subr.mxu0 0.0
    %4761 = vmatpush1.msra.mxu0 %v4741
    %4762 = vmatprep.subr.mxu0 0.0
    %4763 = vmatpush1.msra.mxu0 %v4742
    %4764 = vmatprep.subr.mxu0 0.0
    %4765 = vmatpush1.msra.mxu0 %v4743
    %4766 = vmatprep.subr.mxu0 0.0
    %4767 = vmatpush1.msra.mxu0 %v4744
    %4768 = vmatprep.subr.mxu0 0.0
    %4769 = vmatpush1.msra.mxu0 %v4745
    %4770 = vmatprep.subr.mxu0 0.0
    %4771 = vmatpush1.msra.mxu0 %v4746
    %4772 = vmatprep.subr.mxu0 0.0
    %4773 = vmatpush1.msra.mxu0 %v4747
    %4774 = vmatprep.subr.mxu0 0.0
    %4775 = vmatpush1.msra.mxu0 %v4748
    %4776 = vmatprep.subr.mxu0 0.0
    %4777 = vmatpush1.msra.mxu0 %v4749
    %4778 = vmatprep.subr.mxu0 0.0
    %4779 = vmatpush1.msra.mxu0 %v4750
    %4780 = vmatprep.subr.mxu0 0.0
    %4781 = vmatpush1.msra.mxu0 %v4751
    %4782 = vmatprep.subr.mxu0 0.0
    %4783 = vmatpush1.msra.mxu0 %v4752
    %4784 = vmatprep.subr.mxu0 0.0
    %4785 = vmatpush1.msra.mxu0 %v4753
    %4786 = vmatprep.subr.mxu0 0.0
    %4787 = vmatpush1.msra.mxu0 %v4754
    %4788 = vmatprep.subr.mxu0 0.0
    %4789 = vmatpush1.msra.mxu0 0.0
    %4790 = vmatprep.subr.mxu0 0.0
    %4791 = vmatpush1.msra.mxu0 0.0
    %4792 = vmatprep.subr.mxu0 0.0
    %4793 = vmatpush1.msra.mxu0 0.0
    %4794 = vmatprep.subr.mxu0 0.0
    %4795 = vmatpush1.msra.mxu0 0.0
    %4796 = vmatprep.subr.mxu0 0.0
    %4797 = vmatpush1.msra.mxu0 0.0
    %4798 = vmatprep.subr.mxu0 0.0
    %4799 = vmatpush1.msra.mxu0 0.0
    %4800 = vmatprep.subr.mxu0 0.0
    %4801 = vmatpush1.msra.mxu0 0.0
    %4802 = vmatprep.subr.mxu0 0.0
    %4803 = vmatpush1.msra.mxu0 0.0
    %4804 = vmatprep.subr.mxu0 0.0
    %4805 = vmatpush1.msra.mxu0 0.0
    %4806 = vmatprep.subr.mxu0 0.0
    %4807 = vmatpush1.msra.mxu0 0.0
    %4808 = vmatprep.subr.mxu0 0.0
    %4809 = vmatpush1.msra.mxu0 0.0
    %4810 = vmatprep.subr.mxu0 0.0
    %4811 = vmatpush1.msra.mxu0 0.0
    %4812 = vmatprep.subr.mxu0 0.0
    %4813 = vmatpush1.msra.mxu0 0.0
    %4814 = vmatprep.subr.mxu0 0.0
    %4815 = vmatpush1.msra.mxu0 0.0
    %4816 = vmatprep.subr.mxu0 0.0
    %4817 = vmatpush1.msra.mxu0 0.0
    %4818 = vmatprep.subr.mxu0 0.0
    %4819 = vmatpush1.msra.mxu0 0.0
    %4820 = vmatprep.mubr.f32.mxu0 0.0
    %4821 = vmatmul.mubr.f32.gmra.mrb[0].mxu0 %v4738
    %v4822 = vpop.f32.mrb[0].mxu0
    %v4823 = vadd.f32 %v4755, %v4822
    %v4824 = vpop.f32.mrb[0].mxu0
    %4825 = vdwg.mxu0
    %s4826 = scalar_lea.vmem [#allocation28], %s4321
    %4827 = vst [vmem:[%s4826] sm:$0x1] %v4823
    %v4828 = vadd.f32 %v4823, %v1049
    %v4829 = vsel %vm1558, %v4828, -inf
    %4830 = vmax.xlane.f32.xlu0 %v4829
    %v4831 = vpop.xlane.xlu0 %4830
    %vm4832 = vcmp.ge.f32.partialorder %v4828, %v4831
    %v4833 = vsel %vm4832, %v1045, 128
    %v4834 = vsel %vm1558, %v4833, 2147483647
    %v4835 = vand.u32 %v4834, 65535
    %v4836 = vshra.s32 %v4834, 16
    %v4837 = vcvt.s32.f32 %v4835
    %v4838 = vcvt.s32.f32 %v4836
    %4839 = vmin.xlane.f32.xlu0 %v4838
    %v4840 = vpop.xlane.xlu0 %4839
    %vm4841 = vcmp.eq.f32.partialorder %v4838, %v4840
    %v4842 = vsel %vm4841, %v4837, inf
    %4843 = vmin.xlane.f32.xlu0 %v4842
    %v4844 = vpop.xlane.xlu0 %4843
    %v4845 = vcvt.f32.s32 %v4844
    %v4846 = vcvt.f32.s32 %v4840
    %v4847 = vshll.u32 %v4846, 16
    %v4848 = vadd.s32 %v4847, %v4845
    %v4849 = vrot.slane %v4848, 4
    %vm4850 = vcmp.lt.s32.totalorder %v4848, %v4849
    %v4851 = vsel %vm4850, %v4848, %v4849
    %v4852 = vrot.slane %v4851, 2
    %vm4853 = vcmp.lt.s32.totalorder %v4851, %v4852
    %v4854 = vsel %vm4853, %v4851, %v4852
    %v4855 = vrot.slane %v4854, 1
    %vm4856 = vcmp.lt.s32.totalorder %v4854, %v4855
    %v4857 = vsel %vm4856, %v4854, %v4855
    %s4858 = vtos %v4857
    %s4859 = scalar_lea.smem [#allocation29], %s4321
    %4860 = sst [smem:[%s4859]] %s4858
    %s4861 = sadd.s32 %s4858, 1
    %s4862 = scalar_lea.smem [#allocation4], 6
    %4863 = sst [smem:[%s4862]] %s4861
    %4864 = vst [vmem:[#allocation2 + $0x6] sm:$0x1] %v4738
    %4865 = vst [vmem:[#allocation3 + $0x6] sm:$0x1] %v4732
    // Predicated region
    $region94: #{tpu_custom_call.1} parent=1 // pred_check
      _
    $region95: #{tpu_custom_call.1} parent=1 // pred_check_branch
      %4867 = sbr.rel (0) target = $region97
    $region96: #{tpu_custom_call.1} parent=1 // pred_region
      %s4869 = ssub.s32 128, 128
      %4870 = vsyncadd [#allocation11], %s4869
      %s4872 = sshll.u32 [#allocation28], 4
      %s4873 = int_to_ptr.vmem [resolvable:$true] %s4872
      %4875 = dma.vmem_to_hbm [thread:$0]  %s4873, 128, %s13, [#allocation11]
    $region97: #{tpu_custom_call.1} parent=1 // pred_fallthru
      _
    // Predicated region
    $region98: #{tpu_custom_call.1} parent=1 // pred_check
      _
    $region99: #{tpu_custom_call.1} parent=1 // pred_check_branch
      %4877 = sbr.rel (0) target = $region101
    $region100: #{tpu_custom_call.1} parent=1 // pred_region
      %s4879 = ssub.s32 16, 16
      %4880 = vsyncadd [#allocation13], %s4879
      %4883 = dma.smem_to_hbm [#allocation29], 16, %s14, [#allocation13]
    $region101: #{tpu_custom_call.1} parent=1 // pred_fallthru
      _
    // Predicated region
    $region102: #{tpu_custom_call.1} parent=1 // pred_check
      _
    $region103: #{tpu_custom_call.1} parent=1 // pred_check_branch
      %4885 = sbr.rel (0) target = $region105
    $region104: #{tpu_custom_call.1} parent=1 // pred_region
      %4886 = dma.done [#allocation11], 128
    $region105: #{tpu_custom_call.1} parent=1 // pred_fallthru
      _
    // Predicated region
    $region106: #{tpu_custom_call.1} parent=1 // pred_check
      _
    $region107: #{tpu_custom_call.1} parent=1 // pred_check_branch
      %4888 = sbr.rel (0) target = $region109
    $region108: #{tpu_custom_call.1} parent=1 // pred_region
      %4889 = dma.done [#allocation13], 16
    $region109: #{tpu_custom_call.1} parent=1 // pred_fallthru
      _
    %4890 = sfence
    %4891 = vsyncpa [#allocation10], 1
    %4892 = vsyncpa [#allocation18], 1
    %4893 = vsyncpa [#allocation21], 1
    %4894 = vsyncpa [#allocation24], 1
    %4895 = vsyncpa [#allocation27], 1
    %4896 = vsyncpa [#allocation11], 1
    %4897 = vsyncpa [#allocation12], 1
    %4898 = vsyncpa [#allocation13], 1
    %4899 = vsyncpa [#allocation14], 1

</llo_original>
